<compile_context>
chip_gen: v7x
topology: tpu7x:2x2x1
jax: 0.10.0
libtpu: 0.0.40
codegen_flags: <defaults>
</compile_context>

<pallas_src>
import jax
import jax.numpy as jnp
from jax.experimental import pallas as pl
from jax.experimental.pallas import tpu as pltpu


def _sine_kernel(factor_ref, x_ref, o_ref):
    # Elementwise hot path on the whole VMEM tile: sin(factor * x).
    # factor lives in SMEM -> one scalar load per tile, no recompiles when
    # the factor changes between layers.
    f = factor_ref[0]
    x = x_ref[...].astype(jnp.float32)
    o_ref[...] = jnp.sin(f * x).astype(o_ref.dtype)


# Elements per block (~4 MiB at f32): near the HBM roofline on v5e/v6e/v7x
# while fitting the 32 MiB scoped-VMEM limit with double-buffered in + out.
_BLOCK_ELEMS = 1 << 20
# Below this, pallas_call setup overhead dominates; use fused XLA sin.
_MIN_PALLAS_ELEMS = 1 << 16


def sine(x: jax.Array, factor: float = 1.0) -> jax.Array:
    """Apply sin(factor * x) elementwise via a Pallas TPU kernel."""
    orig_shape = x.shape
    orig_dtype = x.dtype
    total = x.size

    # Small inputs: fixed kernel-launch/DMA overhead dominates -> fused XLA.
    if total < _MIN_PALLAS_ELEMS:
        return jnp.sin(jnp.asarray(factor, dtype=jnp.float32)
                       * x.astype(jnp.float32)).astype(orig_dtype)

    # Pick the widest lane-dense column count that divides the element count
    # exactly, so the wrapper is a free reshape (no pad, no slice).
    cols = 0
    for cand in (1024, 512, 256, 128):
        if total % cand == 0:
            cols = cand
            break
    if cols == 0:
        # Element count is not a multiple of 128: a single fused jnp.sin pass
        # is already at the HBM roofline and beats any pad/slice plumbing.
        return jnp.sin(jnp.asarray(factor, dtype=jnp.float32)
                       * x.astype(jnp.float32)).astype(orig_dtype)

    rows = total // cols
    x2d = jnp.ravel(x).reshape(rows, cols)  # reshape-only, no data movement

    # Target ~4 MiB tiles regardless of cols; clamp to the array extent.
    block_rows = max(1, min(_BLOCK_ELEMS // cols, rows))
    if block_rows < rows:
        # Non-full blocks must have a sublane-aligned (multiple-of-8) height.
        block_rows = max(8, (block_rows // 8) * 8)
    # Guarantee >= 2 grid steps when possible so the "parallel" axis can be
    # sharded across both v7x TensorCores (neutral on single-TC chips).
    if pl.cdiv(rows, block_rows) < 2 and rows >= 16:
        block_rows = ((((rows + 1) // 2) + 7) // 8) * 8

    grid = (pl.cdiv(rows, block_rows),)
    factor_arr = jnp.asarray([factor], dtype=jnp.float32)

    out2d = pl.pallas_call(
        _sine_kernel,
        out_shape=jax.ShapeDtypeStruct((rows, cols), orig_dtype),
        grid=grid,
        in_specs=[
            pl.BlockSpec(memory_space=pltpu.MemorySpace.SMEM),   # factor
            pl.BlockSpec((block_rows, cols), lambda i: (i, 0)),  # x tile
        ],
        out_specs=pl.BlockSpec((block_rows, cols), lambda i: (i, 0)),
        compiler_params=pltpu.CompilerParams(
            dimension_semantics=("parallel",),
            vmem_limit_bytes=32 * 1024 * 1024,
        ),
    )(factor_arr, x2d)

    return out2d.reshape(orig_shape)


class Sine:
    """JAX/Pallas equivalent of the PyTorch Sine module (no parameters)."""

    def __init__(self, factor: float = 1.0):
        self.factor = float(factor)

    def __call__(self, x: jax.Array) -> jax.Array:
        return sine(x, self.factor)

    def __repr__(self):
        return f"Sine(factor={self.factor})"


if __name__ == "__main__":
    key = jax.random.PRNGKey(0)
    factor = 30.0  # typical SIREN first-layer omega_0
    module = Sine(factor=factor)

    # Conv-activation-style input large enough to exercise the Pallas path
    # (2*4*128*128 = 131072 elements -> (128, 1024) slab, 2 row-blocks).
    x_big = jax.random.normal(key, (2, 4, 128, 128), dtype=jnp.float32)
    out_big = jax.block_until_ready(module(x_big))
    ref_big = jnp.sin(factor * x_big)
    assert out_big.shape == x_big.shape and out_big.dtype == x_big.dtype
    assert jnp.allclose(out_big, ref_big, atol=1e-4, rtol=1e-5)

    # Tiny activation exercises the small-input short-circuit path.
    x_small = jax.random.normal(jax.random.PRNGKey(0), (2, 4, 16, 16),
                                dtype=jnp.float32)
    out_small = jax.block_until_ready(module(x_small))
    ref_small = jnp.sin(factor * x_small)
    assert out_small.shape == x_small.shape and out_small.dtype == x_small.dtype
    assert jnp.allclose(out_small, ref_small, atol=1e-4, rtol=1e-5)

    print("KERNEL_OK")
</pallas_src>

<mosaic_0001>
module attributes {stable_mosaic.version = 11 : i64} {
  func.func @_sine_kernel(%arg0: i32, %arg1: memref<1xf32, #tpu.memory_space<smem>>, %arg2: memref<64x1024xf32, #tpu.memory_space<vmem>>, %arg3: memref<64x1024xf32, #tpu.memory_space<vmem>>) attributes {dimension_semantics = [#tpu.dimension_semantics<parallel>], iteration_bounds = array<i64: 2>, scalar_prefetch = 0 : i64, scratch_operands = 0 : i64, tpu.core_type = #tpu.core_type<tc>, window_params = [{transform_indices = @transform_0, window_bounds = array<i64: 1>}, {transform_indices = @transform_1, window_bounds = array<i64: 64, 1024>}, {transform_indices = @transform_2, window_bounds = array<i64: 64, 1024>}]} {
    %c0 = arith.constant 0 : index
    %0 = memref.load %arg1[%c0] : memref<1xf32, #tpu.memory_space<smem>>
    %c0_0 = arith.constant 0 : index
    %c0_1 = arith.constant 0 : index
    %1 = vector.load %arg2[%c0_0, %c0_1] : memref<64x1024xf32, #tpu.memory_space<vmem>>, vector<64x1024xf32>
    %2 = vector.broadcast %0 : f32 to vector<64x1024xf32>
    %3 = arith.mulf %2, %1 : vector<64x1024xf32>
    %4 = math.sin %3 : vector<64x1024xf32>
    %c0_2 = arith.constant 0 : index
    %c0_3 = arith.constant 0 : index
    %5 = vector.load %arg3[%c0_2, %c0_3] : memref<64x1024xf32, #tpu.memory_space<vmem>>, vector<64x1024xf32>
    tpu.vector_store %arg3[%c0_2, %c0_3], %4 {strides = array<i32>} : memref<64x1024xf32, #tpu.memory_space<vmem>>, vector<64x1024xf32>,
    return
  }
  func.func @transform_0(%arg0: i32) -> i32 {
    %c0_i32 = arith.constant 0 : i32
    %c0_i32_0 = arith.constant 0 : i32
    return %c0_i32 : i32
  }
  func.func @transform_1(%arg0: i32) -> (i32, i32) {
    %c0_i32 = arith.constant 0 : i32
    %c0_i32_0 = arith.constant 0 : i32
    return %arg0, %c0_i32 : i32, i32
  }
  func.func @transform_2(%arg0: i32) -> (i32, i32) {
    %c0_i32 = arith.constant 0 : i32
    %c0_i32_0 = arith.constant 0 : i32
    return %arg0, %c0_i32 : i32, i32
  }
}

</mosaic_0001>

<llo_original>
// kernel: tpu_custom_call.1
$region0: #{tpu_custom_call.1}
  #allocation0 [shape = 'u32[]', space=smem, size = 0x4, offset = 0x4, fixed_abs, tag = 'smem constant byte address 0x4 - core index']
  #allocation1 [shape = 'u32[144,128]{1,0:T(1,128)}', space=vmem, size = 0x12000, scoped, tag = 'internal scratch']
  #allocation2 [shape = 'f32[1]{0:T(128)S(6)}', space=smem, size = 0x200, scoped, tag = 'scoped memory for tpu_custom_call.1']
  %s0 = inlined_call_operand.<no memory space> [shape: f32[1], index: 0, kind: input, shape index: {}]
  %s1 = inlined_call_operand.hbm [shape: f32[128,1024], index: 1, kind: input, shape index: {}]
  %s2 = inlined_call_operand.hbm [shape: f32[128,1024], index: 2, kind: output, shape index: {}]
  %s3 = sld [smem:[#allocation0]]
  $region45: #{tpu_custom_call.1} parent=0
    _
  %s5 = ssub.s32 1, %s3
  %s6 = scalar_select 0, %s5, %s3
  %7 = sst [smem:[#allocation2]] %s0
  $region1: #{tpu_custom_call.1} parent=0
    #allocation3 [shape = 'u8[524288]{0}', space=vmem, size = 0x80000, scoped, tag = 'input window, operand 1']
    #allocation4 [shape = 's32[2]{0}', space=sflag, size = 0x8, scoped, tag = 'scoped memory for tpu_custom_call.1']
    #allocation5 [shape = 's32[2]{0}', space=sflag, size = 0x8, scoped, tag = 'scoped memory for tpu_custom_call.1']
    #allocation6 [shape = 'u8[524288]{0}', space=vmem, size = 0x80000, scoped, tag = 'output window, operand 0']
    %8 = vsyncpa [#allocation4], 0
    %s9 = scalar_lea.sflag [#allocation4], 1
    %10 = vsyncpa %s9, 0
    %11 = vsyncpa [#allocation5], 0
    %s12 = scalar_lea.sflag [#allocation5], 1
    %13 = vsyncpa %s12, 0
    loop: start=0, step=1, limit=4
    $region2: #{tpu_custom_call.1} parent=1 // loop_pre_header
      _
    $region3: #{tpu_custom_call.1} parent=1 // loop_header
      %s15 = sphi 0, %s19
      %p16 = scmp.ge.s32.totalorder %s15, 4
      %s23 = sphi 0, %s23
      %s25 = sphi 0, %s23
      %s26 = sphi 0, %s25
      %s40 = sphi 0, %s26
      %s46 = sphi 0, %s48
      %s49 = sphi 0, %s46
      %s50 = sphi 0, %s49
      %s66 = sphi 0, %s50
      %s72 = sphi 0, %s74
      %s75 = sphi 0, %s72
      %s76 = sphi 0, %s75
      %s92 = sphi 0, %s76
    $region4: #{tpu_custom_call.1} parent=1 // loop_header_branch
      %18 = sbr.rel (%p16) target = $region8
    $region5: #{tpu_custom_call.1} parent=1 // loop_body
      %s20 = ssub.s32 %s15, 1
      %s21 = ssub.s32 %s15, 2
      %s22 = sadd.s32 %s15, 1
      %s24 = sadd.s32 %s23, 1
      %p27 = scmp.eq.s32.totalorder %s15, 1
      %p28 = scmp.ne.s32.totalorder %s23, %s25
      %p29 = scmp.eq.s32.totalorder %s15, 0
      %p30 = por %p28, %p29
      %p31 = scmp.ne.s32.totalorder %s23, %s25
      %p32 = scmp.eq.s32.totalorder %s20, 1
      %p33 = por %p31, %p32
      %p34 = scmp.ne.s32.totalorder %s25, %s26
      %p35 = scmp.eq.s32.totalorder %s20, 0
      %p36 = por %p34, %p35
      %p37 = scmp.ne.s32.totalorder %s25, %s26
      %p38 = scmp.eq.s32.totalorder %s21, 1
      %p39 = por %p37, %p38
      %p41 = scmp.ne.s32.totalorder %s26, %s40
      %p42 = scmp.eq.s32.totalorder %s21, 0
      %p43 = por %p41, %p42
      %s44 = ssub.s32 %s15, %s22
      %p45 = scmp.eq.s32.totalorder %s44, 0
      %s47 = sadd.s32 %s46, 1
      %s48 = scalar_select %p45, %s46, %s47
      %p51 = pneg %p45
      %p52 = scmp.eq.s32.totalorder %s15, 1
      %p53 = por %p51, %p52
      %p54 = scmp.ne.s32.totalorder %s46, %s49
      %p55 = scmp.eq.s32.totalorder %s15, 0
      %p56 = por %p54, %p55
      %p57 = scmp.ne.s32.totalorder %s46, %s49
      %p58 = scmp.eq.s32.totalorder %s20, 1
      %p59 = por %p57, %p58
      %p60 = scmp.ne.s32.totalorder %s49, %s50
      %p61 = scmp.eq.s32.totalorder %s20, 0
      %p62 = por %p60, %p61
      %p63 = scmp.ne.s32.totalorder %s49, %s50
      %p64 = scmp.eq.s32.totalorder %s21, 1
      %p65 = por %p63, %p64
      %p67 = scmp.ne.s32.totalorder %s50, %s66
      %p68 = scmp.eq.s32.totalorder %s21, 0
      %p69 = por %p67, %p68
      %s70 = ssub.s32 %s15, %s22
      %p71 = scmp.eq.s32.totalorder %s70, 0
      %s73 = sadd.s32 %s72, 1
      %s74 = scalar_select %p71, %s72, %s73
      %p77 = pneg %p71
      %p78 = scmp.eq.s32.totalorder %s15, 1
      %p79 = por %p77, %p78
      %p80 = scmp.ne.s32.totalorder %s72, %s75
      %p81 = scmp.eq.s32.totalorder %s15, 0
      %p82 = por %p80, %p81
      %p83 = scmp.ne.s32.totalorder %s72, %s75
      %p84 = scmp.eq.s32.totalorder %s20, 1
      %p85 = por %p83, %p84
      %p86 = scmp.ne.s32.totalorder %s75, %s76
      %p87 = scmp.eq.s32.totalorder %s20, 0
      %p88 = por %p86, %p87
      %p89 = scmp.ne.s32.totalorder %s75, %s76
      %p90 = scmp.eq.s32.totalorder %s21, 1
      %p91 = por %p89, %p90
      %p93 = scmp.ne.s32.totalorder %s76, %s92
      %p94 = scmp.eq.s32.totalorder %s21, 0
      %p95 = por %p93, %p94
      %p96 = scmp.le.s32.totalorder 1, %s15
      %p97 = scmp.lt.s32.totalorder %s15, 3
      %p98 = pnand %p96, %p97
      %p99 = pneg %p98
      // Predicated region
      $region9: #{tpu_custom_call.1} parent=5 // pred_check
        _
      $region10: #{tpu_custom_call.1} parent=5 // pred_check_branch
        %101 = sbr.rel (%p98) target = $region12
      $region11: #{tpu_custom_call.1} parent=5 // pred_region
        %s102 = ssub.s32 %s15, 1
        // Predicated region
        $region13: #{tpu_custom_call.1} parent=11 // pred_check
          %p103 = pneg %p36
        $region14: #{tpu_custom_call.1} parent=11 // pred_check_branch
          %105 = sbr.rel (%p103) target = $region16
        $region15: #{tpu_custom_call.1} parent=11 // pred_region
          _
        $region16: #{tpu_custom_call.1} parent=11 // pred_fallthru
          _
      $region12: #{tpu_custom_call.1} parent=5 // pred_fallthru
        _
      %p106 = scmp.lt.s32.totalorder %s15, 2
      // Predicated region
      $region17: #{tpu_custom_call.1} parent=5 // pred_check
        %p107 = pneg %p106
      $region18: #{tpu_custom_call.1} parent=5 // pred_check_branch
        %109 = sbr.rel (%p107) target = $region20
      $region19: #{tpu_custom_call.1} parent=5 // pred_region
        // Predicated region
        $region21: #{tpu_custom_call.1} parent=19 // pred_check
          %p110 = pneg %p56
        $region22: #{tpu_custom_call.1} parent=19 // pred_check_branch
          %112 = sbr.rel (%p110) target = $region24
        $region23: #{tpu_custom_call.1} parent=19 // pred_region
          %s113 = sand.u32 %s46, 1
          %s114 = scalar_lea.sflag [#allocation4], %s113
          %s115 = sand.u32 %s46, 1
          %s116 = smul.addr %s115, 512
          %s117 = scalar_lea.vmem [#allocation3], %s116
          %s118 = smul.u32 8, %s15
          %s120 = ssub.s32 8192, 8192
          %121 = vsyncadd %s114, %s120
          %s122 = smul.addr %s118, 8
          %s123 = smul.addr %s122, 128
          %s124 = scalar_lea.hbm %s1, %s123
          %s125 = sshll.u32 %s117, 4
          %s126 = int_to_ptr.vmem [resolvable:$true] %s125
          %131 = dma.hbm_to_vmem [thread:$0]  %s124, 8192, %s126, %s114, 1024, 1024, 64
        $region24: #{tpu_custom_call.1} parent=19 // pred_fallthru
          _
      $region20: #{tpu_custom_call.1} parent=5 // pred_fallthru
        _
      %p132 = scmp.le.s32.totalorder 1, %s15
      %p133 = scmp.lt.s32.totalorder %s15, 3
      %p134 = pnand %p132, %p133
      %p135 = pneg %p134
      // Predicated region
      $region25: #{tpu_custom_call.1} parent=5 // pred_check
        _
      $region26: #{tpu_custom_call.1} parent=5 // pred_check_branch
        %137 = sbr.rel (%p134) target = $region28
      $region27: #{tpu_custom_call.1} parent=5 // pred_region
        %s138 = ssub.s32 %s15, 1
        %s139 = sand.u32 %s49, 1
        %s140 = scalar_lea.sflag [#allocation4], %s139
        %s141 = sand.u32 %s49, 1
        %s142 = smul.addr %s141, 512
        %s143 = scalar_lea.vmem [#allocation3], %s142
        // Predicated region
        $region29: #{tpu_custom_call.1} parent=27 // pred_check
          %p144 = pneg %p62
        $region30: #{tpu_custom_call.1} parent=27 // pred_check_branch
          %146 = sbr.rel (%p144) target = $region32
        $region31: #{tpu_custom_call.1} parent=27 // pred_region
          %147 = dma.done %s140, 8192
        $region32: #{tpu_custom_call.1} parent=27 // pred_fallthru
          _
        %p148 = pneg %p36
        %p149 = pneg %p33
        %s150 = sand.u32 %s49, 1
        %s151 = scalar_lea.sflag [#allocation4], %s150
        %s152 = sand.u32 %s49, 1
        %s153 = smul.addr %s152, 512
        %s154 = scalar_lea.vmem [#allocation3], %s153
        %p155 = pneg %p62
        %p156 = pneg %p59
        %p157 = pneg %p88
        %p158 = pneg %p85
        %s159 = sand.u32 %s75, 1
        %s160 = scalar_lea.sflag [#allocation5], %s159
        %s161 = sand.u32 %s75, 1
        %s162 = smul.addr %s161, 512
        %s163 = scalar_lea.vmem [#allocation6], %s162
        %s164 = smul.u32 8, %s20
        %s165 = smul.u32 8, %s20
        %s166 = sld [smem:[#allocation2]]
        %v167 = vld [vmem:[%s143] sm:$0xff]
        %v168 = vld [vmem:[%s143 + $0x8] sm:$0xff]
        %v169 = vld [vmem:[%s143 + $0x10] sm:$0xff]
        %v170 = vld [vmem:[%s143 + $0x18] sm:$0xff]
        %v171 = vld [vmem:[%s143 + $0x20] sm:$0xff]
        %v172 = vld [vmem:[%s143 + $0x28] sm:$0xff]
        %v173 = vld [vmem:[%s143 + $0x30] sm:$0xff]
        %v174 = vld [vmem:[%s143 + $0x38] sm:$0xff]
        %v175 = vld [vmem:[%s143 + $0x40] sm:$0xff]
        %v176 = vld [vmem:[%s143 + $0x48] sm:$0xff]
        %v177 = vld [vmem:[%s143 + $0x50] sm:$0xff]
        %v178 = vld [vmem:[%s143 + $0x58] sm:$0xff]
        %v179 = vld [vmem:[%s143 + $0x60] sm:$0xff]
        %v180 = vld [vmem:[%s143 + $0x68] sm:$0xff]
        %v181 = vld [vmem:[%s143 + $0x70] sm:$0xff]
        %v182 = vld [vmem:[%s143 + $0x78] sm:$0xff]
        %v183 = vld [vmem:[%s143 + $0x80] sm:$0xff]
        %v184 = vld [vmem:[%s143 + $0x88] sm:$0xff]
        %v185 = vld [vmem:[%s143 + $0x90] sm:$0xff]
        %v186 = vld [vmem:[%s143 + $0x98] sm:$0xff]
        %v187 = vld [vmem:[%s143 + $0xa0] sm:$0xff]
        %v188 = vld [vmem:[%s143 + $0xa8] sm:$0xff]
        %v189 = vld [vmem:[%s143 + $0xb0] sm:$0xff]
        %v190 = vld [vmem:[%s143 + $0xb8] sm:$0xff]
        %v191 = vld [vmem:[%s143 + $0xc0] sm:$0xff]
        %v192 = vld [vmem:[%s143 + $0xc8] sm:$0xff]
        %v193 = vld [vmem:[%s143 + $0xd0] sm:$0xff]
        %v194 = vld [vmem:[%s143 + $0xd8] sm:$0xff]
        %v195 = vld [vmem:[%s143 + $0xe0] sm:$0xff]
        %v196 = vld [vmem:[%s143 + $0xe8] sm:$0xff]
        %v197 = vld [vmem:[%s143 + $0xf0] sm:$0xff]
        %v198 = vld [vmem:[%s143 + $0xf8] sm:$0xff]
        %v199 = vld [vmem:[%s143 + $0x100] sm:$0xff]
        %v200 = vld [vmem:[%s143 + $0x108] sm:$0xff]
        %v201 = vld [vmem:[%s143 + $0x110] sm:$0xff]
        %v202 = vld [vmem:[%s143 + $0x118] sm:$0xff]
        %v203 = vld [vmem:[%s143 + $0x120] sm:$0xff]
        %v204 = vld [vmem:[%s143 + $0x128] sm:$0xff]
        %v205 = vld [vmem:[%s143 + $0x130] sm:$0xff]
        %v206 = vld [vmem:[%s143 + $0x138] sm:$0xff]
        %v207 = vld [vmem:[%s143 + $0x140] sm:$0xff]
        %v208 = vld [vmem:[%s143 + $0x148] sm:$0xff]
        %v209 = vld [vmem:[%s143 + $0x150] sm:$0xff]
        %v210 = vld [vmem:[%s143 + $0x158] sm:$0xff]
        %v211 = vld [vmem:[%s143 + $0x160] sm:$0xff]
        %v212 = vld [vmem:[%s143 + $0x168] sm:$0xff]
        %v213 = vld [vmem:[%s143 + $0x170] sm:$0xff]
        %v214 = vld [vmem:[%s143 + $0x178] sm:$0xff]
        %v215 = vld [vmem:[%s143 + $0x180] sm:$0xff]
        %v216 = vld [vmem:[%s143 + $0x188] sm:$0xff]
        %v217 = vld [vmem:[%s143 + $0x190] sm:$0xff]
        %v218 = vld [vmem:[%s143 + $0x198] sm:$0xff]
        %v219 = vld [vmem:[%s143 + $0x1a0] sm:$0xff]
        %v220 = vld [vmem:[%s143 + $0x1a8] sm:$0xff]
        %v221 = vld [vmem:[%s143 + $0x1b0] sm:$0xff]
        %v222 = vld [vmem:[%s143 + $0x1b8] sm:$0xff]
        %v223 = vld [vmem:[%s143 + $0x1c0] sm:$0xff]
        %v224 = vld [vmem:[%s143 + $0x1c8] sm:$0xff]
        %v225 = vld [vmem:[%s143 + $0x1d0] sm:$0xff]
        %v226 = vld [vmem:[%s143 + $0x1d8] sm:$0xff]
        %v227 = vld [vmem:[%s143 + $0x1e0] sm:$0xff]
        %v228 = vld [vmem:[%s143 + $0x1e8] sm:$0xff]
        %v229 = vld [vmem:[%s143 + $0x1f0] sm:$0xff]
        %v230 = vld [vmem:[%s143 + $0x1f8] sm:$0xff]
        %v231 = vstv %s166
        %v232 = vmul.f32 %v231, %v167
        %v233 = vmul.f32 %v231, %v168
        %v234 = vmul.f32 %v231, %v169
        %v235 = vmul.f32 %v231, %v170
        %v236 = vmul.f32 %v231, %v171
        %v237 = vmul.f32 %v231, %v172
        %v238 = vmul.f32 %v231, %v173
        %v239 = vmul.f32 %v231, %v174
        %v240 = vmul.f32 %v231, %v175
        %v241 = vmul.f32 %v231, %v176
        %v242 = vmul.f32 %v231, %v177
        %v243 = vmul.f32 %v231, %v178
        %v244 = vmul.f32 %v231, %v179
        %v245 = vmul.f32 %v231, %v180
        %v246 = vmul.f32 %v231, %v181
        %v247 = vmul.f32 %v231, %v182
        %v248 = vmul.f32 %v231, %v183
        %v249 = vmul.f32 %v231, %v184
        %v250 = vmul.f32 %v231, %v185
        %v251 = vmul.f32 %v231, %v186
        %v252 = vmul.f32 %v231, %v187
        %v253 = vmul.f32 %v231, %v188
        %v254 = vmul.f32 %v231, %v189
        %v255 = vmul.f32 %v231, %v190
        %v256 = vmul.f32 %v231, %v191
        %v257 = vmul.f32 %v231, %v192
        %v258 = vmul.f32 %v231, %v193
        %v259 = vmul.f32 %v231, %v194
        %v260 = vmul.f32 %v231, %v195
        %v261 = vmul.f32 %v231, %v196
        %v262 = vmul.f32 %v231, %v197
        %v263 = vmul.f32 %v231, %v198
        %v264 = vmul.f32 %v231, %v199
        %v265 = vmul.f32 %v231, %v200
        %v266 = vmul.f32 %v231, %v201
        %v267 = vmul.f32 %v231, %v202
        %v268 = vmul.f32 %v231, %v203
        %v269 = vmul.f32 %v231, %v204
        %v270 = vmul.f32 %v231, %v205
        %v271 = vmul.f32 %v231, %v206
        %v272 = vmul.f32 %v231, %v207
        %v273 = vmul.f32 %v231, %v208
        %v274 = vmul.f32 %v231, %v209
        %v275 = vmul.f32 %v231, %v210
        %v276 = vmul.f32 %v231, %v211
        %v277 = vmul.f32 %v231, %v212
        %v278 = vmul.f32 %v231, %v213
        %v279 = vmul.f32 %v231, %v214
        %v280 = vmul.f32 %v231, %v215
        %v281 = vmul.f32 %v231, %v216
        %v282 = vmul.f32 %v231, %v217
        %v283 = vmul.f32 %v231, %v218
        %v284 = vmul.f32 %v231, %v219
        %v285 = vmul.f32 %v231, %v220
        %v286 = vmul.f32 %v231, %v221
        %v287 = vmul.f32 %v231, %v222
        %v288 = vmul.f32 %v231, %v223
        %v289 = vmul.f32 %v231, %v224
        %v290 = vmul.f32 %v231, %v225
        %v291 = vmul.f32 %v231, %v226
        %v292 = vmul.f32 %v231, %v227
        %v293 = vmul.f32 %v231, %v228
        %v294 = vmul.f32 %v231, %v229
        %v295 = vmul.f32 %v231, %v230
        %v296 = vand.u32 2147483647, %v232
        %vm297 = vcmp.le.f32.partialorder %v296, 0.7853982
        %vm298 = vcmp.lt.s32.totalorder %v232, 0
        %v299 = vand.u32 %v232, 2139095040
        %v300 = vshrl.u32 %v299, 23
        %v301 = vsub.s32 %v300, 127
        %v302 = vand.u32 2147483647, %v232
        %v303 = vand.u32 %v302, 8388607
        %v304 = vor.u32 %v303, 8388608
        %v305 = vsub.s32 0, %v304
        %v306 = vadd.s32 %v301, 1
        %vm307 = vcmp.gt.s32.totalorder %v306, 0
        %v308 = vsel %vm307, %v306, 0
        %v309 = vshrl.u32 %v308, 5
        %v310 = vand.u32 %v308, 31
        %v311 = vsub.s32 32, %v310
        %v312 = vshrl.u32 683565275, %v311
        %v313 = vshll.u32 683565275, %v310
        %v314 = vshrl.u32 2475754826, %v311
        %v315 = vor.u32 %v313, %v314
        %v316 = vshll.u32 2475754826, %v310
        %v317 = vshrl.u32 2131351028, %v311
        %v318 = vor.u32 %v316, %v317
        %v319 = vshll.u32 2131351028, %v310
        %v320 = vshrl.u32 2102212464, %v311
        %v321 = vor.u32 %v319, %v320
        %v322 = vshll.u32 2102212464, %v310
        %v323 = vshrl.u32 920167782, %v311
        %v324 = vor.u32 %v322, %v323
        %v325 = vshll.u32 920167782, %v310
        %v326 = vshrl.u32 1326507024, %v311
        %v327 = vor.u32 %v325, %v326
        %vm328 = vcmp.lt.s32.totalorder %v309, 1
        %vm329 = vcmp.lt.s32.totalorder %v309, 2
        %vm330 = vcmp.lt.s32.totalorder %v309, 3
        %vm331 = vcmp.lt.s32.totalorder %v309, 4
        %v332 = vsel %vm328, %v312, %v315
        %v333 = vsel %vm331, %v321, 2102212464
        %v334 = vsel %vm330, %v318, %v333
        %v335 = vsel %vm329, %v332, %v334
        %v336 = vsel %vm328, %v315, %v318
        %v337 = vsel %vm331, %v324, 920167782
        %v338 = vsel %vm330, %v321, %v337
        %v339 = vsel %vm329, %v336, %v338
        %v340 = vsel %vm328, %v318, %v321
        %v341 = vsel %vm331, %v327, 1326507024
        %v342 = vsel %vm330, %v324, %v341
        %v343 = vsel %vm329, %v340, %v342
        %v344 = vshll.u32 %v304, 8
        %v345 = vmul.u32.u64.compose %v344, %v343
        %v346 = vextract.low.u32 %v345
        %v347 = vextract.high.u32 %v345
        %v348 = vmul.u32.u64.compose %v344, %v339
        %v349 = vextract.low.u32 %v348
        %v350 = vextract.high.u32 %v348
        %v351 = vmul.u32 %v344, %v335
        %v352 = vadd.s32 %v347, %v349
        %vm353 = vc.u32 %v347, %v349
        %v354 = vadd.s32 %v350, 1
        %v355 = vsel %vm353, %v354, %v350
        %v356 = vadd.s32 %v351, %v355
        %v357 = vadd.s32 %v356, 536870912
        %v358 = vshrl.u32 %v357, 30
        %v359 = vshll.u32 %v358, 30
        %v360 = vsub.s32 %v356, %v359
        %vm361 = vcmp.lt.s32.totalorder %v360, 0
        %v362 = vsub.s32 0, %v360
        %v363 = vsel %vm361, %v362, %v360
        %v364 = vclz %v363
        %v365 = vsub.s32 %v364, 2
        %vm366 = vcmp.gt.s32.totalorder 0, %v365
        %v367 = vsel %vm366, 0, %v365
        %v368 = vsub.s32 32, %v367
        %v369 = vshll.u32 %v360, %v367
        %v370 = vshrl.u32 %v352, %v368
        %v371 = vor.u32 %v369, %v370
        %v372 = vsub.s32 4294967266, %v367
        %v373 = vadd.s32 %v372, 127
        %v374 = vshll.u32 %v373, 23
        %v375 = vor.u32 4788187, %v374
        %v376 = vand.u32 2147483647, %v375
        %v378 = vcvt.s32.f32 %v371
        %v379 = vmul.f32 %v378, %v376
        %v380 = vxor.u32 %v379, 2147483648
        %v381 = vsel %vm298, %v380, %v379
        %v382 = vsub.s32 4, %v358
        %v383 = vsel %vm298, %v382, %v358
        %v384 = vsel %vm297, %v232, %v381
        %v385 = vsel %vm297, 0, %v383
        %v386 = vcosq.f32.pop %v384
        %v387 = vsinq.f32.pop %v384
        %vm388 = vweird.f32 %v232
        %v389 = vadd.s32 %v385, 3
        %v390 = vand.u32 %v389, 3
        %vm391 = vcmp.lt.s32.totalorder %v390, 2
        %vm392 = vcmp.eq.s32.totalorder %v390, 0
        %v393 = vxor.u32 %v387, 2147483648
        %v394 = vsel %vm392, %v386, %v393
        %vm395 = vcmp.eq.s32.totalorder %v390, 2
        %v396 = vxor.u32 %v386, 2147483648
        %v397 = vsel %vm395, %v396, %v387
        %v398 = vsel %vm391, %v394, %v397
        %v399 = vsel %vm388, nan, %v398
        %v400 = vand.u32 2147483647, %v233
        %vm401 = vcmp.le.f32.partialorder %v400, 0.7853982
        %vm402 = vcmp.lt.s32.totalorder %v233, 0
        %v403 = vand.u32 %v233, 2139095040
        %v404 = vshrl.u32 %v403, 23
        %v405 = vsub.s32 %v404, 127
        %v406 = vand.u32 2147483647, %v233
        %v407 = vand.u32 %v406, 8388607
        %v408 = vor.u32 %v407, 8388608
        %v409 = vsub.s32 0, %v408
        %v410 = vadd.s32 %v405, 1
        %vm411 = vcmp.gt.s32.totalorder %v410, 0
        %v412 = vsel %vm411, %v410, 0
        %v413 = vshrl.u32 %v412, 5
        %v414 = vand.u32 %v412, 31
        %v415 = vsub.s32 32, %v414
        %v416 = vshrl.u32 683565275, %v415
        %v417 = vshll.u32 683565275, %v414
        %v418 = vshrl.u32 2475754826, %v415
        %v419 = vor.u32 %v417, %v418
        %v420 = vshll.u32 2475754826, %v414
        %v421 = vshrl.u32 2131351028, %v415
        %v422 = vor.u32 %v420, %v421
        %v423 = vshll.u32 2131351028, %v414
        %v424 = vshrl.u32 2102212464, %v415
        %v425 = vor.u32 %v423, %v424
        %v426 = vshll.u32 2102212464, %v414
        %v427 = vshrl.u32 920167782, %v415
        %v428 = vor.u32 %v426, %v427
        %v429 = vshll.u32 920167782, %v414
        %v430 = vshrl.u32 1326507024, %v415
        %v431 = vor.u32 %v429, %v430
        %vm432 = vcmp.lt.s32.totalorder %v413, 1
        %vm433 = vcmp.lt.s32.totalorder %v413, 2
        %vm434 = vcmp.lt.s32.totalorder %v413, 3
        %vm435 = vcmp.lt.s32.totalorder %v413, 4
        %v436 = vsel %vm432, %v416, %v419
        %v437 = vsel %vm435, %v425, 2102212464
        %v438 = vsel %vm434, %v422, %v437
        %v439 = vsel %vm433, %v436, %v438
        %v440 = vsel %vm432, %v419, %v422
        %v441 = vsel %vm435, %v428, 920167782
        %v442 = vsel %vm434, %v425, %v441
        %v443 = vsel %vm433, %v440, %v442
        %v444 = vsel %vm432, %v422, %v425
        %v445 = vsel %vm435, %v431, 1326507024
        %v446 = vsel %vm434, %v428, %v445
        %v447 = vsel %vm433, %v444, %v446
        %v448 = vshll.u32 %v408, 8
        %v449 = vmul.u32.u64.compose %v448, %v447
        %v450 = vextract.low.u32 %v449
        %v451 = vextract.high.u32 %v449
        %v452 = vmul.u32.u64.compose %v448, %v443
        %v453 = vextract.low.u32 %v452
        %v454 = vextract.high.u32 %v452
        %v455 = vmul.u32 %v448, %v439
        %v456 = vadd.s32 %v451, %v453
        %vm457 = vc.u32 %v451, %v453
        %v458 = vadd.s32 %v454, 1
        %v459 = vsel %vm457, %v458, %v454
        %v460 = vadd.s32 %v455, %v459
        %v461 = vadd.s32 %v460, 536870912
        %v462 = vshrl.u32 %v461, 30
        %v463 = vshll.u32 %v462, 30
        %v464 = vsub.s32 %v460, %v463
        %vm465 = vcmp.lt.s32.totalorder %v464, 0
        %v466 = vsub.s32 0, %v464
        %v467 = vsel %vm465, %v466, %v464
        %v468 = vclz %v467
        %v469 = vsub.s32 %v468, 2
        %vm470 = vcmp.gt.s32.totalorder 0, %v469
        %v471 = vsel %vm470, 0, %v469
        %v472 = vsub.s32 32, %v471
        %v473 = vshll.u32 %v464, %v471
        %v474 = vshrl.u32 %v456, %v472
        %v475 = vor.u32 %v473, %v474
        %v476 = vsub.s32 4294967266, %v471
        %v477 = vadd.s32 %v476, 127
        %v478 = vshll.u32 %v477, 23
        %v479 = vor.u32 4788187, %v478
        %v480 = vand.u32 2147483647, %v479
        %v482 = vcvt.s32.f32 %v475
        %v483 = vmul.f32 %v482, %v480
        %v484 = vxor.u32 %v483, 2147483648
        %v485 = vsel %vm402, %v484, %v483
        %v486 = vsub.s32 4, %v462
        %v487 = vsel %vm402, %v486, %v462
        %v488 = vsel %vm401, %v233, %v485
        %v489 = vsel %vm401, 0, %v487
        %v490 = vcosq.f32.pop %v488
        %v491 = vsinq.f32.pop %v488
        %vm492 = vweird.f32 %v233
        %v493 = vadd.s32 %v489, 3
        %v494 = vand.u32 %v493, 3
        %vm495 = vcmp.lt.s32.totalorder %v494, 2
        %vm496 = vcmp.eq.s32.totalorder %v494, 0
        %v497 = vxor.u32 %v491, 2147483648
        %v498 = vsel %vm496, %v490, %v497
        %vm499 = vcmp.eq.s32.totalorder %v494, 2
        %v500 = vxor.u32 %v490, 2147483648
        %v501 = vsel %vm499, %v500, %v491
        %v502 = vsel %vm495, %v498, %v501
        %v503 = vsel %vm492, nan, %v502
        %v504 = vand.u32 2147483647, %v234
        %vm505 = vcmp.le.f32.partialorder %v504, 0.7853982
        %vm506 = vcmp.lt.s32.totalorder %v234, 0
        %v507 = vand.u32 %v234, 2139095040
        %v508 = vshrl.u32 %v507, 23
        %v509 = vsub.s32 %v508, 127
        %v510 = vand.u32 2147483647, %v234
        %v511 = vand.u32 %v510, 8388607
        %v512 = vor.u32 %v511, 8388608
        %v513 = vsub.s32 0, %v512
        %v514 = vadd.s32 %v509, 1
        %vm515 = vcmp.gt.s32.totalorder %v514, 0
        %v516 = vsel %vm515, %v514, 0
        %v517 = vshrl.u32 %v516, 5
        %v518 = vand.u32 %v516, 31
        %v519 = vsub.s32 32, %v518
        %v520 = vshrl.u32 683565275, %v519
        %v521 = vshll.u32 683565275, %v518
        %v522 = vshrl.u32 2475754826, %v519
        %v523 = vor.u32 %v521, %v522
        %v524 = vshll.u32 2475754826, %v518
        %v525 = vshrl.u32 2131351028, %v519
        %v526 = vor.u32 %v524, %v525
        %v527 = vshll.u32 2131351028, %v518
        %v528 = vshrl.u32 2102212464, %v519
        %v529 = vor.u32 %v527, %v528
        %v530 = vshll.u32 2102212464, %v518
        %v531 = vshrl.u32 920167782, %v519
        %v532 = vor.u32 %v530, %v531
        %v533 = vshll.u32 920167782, %v518
        %v534 = vshrl.u32 1326507024, %v519
        %v535 = vor.u32 %v533, %v534
        %vm536 = vcmp.lt.s32.totalorder %v517, 1
        %vm537 = vcmp.lt.s32.totalorder %v517, 2
        %vm538 = vcmp.lt.s32.totalorder %v517, 3
        %vm539 = vcmp.lt.s32.totalorder %v517, 4
        %v540 = vsel %vm536, %v520, %v523
        %v541 = vsel %vm539, %v529, 2102212464
        %v542 = vsel %vm538, %v526, %v541
        %v543 = vsel %vm537, %v540, %v542
        %v544 = vsel %vm536, %v523, %v526
        %v545 = vsel %vm539, %v532, 920167782
        %v546 = vsel %vm538, %v529, %v545
        %v547 = vsel %vm537, %v544, %v546
        %v548 = vsel %vm536, %v526, %v529
        %v549 = vsel %vm539, %v535, 1326507024
        %v550 = vsel %vm538, %v532, %v549
        %v551 = vsel %vm537, %v548, %v550
        %v552 = vshll.u32 %v512, 8
        %v553 = vmul.u32.u64.compose %v552, %v551
        %v554 = vextract.low.u32 %v553
        %v555 = vextract.high.u32 %v553
        %v556 = vmul.u32.u64.compose %v552, %v547
        %v557 = vextract.low.u32 %v556
        %v558 = vextract.high.u32 %v556
        %v559 = vmul.u32 %v552, %v543
        %v560 = vadd.s32 %v555, %v557
        %vm561 = vc.u32 %v555, %v557
        %v562 = vadd.s32 %v558, 1
        %v563 = vsel %vm561, %v562, %v558
        %v564 = vadd.s32 %v559, %v563
        %v565 = vadd.s32 %v564, 536870912
        %v566 = vshrl.u32 %v565, 30
        %v567 = vshll.u32 %v566, 30
        %v568 = vsub.s32 %v564, %v567
        %vm569 = vcmp.lt.s32.totalorder %v568, 0
        %v570 = vsub.s32 0, %v568
        %v571 = vsel %vm569, %v570, %v568
        %v572 = vclz %v571
        %v573 = vsub.s32 %v572, 2
        %vm574 = vcmp.gt.s32.totalorder 0, %v573
        %v575 = vsel %vm574, 0, %v573
        %v576 = vsub.s32 32, %v575
        %v577 = vshll.u32 %v568, %v575
        %v578 = vshrl.u32 %v560, %v576
        %v579 = vor.u32 %v577, %v578
        %v580 = vsub.s32 4294967266, %v575
        %v581 = vadd.s32 %v580, 127
        %v582 = vshll.u32 %v581, 23
        %v583 = vor.u32 4788187, %v582
        %v584 = vand.u32 2147483647, %v583
        %v586 = vcvt.s32.f32 %v579
        %v587 = vmul.f32 %v586, %v584
        %v588 = vxor.u32 %v587, 2147483648
        %v589 = vsel %vm506, %v588, %v587
        %v590 = vsub.s32 4, %v566
        %v591 = vsel %vm506, %v590, %v566
        %v592 = vsel %vm505, %v234, %v589
        %v593 = vsel %vm505, 0, %v591
        %v594 = vcosq.f32.pop %v592
        %v595 = vsinq.f32.pop %v592
        %vm596 = vweird.f32 %v234
        %v597 = vadd.s32 %v593, 3
        %v598 = vand.u32 %v597, 3
        %vm599 = vcmp.lt.s32.totalorder %v598, 2
        %vm600 = vcmp.eq.s32.totalorder %v598, 0
        %v601 = vxor.u32 %v595, 2147483648
        %v602 = vsel %vm600, %v594, %v601
        %vm603 = vcmp.eq.s32.totalorder %v598, 2
        %v604 = vxor.u32 %v594, 2147483648
        %v605 = vsel %vm603, %v604, %v595
        %v606 = vsel %vm599, %v602, %v605
        %v607 = vsel %vm596, nan, %v606
        %v608 = vand.u32 2147483647, %v235
        %vm609 = vcmp.le.f32.partialorder %v608, 0.7853982
        %vm610 = vcmp.lt.s32.totalorder %v235, 0
        %v611 = vand.u32 %v235, 2139095040
        %v612 = vshrl.u32 %v611, 23
        %v613 = vsub.s32 %v612, 127
        %v614 = vand.u32 2147483647, %v235
        %v615 = vand.u32 %v614, 8388607
        %v616 = vor.u32 %v615, 8388608
        %v617 = vsub.s32 0, %v616
        %v618 = vadd.s32 %v613, 1
        %vm619 = vcmp.gt.s32.totalorder %v618, 0
        %v620 = vsel %vm619, %v618, 0
        %v621 = vshrl.u32 %v620, 5
        %v622 = vand.u32 %v620, 31
        %v623 = vsub.s32 32, %v622
        %v624 = vshrl.u32 683565275, %v623
        %v625 = vshll.u32 683565275, %v622
        %v626 = vshrl.u32 2475754826, %v623
        %v627 = vor.u32 %v625, %v626
        %v628 = vshll.u32 2475754826, %v622
        %v629 = vshrl.u32 2131351028, %v623
        %v630 = vor.u32 %v628, %v629
        %v631 = vshll.u32 2131351028, %v622
        %v632 = vshrl.u32 2102212464, %v623
        %v633 = vor.u32 %v631, %v632
        %v634 = vshll.u32 2102212464, %v622
        %v635 = vshrl.u32 920167782, %v623
        %v636 = vor.u32 %v634, %v635
        %v637 = vshll.u32 920167782, %v622
        %v638 = vshrl.u32 1326507024, %v623
        %v639 = vor.u32 %v637, %v638
        %vm640 = vcmp.lt.s32.totalorder %v621, 1
        %vm641 = vcmp.lt.s32.totalorder %v621, 2
        %vm642 = vcmp.lt.s32.totalorder %v621, 3
        %vm643 = vcmp.lt.s32.totalorder %v621, 4
        %v644 = vsel %vm640, %v624, %v627
        %v645 = vsel %vm643, %v633, 2102212464
        %v646 = vsel %vm642, %v630, %v645
        %v647 = vsel %vm641, %v644, %v646
        %v648 = vsel %vm640, %v627, %v630
        %v649 = vsel %vm643, %v636, 920167782
        %v650 = vsel %vm642, %v633, %v649
        %v651 = vsel %vm641, %v648, %v650
        %v652 = vsel %vm640, %v630, %v633
        %v653 = vsel %vm643, %v639, 1326507024
        %v654 = vsel %vm642, %v636, %v653
        %v655 = vsel %vm641, %v652, %v654
        %v656 = vshll.u32 %v616, 8
        %v657 = vmul.u32.u64.compose %v656, %v655
        %v658 = vextract.low.u32 %v657
        %v659 = vextract.high.u32 %v657
        %v660 = vmul.u32.u64.compose %v656, %v651
        %v661 = vextract.low.u32 %v660
        %v662 = vextract.high.u32 %v660
        %v663 = vmul.u32 %v656, %v647
        %v664 = vadd.s32 %v659, %v661
        %vm665 = vc.u32 %v659, %v661
        %v666 = vadd.s32 %v662, 1
        %v667 = vsel %vm665, %v666, %v662
        %v668 = vadd.s32 %v663, %v667
        %v669 = vadd.s32 %v668, 536870912
        %v670 = vshrl.u32 %v669, 30
        %v671 = vshll.u32 %v670, 30
        %v672 = vsub.s32 %v668, %v671
        %vm673 = vcmp.lt.s32.totalorder %v672, 0
        %v674 = vsub.s32 0, %v672
        %v675 = vsel %vm673, %v674, %v672
        %v676 = vclz %v675
        %v677 = vsub.s32 %v676, 2
        %vm678 = vcmp.gt.s32.totalorder 0, %v677
        %v679 = vsel %vm678, 0, %v677
        %v680 = vsub.s32 32, %v679
        %v681 = vshll.u32 %v672, %v679
        %v682 = vshrl.u32 %v664, %v680
        %v683 = vor.u32 %v681, %v682
        %v684 = vsub.s32 4294967266, %v679
        %v685 = vadd.s32 %v684, 127
        %v686 = vshll.u32 %v685, 23
        %v687 = vor.u32 4788187, %v686
        %v688 = vand.u32 2147483647, %v687
        %v690 = vcvt.s32.f32 %v683
        %v691 = vmul.f32 %v690, %v688
        %v692 = vxor.u32 %v691, 2147483648
        %v693 = vsel %vm610, %v692, %v691
        %v694 = vsub.s32 4, %v670
        %v695 = vsel %vm610, %v694, %v670
        %v696 = vsel %vm609, %v235, %v693
        %v697 = vsel %vm609, 0, %v695
        %v698 = vcosq.f32.pop %v696
        %v699 = vsinq.f32.pop %v696
        %vm700 = vweird.f32 %v235
        %v701 = vadd.s32 %v697, 3
        %v702 = vand.u32 %v701, 3
        %vm703 = vcmp.lt.s32.totalorder %v702, 2
        %vm704 = vcmp.eq.s32.totalorder %v702, 0
        %v705 = vxor.u32 %v699, 2147483648
        %v706 = vsel %vm704, %v698, %v705
        %vm707 = vcmp.eq.s32.totalorder %v702, 2
        %v708 = vxor.u32 %v698, 2147483648
        %v709 = vsel %vm707, %v708, %v699
        %v710 = vsel %vm703, %v706, %v709
        %v711 = vsel %vm700, nan, %v710
        %v712 = vand.u32 2147483647, %v236
        %vm713 = vcmp.le.f32.partialorder %v712, 0.7853982
        %vm714 = vcmp.lt.s32.totalorder %v236, 0
        %v715 = vand.u32 %v236, 2139095040
        %v716 = vshrl.u32 %v715, 23
        %v717 = vsub.s32 %v716, 127
        %v718 = vand.u32 2147483647, %v236
        %v719 = vand.u32 %v718, 8388607
        %v720 = vor.u32 %v719, 8388608
        %v721 = vsub.s32 0, %v720
        %v722 = vadd.s32 %v717, 1
        %vm723 = vcmp.gt.s32.totalorder %v722, 0
        %v724 = vsel %vm723, %v722, 0
        %v725 = vshrl.u32 %v724, 5
        %v726 = vand.u32 %v724, 31
        %v727 = vsub.s32 32, %v726
        %v728 = vshrl.u32 683565275, %v727
        %v729 = vshll.u32 683565275, %v726
        %v730 = vshrl.u32 2475754826, %v727
        %v731 = vor.u32 %v729, %v730
        %v732 = vshll.u32 2475754826, %v726
        %v733 = vshrl.u32 2131351028, %v727
        %v734 = vor.u32 %v732, %v733
        %v735 = vshll.u32 2131351028, %v726
        %v736 = vshrl.u32 2102212464, %v727
        %v737 = vor.u32 %v735, %v736
        %v738 = vshll.u32 2102212464, %v726
        %v739 = vshrl.u32 920167782, %v727
        %v740 = vor.u32 %v738, %v739
        %v741 = vshll.u32 920167782, %v726
        %v742 = vshrl.u32 1326507024, %v727
        %v743 = vor.u32 %v741, %v742
        %vm744 = vcmp.lt.s32.totalorder %v725, 1
        %vm745 = vcmp.lt.s32.totalorder %v725, 2
        %vm746 = vcmp.lt.s32.totalorder %v725, 3
        %vm747 = vcmp.lt.s32.totalorder %v725, 4
        %v748 = vsel %vm744, %v728, %v731
        %v749 = vsel %vm747, %v737, 2102212464
        %v750 = vsel %vm746, %v734, %v749
        %v751 = vsel %vm745, %v748, %v750
        %v752 = vsel %vm744, %v731, %v734
        %v753 = vsel %vm747, %v740, 920167782
        %v754 = vsel %vm746, %v737, %v753
        %v755 = vsel %vm745, %v752, %v754
        %v756 = vsel %vm744, %v734, %v737
        %v757 = vsel %vm747, %v743, 1326507024
        %v758 = vsel %vm746, %v740, %v757
        %v759 = vsel %vm745, %v756, %v758
        %v760 = vshll.u32 %v720, 8
        %v761 = vmul.u32.u64.compose %v760, %v759
        %v762 = vextract.low.u32 %v761
        %v763 = vextract.high.u32 %v761
        %v764 = vmul.u32.u64.compose %v760, %v755
        %v765 = vextract.low.u32 %v764
        %v766 = vextract.high.u32 %v764
        %v767 = vmul.u32 %v760, %v751
        %v768 = vadd.s32 %v763, %v765
        %vm769 = vc.u32 %v763, %v765
        %v770 = vadd.s32 %v766, 1
        %v771 = vsel %vm769, %v770, %v766
        %v772 = vadd.s32 %v767, %v771
        %v773 = vadd.s32 %v772, 536870912
        %v774 = vshrl.u32 %v773, 30
        %v775 = vshll.u32 %v774, 30
        %v776 = vsub.s32 %v772, %v775
        %vm777 = vcmp.lt.s32.totalorder %v776, 0
        %v778 = vsub.s32 0, %v776
        %v779 = vsel %vm777, %v778, %v776
        %v780 = vclz %v779
        %v781 = vsub.s32 %v780, 2
        %vm782 = vcmp.gt.s32.totalorder 0, %v781
        %v783 = vsel %vm782, 0, %v781
        %v784 = vsub.s32 32, %v783
        %v785 = vshll.u32 %v776, %v783
        %v786 = vshrl.u32 %v768, %v784
        %v787 = vor.u32 %v785, %v786
        %v788 = vsub.s32 4294967266, %v783
        %v789 = vadd.s32 %v788, 127
        %v790 = vshll.u32 %v789, 23
        %v791 = vor.u32 4788187, %v790
        %v792 = vand.u32 2147483647, %v791
        %v794 = vcvt.s32.f32 %v787
        %v795 = vmul.f32 %v794, %v792
        %v796 = vxor.u32 %v795, 2147483648
        %v797 = vsel %vm714, %v796, %v795
        %v798 = vsub.s32 4, %v774
        %v799 = vsel %vm714, %v798, %v774
        %v800 = vsel %vm713, %v236, %v797
        %v801 = vsel %vm713, 0, %v799
        %v802 = vcosq.f32.pop %v800
        %v803 = vsinq.f32.pop %v800
        %vm804 = vweird.f32 %v236
        %v805 = vadd.s32 %v801, 3
        %v806 = vand.u32 %v805, 3
        %vm807 = vcmp.lt.s32.totalorder %v806, 2
        %vm808 = vcmp.eq.s32.totalorder %v806, 0
        %v809 = vxor.u32 %v803, 2147483648
        %v810 = vsel %vm808, %v802, %v809
        %vm811 = vcmp.eq.s32.totalorder %v806, 2
        %v812 = vxor.u32 %v802, 2147483648
        %v813 = vsel %vm811, %v812, %v803
        %v814 = vsel %vm807, %v810, %v813
        %v815 = vsel %vm804, nan, %v814
        %v816 = vand.u32 2147483647, %v237
        %vm817 = vcmp.le.f32.partialorder %v816, 0.7853982
        %vm818 = vcmp.lt.s32.totalorder %v237, 0
        %v819 = vand.u32 %v237, 2139095040
        %v820 = vshrl.u32 %v819, 23
        %v821 = vsub.s32 %v820, 127
        %v822 = vand.u32 2147483647, %v237
        %v823 = vand.u32 %v822, 8388607
        %v824 = vor.u32 %v823, 8388608
        %v825 = vsub.s32 0, %v824
        %v826 = vadd.s32 %v821, 1
        %vm827 = vcmp.gt.s32.totalorder %v826, 0
        %v828 = vsel %vm827, %v826, 0
        %v829 = vshrl.u32 %v828, 5
        %v830 = vand.u32 %v828, 31
        %v831 = vsub.s32 32, %v830
        %v832 = vshrl.u32 683565275, %v831
        %v833 = vshll.u32 683565275, %v830
        %v834 = vshrl.u32 2475754826, %v831
        %v835 = vor.u32 %v833, %v834
        %v836 = vshll.u32 2475754826, %v830
        %v837 = vshrl.u32 2131351028, %v831
        %v838 = vor.u32 %v836, %v837
        %v839 = vshll.u32 2131351028, %v830
        %v840 = vshrl.u32 2102212464, %v831
        %v841 = vor.u32 %v839, %v840
        %v842 = vshll.u32 2102212464, %v830
        %v843 = vshrl.u32 920167782, %v831
        %v844 = vor.u32 %v842, %v843
        %v845 = vshll.u32 920167782, %v830
        %v846 = vshrl.u32 1326507024, %v831
        %v847 = vor.u32 %v845, %v846
        %vm848 = vcmp.lt.s32.totalorder %v829, 1
        %vm849 = vcmp.lt.s32.totalorder %v829, 2
        %vm850 = vcmp.lt.s32.totalorder %v829, 3
        %vm851 = vcmp.lt.s32.totalorder %v829, 4
        %v852 = vsel %vm848, %v832, %v835
        %v853 = vsel %vm851, %v841, 2102212464
        %v854 = vsel %vm850, %v838, %v853
        %v855 = vsel %vm849, %v852, %v854
        %v856 = vsel %vm848, %v835, %v838
        %v857 = vsel %vm851, %v844, 920167782
        %v858 = vsel %vm850, %v841, %v857
        %v859 = vsel %vm849, %v856, %v858
        %v860 = vsel %vm848, %v838, %v841
        %v861 = vsel %vm851, %v847, 1326507024
        %v862 = vsel %vm850, %v844, %v861
        %v863 = vsel %vm849, %v860, %v862
        %v864 = vshll.u32 %v824, 8
        %v865 = vmul.u32.u64.compose %v864, %v863
        %v866 = vextract.low.u32 %v865
        %v867 = vextract.high.u32 %v865
        %v868 = vmul.u32.u64.compose %v864, %v859
        %v869 = vextract.low.u32 %v868
        %v870 = vextract.high.u32 %v868
        %v871 = vmul.u32 %v864, %v855
        %v872 = vadd.s32 %v867, %v869
        %vm873 = vc.u32 %v867, %v869
        %v874 = vadd.s32 %v870, 1
        %v875 = vsel %vm873, %v874, %v870
        %v876 = vadd.s32 %v871, %v875
        %v877 = vadd.s32 %v876, 536870912
        %v878 = vshrl.u32 %v877, 30
        %v879 = vshll.u32 %v878, 30
        %v880 = vsub.s32 %v876, %v879
        %vm881 = vcmp.lt.s32.totalorder %v880, 0
        %v882 = vsub.s32 0, %v880
        %v883 = vsel %vm881, %v882, %v880
        %v884 = vclz %v883
        %v885 = vsub.s32 %v884, 2
        %vm886 = vcmp.gt.s32.totalorder 0, %v885
        %v887 = vsel %vm886, 0, %v885
        %v888 = vsub.s32 32, %v887
        %v889 = vshll.u32 %v880, %v887
        %v890 = vshrl.u32 %v872, %v888
        %v891 = vor.u32 %v889, %v890
        %v892 = vsub.s32 4294967266, %v887
        %v893 = vadd.s32 %v892, 127
        %v894 = vshll.u32 %v893, 23
        %v895 = vor.u32 4788187, %v894
        %v896 = vand.u32 2147483647, %v895
        %v898 = vcvt.s32.f32 %v891
        %v899 = vmul.f32 %v898, %v896
        %v900 = vxor.u32 %v899, 2147483648
        %v901 = vsel %vm818, %v900, %v899
        %v902 = vsub.s32 4, %v878
        %v903 = vsel %vm818, %v902, %v878
        %v904 = vsel %vm817, %v237, %v901
        %v905 = vsel %vm817, 0, %v903
        %v906 = vcosq.f32.pop %v904
        %v907 = vsinq.f32.pop %v904
        %vm908 = vweird.f32 %v237
        %v909 = vadd.s32 %v905, 3
        %v910 = vand.u32 %v909, 3
        %vm911 = vcmp.lt.s32.totalorder %v910, 2
        %vm912 = vcmp.eq.s32.totalorder %v910, 0
        %v913 = vxor.u32 %v907, 2147483648
        %v914 = vsel %vm912, %v906, %v913
        %vm915 = vcmp.eq.s32.totalorder %v910, 2
        %v916 = vxor.u32 %v906, 2147483648
        %v917 = vsel %vm915, %v916, %v907
        %v918 = vsel %vm911, %v914, %v917
        %v919 = vsel %vm908, nan, %v918
        %v920 = vand.u32 2147483647, %v238
        %vm921 = vcmp.le.f32.partialorder %v920, 0.7853982
        %vm922 = vcmp.lt.s32.totalorder %v238, 0
        %v923 = vand.u32 %v238, 2139095040
        %v924 = vshrl.u32 %v923, 23
        %v925 = vsub.s32 %v924, 127
        %v926 = vand.u32 2147483647, %v238
        %v927 = vand.u32 %v926, 8388607
        %v928 = vor.u32 %v927, 8388608
        %v929 = vsub.s32 0, %v928
        %v930 = vadd.s32 %v925, 1
        %vm931 = vcmp.gt.s32.totalorder %v930, 0
        %v932 = vsel %vm931, %v930, 0
        %v933 = vshrl.u32 %v932, 5
        %v934 = vand.u32 %v932, 31
        %v935 = vsub.s32 32, %v934
        %v936 = vshrl.u32 683565275, %v935
        %v937 = vshll.u32 683565275, %v934
        %v938 = vshrl.u32 2475754826, %v935
        %v939 = vor.u32 %v937, %v938
        %v940 = vshll.u32 2475754826, %v934
        %v941 = vshrl.u32 2131351028, %v935
        %v942 = vor.u32 %v940, %v941
        %v943 = vshll.u32 2131351028, %v934
        %v944 = vshrl.u32 2102212464, %v935
        %v945 = vor.u32 %v943, %v944
        %v946 = vshll.u32 2102212464, %v934
        %v947 = vshrl.u32 920167782, %v935
        %v948 = vor.u32 %v946, %v947
        %v949 = vshll.u32 920167782, %v934
        %v950 = vshrl.u32 1326507024, %v935
        %v951 = vor.u32 %v949, %v950
        %vm952 = vcmp.lt.s32.totalorder %v933, 1
        %vm953 = vcmp.lt.s32.totalorder %v933, 2
        %vm954 = vcmp.lt.s32.totalorder %v933, 3
        %vm955 = vcmp.lt.s32.totalorder %v933, 4
        %v956 = vsel %vm952, %v936, %v939
        %v957 = vsel %vm955, %v945, 2102212464
        %v958 = vsel %vm954, %v942, %v957
        %v959 = vsel %vm953, %v956, %v958
        %v960 = vsel %vm952, %v939, %v942
        %v961 = vsel %vm955, %v948, 920167782
        %v962 = vsel %vm954, %v945, %v961
        %v963 = vsel %vm953, %v960, %v962
        %v964 = vsel %vm952, %v942, %v945
        %v965 = vsel %vm955, %v951, 1326507024
        %v966 = vsel %vm954, %v948, %v965
        %v967 = vsel %vm953, %v964, %v966
        %v968 = vshll.u32 %v928, 8
        %v969 = vmul.u32.u64.compose %v968, %v967
        %v970 = vextract.low.u32 %v969
        %v971 = vextract.high.u32 %v969
        %v972 = vmul.u32.u64.compose %v968, %v963
        %v973 = vextract.low.u32 %v972
        %v974 = vextract.high.u32 %v972
        %v975 = vmul.u32 %v968, %v959
        %v976 = vadd.s32 %v971, %v973
        %vm977 = vc.u32 %v971, %v973
        %v978 = vadd.s32 %v974, 1
        %v979 = vsel %vm977, %v978, %v974
        %v980 = vadd.s32 %v975, %v979
        %v981 = vadd.s32 %v980, 536870912
        %v982 = vshrl.u32 %v981, 30
        %v983 = vshll.u32 %v982, 30
        %v984 = vsub.s32 %v980, %v983
        %vm985 = vcmp.lt.s32.totalorder %v984, 0
        %v986 = vsub.s32 0, %v984
        %v987 = vsel %vm985, %v986, %v984
        %v988 = vclz %v987
        %v989 = vsub.s32 %v988, 2
        %vm990 = vcmp.gt.s32.totalorder 0, %v989
        %v991 = vsel %vm990, 0, %v989
        %v992 = vsub.s32 32, %v991
        %v993 = vshll.u32 %v984, %v991
        %v994 = vshrl.u32 %v976, %v992
        %v995 = vor.u32 %v993, %v994
        %v996 = vsub.s32 4294967266, %v991
        %v997 = vadd.s32 %v996, 127
        %v998 = vshll.u32 %v997, 23
        %v999 = vor.u32 4788187, %v998
        %v1000 = vand.u32 2147483647, %v999
        %v1002 = vcvt.s32.f32 %v995
        %v1003 = vmul.f32 %v1002, %v1000
        %v1004 = vxor.u32 %v1003, 2147483648
        %v1005 = vsel %vm922, %v1004, %v1003
        %v1006 = vsub.s32 4, %v982
        %v1007 = vsel %vm922, %v1006, %v982
        %v1008 = vsel %vm921, %v238, %v1005
        %v1009 = vsel %vm921, 0, %v1007
        %v1010 = vcosq.f32.pop %v1008
        %v1011 = vsinq.f32.pop %v1008
        %vm1012 = vweird.f32 %v238
        %v1013 = vadd.s32 %v1009, 3
        %v1014 = vand.u32 %v1013, 3
        %vm1015 = vcmp.lt.s32.totalorder %v1014, 2
        %vm1016 = vcmp.eq.s32.totalorder %v1014, 0
        %v1017 = vxor.u32 %v1011, 2147483648
        %v1018 = vsel %vm1016, %v1010, %v1017
        %vm1019 = vcmp.eq.s32.totalorder %v1014, 2
        %v1020 = vxor.u32 %v1010, 2147483648
        %v1021 = vsel %vm1019, %v1020, %v1011
        %v1022 = vsel %vm1015, %v1018, %v1021
        %v1023 = vsel %vm1012, nan, %v1022
        %v1024 = vand.u32 2147483647, %v239
        %vm1025 = vcmp.le.f32.partialorder %v1024, 0.7853982
        %vm1026 = vcmp.lt.s32.totalorder %v239, 0
        %v1027 = vand.u32 %v239, 2139095040
        %v1028 = vshrl.u32 %v1027, 23
        %v1029 = vsub.s32 %v1028, 127
        %v1030 = vand.u32 2147483647, %v239
        %v1031 = vand.u32 %v1030, 8388607
        %v1032 = vor.u32 %v1031, 8388608
        %v1033 = vsub.s32 0, %v1032
        %v1034 = vadd.s32 %v1029, 1
        %vm1035 = vcmp.gt.s32.totalorder %v1034, 0
        %v1036 = vsel %vm1035, %v1034, 0
        %v1037 = vshrl.u32 %v1036, 5
        %v1038 = vand.u32 %v1036, 31
        %v1039 = vsub.s32 32, %v1038
        %v1040 = vshrl.u32 683565275, %v1039
        %v1041 = vshll.u32 683565275, %v1038
        %v1042 = vshrl.u32 2475754826, %v1039
        %v1043 = vor.u32 %v1041, %v1042
        %v1044 = vshll.u32 2475754826, %v1038
        %v1045 = vshrl.u32 2131351028, %v1039
        %v1046 = vor.u32 %v1044, %v1045
        %v1047 = vshll.u32 2131351028, %v1038
        %v1048 = vshrl.u32 2102212464, %v1039
        %v1049 = vor.u32 %v1047, %v1048
        %v1050 = vshll.u32 2102212464, %v1038
        %v1051 = vshrl.u32 920167782, %v1039
        %v1052 = vor.u32 %v1050, %v1051
        %v1053 = vshll.u32 920167782, %v1038
        %v1054 = vshrl.u32 1326507024, %v1039
        %v1055 = vor.u32 %v1053, %v1054
        %vm1056 = vcmp.lt.s32.totalorder %v1037, 1
        %vm1057 = vcmp.lt.s32.totalorder %v1037, 2
        %vm1058 = vcmp.lt.s32.totalorder %v1037, 3
        %vm1059 = vcmp.lt.s32.totalorder %v1037, 4
        %v1060 = vsel %vm1056, %v1040, %v1043
        %v1061 = vsel %vm1059, %v1049, 2102212464
        %v1062 = vsel %vm1058, %v1046, %v1061
        %v1063 = vsel %vm1057, %v1060, %v1062
        %v1064 = vsel %vm1056, %v1043, %v1046
        %v1065 = vsel %vm1059, %v1052, 920167782
        %v1066 = vsel %vm1058, %v1049, %v1065
        %v1067 = vsel %vm1057, %v1064, %v1066
        %v1068 = vsel %vm1056, %v1046, %v1049
        %v1069 = vsel %vm1059, %v1055, 1326507024
        %v1070 = vsel %vm1058, %v1052, %v1069
        %v1071 = vsel %vm1057, %v1068, %v1070
        %v1072 = vshll.u32 %v1032, 8
        %v1073 = vmul.u32.u64.compose %v1072, %v1071
        %v1074 = vextract.low.u32 %v1073
        %v1075 = vextract.high.u32 %v1073
        %v1076 = vmul.u32.u64.compose %v1072, %v1067
        %v1077 = vextract.low.u32 %v1076
        %v1078 = vextract.high.u32 %v1076
        %v1079 = vmul.u32 %v1072, %v1063
        %v1080 = vadd.s32 %v1075, %v1077
        %vm1081 = vc.u32 %v1075, %v1077
        %v1082 = vadd.s32 %v1078, 1
        %v1083 = vsel %vm1081, %v1082, %v1078
        %v1084 = vadd.s32 %v1079, %v1083
        %v1085 = vadd.s32 %v1084, 536870912
        %v1086 = vshrl.u32 %v1085, 30
        %v1087 = vshll.u32 %v1086, 30
        %v1088 = vsub.s32 %v1084, %v1087
        %vm1089 = vcmp.lt.s32.totalorder %v1088, 0
        %v1090 = vsub.s32 0, %v1088
        %v1091 = vsel %vm1089, %v1090, %v1088
        %v1092 = vclz %v1091
        %v1093 = vsub.s32 %v1092, 2
        %vm1094 = vcmp.gt.s32.totalorder 0, %v1093
        %v1095 = vsel %vm1094, 0, %v1093
        %v1096 = vsub.s32 32, %v1095
        %v1097 = vshll.u32 %v1088, %v1095
        %v1098 = vshrl.u32 %v1080, %v1096
        %v1099 = vor.u32 %v1097, %v1098
        %v1100 = vsub.s32 4294967266, %v1095
        %v1101 = vadd.s32 %v1100, 127
        %v1102 = vshll.u32 %v1101, 23
        %v1103 = vor.u32 4788187, %v1102
        %v1104 = vand.u32 2147483647, %v1103
        %v1106 = vcvt.s32.f32 %v1099
        %v1107 = vmul.f32 %v1106, %v1104
        %v1108 = vxor.u32 %v1107, 2147483648
        %v1109 = vsel %vm1026, %v1108, %v1107
        %v1110 = vsub.s32 4, %v1086
        %v1111 = vsel %vm1026, %v1110, %v1086
        %v1112 = vsel %vm1025, %v239, %v1109
        %v1113 = vsel %vm1025, 0, %v1111
        %v1114 = vcosq.f32.pop %v1112
        %v1115 = vsinq.f32.pop %v1112
        %vm1116 = vweird.f32 %v239
        %v1117 = vadd.s32 %v1113, 3
        %v1118 = vand.u32 %v1117, 3
        %vm1119 = vcmp.lt.s32.totalorder %v1118, 2
        %vm1120 = vcmp.eq.s32.totalorder %v1118, 0
        %v1121 = vxor.u32 %v1115, 2147483648
        %v1122 = vsel %vm1120, %v1114, %v1121
        %vm1123 = vcmp.eq.s32.totalorder %v1118, 2
        %v1124 = vxor.u32 %v1114, 2147483648
        %v1125 = vsel %vm1123, %v1124, %v1115
        %v1126 = vsel %vm1119, %v1122, %v1125
        %v1127 = vsel %vm1116, nan, %v1126
        %v1128 = vand.u32 2147483647, %v240
        %vm1129 = vcmp.le.f32.partialorder %v1128, 0.7853982
        %vm1130 = vcmp.lt.s32.totalorder %v240, 0
        %v1131 = vand.u32 %v240, 2139095040
        %v1132 = vshrl.u32 %v1131, 23
        %v1133 = vsub.s32 %v1132, 127
        %v1134 = vand.u32 2147483647, %v240
        %v1135 = vand.u32 %v1134, 8388607
        %v1136 = vor.u32 %v1135, 8388608
        %v1137 = vsub.s32 0, %v1136
        %v1138 = vadd.s32 %v1133, 1
        %vm1139 = vcmp.gt.s32.totalorder %v1138, 0
        %v1140 = vsel %vm1139, %v1138, 0
        %v1141 = vshrl.u32 %v1140, 5
        %v1142 = vand.u32 %v1140, 31
        %v1143 = vsub.s32 32, %v1142
        %v1144 = vshrl.u32 683565275, %v1143
        %v1145 = vshll.u32 683565275, %v1142
        %v1146 = vshrl.u32 2475754826, %v1143
        %v1147 = vor.u32 %v1145, %v1146
        %v1148 = vshll.u32 2475754826, %v1142
        %v1149 = vshrl.u32 2131351028, %v1143
        %v1150 = vor.u32 %v1148, %v1149
        %v1151 = vshll.u32 2131351028, %v1142
        %v1152 = vshrl.u32 2102212464, %v1143
        %v1153 = vor.u32 %v1151, %v1152
        %v1154 = vshll.u32 2102212464, %v1142
        %v1155 = vshrl.u32 920167782, %v1143
        %v1156 = vor.u32 %v1154, %v1155
        %v1157 = vshll.u32 920167782, %v1142
        %v1158 = vshrl.u32 1326507024, %v1143
        %v1159 = vor.u32 %v1157, %v1158
        %vm1160 = vcmp.lt.s32.totalorder %v1141, 1
        %vm1161 = vcmp.lt.s32.totalorder %v1141, 2
        %vm1162 = vcmp.lt.s32.totalorder %v1141, 3
        %vm1163 = vcmp.lt.s32.totalorder %v1141, 4
        %v1164 = vsel %vm1160, %v1144, %v1147
        %v1165 = vsel %vm1163, %v1153, 2102212464
        %v1166 = vsel %vm1162, %v1150, %v1165
        %v1167 = vsel %vm1161, %v1164, %v1166
        %v1168 = vsel %vm1160, %v1147, %v1150
        %v1169 = vsel %vm1163, %v1156, 920167782
        %v1170 = vsel %vm1162, %v1153, %v1169
        %v1171 = vsel %vm1161, %v1168, %v1170
        %v1172 = vsel %vm1160, %v1150, %v1153
        %v1173 = vsel %vm1163, %v1159, 1326507024
        %v1174 = vsel %vm1162, %v1156, %v1173
        %v1175 = vsel %vm1161, %v1172, %v1174
        %v1176 = vshll.u32 %v1136, 8
        %v1177 = vmul.u32.u64.compose %v1176, %v1175
        %v1178 = vextract.low.u32 %v1177
        %v1179 = vextract.high.u32 %v1177
        %v1180 = vmul.u32.u64.compose %v1176, %v1171
        %v1181 = vextract.low.u32 %v1180
        %v1182 = vextract.high.u32 %v1180
        %v1183 = vmul.u32 %v1176, %v1167
        %v1184 = vadd.s32 %v1179, %v1181
        %vm1185 = vc.u32 %v1179, %v1181
        %v1186 = vadd.s32 %v1182, 1
        %v1187 = vsel %vm1185, %v1186, %v1182
        %v1188 = vadd.s32 %v1183, %v1187
        %v1189 = vadd.s32 %v1188, 536870912
        %v1190 = vshrl.u32 %v1189, 30
        %v1191 = vshll.u32 %v1190, 30
        %v1192 = vsub.s32 %v1188, %v1191
        %vm1193 = vcmp.lt.s32.totalorder %v1192, 0
        %v1194 = vsub.s32 0, %v1192
        %v1195 = vsel %vm1193, %v1194, %v1192
        %v1196 = vclz %v1195
        %v1197 = vsub.s32 %v1196, 2
        %vm1198 = vcmp.gt.s32.totalorder 0, %v1197
        %v1199 = vsel %vm1198, 0, %v1197
        %v1200 = vsub.s32 32, %v1199
        %v1201 = vshll.u32 %v1192, %v1199
        %v1202 = vshrl.u32 %v1184, %v1200
        %v1203 = vor.u32 %v1201, %v1202
        %v1204 = vsub.s32 4294967266, %v1199
        %v1205 = vadd.s32 %v1204, 127
        %v1206 = vshll.u32 %v1205, 23
        %v1207 = vor.u32 4788187, %v1206
        %v1208 = vand.u32 2147483647, %v1207
        %v1210 = vcvt.s32.f32 %v1203
        %v1211 = vmul.f32 %v1210, %v1208
        %v1212 = vxor.u32 %v1211, 2147483648
        %v1213 = vsel %vm1130, %v1212, %v1211
        %v1214 = vsub.s32 4, %v1190
        %v1215 = vsel %vm1130, %v1214, %v1190
        %v1216 = vsel %vm1129, %v240, %v1213
        %v1217 = vsel %vm1129, 0, %v1215
        %v1218 = vcosq.f32.pop %v1216
        %v1219 = vsinq.f32.pop %v1216
        %vm1220 = vweird.f32 %v240
        %v1221 = vadd.s32 %v1217, 3
        %v1222 = vand.u32 %v1221, 3
        %vm1223 = vcmp.lt.s32.totalorder %v1222, 2
        %vm1224 = vcmp.eq.s32.totalorder %v1222, 0
        %v1225 = vxor.u32 %v1219, 2147483648
        %v1226 = vsel %vm1224, %v1218, %v1225
        %vm1227 = vcmp.eq.s32.totalorder %v1222, 2
        %v1228 = vxor.u32 %v1218, 2147483648
        %v1229 = vsel %vm1227, %v1228, %v1219
        %v1230 = vsel %vm1223, %v1226, %v1229
        %v1231 = vsel %vm1220, nan, %v1230
        %v1232 = vand.u32 2147483647, %v241
        %vm1233 = vcmp.le.f32.partialorder %v1232, 0.7853982
        %vm1234 = vcmp.lt.s32.totalorder %v241, 0
        %v1235 = vand.u32 %v241, 2139095040
        %v1236 = vshrl.u32 %v1235, 23
        %v1237 = vsub.s32 %v1236, 127
        %v1238 = vand.u32 2147483647, %v241
        %v1239 = vand.u32 %v1238, 8388607
        %v1240 = vor.u32 %v1239, 8388608
        %v1241 = vsub.s32 0, %v1240
        %v1242 = vadd.s32 %v1237, 1
        %vm1243 = vcmp.gt.s32.totalorder %v1242, 0
        %v1244 = vsel %vm1243, %v1242, 0
        %v1245 = vshrl.u32 %v1244, 5
        %v1246 = vand.u32 %v1244, 31
        %v1247 = vsub.s32 32, %v1246
        %v1248 = vshrl.u32 683565275, %v1247
        %v1249 = vshll.u32 683565275, %v1246
        %v1250 = vshrl.u32 2475754826, %v1247
        %v1251 = vor.u32 %v1249, %v1250
        %v1252 = vshll.u32 2475754826, %v1246
        %v1253 = vshrl.u32 2131351028, %v1247
        %v1254 = vor.u32 %v1252, %v1253
        %v1255 = vshll.u32 2131351028, %v1246
        %v1256 = vshrl.u32 2102212464, %v1247
        %v1257 = vor.u32 %v1255, %v1256
        %v1258 = vshll.u32 2102212464, %v1246
        %v1259 = vshrl.u32 920167782, %v1247
        %v1260 = vor.u32 %v1258, %v1259
        %v1261 = vshll.u32 920167782, %v1246
        %v1262 = vshrl.u32 1326507024, %v1247
        %v1263 = vor.u32 %v1261, %v1262
        %vm1264 = vcmp.lt.s32.totalorder %v1245, 1
        %vm1265 = vcmp.lt.s32.totalorder %v1245, 2
        %vm1266 = vcmp.lt.s32.totalorder %v1245, 3
        %vm1267 = vcmp.lt.s32.totalorder %v1245, 4
        %v1268 = vsel %vm1264, %v1248, %v1251
        %v1269 = vsel %vm1267, %v1257, 2102212464
        %v1270 = vsel %vm1266, %v1254, %v1269
        %v1271 = vsel %vm1265, %v1268, %v1270
        %v1272 = vsel %vm1264, %v1251, %v1254
        %v1273 = vsel %vm1267, %v1260, 920167782
        %v1274 = vsel %vm1266, %v1257, %v1273
        %v1275 = vsel %vm1265, %v1272, %v1274
        %v1276 = vsel %vm1264, %v1254, %v1257
        %v1277 = vsel %vm1267, %v1263, 1326507024
        %v1278 = vsel %vm1266, %v1260, %v1277
        %v1279 = vsel %vm1265, %v1276, %v1278
        %v1280 = vshll.u32 %v1240, 8
        %v1281 = vmul.u32.u64.compose %v1280, %v1279
        %v1282 = vextract.low.u32 %v1281
        %v1283 = vextract.high.u32 %v1281
        %v1284 = vmul.u32.u64.compose %v1280, %v1275
        %v1285 = vextract.low.u32 %v1284
        %v1286 = vextract.high.u32 %v1284
        %v1287 = vmul.u32 %v1280, %v1271
        %v1288 = vadd.s32 %v1283, %v1285
        %vm1289 = vc.u32 %v1283, %v1285
        %v1290 = vadd.s32 %v1286, 1
        %v1291 = vsel %vm1289, %v1290, %v1286
        %v1292 = vadd.s32 %v1287, %v1291
        %v1293 = vadd.s32 %v1292, 536870912
        %v1294 = vshrl.u32 %v1293, 30
        %v1295 = vshll.u32 %v1294, 30
        %v1296 = vsub.s32 %v1292, %v1295
        %vm1297 = vcmp.lt.s32.totalorder %v1296, 0
        %v1298 = vsub.s32 0, %v1296
        %v1299 = vsel %vm1297, %v1298, %v1296
        %v1300 = vclz %v1299
        %v1301 = vsub.s32 %v1300, 2
        %vm1302 = vcmp.gt.s32.totalorder 0, %v1301
        %v1303 = vsel %vm1302, 0, %v1301
        %v1304 = vsub.s32 32, %v1303
        %v1305 = vshll.u32 %v1296, %v1303
        %v1306 = vshrl.u32 %v1288, %v1304
        %v1307 = vor.u32 %v1305, %v1306
        %v1308 = vsub.s32 4294967266, %v1303
        %v1309 = vadd.s32 %v1308, 127
        %v1310 = vshll.u32 %v1309, 23
        %v1311 = vor.u32 4788187, %v1310
        %v1312 = vand.u32 2147483647, %v1311
        %v1314 = vcvt.s32.f32 %v1307
        %v1315 = vmul.f32 %v1314, %v1312
        %v1316 = vxor.u32 %v1315, 2147483648
        %v1317 = vsel %vm1234, %v1316, %v1315
        %v1318 = vsub.s32 4, %v1294
        %v1319 = vsel %vm1234, %v1318, %v1294
        %v1320 = vsel %vm1233, %v241, %v1317
        %v1321 = vsel %vm1233, 0, %v1319
        %v1322 = vcosq.f32.pop %v1320
        %v1323 = vsinq.f32.pop %v1320
        %vm1324 = vweird.f32 %v241
        %v1325 = vadd.s32 %v1321, 3
        %v1326 = vand.u32 %v1325, 3
        %vm1327 = vcmp.lt.s32.totalorder %v1326, 2
        %vm1328 = vcmp.eq.s32.totalorder %v1326, 0
        %v1329 = vxor.u32 %v1323, 2147483648
        %v1330 = vsel %vm1328, %v1322, %v1329
        %vm1331 = vcmp.eq.s32.totalorder %v1326, 2
        %v1332 = vxor.u32 %v1322, 2147483648
        %v1333 = vsel %vm1331, %v1332, %v1323
        %v1334 = vsel %vm1327, %v1330, %v1333
        %v1335 = vsel %vm1324, nan, %v1334
        %v1336 = vand.u32 2147483647, %v242
        %vm1337 = vcmp.le.f32.partialorder %v1336, 0.7853982
        %vm1338 = vcmp.lt.s32.totalorder %v242, 0
        %v1339 = vand.u32 %v242, 2139095040
        %v1340 = vshrl.u32 %v1339, 23
        %v1341 = vsub.s32 %v1340, 127
        %v1342 = vand.u32 2147483647, %v242
        %v1343 = vand.u32 %v1342, 8388607
        %v1344 = vor.u32 %v1343, 8388608
        %v1345 = vsub.s32 0, %v1344
        %v1346 = vadd.s32 %v1341, 1
        %vm1347 = vcmp.gt.s32.totalorder %v1346, 0
        %v1348 = vsel %vm1347, %v1346, 0
        %v1349 = vshrl.u32 %v1348, 5
        %v1350 = vand.u32 %v1348, 31
        %v1351 = vsub.s32 32, %v1350
        %v1352 = vshrl.u32 683565275, %v1351
        %v1353 = vshll.u32 683565275, %v1350
        %v1354 = vshrl.u32 2475754826, %v1351
        %v1355 = vor.u32 %v1353, %v1354
        %v1356 = vshll.u32 2475754826, %v1350
        %v1357 = vshrl.u32 2131351028, %v1351
        %v1358 = vor.u32 %v1356, %v1357
        %v1359 = vshll.u32 2131351028, %v1350
        %v1360 = vshrl.u32 2102212464, %v1351
        %v1361 = vor.u32 %v1359, %v1360
        %v1362 = vshll.u32 2102212464, %v1350
        %v1363 = vshrl.u32 920167782, %v1351
        %v1364 = vor.u32 %v1362, %v1363
        %v1365 = vshll.u32 920167782, %v1350
        %v1366 = vshrl.u32 1326507024, %v1351
        %v1367 = vor.u32 %v1365, %v1366
        %vm1368 = vcmp.lt.s32.totalorder %v1349, 1
        %vm1369 = vcmp.lt.s32.totalorder %v1349, 2
        %vm1370 = vcmp.lt.s32.totalorder %v1349, 3
        %vm1371 = vcmp.lt.s32.totalorder %v1349, 4
        %v1372 = vsel %vm1368, %v1352, %v1355
        %v1373 = vsel %vm1371, %v1361, 2102212464
        %v1374 = vsel %vm1370, %v1358, %v1373
        %v1375 = vsel %vm1369, %v1372, %v1374
        %v1376 = vsel %vm1368, %v1355, %v1358
        %v1377 = vsel %vm1371, %v1364, 920167782
        %v1378 = vsel %vm1370, %v1361, %v1377
        %v1379 = vsel %vm1369, %v1376, %v1378
        %v1380 = vsel %vm1368, %v1358, %v1361
        %v1381 = vsel %vm1371, %v1367, 1326507024
        %v1382 = vsel %vm1370, %v1364, %v1381
        %v1383 = vsel %vm1369, %v1380, %v1382
        %v1384 = vshll.u32 %v1344, 8
        %v1385 = vmul.u32.u64.compose %v1384, %v1383
        %v1386 = vextract.low.u32 %v1385
        %v1387 = vextract.high.u32 %v1385
        %v1388 = vmul.u32.u64.compose %v1384, %v1379
        %v1389 = vextract.low.u32 %v1388
        %v1390 = vextract.high.u32 %v1388
        %v1391 = vmul.u32 %v1384, %v1375
        %v1392 = vadd.s32 %v1387, %v1389
        %vm1393 = vc.u32 %v1387, %v1389
        %v1394 = vadd.s32 %v1390, 1
        %v1395 = vsel %vm1393, %v1394, %v1390
        %v1396 = vadd.s32 %v1391, %v1395
        %v1397 = vadd.s32 %v1396, 536870912
        %v1398 = vshrl.u32 %v1397, 30
        %v1399 = vshll.u32 %v1398, 30
        %v1400 = vsub.s32 %v1396, %v1399
        %vm1401 = vcmp.lt.s32.totalorder %v1400, 0
        %v1402 = vsub.s32 0, %v1400
        %v1403 = vsel %vm1401, %v1402, %v1400
        %v1404 = vclz %v1403
        %v1405 = vsub.s32 %v1404, 2
        %vm1406 = vcmp.gt.s32.totalorder 0, %v1405
        %v1407 = vsel %vm1406, 0, %v1405
        %v1408 = vsub.s32 32, %v1407
        %v1409 = vshll.u32 %v1400, %v1407
        %v1410 = vshrl.u32 %v1392, %v1408
        %v1411 = vor.u32 %v1409, %v1410
        %v1412 = vsub.s32 4294967266, %v1407
        %v1413 = vadd.s32 %v1412, 127
        %v1414 = vshll.u32 %v1413, 23
        %v1415 = vor.u32 4788187, %v1414
        %v1416 = vand.u32 2147483647, %v1415
        %v1418 = vcvt.s32.f32 %v1411
        %v1419 = vmul.f32 %v1418, %v1416
        %v1420 = vxor.u32 %v1419, 2147483648
        %v1421 = vsel %vm1338, %v1420, %v1419
        %v1422 = vsub.s32 4, %v1398
        %v1423 = vsel %vm1338, %v1422, %v1398
        %v1424 = vsel %vm1337, %v242, %v1421
        %v1425 = vsel %vm1337, 0, %v1423
        %v1426 = vcosq.f32.pop %v1424
        %v1427 = vsinq.f32.pop %v1424
        %vm1428 = vweird.f32 %v242
        %v1429 = vadd.s32 %v1425, 3
        %v1430 = vand.u32 %v1429, 3
        %vm1431 = vcmp.lt.s32.totalorder %v1430, 2
        %vm1432 = vcmp.eq.s32.totalorder %v1430, 0
        %v1433 = vxor.u32 %v1427, 2147483648
        %v1434 = vsel %vm1432, %v1426, %v1433
        %vm1435 = vcmp.eq.s32.totalorder %v1430, 2
        %v1436 = vxor.u32 %v1426, 2147483648
        %v1437 = vsel %vm1435, %v1436, %v1427
        %v1438 = vsel %vm1431, %v1434, %v1437
        %v1439 = vsel %vm1428, nan, %v1438
        %v1440 = vand.u32 2147483647, %v243
        %vm1441 = vcmp.le.f32.partialorder %v1440, 0.7853982
        %vm1442 = vcmp.lt.s32.totalorder %v243, 0
        %v1443 = vand.u32 %v243, 2139095040
        %v1444 = vshrl.u32 %v1443, 23
        %v1445 = vsub.s32 %v1444, 127
        %v1446 = vand.u32 2147483647, %v243
        %v1447 = vand.u32 %v1446, 8388607
        %v1448 = vor.u32 %v1447, 8388608
        %v1449 = vsub.s32 0, %v1448
        %v1450 = vadd.s32 %v1445, 1
        %vm1451 = vcmp.gt.s32.totalorder %v1450, 0
        %v1452 = vsel %vm1451, %v1450, 0
        %v1453 = vshrl.u32 %v1452, 5
        %v1454 = vand.u32 %v1452, 31
        %v1455 = vsub.s32 32, %v1454
        %v1456 = vshrl.u32 683565275, %v1455
        %v1457 = vshll.u32 683565275, %v1454
        %v1458 = vshrl.u32 2475754826, %v1455
        %v1459 = vor.u32 %v1457, %v1458
        %v1460 = vshll.u32 2475754826, %v1454
        %v1461 = vshrl.u32 2131351028, %v1455
        %v1462 = vor.u32 %v1460, %v1461
        %v1463 = vshll.u32 2131351028, %v1454
        %v1464 = vshrl.u32 2102212464, %v1455
        %v1465 = vor.u32 %v1463, %v1464
        %v1466 = vshll.u32 2102212464, %v1454
        %v1467 = vshrl.u32 920167782, %v1455
        %v1468 = vor.u32 %v1466, %v1467
        %v1469 = vshll.u32 920167782, %v1454
        %v1470 = vshrl.u32 1326507024, %v1455
        %v1471 = vor.u32 %v1469, %v1470
        %vm1472 = vcmp.lt.s32.totalorder %v1453, 1
        %vm1473 = vcmp.lt.s32.totalorder %v1453, 2
        %vm1474 = vcmp.lt.s32.totalorder %v1453, 3
        %vm1475 = vcmp.lt.s32.totalorder %v1453, 4
        %v1476 = vsel %vm1472, %v1456, %v1459
        %v1477 = vsel %vm1475, %v1465, 2102212464
        %v1478 = vsel %vm1474, %v1462, %v1477
        %v1479 = vsel %vm1473, %v1476, %v1478
        %v1480 = vsel %vm1472, %v1459, %v1462
        %v1481 = vsel %vm1475, %v1468, 920167782
        %v1482 = vsel %vm1474, %v1465, %v1481
        %v1483 = vsel %vm1473, %v1480, %v1482
        %v1484 = vsel %vm1472, %v1462, %v1465
        %v1485 = vsel %vm1475, %v1471, 1326507024
        %v1486 = vsel %vm1474, %v1468, %v1485
        %v1487 = vsel %vm1473, %v1484, %v1486
        %v1488 = vshll.u32 %v1448, 8
        %v1489 = vmul.u32.u64.compose %v1488, %v1487
        %v1490 = vextract.low.u32 %v1489
        %v1491 = vextract.high.u32 %v1489
        %v1492 = vmul.u32.u64.compose %v1488, %v1483
        %v1493 = vextract.low.u32 %v1492
        %v1494 = vextract.high.u32 %v1492
        %v1495 = vmul.u32 %v1488, %v1479
        %v1496 = vadd.s32 %v1491, %v1493
        %vm1497 = vc.u32 %v1491, %v1493
        %v1498 = vadd.s32 %v1494, 1
        %v1499 = vsel %vm1497, %v1498, %v1494
        %v1500 = vadd.s32 %v1495, %v1499
        %v1501 = vadd.s32 %v1500, 536870912
        %v1502 = vshrl.u32 %v1501, 30
        %v1503 = vshll.u32 %v1502, 30
        %v1504 = vsub.s32 %v1500, %v1503
        %vm1505 = vcmp.lt.s32.totalorder %v1504, 0
        %v1506 = vsub.s32 0, %v1504
        %v1507 = vsel %vm1505, %v1506, %v1504
        %v1508 = vclz %v1507
        %v1509 = vsub.s32 %v1508, 2
        %vm1510 = vcmp.gt.s32.totalorder 0, %v1509
        %v1511 = vsel %vm1510, 0, %v1509
        %v1512 = vsub.s32 32, %v1511
        %v1513 = vshll.u32 %v1504, %v1511
        %v1514 = vshrl.u32 %v1496, %v1512
        %v1515 = vor.u32 %v1513, %v1514
        %v1516 = vsub.s32 4294967266, %v1511
        %v1517 = vadd.s32 %v1516, 127
        %v1518 = vshll.u32 %v1517, 23
        %v1519 = vor.u32 4788187, %v1518
        %v1520 = vand.u32 2147483647, %v1519
        %v1522 = vcvt.s32.f32 %v1515
        %v1523 = vmul.f32 %v1522, %v1520
        %v1524 = vxor.u32 %v1523, 2147483648
        %v1525 = vsel %vm1442, %v1524, %v1523
        %v1526 = vsub.s32 4, %v1502
        %v1527 = vsel %vm1442, %v1526, %v1502
        %v1528 = vsel %vm1441, %v243, %v1525
        %v1529 = vsel %vm1441, 0, %v1527
        %v1530 = vcosq.f32.pop %v1528
        %v1531 = vsinq.f32.pop %v1528
        %vm1532 = vweird.f32 %v243
        %v1533 = vadd.s32 %v1529, 3
        %v1534 = vand.u32 %v1533, 3
        %vm1535 = vcmp.lt.s32.totalorder %v1534, 2
        %vm1536 = vcmp.eq.s32.totalorder %v1534, 0
        %v1537 = vxor.u32 %v1531, 2147483648
        %v1538 = vsel %vm1536, %v1530, %v1537
        %vm1539 = vcmp.eq.s32.totalorder %v1534, 2
        %v1540 = vxor.u32 %v1530, 2147483648
        %v1541 = vsel %vm1539, %v1540, %v1531
        %v1542 = vsel %vm1535, %v1538, %v1541
        %v1543 = vsel %vm1532, nan, %v1542
        %v1544 = vand.u32 2147483647, %v244
        %vm1545 = vcmp.le.f32.partialorder %v1544, 0.7853982
        %vm1546 = vcmp.lt.s32.totalorder %v244, 0
        %v1547 = vand.u32 %v244, 2139095040
        %v1548 = vshrl.u32 %v1547, 23
        %v1549 = vsub.s32 %v1548, 127
        %v1550 = vand.u32 2147483647, %v244
        %v1551 = vand.u32 %v1550, 8388607
        %v1552 = vor.u32 %v1551, 8388608
        %v1553 = vsub.s32 0, %v1552
        %v1554 = vadd.s32 %v1549, 1
        %vm1555 = vcmp.gt.s32.totalorder %v1554, 0
        %v1556 = vsel %vm1555, %v1554, 0
        %v1557 = vshrl.u32 %v1556, 5
        %v1558 = vand.u32 %v1556, 31
        %v1559 = vsub.s32 32, %v1558
        %v1560 = vshrl.u32 683565275, %v1559
        %v1561 = vshll.u32 683565275, %v1558
        %v1562 = vshrl.u32 2475754826, %v1559
        %v1563 = vor.u32 %v1561, %v1562
        %v1564 = vshll.u32 2475754826, %v1558
        %v1565 = vshrl.u32 2131351028, %v1559
        %v1566 = vor.u32 %v1564, %v1565
        %v1567 = vshll.u32 2131351028, %v1558
        %v1568 = vshrl.u32 2102212464, %v1559
        %v1569 = vor.u32 %v1567, %v1568
        %v1570 = vshll.u32 2102212464, %v1558
        %v1571 = vshrl.u32 920167782, %v1559
        %v1572 = vor.u32 %v1570, %v1571
        %v1573 = vshll.u32 920167782, %v1558
        %v1574 = vshrl.u32 1326507024, %v1559
        %v1575 = vor.u32 %v1573, %v1574
        %vm1576 = vcmp.lt.s32.totalorder %v1557, 1
        %vm1577 = vcmp.lt.s32.totalorder %v1557, 2
        %vm1578 = vcmp.lt.s32.totalorder %v1557, 3
        %vm1579 = vcmp.lt.s32.totalorder %v1557, 4
        %v1580 = vsel %vm1576, %v1560, %v1563
        %v1581 = vsel %vm1579, %v1569, 2102212464
        %v1582 = vsel %vm1578, %v1566, %v1581
        %v1583 = vsel %vm1577, %v1580, %v1582
        %v1584 = vsel %vm1576, %v1563, %v1566
        %v1585 = vsel %vm1579, %v1572, 920167782
        %v1586 = vsel %vm1578, %v1569, %v1585
        %v1587 = vsel %vm1577, %v1584, %v1586
        %v1588 = vsel %vm1576, %v1566, %v1569
        %v1589 = vsel %vm1579, %v1575, 1326507024
        %v1590 = vsel %vm1578, %v1572, %v1589
        %v1591 = vsel %vm1577, %v1588, %v1590
        %v1592 = vshll.u32 %v1552, 8
        %v1593 = vmul.u32.u64.compose %v1592, %v1591
        %v1594 = vextract.low.u32 %v1593
        %v1595 = vextract.high.u32 %v1593
        %v1596 = vmul.u32.u64.compose %v1592, %v1587
        %v1597 = vextract.low.u32 %v1596
        %v1598 = vextract.high.u32 %v1596
        %v1599 = vmul.u32 %v1592, %v1583
        %v1600 = vadd.s32 %v1595, %v1597
        %vm1601 = vc.u32 %v1595, %v1597
        %v1602 = vadd.s32 %v1598, 1
        %v1603 = vsel %vm1601, %v1602, %v1598
        %v1604 = vadd.s32 %v1599, %v1603
        %v1605 = vadd.s32 %v1604, 536870912
        %v1606 = vshrl.u32 %v1605, 30
        %v1607 = vshll.u32 %v1606, 30
        %v1608 = vsub.s32 %v1604, %v1607
        %vm1609 = vcmp.lt.s32.totalorder %v1608, 0
        %v1610 = vsub.s32 0, %v1608
        %v1611 = vsel %vm1609, %v1610, %v1608
        %v1612 = vclz %v1611
        %v1613 = vsub.s32 %v1612, 2
        %vm1614 = vcmp.gt.s32.totalorder 0, %v1613
        %v1615 = vsel %vm1614, 0, %v1613
        %v1616 = vsub.s32 32, %v1615
        %v1617 = vshll.u32 %v1608, %v1615
        %v1618 = vshrl.u32 %v1600, %v1616
        %v1619 = vor.u32 %v1617, %v1618
        %v1620 = vsub.s32 4294967266, %v1615
        %v1621 = vadd.s32 %v1620, 127
        %v1622 = vshll.u32 %v1621, 23
        %v1623 = vor.u32 4788187, %v1622
        %v1624 = vand.u32 2147483647, %v1623
        %v1626 = vcvt.s32.f32 %v1619
        %v1627 = vmul.f32 %v1626, %v1624
        %v1628 = vxor.u32 %v1627, 2147483648
        %v1629 = vsel %vm1546, %v1628, %v1627
        %v1630 = vsub.s32 4, %v1606
        %v1631 = vsel %vm1546, %v1630, %v1606
        %v1632 = vsel %vm1545, %v244, %v1629
        %v1633 = vsel %vm1545, 0, %v1631
        %v1634 = vcosq.f32.pop %v1632
        %v1635 = vsinq.f32.pop %v1632
        %vm1636 = vweird.f32 %v244
        %v1637 = vadd.s32 %v1633, 3
        %v1638 = vand.u32 %v1637, 3
        %vm1639 = vcmp.lt.s32.totalorder %v1638, 2
        %vm1640 = vcmp.eq.s32.totalorder %v1638, 0
        %v1641 = vxor.u32 %v1635, 2147483648
        %v1642 = vsel %vm1640, %v1634, %v1641
        %vm1643 = vcmp.eq.s32.totalorder %v1638, 2
        %v1644 = vxor.u32 %v1634, 2147483648
        %v1645 = vsel %vm1643, %v1644, %v1635
        %v1646 = vsel %vm1639, %v1642, %v1645
        %v1647 = vsel %vm1636, nan, %v1646
        %v1648 = vand.u32 2147483647, %v245
        %vm1649 = vcmp.le.f32.partialorder %v1648, 0.7853982
        %vm1650 = vcmp.lt.s32.totalorder %v245, 0
        %v1651 = vand.u32 %v245, 2139095040
        %v1652 = vshrl.u32 %v1651, 23
        %v1653 = vsub.s32 %v1652, 127
        %v1654 = vand.u32 2147483647, %v245
        %v1655 = vand.u32 %v1654, 8388607
        %v1656 = vor.u32 %v1655, 8388608
        %v1657 = vsub.s32 0, %v1656
        %v1658 = vadd.s32 %v1653, 1
        %vm1659 = vcmp.gt.s32.totalorder %v1658, 0
        %v1660 = vsel %vm1659, %v1658, 0
        %v1661 = vshrl.u32 %v1660, 5
        %v1662 = vand.u32 %v1660, 31
        %v1663 = vsub.s32 32, %v1662
        %v1664 = vshrl.u32 683565275, %v1663
        %v1665 = vshll.u32 683565275, %v1662
        %v1666 = vshrl.u32 2475754826, %v1663
        %v1667 = vor.u32 %v1665, %v1666
        %v1668 = vshll.u32 2475754826, %v1662
        %v1669 = vshrl.u32 2131351028, %v1663
        %v1670 = vor.u32 %v1668, %v1669
        %v1671 = vshll.u32 2131351028, %v1662
        %v1672 = vshrl.u32 2102212464, %v1663
        %v1673 = vor.u32 %v1671, %v1672
        %v1674 = vshll.u32 2102212464, %v1662
        %v1675 = vshrl.u32 920167782, %v1663
        %v1676 = vor.u32 %v1674, %v1675
        %v1677 = vshll.u32 920167782, %v1662
        %v1678 = vshrl.u32 1326507024, %v1663
        %v1679 = vor.u32 %v1677, %v1678
        %vm1680 = vcmp.lt.s32.totalorder %v1661, 1
        %vm1681 = vcmp.lt.s32.totalorder %v1661, 2
        %vm1682 = vcmp.lt.s32.totalorder %v1661, 3
        %vm1683 = vcmp.lt.s32.totalorder %v1661, 4
        %v1684 = vsel %vm1680, %v1664, %v1667
        %v1685 = vsel %vm1683, %v1673, 2102212464
        %v1686 = vsel %vm1682, %v1670, %v1685
        %v1687 = vsel %vm1681, %v1684, %v1686
        %v1688 = vsel %vm1680, %v1667, %v1670
        %v1689 = vsel %vm1683, %v1676, 920167782
        %v1690 = vsel %vm1682, %v1673, %v1689
        %v1691 = vsel %vm1681, %v1688, %v1690
        %v1692 = vsel %vm1680, %v1670, %v1673
        %v1693 = vsel %vm1683, %v1679, 1326507024
        %v1694 = vsel %vm1682, %v1676, %v1693
        %v1695 = vsel %vm1681, %v1692, %v1694
        %v1696 = vshll.u32 %v1656, 8
        %v1697 = vmul.u32.u64.compose %v1696, %v1695
        %v1698 = vextract.low.u32 %v1697
        %v1699 = vextract.high.u32 %v1697
        %v1700 = vmul.u32.u64.compose %v1696, %v1691
        %v1701 = vextract.low.u32 %v1700
        %v1702 = vextract.high.u32 %v1700
        %v1703 = vmul.u32 %v1696, %v1687
        %v1704 = vadd.s32 %v1699, %v1701
        %vm1705 = vc.u32 %v1699, %v1701
        %v1706 = vadd.s32 %v1702, 1
        %v1707 = vsel %vm1705, %v1706, %v1702
        %v1708 = vadd.s32 %v1703, %v1707
        %v1709 = vadd.s32 %v1708, 536870912
        %v1710 = vshrl.u32 %v1709, 30
        %v1711 = vshll.u32 %v1710, 30
        %v1712 = vsub.s32 %v1708, %v1711
        %vm1713 = vcmp.lt.s32.totalorder %v1712, 0
        %v1714 = vsub.s32 0, %v1712
        %v1715 = vsel %vm1713, %v1714, %v1712
        %v1716 = vclz %v1715
        %v1717 = vsub.s32 %v1716, 2
        %vm1718 = vcmp.gt.s32.totalorder 0, %v1717
        %v1719 = vsel %vm1718, 0, %v1717
        %v1720 = vsub.s32 32, %v1719
        %v1721 = vshll.u32 %v1712, %v1719
        %v1722 = vshrl.u32 %v1704, %v1720
        %v1723 = vor.u32 %v1721, %v1722
        %v1724 = vsub.s32 4294967266, %v1719
        %v1725 = vadd.s32 %v1724, 127
        %v1726 = vshll.u32 %v1725, 23
        %v1727 = vor.u32 4788187, %v1726
        %v1728 = vand.u32 2147483647, %v1727
        %v1730 = vcvt.s32.f32 %v1723
        %v1731 = vmul.f32 %v1730, %v1728
        %v1732 = vxor.u32 %v1731, 2147483648
        %v1733 = vsel %vm1650, %v1732, %v1731
        %v1734 = vsub.s32 4, %v1710
        %v1735 = vsel %vm1650, %v1734, %v1710
        %v1736 = vsel %vm1649, %v245, %v1733
        %v1737 = vsel %vm1649, 0, %v1735
        %v1738 = vcosq.f32.pop %v1736
        %v1739 = vsinq.f32.pop %v1736
        %vm1740 = vweird.f32 %v245
        %v1741 = vadd.s32 %v1737, 3
        %v1742 = vand.u32 %v1741, 3
        %vm1743 = vcmp.lt.s32.totalorder %v1742, 2
        %vm1744 = vcmp.eq.s32.totalorder %v1742, 0
        %v1745 = vxor.u32 %v1739, 2147483648
        %v1746 = vsel %vm1744, %v1738, %v1745
        %vm1747 = vcmp.eq.s32.totalorder %v1742, 2
        %v1748 = vxor.u32 %v1738, 2147483648
        %v1749 = vsel %vm1747, %v1748, %v1739
        %v1750 = vsel %vm1743, %v1746, %v1749
        %v1751 = vsel %vm1740, nan, %v1750
        %v1752 = vand.u32 2147483647, %v246
        %vm1753 = vcmp.le.f32.partialorder %v1752, 0.7853982
        %vm1754 = vcmp.lt.s32.totalorder %v246, 0
        %v1755 = vand.u32 %v246, 2139095040
        %v1756 = vshrl.u32 %v1755, 23
        %v1757 = vsub.s32 %v1756, 127
        %v1758 = vand.u32 2147483647, %v246
        %v1759 = vand.u32 %v1758, 8388607
        %v1760 = vor.u32 %v1759, 8388608
        %v1761 = vsub.s32 0, %v1760
        %v1762 = vadd.s32 %v1757, 1
        %vm1763 = vcmp.gt.s32.totalorder %v1762, 0
        %v1764 = vsel %vm1763, %v1762, 0
        %v1765 = vshrl.u32 %v1764, 5
        %v1766 = vand.u32 %v1764, 31
        %v1767 = vsub.s32 32, %v1766
        %v1768 = vshrl.u32 683565275, %v1767
        %v1769 = vshll.u32 683565275, %v1766
        %v1770 = vshrl.u32 2475754826, %v1767
        %v1771 = vor.u32 %v1769, %v1770
        %v1772 = vshll.u32 2475754826, %v1766
        %v1773 = vshrl.u32 2131351028, %v1767
        %v1774 = vor.u32 %v1772, %v1773
        %v1775 = vshll.u32 2131351028, %v1766
        %v1776 = vshrl.u32 2102212464, %v1767
        %v1777 = vor.u32 %v1775, %v1776
        %v1778 = vshll.u32 2102212464, %v1766
        %v1779 = vshrl.u32 920167782, %v1767
        %v1780 = vor.u32 %v1778, %v1779
        %v1781 = vshll.u32 920167782, %v1766
        %v1782 = vshrl.u32 1326507024, %v1767
        %v1783 = vor.u32 %v1781, %v1782
        %vm1784 = vcmp.lt.s32.totalorder %v1765, 1
        %vm1785 = vcmp.lt.s32.totalorder %v1765, 2
        %vm1786 = vcmp.lt.s32.totalorder %v1765, 3
        %vm1787 = vcmp.lt.s32.totalorder %v1765, 4
        %v1788 = vsel %vm1784, %v1768, %v1771
        %v1789 = vsel %vm1787, %v1777, 2102212464
        %v1790 = vsel %vm1786, %v1774, %v1789
        %v1791 = vsel %vm1785, %v1788, %v1790
        %v1792 = vsel %vm1784, %v1771, %v1774
        %v1793 = vsel %vm1787, %v1780, 920167782
        %v1794 = vsel %vm1786, %v1777, %v1793
        %v1795 = vsel %vm1785, %v1792, %v1794
        %v1796 = vsel %vm1784, %v1774, %v1777
        %v1797 = vsel %vm1787, %v1783, 1326507024
        %v1798 = vsel %vm1786, %v1780, %v1797
        %v1799 = vsel %vm1785, %v1796, %v1798
        %v1800 = vshll.u32 %v1760, 8
        %v1801 = vmul.u32.u64.compose %v1800, %v1799
        %v1802 = vextract.low.u32 %v1801
        %v1803 = vextract.high.u32 %v1801
        %v1804 = vmul.u32.u64.compose %v1800, %v1795
        %v1805 = vextract.low.u32 %v1804
        %v1806 = vextract.high.u32 %v1804
        %v1807 = vmul.u32 %v1800, %v1791
        %v1808 = vadd.s32 %v1803, %v1805
        %vm1809 = vc.u32 %v1803, %v1805
        %v1810 = vadd.s32 %v1806, 1
        %v1811 = vsel %vm1809, %v1810, %v1806
        %v1812 = vadd.s32 %v1807, %v1811
        %v1813 = vadd.s32 %v1812, 536870912
        %v1814 = vshrl.u32 %v1813, 30
        %v1815 = vshll.u32 %v1814, 30
        %v1816 = vsub.s32 %v1812, %v1815
        %vm1817 = vcmp.lt.s32.totalorder %v1816, 0
        %v1818 = vsub.s32 0, %v1816
        %v1819 = vsel %vm1817, %v1818, %v1816
        %v1820 = vclz %v1819
        %v1821 = vsub.s32 %v1820, 2
        %vm1822 = vcmp.gt.s32.totalorder 0, %v1821
        %v1823 = vsel %vm1822, 0, %v1821
        %v1824 = vsub.s32 32, %v1823
        %v1825 = vshll.u32 %v1816, %v1823
        %v1826 = vshrl.u32 %v1808, %v1824
        %v1827 = vor.u32 %v1825, %v1826
        %v1828 = vsub.s32 4294967266, %v1823
        %v1829 = vadd.s32 %v1828, 127
        %v1830 = vshll.u32 %v1829, 23
        %v1831 = vor.u32 4788187, %v1830
        %v1832 = vand.u32 2147483647, %v1831
        %v1834 = vcvt.s32.f32 %v1827
        %v1835 = vmul.f32 %v1834, %v1832
        %v1836 = vxor.u32 %v1835, 2147483648
        %v1837 = vsel %vm1754, %v1836, %v1835
        %v1838 = vsub.s32 4, %v1814
        %v1839 = vsel %vm1754, %v1838, %v1814
        %v1840 = vsel %vm1753, %v246, %v1837
        %v1841 = vsel %vm1753, 0, %v1839
        %v1842 = vcosq.f32.pop %v1840
        %v1843 = vsinq.f32.pop %v1840
        %vm1844 = vweird.f32 %v246
        %v1845 = vadd.s32 %v1841, 3
        %v1846 = vand.u32 %v1845, 3
        %vm1847 = vcmp.lt.s32.totalorder %v1846, 2
        %vm1848 = vcmp.eq.s32.totalorder %v1846, 0
        %v1849 = vxor.u32 %v1843, 2147483648
        %v1850 = vsel %vm1848, %v1842, %v1849
        %vm1851 = vcmp.eq.s32.totalorder %v1846, 2
        %v1852 = vxor.u32 %v1842, 2147483648
        %v1853 = vsel %vm1851, %v1852, %v1843
        %v1854 = vsel %vm1847, %v1850, %v1853
        %v1855 = vsel %vm1844, nan, %v1854
        %v1856 = vand.u32 2147483647, %v247
        %vm1857 = vcmp.le.f32.partialorder %v1856, 0.7853982
        %vm1858 = vcmp.lt.s32.totalorder %v247, 0
        %v1859 = vand.u32 %v247, 2139095040
        %v1860 = vshrl.u32 %v1859, 23
        %v1861 = vsub.s32 %v1860, 127
        %v1862 = vand.u32 2147483647, %v247
        %v1863 = vand.u32 %v1862, 8388607
        %v1864 = vor.u32 %v1863, 8388608
        %v1865 = vsub.s32 0, %v1864
        %v1866 = vadd.s32 %v1861, 1
        %vm1867 = vcmp.gt.s32.totalorder %v1866, 0
        %v1868 = vsel %vm1867, %v1866, 0
        %v1869 = vshrl.u32 %v1868, 5
        %v1870 = vand.u32 %v1868, 31
        %v1871 = vsub.s32 32, %v1870
        %v1872 = vshrl.u32 683565275, %v1871
        %v1873 = vshll.u32 683565275, %v1870
        %v1874 = vshrl.u32 2475754826, %v1871
        %v1875 = vor.u32 %v1873, %v1874
        %v1876 = vshll.u32 2475754826, %v1870
        %v1877 = vshrl.u32 2131351028, %v1871
        %v1878 = vor.u32 %v1876, %v1877
        %v1879 = vshll.u32 2131351028, %v1870
        %v1880 = vshrl.u32 2102212464, %v1871
        %v1881 = vor.u32 %v1879, %v1880
        %v1882 = vshll.u32 2102212464, %v1870
        %v1883 = vshrl.u32 920167782, %v1871
        %v1884 = vor.u32 %v1882, %v1883
        %v1885 = vshll.u32 920167782, %v1870
        %v1886 = vshrl.u32 1326507024, %v1871
        %v1887 = vor.u32 %v1885, %v1886
        %vm1888 = vcmp.lt.s32.totalorder %v1869, 1
        %vm1889 = vcmp.lt.s32.totalorder %v1869, 2
        %vm1890 = vcmp.lt.s32.totalorder %v1869, 3
        %vm1891 = vcmp.lt.s32.totalorder %v1869, 4
        %v1892 = vsel %vm1888, %v1872, %v1875
        %v1893 = vsel %vm1891, %v1881, 2102212464
        %v1894 = vsel %vm1890, %v1878, %v1893
        %v1895 = vsel %vm1889, %v1892, %v1894
        %v1896 = vsel %vm1888, %v1875, %v1878
        %v1897 = vsel %vm1891, %v1884, 920167782
        %v1898 = vsel %vm1890, %v1881, %v1897
        %v1899 = vsel %vm1889, %v1896, %v1898
        %v1900 = vsel %vm1888, %v1878, %v1881
        %v1901 = vsel %vm1891, %v1887, 1326507024
        %v1902 = vsel %vm1890, %v1884, %v1901
        %v1903 = vsel %vm1889, %v1900, %v1902
        %v1904 = vshll.u32 %v1864, 8
        %v1905 = vmul.u32.u64.compose %v1904, %v1903
        %v1906 = vextract.low.u32 %v1905
        %v1907 = vextract.high.u32 %v1905
        %v1908 = vmul.u32.u64.compose %v1904, %v1899
        %v1909 = vextract.low.u32 %v1908
        %v1910 = vextract.high.u32 %v1908
        %v1911 = vmul.u32 %v1904, %v1895
        %v1912 = vadd.s32 %v1907, %v1909
        %vm1913 = vc.u32 %v1907, %v1909
        %v1914 = vadd.s32 %v1910, 1
        %v1915 = vsel %vm1913, %v1914, %v1910
        %v1916 = vadd.s32 %v1911, %v1915
        %v1917 = vadd.s32 %v1916, 536870912
        %v1918 = vshrl.u32 %v1917, 30
        %v1919 = vshll.u32 %v1918, 30
        %v1920 = vsub.s32 %v1916, %v1919
        %vm1921 = vcmp.lt.s32.totalorder %v1920, 0
        %v1922 = vsub.s32 0, %v1920
        %v1923 = vsel %vm1921, %v1922, %v1920
        %v1924 = vclz %v1923
        %v1925 = vsub.s32 %v1924, 2
        %vm1926 = vcmp.gt.s32.totalorder 0, %v1925
        %v1927 = vsel %vm1926, 0, %v1925
        %v1928 = vsub.s32 32, %v1927
        %v1929 = vshll.u32 %v1920, %v1927
        %v1930 = vshrl.u32 %v1912, %v1928
        %v1931 = vor.u32 %v1929, %v1930
        %v1932 = vsub.s32 4294967266, %v1927
        %v1933 = vadd.s32 %v1932, 127
        %v1934 = vshll.u32 %v1933, 23
        %v1935 = vor.u32 4788187, %v1934
        %v1936 = vand.u32 2147483647, %v1935
        %v1938 = vcvt.s32.f32 %v1931
        %v1939 = vmul.f32 %v1938, %v1936
        %v1940 = vxor.u32 %v1939, 2147483648
        %v1941 = vsel %vm1858, %v1940, %v1939
        %v1942 = vsub.s32 4, %v1918
        %v1943 = vsel %vm1858, %v1942, %v1918
        %v1944 = vsel %vm1857, %v247, %v1941
        %v1945 = vsel %vm1857, 0, %v1943
        %v1946 = vcosq.f32.pop %v1944
        %v1947 = vsinq.f32.pop %v1944
        %vm1948 = vweird.f32 %v247
        %v1949 = vadd.s32 %v1945, 3
        %v1950 = vand.u32 %v1949, 3
        %vm1951 = vcmp.lt.s32.totalorder %v1950, 2
        %vm1952 = vcmp.eq.s32.totalorder %v1950, 0
        %v1953 = vxor.u32 %v1947, 2147483648
        %v1954 = vsel %vm1952, %v1946, %v1953
        %vm1955 = vcmp.eq.s32.totalorder %v1950, 2
        %v1956 = vxor.u32 %v1946, 2147483648
        %v1957 = vsel %vm1955, %v1956, %v1947
        %v1958 = vsel %vm1951, %v1954, %v1957
        %v1959 = vsel %vm1948, nan, %v1958
        %v1960 = vand.u32 2147483647, %v248
        %vm1961 = vcmp.le.f32.partialorder %v1960, 0.7853982
        %vm1962 = vcmp.lt.s32.totalorder %v248, 0
        %v1963 = vand.u32 %v248, 2139095040
        %v1964 = vshrl.u32 %v1963, 23
        %v1965 = vsub.s32 %v1964, 127
        %v1966 = vand.u32 2147483647, %v248
        %v1967 = vand.u32 %v1966, 8388607
        %v1968 = vor.u32 %v1967, 8388608
        %v1969 = vsub.s32 0, %v1968
        %v1970 = vadd.s32 %v1965, 1
        %vm1971 = vcmp.gt.s32.totalorder %v1970, 0
        %v1972 = vsel %vm1971, %v1970, 0
        %v1973 = vshrl.u32 %v1972, 5
        %v1974 = vand.u32 %v1972, 31
        %v1975 = vsub.s32 32, %v1974
        %v1976 = vshrl.u32 683565275, %v1975
        %v1977 = vshll.u32 683565275, %v1974
        %v1978 = vshrl.u32 2475754826, %v1975
        %v1979 = vor.u32 %v1977, %v1978
        %v1980 = vshll.u32 2475754826, %v1974
        %v1981 = vshrl.u32 2131351028, %v1975
        %v1982 = vor.u32 %v1980, %v1981
        %v1983 = vshll.u32 2131351028, %v1974
        %v1984 = vshrl.u32 2102212464, %v1975
        %v1985 = vor.u32 %v1983, %v1984
        %v1986 = vshll.u32 2102212464, %v1974
        %v1987 = vshrl.u32 920167782, %v1975
        %v1988 = vor.u32 %v1986, %v1987
        %v1989 = vshll.u32 920167782, %v1974
        %v1990 = vshrl.u32 1326507024, %v1975
        %v1991 = vor.u32 %v1989, %v1990
        %vm1992 = vcmp.lt.s32.totalorder %v1973, 1
        %vm1993 = vcmp.lt.s32.totalorder %v1973, 2
        %vm1994 = vcmp.lt.s32.totalorder %v1973, 3
        %vm1995 = vcmp.lt.s32.totalorder %v1973, 4
        %v1996 = vsel %vm1992, %v1976, %v1979
        %v1997 = vsel %vm1995, %v1985, 2102212464
        %v1998 = vsel %vm1994, %v1982, %v1997
        %v1999 = vsel %vm1993, %v1996, %v1998
        %v2000 = vsel %vm1992, %v1979, %v1982
        %v2001 = vsel %vm1995, %v1988, 920167782
        %v2002 = vsel %vm1994, %v1985, %v2001
        %v2003 = vsel %vm1993, %v2000, %v2002
        %v2004 = vsel %vm1992, %v1982, %v1985
        %v2005 = vsel %vm1995, %v1991, 1326507024
        %v2006 = vsel %vm1994, %v1988, %v2005
        %v2007 = vsel %vm1993, %v2004, %v2006
        %v2008 = vshll.u32 %v1968, 8
        %v2009 = vmul.u32.u64.compose %v2008, %v2007
        %v2010 = vextract.low.u32 %v2009
        %v2011 = vextract.high.u32 %v2009
        %v2012 = vmul.u32.u64.compose %v2008, %v2003
        %v2013 = vextract.low.u32 %v2012
        %v2014 = vextract.high.u32 %v2012
        %v2015 = vmul.u32 %v2008, %v1999
        %v2016 = vadd.s32 %v2011, %v2013
        %vm2017 = vc.u32 %v2011, %v2013
        %v2018 = vadd.s32 %v2014, 1
        %v2019 = vsel %vm2017, %v2018, %v2014
        %v2020 = vadd.s32 %v2015, %v2019
        %v2021 = vadd.s32 %v2020, 536870912
        %v2022 = vshrl.u32 %v2021, 30
        %v2023 = vshll.u32 %v2022, 30
        %v2024 = vsub.s32 %v2020, %v2023
        %vm2025 = vcmp.lt.s32.totalorder %v2024, 0
        %v2026 = vsub.s32 0, %v2024
        %v2027 = vsel %vm2025, %v2026, %v2024
        %v2028 = vclz %v2027
        %v2029 = vsub.s32 %v2028, 2
        %vm2030 = vcmp.gt.s32.totalorder 0, %v2029
        %v2031 = vsel %vm2030, 0, %v2029
        %v2032 = vsub.s32 32, %v2031
        %v2033 = vshll.u32 %v2024, %v2031
        %v2034 = vshrl.u32 %v2016, %v2032
        %v2035 = vor.u32 %v2033, %v2034
        %v2036 = vsub.s32 4294967266, %v2031
        %v2037 = vadd.s32 %v2036, 127
        %v2038 = vshll.u32 %v2037, 23
        %v2039 = vor.u32 4788187, %v2038
        %v2040 = vand.u32 2147483647, %v2039
        %v2042 = vcvt.s32.f32 %v2035
        %v2043 = vmul.f32 %v2042, %v2040
        %v2044 = vxor.u32 %v2043, 2147483648
        %v2045 = vsel %vm1962, %v2044, %v2043
        %v2046 = vsub.s32 4, %v2022
        %v2047 = vsel %vm1962, %v2046, %v2022
        %v2048 = vsel %vm1961, %v248, %v2045
        %v2049 = vsel %vm1961, 0, %v2047
        %v2050 = vcosq.f32.pop %v2048
        %v2051 = vsinq.f32.pop %v2048
        %vm2052 = vweird.f32 %v248
        %v2053 = vadd.s32 %v2049, 3
        %v2054 = vand.u32 %v2053, 3
        %vm2055 = vcmp.lt.s32.totalorder %v2054, 2
        %vm2056 = vcmp.eq.s32.totalorder %v2054, 0
        %v2057 = vxor.u32 %v2051, 2147483648
        %v2058 = vsel %vm2056, %v2050, %v2057
        %vm2059 = vcmp.eq.s32.totalorder %v2054, 2
        %v2060 = vxor.u32 %v2050, 2147483648
        %v2061 = vsel %vm2059, %v2060, %v2051
        %v2062 = vsel %vm2055, %v2058, %v2061
        %v2063 = vsel %vm2052, nan, %v2062
        %v2064 = vand.u32 2147483647, %v249
        %vm2065 = vcmp.le.f32.partialorder %v2064, 0.7853982
        %vm2066 = vcmp.lt.s32.totalorder %v249, 0
        %v2067 = vand.u32 %v249, 2139095040
        %v2068 = vshrl.u32 %v2067, 23
        %v2069 = vsub.s32 %v2068, 127
        %v2070 = vand.u32 2147483647, %v249
        %v2071 = vand.u32 %v2070, 8388607
        %v2072 = vor.u32 %v2071, 8388608
        %v2073 = vsub.s32 0, %v2072
        %v2074 = vadd.s32 %v2069, 1
        %vm2075 = vcmp.gt.s32.totalorder %v2074, 0
        %v2076 = vsel %vm2075, %v2074, 0
        %v2077 = vshrl.u32 %v2076, 5
        %v2078 = vand.u32 %v2076, 31
        %v2079 = vsub.s32 32, %v2078
        %v2080 = vshrl.u32 683565275, %v2079
        %v2081 = vshll.u32 683565275, %v2078
        %v2082 = vshrl.u32 2475754826, %v2079
        %v2083 = vor.u32 %v2081, %v2082
        %v2084 = vshll.u32 2475754826, %v2078
        %v2085 = vshrl.u32 2131351028, %v2079
        %v2086 = vor.u32 %v2084, %v2085
        %v2087 = vshll.u32 2131351028, %v2078
        %v2088 = vshrl.u32 2102212464, %v2079
        %v2089 = vor.u32 %v2087, %v2088
        %v2090 = vshll.u32 2102212464, %v2078
        %v2091 = vshrl.u32 920167782, %v2079
        %v2092 = vor.u32 %v2090, %v2091
        %v2093 = vshll.u32 920167782, %v2078
        %v2094 = vshrl.u32 1326507024, %v2079
        %v2095 = vor.u32 %v2093, %v2094
        %vm2096 = vcmp.lt.s32.totalorder %v2077, 1
        %vm2097 = vcmp.lt.s32.totalorder %v2077, 2
        %vm2098 = vcmp.lt.s32.totalorder %v2077, 3
        %vm2099 = vcmp.lt.s32.totalorder %v2077, 4
        %v2100 = vsel %vm2096, %v2080, %v2083
        %v2101 = vsel %vm2099, %v2089, 2102212464
        %v2102 = vsel %vm2098, %v2086, %v2101
        %v2103 = vsel %vm2097, %v2100, %v2102
        %v2104 = vsel %vm2096, %v2083, %v2086
        %v2105 = vsel %vm2099, %v2092, 920167782
        %v2106 = vsel %vm2098, %v2089, %v2105
        %v2107 = vsel %vm2097, %v2104, %v2106
        %v2108 = vsel %vm2096, %v2086, %v2089
        %v2109 = vsel %vm2099, %v2095, 1326507024
        %v2110 = vsel %vm2098, %v2092, %v2109
        %v2111 = vsel %vm2097, %v2108, %v2110
        %v2112 = vshll.u32 %v2072, 8
        %v2113 = vmul.u32.u64.compose %v2112, %v2111
        %v2114 = vextract.low.u32 %v2113
        %v2115 = vextract.high.u32 %v2113
        %v2116 = vmul.u32.u64.compose %v2112, %v2107
        %v2117 = vextract.low.u32 %v2116
        %v2118 = vextract.high.u32 %v2116
        %v2119 = vmul.u32 %v2112, %v2103
        %v2120 = vadd.s32 %v2115, %v2117
        %vm2121 = vc.u32 %v2115, %v2117
        %v2122 = vadd.s32 %v2118, 1
        %v2123 = vsel %vm2121, %v2122, %v2118
        %v2124 = vadd.s32 %v2119, %v2123
        %v2125 = vadd.s32 %v2124, 536870912
        %v2126 = vshrl.u32 %v2125, 30
        %v2127 = vshll.u32 %v2126, 30
        %v2128 = vsub.s32 %v2124, %v2127
        %vm2129 = vcmp.lt.s32.totalorder %v2128, 0
        %v2130 = vsub.s32 0, %v2128
        %v2131 = vsel %vm2129, %v2130, %v2128
        %v2132 = vclz %v2131
        %v2133 = vsub.s32 %v2132, 2
        %vm2134 = vcmp.gt.s32.totalorder 0, %v2133
        %v2135 = vsel %vm2134, 0, %v2133
        %v2136 = vsub.s32 32, %v2135
        %v2137 = vshll.u32 %v2128, %v2135
        %v2138 = vshrl.u32 %v2120, %v2136
        %v2139 = vor.u32 %v2137, %v2138
        %v2140 = vsub.s32 4294967266, %v2135
        %v2141 = vadd.s32 %v2140, 127
        %v2142 = vshll.u32 %v2141, 23
        %v2143 = vor.u32 4788187, %v2142
        %v2144 = vand.u32 2147483647, %v2143
        %v2146 = vcvt.s32.f32 %v2139
        %v2147 = vmul.f32 %v2146, %v2144
        %v2148 = vxor.u32 %v2147, 2147483648
        %v2149 = vsel %vm2066, %v2148, %v2147
        %v2150 = vsub.s32 4, %v2126
        %v2151 = vsel %vm2066, %v2150, %v2126
        %v2152 = vsel %vm2065, %v249, %v2149
        %v2153 = vsel %vm2065, 0, %v2151
        %v2154 = vcosq.f32.pop %v2152
        %v2155 = vsinq.f32.pop %v2152
        %vm2156 = vweird.f32 %v249
        %v2157 = vadd.s32 %v2153, 3
        %v2158 = vand.u32 %v2157, 3
        %vm2159 = vcmp.lt.s32.totalorder %v2158, 2
        %vm2160 = vcmp.eq.s32.totalorder %v2158, 0
        %v2161 = vxor.u32 %v2155, 2147483648
        %v2162 = vsel %vm2160, %v2154, %v2161
        %vm2163 = vcmp.eq.s32.totalorder %v2158, 2
        %v2164 = vxor.u32 %v2154, 2147483648
        %v2165 = vsel %vm2163, %v2164, %v2155
        %v2166 = vsel %vm2159, %v2162, %v2165
        %v2167 = vsel %vm2156, nan, %v2166
        %v2168 = vand.u32 2147483647, %v250
        %vm2169 = vcmp.le.f32.partialorder %v2168, 0.7853982
        %vm2170 = vcmp.lt.s32.totalorder %v250, 0
        %v2171 = vand.u32 %v250, 2139095040
        %v2172 = vshrl.u32 %v2171, 23
        %v2173 = vsub.s32 %v2172, 127
        %v2174 = vand.u32 2147483647, %v250
        %v2175 = vand.u32 %v2174, 8388607
        %v2176 = vor.u32 %v2175, 8388608
        %v2177 = vsub.s32 0, %v2176
        %v2178 = vadd.s32 %v2173, 1
        %vm2179 = vcmp.gt.s32.totalorder %v2178, 0
        %v2180 = vsel %vm2179, %v2178, 0
        %v2181 = vshrl.u32 %v2180, 5
        %v2182 = vand.u32 %v2180, 31
        %v2183 = vsub.s32 32, %v2182
        %v2184 = vshrl.u32 683565275, %v2183
        %v2185 = vshll.u32 683565275, %v2182
        %v2186 = vshrl.u32 2475754826, %v2183
        %v2187 = vor.u32 %v2185, %v2186
        %v2188 = vshll.u32 2475754826, %v2182
        %v2189 = vshrl.u32 2131351028, %v2183
        %v2190 = vor.u32 %v2188, %v2189
        %v2191 = vshll.u32 2131351028, %v2182
        %v2192 = vshrl.u32 2102212464, %v2183
        %v2193 = vor.u32 %v2191, %v2192
        %v2194 = vshll.u32 2102212464, %v2182
        %v2195 = vshrl.u32 920167782, %v2183
        %v2196 = vor.u32 %v2194, %v2195
        %v2197 = vshll.u32 920167782, %v2182
        %v2198 = vshrl.u32 1326507024, %v2183
        %v2199 = vor.u32 %v2197, %v2198
        %vm2200 = vcmp.lt.s32.totalorder %v2181, 1
        %vm2201 = vcmp.lt.s32.totalorder %v2181, 2
        %vm2202 = vcmp.lt.s32.totalorder %v2181, 3
        %vm2203 = vcmp.lt.s32.totalorder %v2181, 4
        %v2204 = vsel %vm2200, %v2184, %v2187
        %v2205 = vsel %vm2203, %v2193, 2102212464
        %v2206 = vsel %vm2202, %v2190, %v2205
        %v2207 = vsel %vm2201, %v2204, %v2206
        %v2208 = vsel %vm2200, %v2187, %v2190
        %v2209 = vsel %vm2203, %v2196, 920167782
        %v2210 = vsel %vm2202, %v2193, %v2209
        %v2211 = vsel %vm2201, %v2208, %v2210
        %v2212 = vsel %vm2200, %v2190, %v2193
        %v2213 = vsel %vm2203, %v2199, 1326507024
        %v2214 = vsel %vm2202, %v2196, %v2213
        %v2215 = vsel %vm2201, %v2212, %v2214
        %v2216 = vshll.u32 %v2176, 8
        %v2217 = vmul.u32.u64.compose %v2216, %v2215
        %v2218 = vextract.low.u32 %v2217
        %v2219 = vextract.high.u32 %v2217
        %v2220 = vmul.u32.u64.compose %v2216, %v2211
        %v2221 = vextract.low.u32 %v2220
        %v2222 = vextract.high.u32 %v2220
        %v2223 = vmul.u32 %v2216, %v2207
        %v2224 = vadd.s32 %v2219, %v2221
        %vm2225 = vc.u32 %v2219, %v2221
        %v2226 = vadd.s32 %v2222, 1
        %v2227 = vsel %vm2225, %v2226, %v2222
        %v2228 = vadd.s32 %v2223, %v2227
        %v2229 = vadd.s32 %v2228, 536870912
        %v2230 = vshrl.u32 %v2229, 30
        %v2231 = vshll.u32 %v2230, 30
        %v2232 = vsub.s32 %v2228, %v2231
        %vm2233 = vcmp.lt.s32.totalorder %v2232, 0
        %v2234 = vsub.s32 0, %v2232
        %v2235 = vsel %vm2233, %v2234, %v2232
        %v2236 = vclz %v2235
        %v2237 = vsub.s32 %v2236, 2
        %vm2238 = vcmp.gt.s32.totalorder 0, %v2237
        %v2239 = vsel %vm2238, 0, %v2237
        %v2240 = vsub.s32 32, %v2239
        %v2241 = vshll.u32 %v2232, %v2239
        %v2242 = vshrl.u32 %v2224, %v2240
        %v2243 = vor.u32 %v2241, %v2242
        %v2244 = vsub.s32 4294967266, %v2239
        %v2245 = vadd.s32 %v2244, 127
        %v2246 = vshll.u32 %v2245, 23
        %v2247 = vor.u32 4788187, %v2246
        %v2248 = vand.u32 2147483647, %v2247
        %v2250 = vcvt.s32.f32 %v2243
        %v2251 = vmul.f32 %v2250, %v2248
        %v2252 = vxor.u32 %v2251, 2147483648
        %v2253 = vsel %vm2170, %v2252, %v2251
        %v2254 = vsub.s32 4, %v2230
        %v2255 = vsel %vm2170, %v2254, %v2230
        %v2256 = vsel %vm2169, %v250, %v2253
        %v2257 = vsel %vm2169, 0, %v2255
        %v2258 = vcosq.f32.pop %v2256
        %v2259 = vsinq.f32.pop %v2256
        %vm2260 = vweird.f32 %v250
        %v2261 = vadd.s32 %v2257, 3
        %v2262 = vand.u32 %v2261, 3
        %vm2263 = vcmp.lt.s32.totalorder %v2262, 2
        %vm2264 = vcmp.eq.s32.totalorder %v2262, 0
        %v2265 = vxor.u32 %v2259, 2147483648
        %v2266 = vsel %vm2264, %v2258, %v2265
        %vm2267 = vcmp.eq.s32.totalorder %v2262, 2
        %v2268 = vxor.u32 %v2258, 2147483648
        %v2269 = vsel %vm2267, %v2268, %v2259
        %v2270 = vsel %vm2263, %v2266, %v2269
        %v2271 = vsel %vm2260, nan, %v2270
        %v2272 = vand.u32 2147483647, %v251
        %vm2273 = vcmp.le.f32.partialorder %v2272, 0.7853982
        %vm2274 = vcmp.lt.s32.totalorder %v251, 0
        %v2275 = vand.u32 %v251, 2139095040
        %v2276 = vshrl.u32 %v2275, 23
        %v2277 = vsub.s32 %v2276, 127
        %v2278 = vand.u32 2147483647, %v251
        %v2279 = vand.u32 %v2278, 8388607
        %v2280 = vor.u32 %v2279, 8388608
        %v2281 = vsub.s32 0, %v2280
        %v2282 = vadd.s32 %v2277, 1
        %vm2283 = vcmp.gt.s32.totalorder %v2282, 0
        %v2284 = vsel %vm2283, %v2282, 0
        %v2285 = vshrl.u32 %v2284, 5
        %v2286 = vand.u32 %v2284, 31
        %v2287 = vsub.s32 32, %v2286
        %v2288 = vshrl.u32 683565275, %v2287
        %v2289 = vshll.u32 683565275, %v2286
        %v2290 = vshrl.u32 2475754826, %v2287
        %v2291 = vor.u32 %v2289, %v2290
        %v2292 = vshll.u32 2475754826, %v2286
        %v2293 = vshrl.u32 2131351028, %v2287
        %v2294 = vor.u32 %v2292, %v2293
        %v2295 = vshll.u32 2131351028, %v2286
        %v2296 = vshrl.u32 2102212464, %v2287
        %v2297 = vor.u32 %v2295, %v2296
        %v2298 = vshll.u32 2102212464, %v2286
        %v2299 = vshrl.u32 920167782, %v2287
        %v2300 = vor.u32 %v2298, %v2299
        %v2301 = vshll.u32 920167782, %v2286
        %v2302 = vshrl.u32 1326507024, %v2287
        %v2303 = vor.u32 %v2301, %v2302
        %vm2304 = vcmp.lt.s32.totalorder %v2285, 1
        %vm2305 = vcmp.lt.s32.totalorder %v2285, 2
        %vm2306 = vcmp.lt.s32.totalorder %v2285, 3
        %vm2307 = vcmp.lt.s32.totalorder %v2285, 4
        %v2308 = vsel %vm2304, %v2288, %v2291
        %v2309 = vsel %vm2307, %v2297, 2102212464
        %v2310 = vsel %vm2306, %v2294, %v2309
        %v2311 = vsel %vm2305, %v2308, %v2310
        %v2312 = vsel %vm2304, %v2291, %v2294
        %v2313 = vsel %vm2307, %v2300, 920167782
        %v2314 = vsel %vm2306, %v2297, %v2313
        %v2315 = vsel %vm2305, %v2312, %v2314
        %v2316 = vsel %vm2304, %v2294, %v2297
        %v2317 = vsel %vm2307, %v2303, 1326507024
        %v2318 = vsel %vm2306, %v2300, %v2317
        %v2319 = vsel %vm2305, %v2316, %v2318
        %v2320 = vshll.u32 %v2280, 8
        %v2321 = vmul.u32.u64.compose %v2320, %v2319
        %v2322 = vextract.low.u32 %v2321
        %v2323 = vextract.high.u32 %v2321
        %v2324 = vmul.u32.u64.compose %v2320, %v2315
        %v2325 = vextract.low.u32 %v2324
        %v2326 = vextract.high.u32 %v2324
        %v2327 = vmul.u32 %v2320, %v2311
        %v2328 = vadd.s32 %v2323, %v2325
        %vm2329 = vc.u32 %v2323, %v2325
        %v2330 = vadd.s32 %v2326, 1
        %v2331 = vsel %vm2329, %v2330, %v2326
        %v2332 = vadd.s32 %v2327, %v2331
        %v2333 = vadd.s32 %v2332, 536870912
        %v2334 = vshrl.u32 %v2333, 30
        %v2335 = vshll.u32 %v2334, 30
        %v2336 = vsub.s32 %v2332, %v2335
        %vm2337 = vcmp.lt.s32.totalorder %v2336, 0
        %v2338 = vsub.s32 0, %v2336
        %v2339 = vsel %vm2337, %v2338, %v2336
        %v2340 = vclz %v2339
        %v2341 = vsub.s32 %v2340, 2
        %vm2342 = vcmp.gt.s32.totalorder 0, %v2341
        %v2343 = vsel %vm2342, 0, %v2341
        %v2344 = vsub.s32 32, %v2343
        %v2345 = vshll.u32 %v2336, %v2343
        %v2346 = vshrl.u32 %v2328, %v2344
        %v2347 = vor.u32 %v2345, %v2346
        %v2348 = vsub.s32 4294967266, %v2343
        %v2349 = vadd.s32 %v2348, 127
        %v2350 = vshll.u32 %v2349, 23
        %v2351 = vor.u32 4788187, %v2350
        %v2352 = vand.u32 2147483647, %v2351
        %v2354 = vcvt.s32.f32 %v2347
        %v2355 = vmul.f32 %v2354, %v2352
        %v2356 = vxor.u32 %v2355, 2147483648
        %v2357 = vsel %vm2274, %v2356, %v2355
        %v2358 = vsub.s32 4, %v2334
        %v2359 = vsel %vm2274, %v2358, %v2334
        %v2360 = vsel %vm2273, %v251, %v2357
        %v2361 = vsel %vm2273, 0, %v2359
        %v2362 = vcosq.f32.pop %v2360
        %v2363 = vsinq.f32.pop %v2360
        %vm2364 = vweird.f32 %v251
        %v2365 = vadd.s32 %v2361, 3
        %v2366 = vand.u32 %v2365, 3
        %vm2367 = vcmp.lt.s32.totalorder %v2366, 2
        %vm2368 = vcmp.eq.s32.totalorder %v2366, 0
        %v2369 = vxor.u32 %v2363, 2147483648
        %v2370 = vsel %vm2368, %v2362, %v2369
        %vm2371 = vcmp.eq.s32.totalorder %v2366, 2
        %v2372 = vxor.u32 %v2362, 2147483648
        %v2373 = vsel %vm2371, %v2372, %v2363
        %v2374 = vsel %vm2367, %v2370, %v2373
        %v2375 = vsel %vm2364, nan, %v2374
        %v2376 = vand.u32 2147483647, %v252
        %vm2377 = vcmp.le.f32.partialorder %v2376, 0.7853982
        %vm2378 = vcmp.lt.s32.totalorder %v252, 0
        %v2379 = vand.u32 %v252, 2139095040
        %v2380 = vshrl.u32 %v2379, 23
        %v2381 = vsub.s32 %v2380, 127
        %v2382 = vand.u32 2147483647, %v252
        %v2383 = vand.u32 %v2382, 8388607
        %v2384 = vor.u32 %v2383, 8388608
        %v2385 = vsub.s32 0, %v2384
        %v2386 = vadd.s32 %v2381, 1
        %vm2387 = vcmp.gt.s32.totalorder %v2386, 0
        %v2388 = vsel %vm2387, %v2386, 0
        %v2389 = vshrl.u32 %v2388, 5
        %v2390 = vand.u32 %v2388, 31
        %v2391 = vsub.s32 32, %v2390
        %v2392 = vshrl.u32 683565275, %v2391
        %v2393 = vshll.u32 683565275, %v2390
        %v2394 = vshrl.u32 2475754826, %v2391
        %v2395 = vor.u32 %v2393, %v2394
        %v2396 = vshll.u32 2475754826, %v2390
        %v2397 = vshrl.u32 2131351028, %v2391
        %v2398 = vor.u32 %v2396, %v2397
        %v2399 = vshll.u32 2131351028, %v2390
        %v2400 = vshrl.u32 2102212464, %v2391
        %v2401 = vor.u32 %v2399, %v2400
        %v2402 = vshll.u32 2102212464, %v2390
        %v2403 = vshrl.u32 920167782, %v2391
        %v2404 = vor.u32 %v2402, %v2403
        %v2405 = vshll.u32 920167782, %v2390
        %v2406 = vshrl.u32 1326507024, %v2391
        %v2407 = vor.u32 %v2405, %v2406
        %vm2408 = vcmp.lt.s32.totalorder %v2389, 1
        %vm2409 = vcmp.lt.s32.totalorder %v2389, 2
        %vm2410 = vcmp.lt.s32.totalorder %v2389, 3
        %vm2411 = vcmp.lt.s32.totalorder %v2389, 4
        %v2412 = vsel %vm2408, %v2392, %v2395
        %v2413 = vsel %vm2411, %v2401, 2102212464
        %v2414 = vsel %vm2410, %v2398, %v2413
        %v2415 = vsel %vm2409, %v2412, %v2414
        %v2416 = vsel %vm2408, %v2395, %v2398
        %v2417 = vsel %vm2411, %v2404, 920167782
        %v2418 = vsel %vm2410, %v2401, %v2417
        %v2419 = vsel %vm2409, %v2416, %v2418
        %v2420 = vsel %vm2408, %v2398, %v2401
        %v2421 = vsel %vm2411, %v2407, 1326507024
        %v2422 = vsel %vm2410, %v2404, %v2421
        %v2423 = vsel %vm2409, %v2420, %v2422
        %v2424 = vshll.u32 %v2384, 8
        %v2425 = vmul.u32.u64.compose %v2424, %v2423
        %v2426 = vextract.low.u32 %v2425
        %v2427 = vextract.high.u32 %v2425
        %v2428 = vmul.u32.u64.compose %v2424, %v2419
        %v2429 = vextract.low.u32 %v2428
        %v2430 = vextract.high.u32 %v2428
        %v2431 = vmul.u32 %v2424, %v2415
        %v2432 = vadd.s32 %v2427, %v2429
        %vm2433 = vc.u32 %v2427, %v2429
        %v2434 = vadd.s32 %v2430, 1
        %v2435 = vsel %vm2433, %v2434, %v2430
        %v2436 = vadd.s32 %v2431, %v2435
        %v2437 = vadd.s32 %v2436, 536870912
        %v2438 = vshrl.u32 %v2437, 30
        %v2439 = vshll.u32 %v2438, 30
        %v2440 = vsub.s32 %v2436, %v2439
        %vm2441 = vcmp.lt.s32.totalorder %v2440, 0
        %v2442 = vsub.s32 0, %v2440
        %v2443 = vsel %vm2441, %v2442, %v2440
        %v2444 = vclz %v2443
        %v2445 = vsub.s32 %v2444, 2
        %vm2446 = vcmp.gt.s32.totalorder 0, %v2445
        %v2447 = vsel %vm2446, 0, %v2445
        %v2448 = vsub.s32 32, %v2447
        %v2449 = vshll.u32 %v2440, %v2447
        %v2450 = vshrl.u32 %v2432, %v2448
        %v2451 = vor.u32 %v2449, %v2450
        %v2452 = vsub.s32 4294967266, %v2447
        %v2453 = vadd.s32 %v2452, 127
        %v2454 = vshll.u32 %v2453, 23
        %v2455 = vor.u32 4788187, %v2454
        %v2456 = vand.u32 2147483647, %v2455
        %v2458 = vcvt.s32.f32 %v2451
        %v2459 = vmul.f32 %v2458, %v2456
        %v2460 = vxor.u32 %v2459, 2147483648
        %v2461 = vsel %vm2378, %v2460, %v2459
        %v2462 = vsub.s32 4, %v2438
        %v2463 = vsel %vm2378, %v2462, %v2438
        %v2464 = vsel %vm2377, %v252, %v2461
        %v2465 = vsel %vm2377, 0, %v2463
        %v2466 = vcosq.f32.pop %v2464
        %v2467 = vsinq.f32.pop %v2464
        %vm2468 = vweird.f32 %v252
        %v2469 = vadd.s32 %v2465, 3
        %v2470 = vand.u32 %v2469, 3
        %vm2471 = vcmp.lt.s32.totalorder %v2470, 2
        %vm2472 = vcmp.eq.s32.totalorder %v2470, 0
        %v2473 = vxor.u32 %v2467, 2147483648
        %v2474 = vsel %vm2472, %v2466, %v2473
        %vm2475 = vcmp.eq.s32.totalorder %v2470, 2
        %v2476 = vxor.u32 %v2466, 2147483648
        %v2477 = vsel %vm2475, %v2476, %v2467
        %v2478 = vsel %vm2471, %v2474, %v2477
        %v2479 = vsel %vm2468, nan, %v2478
        %v2480 = vand.u32 2147483647, %v253
        %vm2481 = vcmp.le.f32.partialorder %v2480, 0.7853982
        %vm2482 = vcmp.lt.s32.totalorder %v253, 0
        %v2483 = vand.u32 %v253, 2139095040
        %v2484 = vshrl.u32 %v2483, 23
        %v2485 = vsub.s32 %v2484, 127
        %v2486 = vand.u32 2147483647, %v253
        %v2487 = vand.u32 %v2486, 8388607
        %v2488 = vor.u32 %v2487, 8388608
        %v2489 = vsub.s32 0, %v2488
        %v2490 = vadd.s32 %v2485, 1
        %vm2491 = vcmp.gt.s32.totalorder %v2490, 0
        %v2492 = vsel %vm2491, %v2490, 0
        %v2493 = vshrl.u32 %v2492, 5
        %v2494 = vand.u32 %v2492, 31
        %v2495 = vsub.s32 32, %v2494
        %v2496 = vshrl.u32 683565275, %v2495
        %v2497 = vshll.u32 683565275, %v2494
        %v2498 = vshrl.u32 2475754826, %v2495
        %v2499 = vor.u32 %v2497, %v2498
        %v2500 = vshll.u32 2475754826, %v2494
        %v2501 = vshrl.u32 2131351028, %v2495
        %v2502 = vor.u32 %v2500, %v2501
        %v2503 = vshll.u32 2131351028, %v2494
        %v2504 = vshrl.u32 2102212464, %v2495
        %v2505 = vor.u32 %v2503, %v2504
        %v2506 = vshll.u32 2102212464, %v2494
        %v2507 = vshrl.u32 920167782, %v2495
        %v2508 = vor.u32 %v2506, %v2507
        %v2509 = vshll.u32 920167782, %v2494
        %v2510 = vshrl.u32 1326507024, %v2495
        %v2511 = vor.u32 %v2509, %v2510
        %vm2512 = vcmp.lt.s32.totalorder %v2493, 1
        %vm2513 = vcmp.lt.s32.totalorder %v2493, 2
        %vm2514 = vcmp.lt.s32.totalorder %v2493, 3
        %vm2515 = vcmp.lt.s32.totalorder %v2493, 4
        %v2516 = vsel %vm2512, %v2496, %v2499
        %v2517 = vsel %vm2515, %v2505, 2102212464
        %v2518 = vsel %vm2514, %v2502, %v2517
        %v2519 = vsel %vm2513, %v2516, %v2518
        %v2520 = vsel %vm2512, %v2499, %v2502
        %v2521 = vsel %vm2515, %v2508, 920167782
        %v2522 = vsel %vm2514, %v2505, %v2521
        %v2523 = vsel %vm2513, %v2520, %v2522
        %v2524 = vsel %vm2512, %v2502, %v2505
        %v2525 = vsel %vm2515, %v2511, 1326507024
        %v2526 = vsel %vm2514, %v2508, %v2525
        %v2527 = vsel %vm2513, %v2524, %v2526
        %v2528 = vshll.u32 %v2488, 8
        %v2529 = vmul.u32.u64.compose %v2528, %v2527
        %v2530 = vextract.low.u32 %v2529
        %v2531 = vextract.high.u32 %v2529
        %v2532 = vmul.u32.u64.compose %v2528, %v2523
        %v2533 = vextract.low.u32 %v2532
        %v2534 = vextract.high.u32 %v2532
        %v2535 = vmul.u32 %v2528, %v2519
        %v2536 = vadd.s32 %v2531, %v2533
        %vm2537 = vc.u32 %v2531, %v2533
        %v2538 = vadd.s32 %v2534, 1
        %v2539 = vsel %vm2537, %v2538, %v2534
        %v2540 = vadd.s32 %v2535, %v2539
        %v2541 = vadd.s32 %v2540, 536870912
        %v2542 = vshrl.u32 %v2541, 30
        %v2543 = vshll.u32 %v2542, 30
        %v2544 = vsub.s32 %v2540, %v2543
        %vm2545 = vcmp.lt.s32.totalorder %v2544, 0
        %v2546 = vsub.s32 0, %v2544
        %v2547 = vsel %vm2545, %v2546, %v2544
        %v2548 = vclz %v2547
        %v2549 = vsub.s32 %v2548, 2
        %vm2550 = vcmp.gt.s32.totalorder 0, %v2549
        %v2551 = vsel %vm2550, 0, %v2549
        %v2552 = vsub.s32 32, %v2551
        %v2553 = vshll.u32 %v2544, %v2551
        %v2554 = vshrl.u32 %v2536, %v2552
        %v2555 = vor.u32 %v2553, %v2554
        %v2556 = vsub.s32 4294967266, %v2551
        %v2557 = vadd.s32 %v2556, 127
        %v2558 = vshll.u32 %v2557, 23
        %v2559 = vor.u32 4788187, %v2558
        %v2560 = vand.u32 2147483647, %v2559
        %v2562 = vcvt.s32.f32 %v2555
        %v2563 = vmul.f32 %v2562, %v2560
        %v2564 = vxor.u32 %v2563, 2147483648
        %v2565 = vsel %vm2482, %v2564, %v2563
        %v2566 = vsub.s32 4, %v2542
        %v2567 = vsel %vm2482, %v2566, %v2542
        %v2568 = vsel %vm2481, %v253, %v2565
        %v2569 = vsel %vm2481, 0, %v2567
        %v2570 = vcosq.f32.pop %v2568
        %v2571 = vsinq.f32.pop %v2568
        %vm2572 = vweird.f32 %v253
        %v2573 = vadd.s32 %v2569, 3
        %v2574 = vand.u32 %v2573, 3
        %vm2575 = vcmp.lt.s32.totalorder %v2574, 2
        %vm2576 = vcmp.eq.s32.totalorder %v2574, 0
        %v2577 = vxor.u32 %v2571, 2147483648
        %v2578 = vsel %vm2576, %v2570, %v2577
        %vm2579 = vcmp.eq.s32.totalorder %v2574, 2
        %v2580 = vxor.u32 %v2570, 2147483648
        %v2581 = vsel %vm2579, %v2580, %v2571
        %v2582 = vsel %vm2575, %v2578, %v2581
        %v2583 = vsel %vm2572, nan, %v2582
        %v2584 = vand.u32 2147483647, %v254
        %vm2585 = vcmp.le.f32.partialorder %v2584, 0.7853982
        %vm2586 = vcmp.lt.s32.totalorder %v254, 0
        %v2587 = vand.u32 %v254, 2139095040
        %v2588 = vshrl.u32 %v2587, 23
        %v2589 = vsub.s32 %v2588, 127
        %v2590 = vand.u32 2147483647, %v254
        %v2591 = vand.u32 %v2590, 8388607
        %v2592 = vor.u32 %v2591, 8388608
        %v2593 = vsub.s32 0, %v2592
        %v2594 = vadd.s32 %v2589, 1
        %vm2595 = vcmp.gt.s32.totalorder %v2594, 0
        %v2596 = vsel %vm2595, %v2594, 0
        %v2597 = vshrl.u32 %v2596, 5
        %v2598 = vand.u32 %v2596, 31
        %v2599 = vsub.s32 32, %v2598
        %v2600 = vshrl.u32 683565275, %v2599
        %v2601 = vshll.u32 683565275, %v2598
        %v2602 = vshrl.u32 2475754826, %v2599
        %v2603 = vor.u32 %v2601, %v2602
        %v2604 = vshll.u32 2475754826, %v2598
        %v2605 = vshrl.u32 2131351028, %v2599
        %v2606 = vor.u32 %v2604, %v2605
        %v2607 = vshll.u32 2131351028, %v2598
        %v2608 = vshrl.u32 2102212464, %v2599
        %v2609 = vor.u32 %v2607, %v2608
        %v2610 = vshll.u32 2102212464, %v2598
        %v2611 = vshrl.u32 920167782, %v2599
        %v2612 = vor.u32 %v2610, %v2611
        %v2613 = vshll.u32 920167782, %v2598
        %v2614 = vshrl.u32 1326507024, %v2599
        %v2615 = vor.u32 %v2613, %v2614
        %vm2616 = vcmp.lt.s32.totalorder %v2597, 1
        %vm2617 = vcmp.lt.s32.totalorder %v2597, 2
        %vm2618 = vcmp.lt.s32.totalorder %v2597, 3
        %vm2619 = vcmp.lt.s32.totalorder %v2597, 4
        %v2620 = vsel %vm2616, %v2600, %v2603
        %v2621 = vsel %vm2619, %v2609, 2102212464
        %v2622 = vsel %vm2618, %v2606, %v2621
        %v2623 = vsel %vm2617, %v2620, %v2622
        %v2624 = vsel %vm2616, %v2603, %v2606
        %v2625 = vsel %vm2619, %v2612, 920167782
        %v2626 = vsel %vm2618, %v2609, %v2625
        %v2627 = vsel %vm2617, %v2624, %v2626
        %v2628 = vsel %vm2616, %v2606, %v2609
        %v2629 = vsel %vm2619, %v2615, 1326507024
        %v2630 = vsel %vm2618, %v2612, %v2629
        %v2631 = vsel %vm2617, %v2628, %v2630
        %v2632 = vshll.u32 %v2592, 8
        %v2633 = vmul.u32.u64.compose %v2632, %v2631
        %v2634 = vextract.low.u32 %v2633
        %v2635 = vextract.high.u32 %v2633
        %v2636 = vmul.u32.u64.compose %v2632, %v2627
        %v2637 = vextract.low.u32 %v2636
        %v2638 = vextract.high.u32 %v2636
        %v2639 = vmul.u32 %v2632, %v2623
        %v2640 = vadd.s32 %v2635, %v2637
        %vm2641 = vc.u32 %v2635, %v2637
        %v2642 = vadd.s32 %v2638, 1
        %v2643 = vsel %vm2641, %v2642, %v2638
        %v2644 = vadd.s32 %v2639, %v2643
        %v2645 = vadd.s32 %v2644, 536870912
        %v2646 = vshrl.u32 %v2645, 30
        %v2647 = vshll.u32 %v2646, 30
        %v2648 = vsub.s32 %v2644, %v2647
        %vm2649 = vcmp.lt.s32.totalorder %v2648, 0
        %v2650 = vsub.s32 0, %v2648
        %v2651 = vsel %vm2649, %v2650, %v2648
        %v2652 = vclz %v2651
        %v2653 = vsub.s32 %v2652, 2
        %vm2654 = vcmp.gt.s32.totalorder 0, %v2653
        %v2655 = vsel %vm2654, 0, %v2653
        %v2656 = vsub.s32 32, %v2655
        %v2657 = vshll.u32 %v2648, %v2655
        %v2658 = vshrl.u32 %v2640, %v2656
        %v2659 = vor.u32 %v2657, %v2658
        %v2660 = vsub.s32 4294967266, %v2655
        %v2661 = vadd.s32 %v2660, 127
        %v2662 = vshll.u32 %v2661, 23
        %v2663 = vor.u32 4788187, %v2662
        %v2664 = vand.u32 2147483647, %v2663
        %v2666 = vcvt.s32.f32 %v2659
        %v2667 = vmul.f32 %v2666, %v2664
        %v2668 = vxor.u32 %v2667, 2147483648
        %v2669 = vsel %vm2586, %v2668, %v2667
        %v2670 = vsub.s32 4, %v2646
        %v2671 = vsel %vm2586, %v2670, %v2646
        %v2672 = vsel %vm2585, %v254, %v2669
        %v2673 = vsel %vm2585, 0, %v2671
        %v2674 = vcosq.f32.pop %v2672
        %v2675 = vsinq.f32.pop %v2672
        %vm2676 = vweird.f32 %v254
        %v2677 = vadd.s32 %v2673, 3
        %v2678 = vand.u32 %v2677, 3
        %vm2679 = vcmp.lt.s32.totalorder %v2678, 2
        %vm2680 = vcmp.eq.s32.totalorder %v2678, 0
        %v2681 = vxor.u32 %v2675, 2147483648
        %v2682 = vsel %vm2680, %v2674, %v2681
        %vm2683 = vcmp.eq.s32.totalorder %v2678, 2
        %v2684 = vxor.u32 %v2674, 2147483648
        %v2685 = vsel %vm2683, %v2684, %v2675
        %v2686 = vsel %vm2679, %v2682, %v2685
        %v2687 = vsel %vm2676, nan, %v2686
        %v2688 = vand.u32 2147483647, %v255
        %vm2689 = vcmp.le.f32.partialorder %v2688, 0.7853982
        %vm2690 = vcmp.lt.s32.totalorder %v255, 0
        %v2691 = vand.u32 %v255, 2139095040
        %v2692 = vshrl.u32 %v2691, 23
        %v2693 = vsub.s32 %v2692, 127
        %v2694 = vand.u32 2147483647, %v255
        %v2695 = vand.u32 %v2694, 8388607
        %v2696 = vor.u32 %v2695, 8388608
        %v2697 = vsub.s32 0, %v2696
        %v2698 = vadd.s32 %v2693, 1
        %vm2699 = vcmp.gt.s32.totalorder %v2698, 0
        %v2700 = vsel %vm2699, %v2698, 0
        %v2701 = vshrl.u32 %v2700, 5
        %v2702 = vand.u32 %v2700, 31
        %v2703 = vsub.s32 32, %v2702
        %v2704 = vshrl.u32 683565275, %v2703
        %v2705 = vshll.u32 683565275, %v2702
        %v2706 = vshrl.u32 2475754826, %v2703
        %v2707 = vor.u32 %v2705, %v2706
        %v2708 = vshll.u32 2475754826, %v2702
        %v2709 = vshrl.u32 2131351028, %v2703
        %v2710 = vor.u32 %v2708, %v2709
        %v2711 = vshll.u32 2131351028, %v2702
        %v2712 = vshrl.u32 2102212464, %v2703
        %v2713 = vor.u32 %v2711, %v2712
        %v2714 = vshll.u32 2102212464, %v2702
        %v2715 = vshrl.u32 920167782, %v2703
        %v2716 = vor.u32 %v2714, %v2715
        %v2717 = vshll.u32 920167782, %v2702
        %v2718 = vshrl.u32 1326507024, %v2703
        %v2719 = vor.u32 %v2717, %v2718
        %vm2720 = vcmp.lt.s32.totalorder %v2701, 1
        %vm2721 = vcmp.lt.s32.totalorder %v2701, 2
        %vm2722 = vcmp.lt.s32.totalorder %v2701, 3
        %vm2723 = vcmp.lt.s32.totalorder %v2701, 4
        %v2724 = vsel %vm2720, %v2704, %v2707
        %v2725 = vsel %vm2723, %v2713, 2102212464
        %v2726 = vsel %vm2722, %v2710, %v2725
        %v2727 = vsel %vm2721, %v2724, %v2726
        %v2728 = vsel %vm2720, %v2707, %v2710
        %v2729 = vsel %vm2723, %v2716, 920167782
        %v2730 = vsel %vm2722, %v2713, %v2729
        %v2731 = vsel %vm2721, %v2728, %v2730
        %v2732 = vsel %vm2720, %v2710, %v2713
        %v2733 = vsel %vm2723, %v2719, 1326507024
        %v2734 = vsel %vm2722, %v2716, %v2733
        %v2735 = vsel %vm2721, %v2732, %v2734
        %v2736 = vshll.u32 %v2696, 8
        %v2737 = vmul.u32.u64.compose %v2736, %v2735
        %v2738 = vextract.low.u32 %v2737
        %v2739 = vextract.high.u32 %v2737
        %v2740 = vmul.u32.u64.compose %v2736, %v2731
        %v2741 = vextract.low.u32 %v2740
        %v2742 = vextract.high.u32 %v2740
        %v2743 = vmul.u32 %v2736, %v2727
        %v2744 = vadd.s32 %v2739, %v2741
        %vm2745 = vc.u32 %v2739, %v2741
        %v2746 = vadd.s32 %v2742, 1
        %v2747 = vsel %vm2745, %v2746, %v2742
        %v2748 = vadd.s32 %v2743, %v2747
        %v2749 = vadd.s32 %v2748, 536870912
        %v2750 = vshrl.u32 %v2749, 30
        %v2751 = vshll.u32 %v2750, 30
        %v2752 = vsub.s32 %v2748, %v2751
        %vm2753 = vcmp.lt.s32.totalorder %v2752, 0
        %v2754 = vsub.s32 0, %v2752
        %v2755 = vsel %vm2753, %v2754, %v2752
        %v2756 = vclz %v2755
        %v2757 = vsub.s32 %v2756, 2
        %vm2758 = vcmp.gt.s32.totalorder 0, %v2757
        %v2759 = vsel %vm2758, 0, %v2757
        %v2760 = vsub.s32 32, %v2759
        %v2761 = vshll.u32 %v2752, %v2759
        %v2762 = vshrl.u32 %v2744, %v2760
        %v2763 = vor.u32 %v2761, %v2762
        %v2764 = vsub.s32 4294967266, %v2759
        %v2765 = vadd.s32 %v2764, 127
        %v2766 = vshll.u32 %v2765, 23
        %v2767 = vor.u32 4788187, %v2766
        %v2768 = vand.u32 2147483647, %v2767
        %v2770 = vcvt.s32.f32 %v2763
        %v2771 = vmul.f32 %v2770, %v2768
        %v2772 = vxor.u32 %v2771, 2147483648
        %v2773 = vsel %vm2690, %v2772, %v2771
        %v2774 = vsub.s32 4, %v2750
        %v2775 = vsel %vm2690, %v2774, %v2750
        %v2776 = vsel %vm2689, %v255, %v2773
        %v2777 = vsel %vm2689, 0, %v2775
        %v2778 = vcosq.f32.pop %v2776
        %v2779 = vsinq.f32.pop %v2776
        %vm2780 = vweird.f32 %v255
        %v2781 = vadd.s32 %v2777, 3
        %v2782 = vand.u32 %v2781, 3
        %vm2783 = vcmp.lt.s32.totalorder %v2782, 2
        %vm2784 = vcmp.eq.s32.totalorder %v2782, 0
        %v2785 = vxor.u32 %v2779, 2147483648
        %v2786 = vsel %vm2784, %v2778, %v2785
        %vm2787 = vcmp.eq.s32.totalorder %v2782, 2
        %v2788 = vxor.u32 %v2778, 2147483648
        %v2789 = vsel %vm2787, %v2788, %v2779
        %v2790 = vsel %vm2783, %v2786, %v2789
        %v2791 = vsel %vm2780, nan, %v2790
        %v2792 = vand.u32 2147483647, %v256
        %vm2793 = vcmp.le.f32.partialorder %v2792, 0.7853982
        %vm2794 = vcmp.lt.s32.totalorder %v256, 0
        %v2795 = vand.u32 %v256, 2139095040
        %v2796 = vshrl.u32 %v2795, 23
        %v2797 = vsub.s32 %v2796, 127
        %v2798 = vand.u32 2147483647, %v256
        %v2799 = vand.u32 %v2798, 8388607
        %v2800 = vor.u32 %v2799, 8388608
        %v2801 = vsub.s32 0, %v2800
        %v2802 = vadd.s32 %v2797, 1
        %vm2803 = vcmp.gt.s32.totalorder %v2802, 0
        %v2804 = vsel %vm2803, %v2802, 0
        %v2805 = vshrl.u32 %v2804, 5
        %v2806 = vand.u32 %v2804, 31
        %v2807 = vsub.s32 32, %v2806
        %v2808 = vshrl.u32 683565275, %v2807
        %v2809 = vshll.u32 683565275, %v2806
        %v2810 = vshrl.u32 2475754826, %v2807
        %v2811 = vor.u32 %v2809, %v2810
        %v2812 = vshll.u32 2475754826, %v2806
        %v2813 = vshrl.u32 2131351028, %v2807
        %v2814 = vor.u32 %v2812, %v2813
        %v2815 = vshll.u32 2131351028, %v2806
        %v2816 = vshrl.u32 2102212464, %v2807
        %v2817 = vor.u32 %v2815, %v2816
        %v2818 = vshll.u32 2102212464, %v2806
        %v2819 = vshrl.u32 920167782, %v2807
        %v2820 = vor.u32 %v2818, %v2819
        %v2821 = vshll.u32 920167782, %v2806
        %v2822 = vshrl.u32 1326507024, %v2807
        %v2823 = vor.u32 %v2821, %v2822
        %vm2824 = vcmp.lt.s32.totalorder %v2805, 1
        %vm2825 = vcmp.lt.s32.totalorder %v2805, 2
        %vm2826 = vcmp.lt.s32.totalorder %v2805, 3
        %vm2827 = vcmp.lt.s32.totalorder %v2805, 4
        %v2828 = vsel %vm2824, %v2808, %v2811
        %v2829 = vsel %vm2827, %v2817, 2102212464
        %v2830 = vsel %vm2826, %v2814, %v2829
        %v2831 = vsel %vm2825, %v2828, %v2830
        %v2832 = vsel %vm2824, %v2811, %v2814
        %v2833 = vsel %vm2827, %v2820, 920167782
        %v2834 = vsel %vm2826, %v2817, %v2833
        %v2835 = vsel %vm2825, %v2832, %v2834
        %v2836 = vsel %vm2824, %v2814, %v2817
        %v2837 = vsel %vm2827, %v2823, 1326507024
        %v2838 = vsel %vm2826, %v2820, %v2837
        %v2839 = vsel %vm2825, %v2836, %v2838
        %v2840 = vshll.u32 %v2800, 8
        %v2841 = vmul.u32.u64.compose %v2840, %v2839
        %v2842 = vextract.low.u32 %v2841
        %v2843 = vextract.high.u32 %v2841
        %v2844 = vmul.u32.u64.compose %v2840, %v2835
        %v2845 = vextract.low.u32 %v2844
        %v2846 = vextract.high.u32 %v2844
        %v2847 = vmul.u32 %v2840, %v2831
        %v2848 = vadd.s32 %v2843, %v2845
        %vm2849 = vc.u32 %v2843, %v2845
        %v2850 = vadd.s32 %v2846, 1
        %v2851 = vsel %vm2849, %v2850, %v2846
        %v2852 = vadd.s32 %v2847, %v2851
        %v2853 = vadd.s32 %v2852, 536870912
        %v2854 = vshrl.u32 %v2853, 30
        %v2855 = vshll.u32 %v2854, 30
        %v2856 = vsub.s32 %v2852, %v2855
        %vm2857 = vcmp.lt.s32.totalorder %v2856, 0
        %v2858 = vsub.s32 0, %v2856
        %v2859 = vsel %vm2857, %v2858, %v2856
        %v2860 = vclz %v2859
        %v2861 = vsub.s32 %v2860, 2
        %vm2862 = vcmp.gt.s32.totalorder 0, %v2861
        %v2863 = vsel %vm2862, 0, %v2861
        %v2864 = vsub.s32 32, %v2863
        %v2865 = vshll.u32 %v2856, %v2863
        %v2866 = vshrl.u32 %v2848, %v2864
        %v2867 = vor.u32 %v2865, %v2866
        %v2868 = vsub.s32 4294967266, %v2863
        %v2869 = vadd.s32 %v2868, 127
        %v2870 = vshll.u32 %v2869, 23
        %v2871 = vor.u32 4788187, %v2870
        %v2872 = vand.u32 2147483647, %v2871
        %v2874 = vcvt.s32.f32 %v2867
        %v2875 = vmul.f32 %v2874, %v2872
        %v2876 = vxor.u32 %v2875, 2147483648
        %v2877 = vsel %vm2794, %v2876, %v2875
        %v2878 = vsub.s32 4, %v2854
        %v2879 = vsel %vm2794, %v2878, %v2854
        %v2880 = vsel %vm2793, %v256, %v2877
        %v2881 = vsel %vm2793, 0, %v2879
        %v2882 = vcosq.f32.pop %v2880
        %v2883 = vsinq.f32.pop %v2880
        %vm2884 = vweird.f32 %v256
        %v2885 = vadd.s32 %v2881, 3
        %v2886 = vand.u32 %v2885, 3
        %vm2887 = vcmp.lt.s32.totalorder %v2886, 2
        %vm2888 = vcmp.eq.s32.totalorder %v2886, 0
        %v2889 = vxor.u32 %v2883, 2147483648
        %v2890 = vsel %vm2888, %v2882, %v2889
        %vm2891 = vcmp.eq.s32.totalorder %v2886, 2
        %v2892 = vxor.u32 %v2882, 2147483648
        %v2893 = vsel %vm2891, %v2892, %v2883
        %v2894 = vsel %vm2887, %v2890, %v2893
        %v2895 = vsel %vm2884, nan, %v2894
        %v2896 = vand.u32 2147483647, %v257
        %vm2897 = vcmp.le.f32.partialorder %v2896, 0.7853982
        %vm2898 = vcmp.lt.s32.totalorder %v257, 0
        %v2899 = vand.u32 %v257, 2139095040
        %v2900 = vshrl.u32 %v2899, 23
        %v2901 = vsub.s32 %v2900, 127
        %v2902 = vand.u32 2147483647, %v257
        %v2903 = vand.u32 %v2902, 8388607
        %v2904 = vor.u32 %v2903, 8388608
        %v2905 = vsub.s32 0, %v2904
        %v2906 = vadd.s32 %v2901, 1
        %vm2907 = vcmp.gt.s32.totalorder %v2906, 0
        %v2908 = vsel %vm2907, %v2906, 0
        %v2909 = vshrl.u32 %v2908, 5
        %v2910 = vand.u32 %v2908, 31
        %v2911 = vsub.s32 32, %v2910
        %v2912 = vshrl.u32 683565275, %v2911
        %v2913 = vshll.u32 683565275, %v2910
        %v2914 = vshrl.u32 2475754826, %v2911
        %v2915 = vor.u32 %v2913, %v2914
        %v2916 = vshll.u32 2475754826, %v2910
        %v2917 = vshrl.u32 2131351028, %v2911
        %v2918 = vor.u32 %v2916, %v2917
        %v2919 = vshll.u32 2131351028, %v2910
        %v2920 = vshrl.u32 2102212464, %v2911
        %v2921 = vor.u32 %v2919, %v2920
        %v2922 = vshll.u32 2102212464, %v2910
        %v2923 = vshrl.u32 920167782, %v2911
        %v2924 = vor.u32 %v2922, %v2923
        %v2925 = vshll.u32 920167782, %v2910
        %v2926 = vshrl.u32 1326507024, %v2911
        %v2927 = vor.u32 %v2925, %v2926
        %vm2928 = vcmp.lt.s32.totalorder %v2909, 1
        %vm2929 = vcmp.lt.s32.totalorder %v2909, 2
        %vm2930 = vcmp.lt.s32.totalorder %v2909, 3
        %vm2931 = vcmp.lt.s32.totalorder %v2909, 4
        %v2932 = vsel %vm2928, %v2912, %v2915
        %v2933 = vsel %vm2931, %v2921, 2102212464
        %v2934 = vsel %vm2930, %v2918, %v2933
        %v2935 = vsel %vm2929, %v2932, %v2934
        %v2936 = vsel %vm2928, %v2915, %v2918
        %v2937 = vsel %vm2931, %v2924, 920167782
        %v2938 = vsel %vm2930, %v2921, %v2937
        %v2939 = vsel %vm2929, %v2936, %v2938
        %v2940 = vsel %vm2928, %v2918, %v2921
        %v2941 = vsel %vm2931, %v2927, 1326507024
        %v2942 = vsel %vm2930, %v2924, %v2941
        %v2943 = vsel %vm2929, %v2940, %v2942
        %v2944 = vshll.u32 %v2904, 8
        %v2945 = vmul.u32.u64.compose %v2944, %v2943
        %v2946 = vextract.low.u32 %v2945
        %v2947 = vextract.high.u32 %v2945
        %v2948 = vmul.u32.u64.compose %v2944, %v2939
        %v2949 = vextract.low.u32 %v2948
        %v2950 = vextract.high.u32 %v2948
        %v2951 = vmul.u32 %v2944, %v2935
        %v2952 = vadd.s32 %v2947, %v2949
        %vm2953 = vc.u32 %v2947, %v2949
        %v2954 = vadd.s32 %v2950, 1
        %v2955 = vsel %vm2953, %v2954, %v2950
        %v2956 = vadd.s32 %v2951, %v2955
        %v2957 = vadd.s32 %v2956, 536870912
        %v2958 = vshrl.u32 %v2957, 30
        %v2959 = vshll.u32 %v2958, 30
        %v2960 = vsub.s32 %v2956, %v2959
        %vm2961 = vcmp.lt.s32.totalorder %v2960, 0
        %v2962 = vsub.s32 0, %v2960
        %v2963 = vsel %vm2961, %v2962, %v2960
        %v2964 = vclz %v2963
        %v2965 = vsub.s32 %v2964, 2
        %vm2966 = vcmp.gt.s32.totalorder 0, %v2965
        %v2967 = vsel %vm2966, 0, %v2965
        %v2968 = vsub.s32 32, %v2967
        %v2969 = vshll.u32 %v2960, %v2967
        %v2970 = vshrl.u32 %v2952, %v2968
        %v2971 = vor.u32 %v2969, %v2970
        %v2972 = vsub.s32 4294967266, %v2967
        %v2973 = vadd.s32 %v2972, 127
        %v2974 = vshll.u32 %v2973, 23
        %v2975 = vor.u32 4788187, %v2974
        %v2976 = vand.u32 2147483647, %v2975
        %v2978 = vcvt.s32.f32 %v2971
        %v2979 = vmul.f32 %v2978, %v2976
        %v2980 = vxor.u32 %v2979, 2147483648
        %v2981 = vsel %vm2898, %v2980, %v2979
        %v2982 = vsub.s32 4, %v2958
        %v2983 = vsel %vm2898, %v2982, %v2958
        %v2984 = vsel %vm2897, %v257, %v2981
        %v2985 = vsel %vm2897, 0, %v2983
        %v2986 = vcosq.f32.pop %v2984
        %v2987 = vsinq.f32.pop %v2984
        %vm2988 = vweird.f32 %v257
        %v2989 = vadd.s32 %v2985, 3
        %v2990 = vand.u32 %v2989, 3
        %vm2991 = vcmp.lt.s32.totalorder %v2990, 2
        %vm2992 = vcmp.eq.s32.totalorder %v2990, 0
        %v2993 = vxor.u32 %v2987, 2147483648
        %v2994 = vsel %vm2992, %v2986, %v2993
        %vm2995 = vcmp.eq.s32.totalorder %v2990, 2
        %v2996 = vxor.u32 %v2986, 2147483648
        %v2997 = vsel %vm2995, %v2996, %v2987
        %v2998 = vsel %vm2991, %v2994, %v2997
        %v2999 = vsel %vm2988, nan, %v2998
        %v3000 = vand.u32 2147483647, %v258
        %vm3001 = vcmp.le.f32.partialorder %v3000, 0.7853982
        %vm3002 = vcmp.lt.s32.totalorder %v258, 0
        %v3003 = vand.u32 %v258, 2139095040
        %v3004 = vshrl.u32 %v3003, 23
        %v3005 = vsub.s32 %v3004, 127
        %v3006 = vand.u32 2147483647, %v258
        %v3007 = vand.u32 %v3006, 8388607
        %v3008 = vor.u32 %v3007, 8388608
        %v3009 = vsub.s32 0, %v3008
        %v3010 = vadd.s32 %v3005, 1
        %vm3011 = vcmp.gt.s32.totalorder %v3010, 0
        %v3012 = vsel %vm3011, %v3010, 0
        %v3013 = vshrl.u32 %v3012, 5
        %v3014 = vand.u32 %v3012, 31
        %v3015 = vsub.s32 32, %v3014
        %v3016 = vshrl.u32 683565275, %v3015
        %v3017 = vshll.u32 683565275, %v3014
        %v3018 = vshrl.u32 2475754826, %v3015
        %v3019 = vor.u32 %v3017, %v3018
        %v3020 = vshll.u32 2475754826, %v3014
        %v3021 = vshrl.u32 2131351028, %v3015
        %v3022 = vor.u32 %v3020, %v3021
        %v3023 = vshll.u32 2131351028, %v3014
        %v3024 = vshrl.u32 2102212464, %v3015
        %v3025 = vor.u32 %v3023, %v3024
        %v3026 = vshll.u32 2102212464, %v3014
        %v3027 = vshrl.u32 920167782, %v3015
        %v3028 = vor.u32 %v3026, %v3027
        %v3029 = vshll.u32 920167782, %v3014
        %v3030 = vshrl.u32 1326507024, %v3015
        %v3031 = vor.u32 %v3029, %v3030
        %vm3032 = vcmp.lt.s32.totalorder %v3013, 1
        %vm3033 = vcmp.lt.s32.totalorder %v3013, 2
        %vm3034 = vcmp.lt.s32.totalorder %v3013, 3
        %vm3035 = vcmp.lt.s32.totalorder %v3013, 4
        %v3036 = vsel %vm3032, %v3016, %v3019
        %v3037 = vsel %vm3035, %v3025, 2102212464
        %v3038 = vsel %vm3034, %v3022, %v3037
        %v3039 = vsel %vm3033, %v3036, %v3038
        %v3040 = vsel %vm3032, %v3019, %v3022
        %v3041 = vsel %vm3035, %v3028, 920167782
        %v3042 = vsel %vm3034, %v3025, %v3041
        %v3043 = vsel %vm3033, %v3040, %v3042
        %v3044 = vsel %vm3032, %v3022, %v3025
        %v3045 = vsel %vm3035, %v3031, 1326507024
        %v3046 = vsel %vm3034, %v3028, %v3045
        %v3047 = vsel %vm3033, %v3044, %v3046
        %v3048 = vshll.u32 %v3008, 8
        %v3049 = vmul.u32.u64.compose %v3048, %v3047
        %v3050 = vextract.low.u32 %v3049
        %v3051 = vextract.high.u32 %v3049
        %v3052 = vmul.u32.u64.compose %v3048, %v3043
        %v3053 = vextract.low.u32 %v3052
        %v3054 = vextract.high.u32 %v3052
        %v3055 = vmul.u32 %v3048, %v3039
        %v3056 = vadd.s32 %v3051, %v3053
        %vm3057 = vc.u32 %v3051, %v3053
        %v3058 = vadd.s32 %v3054, 1
        %v3059 = vsel %vm3057, %v3058, %v3054
        %v3060 = vadd.s32 %v3055, %v3059
        %v3061 = vadd.s32 %v3060, 536870912
        %v3062 = vshrl.u32 %v3061, 30
        %v3063 = vshll.u32 %v3062, 30
        %v3064 = vsub.s32 %v3060, %v3063
        %vm3065 = vcmp.lt.s32.totalorder %v3064, 0
        %v3066 = vsub.s32 0, %v3064
        %v3067 = vsel %vm3065, %v3066, %v3064
        %v3068 = vclz %v3067
        %v3069 = vsub.s32 %v3068, 2
        %vm3070 = vcmp.gt.s32.totalorder 0, %v3069
        %v3071 = vsel %vm3070, 0, %v3069
        %v3072 = vsub.s32 32, %v3071
        %v3073 = vshll.u32 %v3064, %v3071
        %v3074 = vshrl.u32 %v3056, %v3072
        %v3075 = vor.u32 %v3073, %v3074
        %v3076 = vsub.s32 4294967266, %v3071
        %v3077 = vadd.s32 %v3076, 127
        %v3078 = vshll.u32 %v3077, 23
        %v3079 = vor.u32 4788187, %v3078
        %v3080 = vand.u32 2147483647, %v3079
        %v3082 = vcvt.s32.f32 %v3075
        %v3083 = vmul.f32 %v3082, %v3080
        %v3084 = vxor.u32 %v3083, 2147483648
        %v3085 = vsel %vm3002, %v3084, %v3083
        %v3086 = vsub.s32 4, %v3062
        %v3087 = vsel %vm3002, %v3086, %v3062
        %v3088 = vsel %vm3001, %v258, %v3085
        %v3089 = vsel %vm3001, 0, %v3087
        %v3090 = vcosq.f32.pop %v3088
        %v3091 = vsinq.f32.pop %v3088
        %vm3092 = vweird.f32 %v258
        %v3093 = vadd.s32 %v3089, 3
        %v3094 = vand.u32 %v3093, 3
        %vm3095 = vcmp.lt.s32.totalorder %v3094, 2
        %vm3096 = vcmp.eq.s32.totalorder %v3094, 0
        %v3097 = vxor.u32 %v3091, 2147483648
        %v3098 = vsel %vm3096, %v3090, %v3097
        %vm3099 = vcmp.eq.s32.totalorder %v3094, 2
        %v3100 = vxor.u32 %v3090, 2147483648
        %v3101 = vsel %vm3099, %v3100, %v3091
        %v3102 = vsel %vm3095, %v3098, %v3101
        %v3103 = vsel %vm3092, nan, %v3102
        %v3104 = vand.u32 2147483647, %v259
        %vm3105 = vcmp.le.f32.partialorder %v3104, 0.7853982
        %vm3106 = vcmp.lt.s32.totalorder %v259, 0
        %v3107 = vand.u32 %v259, 2139095040
        %v3108 = vshrl.u32 %v3107, 23
        %v3109 = vsub.s32 %v3108, 127
        %v3110 = vand.u32 2147483647, %v259
        %v3111 = vand.u32 %v3110, 8388607
        %v3112 = vor.u32 %v3111, 8388608
        %v3113 = vsub.s32 0, %v3112
        %v3114 = vadd.s32 %v3109, 1
        %vm3115 = vcmp.gt.s32.totalorder %v3114, 0
        %v3116 = vsel %vm3115, %v3114, 0
        %v3117 = vshrl.u32 %v3116, 5
        %v3118 = vand.u32 %v3116, 31
        %v3119 = vsub.s32 32, %v3118
        %v3120 = vshrl.u32 683565275, %v3119
        %v3121 = vshll.u32 683565275, %v3118
        %v3122 = vshrl.u32 2475754826, %v3119
        %v3123 = vor.u32 %v3121, %v3122
        %v3124 = vshll.u32 2475754826, %v3118
        %v3125 = vshrl.u32 2131351028, %v3119
        %v3126 = vor.u32 %v3124, %v3125
        %v3127 = vshll.u32 2131351028, %v3118
        %v3128 = vshrl.u32 2102212464, %v3119
        %v3129 = vor.u32 %v3127, %v3128
        %v3130 = vshll.u32 2102212464, %v3118
        %v3131 = vshrl.u32 920167782, %v3119
        %v3132 = vor.u32 %v3130, %v3131
        %v3133 = vshll.u32 920167782, %v3118
        %v3134 = vshrl.u32 1326507024, %v3119
        %v3135 = vor.u32 %v3133, %v3134
        %vm3136 = vcmp.lt.s32.totalorder %v3117, 1
        %vm3137 = vcmp.lt.s32.totalorder %v3117, 2
        %vm3138 = vcmp.lt.s32.totalorder %v3117, 3
        %vm3139 = vcmp.lt.s32.totalorder %v3117, 4
        %v3140 = vsel %vm3136, %v3120, %v3123
        %v3141 = vsel %vm3139, %v3129, 2102212464
        %v3142 = vsel %vm3138, %v3126, %v3141
        %v3143 = vsel %vm3137, %v3140, %v3142
        %v3144 = vsel %vm3136, %v3123, %v3126
        %v3145 = vsel %vm3139, %v3132, 920167782
        %v3146 = vsel %vm3138, %v3129, %v3145
        %v3147 = vsel %vm3137, %v3144, %v3146
        %v3148 = vsel %vm3136, %v3126, %v3129
        %v3149 = vsel %vm3139, %v3135, 1326507024
        %v3150 = vsel %vm3138, %v3132, %v3149
        %v3151 = vsel %vm3137, %v3148, %v3150
        %v3152 = vshll.u32 %v3112, 8
        %v3153 = vmul.u32.u64.compose %v3152, %v3151
        %v3154 = vextract.low.u32 %v3153
        %v3155 = vextract.high.u32 %v3153
        %v3156 = vmul.u32.u64.compose %v3152, %v3147
        %v3157 = vextract.low.u32 %v3156
        %v3158 = vextract.high.u32 %v3156
        %v3159 = vmul.u32 %v3152, %v3143
        %v3160 = vadd.s32 %v3155, %v3157
        %vm3161 = vc.u32 %v3155, %v3157
        %v3162 = vadd.s32 %v3158, 1
        %v3163 = vsel %vm3161, %v3162, %v3158
        %v3164 = vadd.s32 %v3159, %v3163
        %v3165 = vadd.s32 %v3164, 536870912
        %v3166 = vshrl.u32 %v3165, 30
        %v3167 = vshll.u32 %v3166, 30
        %v3168 = vsub.s32 %v3164, %v3167
        %vm3169 = vcmp.lt.s32.totalorder %v3168, 0
        %v3170 = vsub.s32 0, %v3168
        %v3171 = vsel %vm3169, %v3170, %v3168
        %v3172 = vclz %v3171
        %v3173 = vsub.s32 %v3172, 2
        %vm3174 = vcmp.gt.s32.totalorder 0, %v3173
        %v3175 = vsel %vm3174, 0, %v3173
        %v3176 = vsub.s32 32, %v3175
        %v3177 = vshll.u32 %v3168, %v3175
        %v3178 = vshrl.u32 %v3160, %v3176
        %v3179 = vor.u32 %v3177, %v3178
        %v3180 = vsub.s32 4294967266, %v3175
        %v3181 = vadd.s32 %v3180, 127
        %v3182 = vshll.u32 %v3181, 23
        %v3183 = vor.u32 4788187, %v3182
        %v3184 = vand.u32 2147483647, %v3183
        %v3186 = vcvt.s32.f32 %v3179
        %v3187 = vmul.f32 %v3186, %v3184
        %v3188 = vxor.u32 %v3187, 2147483648
        %v3189 = vsel %vm3106, %v3188, %v3187
        %v3190 = vsub.s32 4, %v3166
        %v3191 = vsel %vm3106, %v3190, %v3166
        %v3192 = vsel %vm3105, %v259, %v3189
        %v3193 = vsel %vm3105, 0, %v3191
        %v3194 = vcosq.f32.pop %v3192
        %v3195 = vsinq.f32.pop %v3192
        %vm3196 = vweird.f32 %v259
        %v3197 = vadd.s32 %v3193, 3
        %v3198 = vand.u32 %v3197, 3
        %vm3199 = vcmp.lt.s32.totalorder %v3198, 2
        %vm3200 = vcmp.eq.s32.totalorder %v3198, 0
        %v3201 = vxor.u32 %v3195, 2147483648
        %v3202 = vsel %vm3200, %v3194, %v3201
        %vm3203 = vcmp.eq.s32.totalorder %v3198, 2
        %v3204 = vxor.u32 %v3194, 2147483648
        %v3205 = vsel %vm3203, %v3204, %v3195
        %v3206 = vsel %vm3199, %v3202, %v3205
        %v3207 = vsel %vm3196, nan, %v3206
        %v3208 = vand.u32 2147483647, %v260
        %vm3209 = vcmp.le.f32.partialorder %v3208, 0.7853982
        %vm3210 = vcmp.lt.s32.totalorder %v260, 0
        %v3211 = vand.u32 %v260, 2139095040
        %v3212 = vshrl.u32 %v3211, 23
        %v3213 = vsub.s32 %v3212, 127
        %v3214 = vand.u32 2147483647, %v260
        %v3215 = vand.u32 %v3214, 8388607
        %v3216 = vor.u32 %v3215, 8388608
        %v3217 = vsub.s32 0, %v3216
        %v3218 = vadd.s32 %v3213, 1
        %vm3219 = vcmp.gt.s32.totalorder %v3218, 0
        %v3220 = vsel %vm3219, %v3218, 0
        %v3221 = vshrl.u32 %v3220, 5
        %v3222 = vand.u32 %v3220, 31
        %v3223 = vsub.s32 32, %v3222
        %v3224 = vshrl.u32 683565275, %v3223
        %v3225 = vshll.u32 683565275, %v3222
        %v3226 = vshrl.u32 2475754826, %v3223
        %v3227 = vor.u32 %v3225, %v3226
        %v3228 = vshll.u32 2475754826, %v3222
        %v3229 = vshrl.u32 2131351028, %v3223
        %v3230 = vor.u32 %v3228, %v3229
        %v3231 = vshll.u32 2131351028, %v3222
        %v3232 = vshrl.u32 2102212464, %v3223
        %v3233 = vor.u32 %v3231, %v3232
        %v3234 = vshll.u32 2102212464, %v3222
        %v3235 = vshrl.u32 920167782, %v3223
        %v3236 = vor.u32 %v3234, %v3235
        %v3237 = vshll.u32 920167782, %v3222
        %v3238 = vshrl.u32 1326507024, %v3223
        %v3239 = vor.u32 %v3237, %v3238
        %vm3240 = vcmp.lt.s32.totalorder %v3221, 1
        %vm3241 = vcmp.lt.s32.totalorder %v3221, 2
        %vm3242 = vcmp.lt.s32.totalorder %v3221, 3
        %vm3243 = vcmp.lt.s32.totalorder %v3221, 4
        %v3244 = vsel %vm3240, %v3224, %v3227
        %v3245 = vsel %vm3243, %v3233, 2102212464
        %v3246 = vsel %vm3242, %v3230, %v3245
        %v3247 = vsel %vm3241, %v3244, %v3246
        %v3248 = vsel %vm3240, %v3227, %v3230
        %v3249 = vsel %vm3243, %v3236, 920167782
        %v3250 = vsel %vm3242, %v3233, %v3249
        %v3251 = vsel %vm3241, %v3248, %v3250
        %v3252 = vsel %vm3240, %v3230, %v3233
        %v3253 = vsel %vm3243, %v3239, 1326507024
        %v3254 = vsel %vm3242, %v3236, %v3253
        %v3255 = vsel %vm3241, %v3252, %v3254
        %v3256 = vshll.u32 %v3216, 8
        %v3257 = vmul.u32.u64.compose %v3256, %v3255
        %v3258 = vextract.low.u32 %v3257
        %v3259 = vextract.high.u32 %v3257
        %v3260 = vmul.u32.u64.compose %v3256, %v3251
        %v3261 = vextract.low.u32 %v3260
        %v3262 = vextract.high.u32 %v3260
        %v3263 = vmul.u32 %v3256, %v3247
        %v3264 = vadd.s32 %v3259, %v3261
        %vm3265 = vc.u32 %v3259, %v3261
        %v3266 = vadd.s32 %v3262, 1
        %v3267 = vsel %vm3265, %v3266, %v3262
        %v3268 = vadd.s32 %v3263, %v3267
        %v3269 = vadd.s32 %v3268, 536870912
        %v3270 = vshrl.u32 %v3269, 30
        %v3271 = vshll.u32 %v3270, 30
        %v3272 = vsub.s32 %v3268, %v3271
        %vm3273 = vcmp.lt.s32.totalorder %v3272, 0
        %v3274 = vsub.s32 0, %v3272
        %v3275 = vsel %vm3273, %v3274, %v3272
        %v3276 = vclz %v3275
        %v3277 = vsub.s32 %v3276, 2
        %vm3278 = vcmp.gt.s32.totalorder 0, %v3277
        %v3279 = vsel %vm3278, 0, %v3277
        %v3280 = vsub.s32 32, %v3279
        %v3281 = vshll.u32 %v3272, %v3279
        %v3282 = vshrl.u32 %v3264, %v3280
        %v3283 = vor.u32 %v3281, %v3282
        %v3284 = vsub.s32 4294967266, %v3279
        %v3285 = vadd.s32 %v3284, 127
        %v3286 = vshll.u32 %v3285, 23
        %v3287 = vor.u32 4788187, %v3286
        %v3288 = vand.u32 2147483647, %v3287
        %v3290 = vcvt.s32.f32 %v3283
        %v3291 = vmul.f32 %v3290, %v3288
        %v3292 = vxor.u32 %v3291, 2147483648
        %v3293 = vsel %vm3210, %v3292, %v3291
        %v3294 = vsub.s32 4, %v3270
        %v3295 = vsel %vm3210, %v3294, %v3270
        %v3296 = vsel %vm3209, %v260, %v3293
        %v3297 = vsel %vm3209, 0, %v3295
        %v3298 = vcosq.f32.pop %v3296
        %v3299 = vsinq.f32.pop %v3296
        %vm3300 = vweird.f32 %v260
        %v3301 = vadd.s32 %v3297, 3
        %v3302 = vand.u32 %v3301, 3
        %vm3303 = vcmp.lt.s32.totalorder %v3302, 2
        %vm3304 = vcmp.eq.s32.totalorder %v3302, 0
        %v3305 = vxor.u32 %v3299, 2147483648
        %v3306 = vsel %vm3304, %v3298, %v3305
        %vm3307 = vcmp.eq.s32.totalorder %v3302, 2
        %v3308 = vxor.u32 %v3298, 2147483648
        %v3309 = vsel %vm3307, %v3308, %v3299
        %v3310 = vsel %vm3303, %v3306, %v3309
        %v3311 = vsel %vm3300, nan, %v3310
        %v3312 = vand.u32 2147483647, %v261
        %vm3313 = vcmp.le.f32.partialorder %v3312, 0.7853982
        %vm3314 = vcmp.lt.s32.totalorder %v261, 0
        %v3315 = vand.u32 %v261, 2139095040
        %v3316 = vshrl.u32 %v3315, 23
        %v3317 = vsub.s32 %v3316, 127
        %v3318 = vand.u32 2147483647, %v261
        %v3319 = vand.u32 %v3318, 8388607
        %v3320 = vor.u32 %v3319, 8388608
        %v3321 = vsub.s32 0, %v3320
        %v3322 = vadd.s32 %v3317, 1
        %vm3323 = vcmp.gt.s32.totalorder %v3322, 0
        %v3324 = vsel %vm3323, %v3322, 0
        %v3325 = vshrl.u32 %v3324, 5
        %v3326 = vand.u32 %v3324, 31
        %v3327 = vsub.s32 32, %v3326
        %v3328 = vshrl.u32 683565275, %v3327
        %v3329 = vshll.u32 683565275, %v3326
        %v3330 = vshrl.u32 2475754826, %v3327
        %v3331 = vor.u32 %v3329, %v3330
        %v3332 = vshll.u32 2475754826, %v3326
        %v3333 = vshrl.u32 2131351028, %v3327
        %v3334 = vor.u32 %v3332, %v3333
        %v3335 = vshll.u32 2131351028, %v3326
        %v3336 = vshrl.u32 2102212464, %v3327
        %v3337 = vor.u32 %v3335, %v3336
        %v3338 = vshll.u32 2102212464, %v3326
        %v3339 = vshrl.u32 920167782, %v3327
        %v3340 = vor.u32 %v3338, %v3339
        %v3341 = vshll.u32 920167782, %v3326
        %v3342 = vshrl.u32 1326507024, %v3327
        %v3343 = vor.u32 %v3341, %v3342
        %vm3344 = vcmp.lt.s32.totalorder %v3325, 1
        %vm3345 = vcmp.lt.s32.totalorder %v3325, 2
        %vm3346 = vcmp.lt.s32.totalorder %v3325, 3
        %vm3347 = vcmp.lt.s32.totalorder %v3325, 4
        %v3348 = vsel %vm3344, %v3328, %v3331
        %v3349 = vsel %vm3347, %v3337, 2102212464
        %v3350 = vsel %vm3346, %v3334, %v3349
        %v3351 = vsel %vm3345, %v3348, %v3350
        %v3352 = vsel %vm3344, %v3331, %v3334
        %v3353 = vsel %vm3347, %v3340, 920167782
        %v3354 = vsel %vm3346, %v3337, %v3353
        %v3355 = vsel %vm3345, %v3352, %v3354
        %v3356 = vsel %vm3344, %v3334, %v3337
        %v3357 = vsel %vm3347, %v3343, 1326507024
        %v3358 = vsel %vm3346, %v3340, %v3357
        %v3359 = vsel %vm3345, %v3356, %v3358
        %v3360 = vshll.u32 %v3320, 8
        %v3361 = vmul.u32.u64.compose %v3360, %v3359
        %v3362 = vextract.low.u32 %v3361
        %v3363 = vextract.high.u32 %v3361
        %v3364 = vmul.u32.u64.compose %v3360, %v3355
        %v3365 = vextract.low.u32 %v3364
        %v3366 = vextract.high.u32 %v3364
        %v3367 = vmul.u32 %v3360, %v3351
        %v3368 = vadd.s32 %v3363, %v3365
        %vm3369 = vc.u32 %v3363, %v3365
        %v3370 = vadd.s32 %v3366, 1
        %v3371 = vsel %vm3369, %v3370, %v3366
        %v3372 = vadd.s32 %v3367, %v3371
        %v3373 = vadd.s32 %v3372, 536870912
        %v3374 = vshrl.u32 %v3373, 30
        %v3375 = vshll.u32 %v3374, 30
        %v3376 = vsub.s32 %v3372, %v3375
        %vm3377 = vcmp.lt.s32.totalorder %v3376, 0
        %v3378 = vsub.s32 0, %v3376
        %v3379 = vsel %vm3377, %v3378, %v3376
        %v3380 = vclz %v3379
        %v3381 = vsub.s32 %v3380, 2
        %vm3382 = vcmp.gt.s32.totalorder 0, %v3381
        %v3383 = vsel %vm3382, 0, %v3381
        %v3384 = vsub.s32 32, %v3383
        %v3385 = vshll.u32 %v3376, %v3383
        %v3386 = vshrl.u32 %v3368, %v3384
        %v3387 = vor.u32 %v3385, %v3386
        %v3388 = vsub.s32 4294967266, %v3383
        %v3389 = vadd.s32 %v3388, 127
        %v3390 = vshll.u32 %v3389, 23
        %v3391 = vor.u32 4788187, %v3390
        %v3392 = vand.u32 2147483647, %v3391
        %v3394 = vcvt.s32.f32 %v3387
        %v3395 = vmul.f32 %v3394, %v3392
        %v3396 = vxor.u32 %v3395, 2147483648
        %v3397 = vsel %vm3314, %v3396, %v3395
        %v3398 = vsub.s32 4, %v3374
        %v3399 = vsel %vm3314, %v3398, %v3374
        %v3400 = vsel %vm3313, %v261, %v3397
        %v3401 = vsel %vm3313, 0, %v3399
        %v3402 = vcosq.f32.pop %v3400
        %v3403 = vsinq.f32.pop %v3400
        %vm3404 = vweird.f32 %v261
        %v3405 = vadd.s32 %v3401, 3
        %v3406 = vand.u32 %v3405, 3
        %vm3407 = vcmp.lt.s32.totalorder %v3406, 2
        %vm3408 = vcmp.eq.s32.totalorder %v3406, 0
        %v3409 = vxor.u32 %v3403, 2147483648
        %v3410 = vsel %vm3408, %v3402, %v3409
        %vm3411 = vcmp.eq.s32.totalorder %v3406, 2
        %v3412 = vxor.u32 %v3402, 2147483648
        %v3413 = vsel %vm3411, %v3412, %v3403
        %v3414 = vsel %vm3407, %v3410, %v3413
        %v3415 = vsel %vm3404, nan, %v3414
        %v3416 = vand.u32 2147483647, %v262
        %vm3417 = vcmp.le.f32.partialorder %v3416, 0.7853982
        %vm3418 = vcmp.lt.s32.totalorder %v262, 0
        %v3419 = vand.u32 %v262, 2139095040
        %v3420 = vshrl.u32 %v3419, 23
        %v3421 = vsub.s32 %v3420, 127
        %v3422 = vand.u32 2147483647, %v262
        %v3423 = vand.u32 %v3422, 8388607
        %v3424 = vor.u32 %v3423, 8388608
        %v3425 = vsub.s32 0, %v3424
        %v3426 = vadd.s32 %v3421, 1
        %vm3427 = vcmp.gt.s32.totalorder %v3426, 0
        %v3428 = vsel %vm3427, %v3426, 0
        %v3429 = vshrl.u32 %v3428, 5
        %v3430 = vand.u32 %v3428, 31
        %v3431 = vsub.s32 32, %v3430
        %v3432 = vshrl.u32 683565275, %v3431
        %v3433 = vshll.u32 683565275, %v3430
        %v3434 = vshrl.u32 2475754826, %v3431
        %v3435 = vor.u32 %v3433, %v3434
        %v3436 = vshll.u32 2475754826, %v3430
        %v3437 = vshrl.u32 2131351028, %v3431
        %v3438 = vor.u32 %v3436, %v3437
        %v3439 = vshll.u32 2131351028, %v3430
        %v3440 = vshrl.u32 2102212464, %v3431
        %v3441 = vor.u32 %v3439, %v3440
        %v3442 = vshll.u32 2102212464, %v3430
        %v3443 = vshrl.u32 920167782, %v3431
        %v3444 = vor.u32 %v3442, %v3443
        %v3445 = vshll.u32 920167782, %v3430
        %v3446 = vshrl.u32 1326507024, %v3431
        %v3447 = vor.u32 %v3445, %v3446
        %vm3448 = vcmp.lt.s32.totalorder %v3429, 1
        %vm3449 = vcmp.lt.s32.totalorder %v3429, 2
        %vm3450 = vcmp.lt.s32.totalorder %v3429, 3
        %vm3451 = vcmp.lt.s32.totalorder %v3429, 4
        %v3452 = vsel %vm3448, %v3432, %v3435
        %v3453 = vsel %vm3451, %v3441, 2102212464
        %v3454 = vsel %vm3450, %v3438, %v3453
        %v3455 = vsel %vm3449, %v3452, %v3454
        %v3456 = vsel %vm3448, %v3435, %v3438
        %v3457 = vsel %vm3451, %v3444, 920167782
        %v3458 = vsel %vm3450, %v3441, %v3457
        %v3459 = vsel %vm3449, %v3456, %v3458
        %v3460 = vsel %vm3448, %v3438, %v3441
        %v3461 = vsel %vm3451, %v3447, 1326507024
        %v3462 = vsel %vm3450, %v3444, %v3461
        %v3463 = vsel %vm3449, %v3460, %v3462
        %v3464 = vshll.u32 %v3424, 8
        %v3465 = vmul.u32.u64.compose %v3464, %v3463
        %v3466 = vextract.low.u32 %v3465
        %v3467 = vextract.high.u32 %v3465
        %v3468 = vmul.u32.u64.compose %v3464, %v3459
        %v3469 = vextract.low.u32 %v3468
        %v3470 = vextract.high.u32 %v3468
        %v3471 = vmul.u32 %v3464, %v3455
        %v3472 = vadd.s32 %v3467, %v3469
        %vm3473 = vc.u32 %v3467, %v3469
        %v3474 = vadd.s32 %v3470, 1
        %v3475 = vsel %vm3473, %v3474, %v3470
        %v3476 = vadd.s32 %v3471, %v3475
        %v3477 = vadd.s32 %v3476, 536870912
        %v3478 = vshrl.u32 %v3477, 30
        %v3479 = vshll.u32 %v3478, 30
        %v3480 = vsub.s32 %v3476, %v3479
        %vm3481 = vcmp.lt.s32.totalorder %v3480, 0
        %v3482 = vsub.s32 0, %v3480
        %v3483 = vsel %vm3481, %v3482, %v3480
        %v3484 = vclz %v3483
        %v3485 = vsub.s32 %v3484, 2
        %vm3486 = vcmp.gt.s32.totalorder 0, %v3485
        %v3487 = vsel %vm3486, 0, %v3485
        %v3488 = vsub.s32 32, %v3487
        %v3489 = vshll.u32 %v3480, %v3487
        %v3490 = vshrl.u32 %v3472, %v3488
        %v3491 = vor.u32 %v3489, %v3490
        %v3492 = vsub.s32 4294967266, %v3487
        %v3493 = vadd.s32 %v3492, 127
        %v3494 = vshll.u32 %v3493, 23
        %v3495 = vor.u32 4788187, %v3494
        %v3496 = vand.u32 2147483647, %v3495
        %v3498 = vcvt.s32.f32 %v3491
        %v3499 = vmul.f32 %v3498, %v3496
        %v3500 = vxor.u32 %v3499, 2147483648
        %v3501 = vsel %vm3418, %v3500, %v3499
        %v3502 = vsub.s32 4, %v3478
        %v3503 = vsel %vm3418, %v3502, %v3478
        %v3504 = vsel %vm3417, %v262, %v3501
        %v3505 = vsel %vm3417, 0, %v3503
        %v3506 = vcosq.f32.pop %v3504
        %v3507 = vsinq.f32.pop %v3504
        %vm3508 = vweird.f32 %v262
        %v3509 = vadd.s32 %v3505, 3
        %v3510 = vand.u32 %v3509, 3
        %vm3511 = vcmp.lt.s32.totalorder %v3510, 2
        %vm3512 = vcmp.eq.s32.totalorder %v3510, 0
        %v3513 = vxor.u32 %v3507, 2147483648
        %v3514 = vsel %vm3512, %v3506, %v3513
        %vm3515 = vcmp.eq.s32.totalorder %v3510, 2
        %v3516 = vxor.u32 %v3506, 2147483648
        %v3517 = vsel %vm3515, %v3516, %v3507
        %v3518 = vsel %vm3511, %v3514, %v3517
        %v3519 = vsel %vm3508, nan, %v3518
        %v3520 = vand.u32 2147483647, %v263
        %vm3521 = vcmp.le.f32.partialorder %v3520, 0.7853982
        %vm3522 = vcmp.lt.s32.totalorder %v263, 0
        %v3523 = vand.u32 %v263, 2139095040
        %v3524 = vshrl.u32 %v3523, 23
        %v3525 = vsub.s32 %v3524, 127
        %v3526 = vand.u32 2147483647, %v263
        %v3527 = vand.u32 %v3526, 8388607
        %v3528 = vor.u32 %v3527, 8388608
        %v3529 = vsub.s32 0, %v3528
        %v3530 = vadd.s32 %v3525, 1
        %vm3531 = vcmp.gt.s32.totalorder %v3530, 0
        %v3532 = vsel %vm3531, %v3530, 0
        %v3533 = vshrl.u32 %v3532, 5
        %v3534 = vand.u32 %v3532, 31
        %v3535 = vsub.s32 32, %v3534
        %v3536 = vshrl.u32 683565275, %v3535
        %v3537 = vshll.u32 683565275, %v3534
        %v3538 = vshrl.u32 2475754826, %v3535
        %v3539 = vor.u32 %v3537, %v3538
        %v3540 = vshll.u32 2475754826, %v3534
        %v3541 = vshrl.u32 2131351028, %v3535
        %v3542 = vor.u32 %v3540, %v3541
        %v3543 = vshll.u32 2131351028, %v3534
        %v3544 = vshrl.u32 2102212464, %v3535
        %v3545 = vor.u32 %v3543, %v3544
        %v3546 = vshll.u32 2102212464, %v3534
        %v3547 = vshrl.u32 920167782, %v3535
        %v3548 = vor.u32 %v3546, %v3547
        %v3549 = vshll.u32 920167782, %v3534
        %v3550 = vshrl.u32 1326507024, %v3535
        %v3551 = vor.u32 %v3549, %v3550
        %vm3552 = vcmp.lt.s32.totalorder %v3533, 1
        %vm3553 = vcmp.lt.s32.totalorder %v3533, 2
        %vm3554 = vcmp.lt.s32.totalorder %v3533, 3
        %vm3555 = vcmp.lt.s32.totalorder %v3533, 4
        %v3556 = vsel %vm3552, %v3536, %v3539
        %v3557 = vsel %vm3555, %v3545, 2102212464
        %v3558 = vsel %vm3554, %v3542, %v3557
        %v3559 = vsel %vm3553, %v3556, %v3558
        %v3560 = vsel %vm3552, %v3539, %v3542
        %v3561 = vsel %vm3555, %v3548, 920167782
        %v3562 = vsel %vm3554, %v3545, %v3561
        %v3563 = vsel %vm3553, %v3560, %v3562
        %v3564 = vsel %vm3552, %v3542, %v3545
        %v3565 = vsel %vm3555, %v3551, 1326507024
        %v3566 = vsel %vm3554, %v3548, %v3565
        %v3567 = vsel %vm3553, %v3564, %v3566
        %v3568 = vshll.u32 %v3528, 8
        %v3569 = vmul.u32.u64.compose %v3568, %v3567
        %v3570 = vextract.low.u32 %v3569
        %v3571 = vextract.high.u32 %v3569
        %v3572 = vmul.u32.u64.compose %v3568, %v3563
        %v3573 = vextract.low.u32 %v3572
        %v3574 = vextract.high.u32 %v3572
        %v3575 = vmul.u32 %v3568, %v3559
        %v3576 = vadd.s32 %v3571, %v3573
        %vm3577 = vc.u32 %v3571, %v3573
        %v3578 = vadd.s32 %v3574, 1
        %v3579 = vsel %vm3577, %v3578, %v3574
        %v3580 = vadd.s32 %v3575, %v3579
        %v3581 = vadd.s32 %v3580, 536870912
        %v3582 = vshrl.u32 %v3581, 30
        %v3583 = vshll.u32 %v3582, 30
        %v3584 = vsub.s32 %v3580, %v3583
        %vm3585 = vcmp.lt.s32.totalorder %v3584, 0
        %v3586 = vsub.s32 0, %v3584
        %v3587 = vsel %vm3585, %v3586, %v3584
        %v3588 = vclz %v3587
        %v3589 = vsub.s32 %v3588, 2
        %vm3590 = vcmp.gt.s32.totalorder 0, %v3589
        %v3591 = vsel %vm3590, 0, %v3589
        %v3592 = vsub.s32 32, %v3591
        %v3593 = vshll.u32 %v3584, %v3591
        %v3594 = vshrl.u32 %v3576, %v3592
        %v3595 = vor.u32 %v3593, %v3594
        %v3596 = vsub.s32 4294967266, %v3591
        %v3597 = vadd.s32 %v3596, 127
        %v3598 = vshll.u32 %v3597, 23
        %v3599 = vor.u32 4788187, %v3598
        %v3600 = vand.u32 2147483647, %v3599
        %v3602 = vcvt.s32.f32 %v3595
        %v3603 = vmul.f32 %v3602, %v3600
        %v3604 = vxor.u32 %v3603, 2147483648
        %v3605 = vsel %vm3522, %v3604, %v3603
        %v3606 = vsub.s32 4, %v3582
        %v3607 = vsel %vm3522, %v3606, %v3582
        %v3608 = vsel %vm3521, %v263, %v3605
        %v3609 = vsel %vm3521, 0, %v3607
        %v3610 = vcosq.f32.pop %v3608
        %v3611 = vsinq.f32.pop %v3608
        %vm3612 = vweird.f32 %v263
        %v3613 = vadd.s32 %v3609, 3
        %v3614 = vand.u32 %v3613, 3
        %vm3615 = vcmp.lt.s32.totalorder %v3614, 2
        %vm3616 = vcmp.eq.s32.totalorder %v3614, 0
        %v3617 = vxor.u32 %v3611, 2147483648
        %v3618 = vsel %vm3616, %v3610, %v3617
        %vm3619 = vcmp.eq.s32.totalorder %v3614, 2
        %v3620 = vxor.u32 %v3610, 2147483648
        %v3621 = vsel %vm3619, %v3620, %v3611
        %v3622 = vsel %vm3615, %v3618, %v3621
        %v3623 = vsel %vm3612, nan, %v3622
        %v3624 = vand.u32 2147483647, %v264
        %vm3625 = vcmp.le.f32.partialorder %v3624, 0.7853982
        %vm3626 = vcmp.lt.s32.totalorder %v264, 0
        %v3627 = vand.u32 %v264, 2139095040
        %v3628 = vshrl.u32 %v3627, 23
        %v3629 = vsub.s32 %v3628, 127
        %v3630 = vand.u32 2147483647, %v264
        %v3631 = vand.u32 %v3630, 8388607
        %v3632 = vor.u32 %v3631, 8388608
        %v3633 = vsub.s32 0, %v3632
        %v3634 = vadd.s32 %v3629, 1
        %vm3635 = vcmp.gt.s32.totalorder %v3634, 0
        %v3636 = vsel %vm3635, %v3634, 0
        %v3637 = vshrl.u32 %v3636, 5
        %v3638 = vand.u32 %v3636, 31
        %v3639 = vsub.s32 32, %v3638
        %v3640 = vshrl.u32 683565275, %v3639
        %v3641 = vshll.u32 683565275, %v3638
        %v3642 = vshrl.u32 2475754826, %v3639
        %v3643 = vor.u32 %v3641, %v3642
        %v3644 = vshll.u32 2475754826, %v3638
        %v3645 = vshrl.u32 2131351028, %v3639
        %v3646 = vor.u32 %v3644, %v3645
        %v3647 = vshll.u32 2131351028, %v3638
        %v3648 = vshrl.u32 2102212464, %v3639
        %v3649 = vor.u32 %v3647, %v3648
        %v3650 = vshll.u32 2102212464, %v3638
        %v3651 = vshrl.u32 920167782, %v3639
        %v3652 = vor.u32 %v3650, %v3651
        %v3653 = vshll.u32 920167782, %v3638
        %v3654 = vshrl.u32 1326507024, %v3639
        %v3655 = vor.u32 %v3653, %v3654
        %vm3656 = vcmp.lt.s32.totalorder %v3637, 1
        %vm3657 = vcmp.lt.s32.totalorder %v3637, 2
        %vm3658 = vcmp.lt.s32.totalorder %v3637, 3
        %vm3659 = vcmp.lt.s32.totalorder %v3637, 4
        %v3660 = vsel %vm3656, %v3640, %v3643
        %v3661 = vsel %vm3659, %v3649, 2102212464
        %v3662 = vsel %vm3658, %v3646, %v3661
        %v3663 = vsel %vm3657, %v3660, %v3662
        %v3664 = vsel %vm3656, %v3643, %v3646
        %v3665 = vsel %vm3659, %v3652, 920167782
        %v3666 = vsel %vm3658, %v3649, %v3665
        %v3667 = vsel %vm3657, %v3664, %v3666
        %v3668 = vsel %vm3656, %v3646, %v3649
        %v3669 = vsel %vm3659, %v3655, 1326507024
        %v3670 = vsel %vm3658, %v3652, %v3669
        %v3671 = vsel %vm3657, %v3668, %v3670
        %v3672 = vshll.u32 %v3632, 8
        %v3673 = vmul.u32.u64.compose %v3672, %v3671
        %v3674 = vextract.low.u32 %v3673
        %v3675 = vextract.high.u32 %v3673
        %v3676 = vmul.u32.u64.compose %v3672, %v3667
        %v3677 = vextract.low.u32 %v3676
        %v3678 = vextract.high.u32 %v3676
        %v3679 = vmul.u32 %v3672, %v3663
        %v3680 = vadd.s32 %v3675, %v3677
        %vm3681 = vc.u32 %v3675, %v3677
        %v3682 = vadd.s32 %v3678, 1
        %v3683 = vsel %vm3681, %v3682, %v3678
        %v3684 = vadd.s32 %v3679, %v3683
        %v3685 = vadd.s32 %v3684, 536870912
        %v3686 = vshrl.u32 %v3685, 30
        %v3687 = vshll.u32 %v3686, 30
        %v3688 = vsub.s32 %v3684, %v3687
        %vm3689 = vcmp.lt.s32.totalorder %v3688, 0
        %v3690 = vsub.s32 0, %v3688
        %v3691 = vsel %vm3689, %v3690, %v3688
        %v3692 = vclz %v3691
        %v3693 = vsub.s32 %v3692, 2
        %vm3694 = vcmp.gt.s32.totalorder 0, %v3693
        %v3695 = vsel %vm3694, 0, %v3693
        %v3696 = vsub.s32 32, %v3695
        %v3697 = vshll.u32 %v3688, %v3695
        %v3698 = vshrl.u32 %v3680, %v3696
        %v3699 = vor.u32 %v3697, %v3698
        %v3700 = vsub.s32 4294967266, %v3695
        %v3701 = vadd.s32 %v3700, 127
        %v3702 = vshll.u32 %v3701, 23
        %v3703 = vor.u32 4788187, %v3702
        %v3704 = vand.u32 2147483647, %v3703
        %v3706 = vcvt.s32.f32 %v3699
        %v3707 = vmul.f32 %v3706, %v3704
        %v3708 = vxor.u32 %v3707, 2147483648
        %v3709 = vsel %vm3626, %v3708, %v3707
        %v3710 = vsub.s32 4, %v3686
        %v3711 = vsel %vm3626, %v3710, %v3686
        %v3712 = vsel %vm3625, %v264, %v3709
        %v3713 = vsel %vm3625, 0, %v3711
        %v3714 = vcosq.f32.pop %v3712
        %v3715 = vsinq.f32.pop %v3712
        %vm3716 = vweird.f32 %v264
        %v3717 = vadd.s32 %v3713, 3
        %v3718 = vand.u32 %v3717, 3
        %vm3719 = vcmp.lt.s32.totalorder %v3718, 2
        %vm3720 = vcmp.eq.s32.totalorder %v3718, 0
        %v3721 = vxor.u32 %v3715, 2147483648
        %v3722 = vsel %vm3720, %v3714, %v3721
        %vm3723 = vcmp.eq.s32.totalorder %v3718, 2
        %v3724 = vxor.u32 %v3714, 2147483648
        %v3725 = vsel %vm3723, %v3724, %v3715
        %v3726 = vsel %vm3719, %v3722, %v3725
        %v3727 = vsel %vm3716, nan, %v3726
        %v3728 = vand.u32 2147483647, %v265
        %vm3729 = vcmp.le.f32.partialorder %v3728, 0.7853982
        %vm3730 = vcmp.lt.s32.totalorder %v265, 0
        %v3731 = vand.u32 %v265, 2139095040
        %v3732 = vshrl.u32 %v3731, 23
        %v3733 = vsub.s32 %v3732, 127
        %v3734 = vand.u32 2147483647, %v265
        %v3735 = vand.u32 %v3734, 8388607
        %v3736 = vor.u32 %v3735, 8388608
        %v3737 = vsub.s32 0, %v3736
        %v3738 = vadd.s32 %v3733, 1
        %vm3739 = vcmp.gt.s32.totalorder %v3738, 0
        %v3740 = vsel %vm3739, %v3738, 0
        %v3741 = vshrl.u32 %v3740, 5
        %v3742 = vand.u32 %v3740, 31
        %v3743 = vsub.s32 32, %v3742
        %v3744 = vshrl.u32 683565275, %v3743
        %v3745 = vshll.u32 683565275, %v3742
        %v3746 = vshrl.u32 2475754826, %v3743
        %v3747 = vor.u32 %v3745, %v3746
        %v3748 = vshll.u32 2475754826, %v3742
        %v3749 = vshrl.u32 2131351028, %v3743
        %v3750 = vor.u32 %v3748, %v3749
        %v3751 = vshll.u32 2131351028, %v3742
        %v3752 = vshrl.u32 2102212464, %v3743
        %v3753 = vor.u32 %v3751, %v3752
        %v3754 = vshll.u32 2102212464, %v3742
        %v3755 = vshrl.u32 920167782, %v3743
        %v3756 = vor.u32 %v3754, %v3755
        %v3757 = vshll.u32 920167782, %v3742
        %v3758 = vshrl.u32 1326507024, %v3743
        %v3759 = vor.u32 %v3757, %v3758
        %vm3760 = vcmp.lt.s32.totalorder %v3741, 1
        %vm3761 = vcmp.lt.s32.totalorder %v3741, 2
        %vm3762 = vcmp.lt.s32.totalorder %v3741, 3
        %vm3763 = vcmp.lt.s32.totalorder %v3741, 4
        %v3764 = vsel %vm3760, %v3744, %v3747
        %v3765 = vsel %vm3763, %v3753, 2102212464
        %v3766 = vsel %vm3762, %v3750, %v3765
        %v3767 = vsel %vm3761, %v3764, %v3766
        %v3768 = vsel %vm3760, %v3747, %v3750
        %v3769 = vsel %vm3763, %v3756, 920167782
        %v3770 = vsel %vm3762, %v3753, %v3769
        %v3771 = vsel %vm3761, %v3768, %v3770
        %v3772 = vsel %vm3760, %v3750, %v3753
        %v3773 = vsel %vm3763, %v3759, 1326507024
        %v3774 = vsel %vm3762, %v3756, %v3773
        %v3775 = vsel %vm3761, %v3772, %v3774
        %v3776 = vshll.u32 %v3736, 8
        %v3777 = vmul.u32.u64.compose %v3776, %v3775
        %v3778 = vextract.low.u32 %v3777
        %v3779 = vextract.high.u32 %v3777
        %v3780 = vmul.u32.u64.compose %v3776, %v3771
        %v3781 = vextract.low.u32 %v3780
        %v3782 = vextract.high.u32 %v3780
        %v3783 = vmul.u32 %v3776, %v3767
        %v3784 = vadd.s32 %v3779, %v3781
        %vm3785 = vc.u32 %v3779, %v3781
        %v3786 = vadd.s32 %v3782, 1
        %v3787 = vsel %vm3785, %v3786, %v3782
        %v3788 = vadd.s32 %v3783, %v3787
        %v3789 = vadd.s32 %v3788, 536870912
        %v3790 = vshrl.u32 %v3789, 30
        %v3791 = vshll.u32 %v3790, 30
        %v3792 = vsub.s32 %v3788, %v3791
        %vm3793 = vcmp.lt.s32.totalorder %v3792, 0
        %v3794 = vsub.s32 0, %v3792
        %v3795 = vsel %vm3793, %v3794, %v3792
        %v3796 = vclz %v3795
        %v3797 = vsub.s32 %v3796, 2
        %vm3798 = vcmp.gt.s32.totalorder 0, %v3797
        %v3799 = vsel %vm3798, 0, %v3797
        %v3800 = vsub.s32 32, %v3799
        %v3801 = vshll.u32 %v3792, %v3799
        %v3802 = vshrl.u32 %v3784, %v3800
        %v3803 = vor.u32 %v3801, %v3802
        %v3804 = vsub.s32 4294967266, %v3799
        %v3805 = vadd.s32 %v3804, 127
        %v3806 = vshll.u32 %v3805, 23
        %v3807 = vor.u32 4788187, %v3806
        %v3808 = vand.u32 2147483647, %v3807
        %v3810 = vcvt.s32.f32 %v3803
        %v3811 = vmul.f32 %v3810, %v3808
        %v3812 = vxor.u32 %v3811, 2147483648
        %v3813 = vsel %vm3730, %v3812, %v3811
        %v3814 = vsub.s32 4, %v3790
        %v3815 = vsel %vm3730, %v3814, %v3790
        %v3816 = vsel %vm3729, %v265, %v3813
        %v3817 = vsel %vm3729, 0, %v3815
        %v3818 = vcosq.f32.pop %v3816
        %v3819 = vsinq.f32.pop %v3816
        %vm3820 = vweird.f32 %v265
        %v3821 = vadd.s32 %v3817, 3
        %v3822 = vand.u32 %v3821, 3
        %vm3823 = vcmp.lt.s32.totalorder %v3822, 2
        %vm3824 = vcmp.eq.s32.totalorder %v3822, 0
        %v3825 = vxor.u32 %v3819, 2147483648
        %v3826 = vsel %vm3824, %v3818, %v3825
        %vm3827 = vcmp.eq.s32.totalorder %v3822, 2
        %v3828 = vxor.u32 %v3818, 2147483648
        %v3829 = vsel %vm3827, %v3828, %v3819
        %v3830 = vsel %vm3823, %v3826, %v3829
        %v3831 = vsel %vm3820, nan, %v3830
        %v3832 = vand.u32 2147483647, %v266
        %vm3833 = vcmp.le.f32.partialorder %v3832, 0.7853982
        %vm3834 = vcmp.lt.s32.totalorder %v266, 0
        %v3835 = vand.u32 %v266, 2139095040
        %v3836 = vshrl.u32 %v3835, 23
        %v3837 = vsub.s32 %v3836, 127
        %v3838 = vand.u32 2147483647, %v266
        %v3839 = vand.u32 %v3838, 8388607
        %v3840 = vor.u32 %v3839, 8388608
        %v3841 = vsub.s32 0, %v3840
        %v3842 = vadd.s32 %v3837, 1
        %vm3843 = vcmp.gt.s32.totalorder %v3842, 0
        %v3844 = vsel %vm3843, %v3842, 0
        %v3845 = vshrl.u32 %v3844, 5
        %v3846 = vand.u32 %v3844, 31
        %v3847 = vsub.s32 32, %v3846
        %v3848 = vshrl.u32 683565275, %v3847
        %v3849 = vshll.u32 683565275, %v3846
        %v3850 = vshrl.u32 2475754826, %v3847
        %v3851 = vor.u32 %v3849, %v3850
        %v3852 = vshll.u32 2475754826, %v3846
        %v3853 = vshrl.u32 2131351028, %v3847
        %v3854 = vor.u32 %v3852, %v3853
        %v3855 = vshll.u32 2131351028, %v3846
        %v3856 = vshrl.u32 2102212464, %v3847
        %v3857 = vor.u32 %v3855, %v3856
        %v3858 = vshll.u32 2102212464, %v3846
        %v3859 = vshrl.u32 920167782, %v3847
        %v3860 = vor.u32 %v3858, %v3859
        %v3861 = vshll.u32 920167782, %v3846
        %v3862 = vshrl.u32 1326507024, %v3847
        %v3863 = vor.u32 %v3861, %v3862
        %vm3864 = vcmp.lt.s32.totalorder %v3845, 1
        %vm3865 = vcmp.lt.s32.totalorder %v3845, 2
        %vm3866 = vcmp.lt.s32.totalorder %v3845, 3
        %vm3867 = vcmp.lt.s32.totalorder %v3845, 4
        %v3868 = vsel %vm3864, %v3848, %v3851
        %v3869 = vsel %vm3867, %v3857, 2102212464
        %v3870 = vsel %vm3866, %v3854, %v3869
        %v3871 = vsel %vm3865, %v3868, %v3870
        %v3872 = vsel %vm3864, %v3851, %v3854
        %v3873 = vsel %vm3867, %v3860, 920167782
        %v3874 = vsel %vm3866, %v3857, %v3873
        %v3875 = vsel %vm3865, %v3872, %v3874
        %v3876 = vsel %vm3864, %v3854, %v3857
        %v3877 = vsel %vm3867, %v3863, 1326507024
        %v3878 = vsel %vm3866, %v3860, %v3877
        %v3879 = vsel %vm3865, %v3876, %v3878
        %v3880 = vshll.u32 %v3840, 8
        %v3881 = vmul.u32.u64.compose %v3880, %v3879
        %v3882 = vextract.low.u32 %v3881
        %v3883 = vextract.high.u32 %v3881
        %v3884 = vmul.u32.u64.compose %v3880, %v3875
        %v3885 = vextract.low.u32 %v3884
        %v3886 = vextract.high.u32 %v3884
        %v3887 = vmul.u32 %v3880, %v3871
        %v3888 = vadd.s32 %v3883, %v3885
        %vm3889 = vc.u32 %v3883, %v3885
        %v3890 = vadd.s32 %v3886, 1
        %v3891 = vsel %vm3889, %v3890, %v3886
        %v3892 = vadd.s32 %v3887, %v3891
        %v3893 = vadd.s32 %v3892, 536870912
        %v3894 = vshrl.u32 %v3893, 30
        %v3895 = vshll.u32 %v3894, 30
        %v3896 = vsub.s32 %v3892, %v3895
        %vm3897 = vcmp.lt.s32.totalorder %v3896, 0
        %v3898 = vsub.s32 0, %v3896
        %v3899 = vsel %vm3897, %v3898, %v3896
        %v3900 = vclz %v3899
        %v3901 = vsub.s32 %v3900, 2
        %vm3902 = vcmp.gt.s32.totalorder 0, %v3901
        %v3903 = vsel %vm3902, 0, %v3901
        %v3904 = vsub.s32 32, %v3903
        %v3905 = vshll.u32 %v3896, %v3903
        %v3906 = vshrl.u32 %v3888, %v3904
        %v3907 = vor.u32 %v3905, %v3906
        %v3908 = vsub.s32 4294967266, %v3903
        %v3909 = vadd.s32 %v3908, 127
        %v3910 = vshll.u32 %v3909, 23
        %v3911 = vor.u32 4788187, %v3910
        %v3912 = vand.u32 2147483647, %v3911
        %v3914 = vcvt.s32.f32 %v3907
        %v3915 = vmul.f32 %v3914, %v3912
        %v3916 = vxor.u32 %v3915, 2147483648
        %v3917 = vsel %vm3834, %v3916, %v3915
        %v3918 = vsub.s32 4, %v3894
        %v3919 = vsel %vm3834, %v3918, %v3894
        %v3920 = vsel %vm3833, %v266, %v3917
        %v3921 = vsel %vm3833, 0, %v3919
        %v3922 = vcosq.f32.pop %v3920
        %v3923 = vsinq.f32.pop %v3920
        %vm3924 = vweird.f32 %v266
        %v3925 = vadd.s32 %v3921, 3
        %v3926 = vand.u32 %v3925, 3
        %vm3927 = vcmp.lt.s32.totalorder %v3926, 2
        %vm3928 = vcmp.eq.s32.totalorder %v3926, 0
        %v3929 = vxor.u32 %v3923, 2147483648
        %v3930 = vsel %vm3928, %v3922, %v3929
        %vm3931 = vcmp.eq.s32.totalorder %v3926, 2
        %v3932 = vxor.u32 %v3922, 2147483648
        %v3933 = vsel %vm3931, %v3932, %v3923
        %v3934 = vsel %vm3927, %v3930, %v3933
        %v3935 = vsel %vm3924, nan, %v3934
        %v3936 = vand.u32 2147483647, %v267
        %vm3937 = vcmp.le.f32.partialorder %v3936, 0.7853982
        %vm3938 = vcmp.lt.s32.totalorder %v267, 0
        %v3939 = vand.u32 %v267, 2139095040
        %v3940 = vshrl.u32 %v3939, 23
        %v3941 = vsub.s32 %v3940, 127
        %v3942 = vand.u32 2147483647, %v267
        %v3943 = vand.u32 %v3942, 8388607
        %v3944 = vor.u32 %v3943, 8388608
        %v3945 = vsub.s32 0, %v3944
        %v3946 = vadd.s32 %v3941, 1
        %vm3947 = vcmp.gt.s32.totalorder %v3946, 0
        %v3948 = vsel %vm3947, %v3946, 0
        %v3949 = vshrl.u32 %v3948, 5
        %v3950 = vand.u32 %v3948, 31
        %v3951 = vsub.s32 32, %v3950
        %v3952 = vshrl.u32 683565275, %v3951
        %v3953 = vshll.u32 683565275, %v3950
        %v3954 = vshrl.u32 2475754826, %v3951
        %v3955 = vor.u32 %v3953, %v3954
        %v3956 = vshll.u32 2475754826, %v3950
        %v3957 = vshrl.u32 2131351028, %v3951
        %v3958 = vor.u32 %v3956, %v3957
        %v3959 = vshll.u32 2131351028, %v3950
        %v3960 = vshrl.u32 2102212464, %v3951
        %v3961 = vor.u32 %v3959, %v3960
        %v3962 = vshll.u32 2102212464, %v3950
        %v3963 = vshrl.u32 920167782, %v3951
        %v3964 = vor.u32 %v3962, %v3963
        %v3965 = vshll.u32 920167782, %v3950
        %v3966 = vshrl.u32 1326507024, %v3951
        %v3967 = vor.u32 %v3965, %v3966
        %vm3968 = vcmp.lt.s32.totalorder %v3949, 1
        %vm3969 = vcmp.lt.s32.totalorder %v3949, 2
        %vm3970 = vcmp.lt.s32.totalorder %v3949, 3
        %vm3971 = vcmp.lt.s32.totalorder %v3949, 4
        %v3972 = vsel %vm3968, %v3952, %v3955
        %v3973 = vsel %vm3971, %v3961, 2102212464
        %v3974 = vsel %vm3970, %v3958, %v3973
        %v3975 = vsel %vm3969, %v3972, %v3974
        %v3976 = vsel %vm3968, %v3955, %v3958
        %v3977 = vsel %vm3971, %v3964, 920167782
        %v3978 = vsel %vm3970, %v3961, %v3977
        %v3979 = vsel %vm3969, %v3976, %v3978
        %v3980 = vsel %vm3968, %v3958, %v3961
        %v3981 = vsel %vm3971, %v3967, 1326507024
        %v3982 = vsel %vm3970, %v3964, %v3981
        %v3983 = vsel %vm3969, %v3980, %v3982
        %v3984 = vshll.u32 %v3944, 8
        %v3985 = vmul.u32.u64.compose %v3984, %v3983
        %v3986 = vextract.low.u32 %v3985
        %v3987 = vextract.high.u32 %v3985
        %v3988 = vmul.u32.u64.compose %v3984, %v3979
        %v3989 = vextract.low.u32 %v3988
        %v3990 = vextract.high.u32 %v3988
        %v3991 = vmul.u32 %v3984, %v3975
        %v3992 = vadd.s32 %v3987, %v3989
        %vm3993 = vc.u32 %v3987, %v3989
        %v3994 = vadd.s32 %v3990, 1
        %v3995 = vsel %vm3993, %v3994, %v3990
        %v3996 = vadd.s32 %v3991, %v3995
        %v3997 = vadd.s32 %v3996, 536870912
        %v3998 = vshrl.u32 %v3997, 30
        %v3999 = vshll.u32 %v3998, 30
        %v4000 = vsub.s32 %v3996, %v3999
        %vm4001 = vcmp.lt.s32.totalorder %v4000, 0
        %v4002 = vsub.s32 0, %v4000
        %v4003 = vsel %vm4001, %v4002, %v4000
        %v4004 = vclz %v4003
        %v4005 = vsub.s32 %v4004, 2
        %vm4006 = vcmp.gt.s32.totalorder 0, %v4005
        %v4007 = vsel %vm4006, 0, %v4005
        %v4008 = vsub.s32 32, %v4007
        %v4009 = vshll.u32 %v4000, %v4007
        %v4010 = vshrl.u32 %v3992, %v4008
        %v4011 = vor.u32 %v4009, %v4010
        %v4012 = vsub.s32 4294967266, %v4007
        %v4013 = vadd.s32 %v4012, 127
        %v4014 = vshll.u32 %v4013, 23
        %v4015 = vor.u32 4788187, %v4014
        %v4016 = vand.u32 2147483647, %v4015
        %v4018 = vcvt.s32.f32 %v4011
        %v4019 = vmul.f32 %v4018, %v4016
        %v4020 = vxor.u32 %v4019, 2147483648
        %v4021 = vsel %vm3938, %v4020, %v4019
        %v4022 = vsub.s32 4, %v3998
        %v4023 = vsel %vm3938, %v4022, %v3998
        %v4024 = vsel %vm3937, %v267, %v4021
        %v4025 = vsel %vm3937, 0, %v4023
        %v4026 = vcosq.f32.pop %v4024
        %v4027 = vsinq.f32.pop %v4024
        %vm4028 = vweird.f32 %v267
        %v4029 = vadd.s32 %v4025, 3
        %v4030 = vand.u32 %v4029, 3
        %vm4031 = vcmp.lt.s32.totalorder %v4030, 2
        %vm4032 = vcmp.eq.s32.totalorder %v4030, 0
        %v4033 = vxor.u32 %v4027, 2147483648
        %v4034 = vsel %vm4032, %v4026, %v4033
        %vm4035 = vcmp.eq.s32.totalorder %v4030, 2
        %v4036 = vxor.u32 %v4026, 2147483648
        %v4037 = vsel %vm4035, %v4036, %v4027
        %v4038 = vsel %vm4031, %v4034, %v4037
        %v4039 = vsel %vm4028, nan, %v4038
        %v4040 = vand.u32 2147483647, %v268
        %vm4041 = vcmp.le.f32.partialorder %v4040, 0.7853982
        %vm4042 = vcmp.lt.s32.totalorder %v268, 0
        %v4043 = vand.u32 %v268, 2139095040
        %v4044 = vshrl.u32 %v4043, 23
        %v4045 = vsub.s32 %v4044, 127
        %v4046 = vand.u32 2147483647, %v268
        %v4047 = vand.u32 %v4046, 8388607
        %v4048 = vor.u32 %v4047, 8388608
        %v4049 = vsub.s32 0, %v4048
        %v4050 = vadd.s32 %v4045, 1
        %vm4051 = vcmp.gt.s32.totalorder %v4050, 0
        %v4052 = vsel %vm4051, %v4050, 0
        %v4053 = vshrl.u32 %v4052, 5
        %v4054 = vand.u32 %v4052, 31
        %v4055 = vsub.s32 32, %v4054
        %v4056 = vshrl.u32 683565275, %v4055
        %v4057 = vshll.u32 683565275, %v4054
        %v4058 = vshrl.u32 2475754826, %v4055
        %v4059 = vor.u32 %v4057, %v4058
        %v4060 = vshll.u32 2475754826, %v4054
        %v4061 = vshrl.u32 2131351028, %v4055
        %v4062 = vor.u32 %v4060, %v4061
        %v4063 = vshll.u32 2131351028, %v4054
        %v4064 = vshrl.u32 2102212464, %v4055
        %v4065 = vor.u32 %v4063, %v4064
        %v4066 = vshll.u32 2102212464, %v4054
        %v4067 = vshrl.u32 920167782, %v4055
        %v4068 = vor.u32 %v4066, %v4067
        %v4069 = vshll.u32 920167782, %v4054
        %v4070 = vshrl.u32 1326507024, %v4055
        %v4071 = vor.u32 %v4069, %v4070
        %vm4072 = vcmp.lt.s32.totalorder %v4053, 1
        %vm4073 = vcmp.lt.s32.totalorder %v4053, 2
        %vm4074 = vcmp.lt.s32.totalorder %v4053, 3
        %vm4075 = vcmp.lt.s32.totalorder %v4053, 4
        %v4076 = vsel %vm4072, %v4056, %v4059
        %v4077 = vsel %vm4075, %v4065, 2102212464
        %v4078 = vsel %vm4074, %v4062, %v4077
        %v4079 = vsel %vm4073, %v4076, %v4078
        %v4080 = vsel %vm4072, %v4059, %v4062
        %v4081 = vsel %vm4075, %v4068, 920167782
        %v4082 = vsel %vm4074, %v4065, %v4081
        %v4083 = vsel %vm4073, %v4080, %v4082
        %v4084 = vsel %vm4072, %v4062, %v4065
        %v4085 = vsel %vm4075, %v4071, 1326507024
        %v4086 = vsel %vm4074, %v4068, %v4085
        %v4087 = vsel %vm4073, %v4084, %v4086
        %v4088 = vshll.u32 %v4048, 8
        %v4089 = vmul.u32.u64.compose %v4088, %v4087
        %v4090 = vextract.low.u32 %v4089
        %v4091 = vextract.high.u32 %v4089
        %v4092 = vmul.u32.u64.compose %v4088, %v4083
        %v4093 = vextract.low.u32 %v4092
        %v4094 = vextract.high.u32 %v4092
        %v4095 = vmul.u32 %v4088, %v4079
        %v4096 = vadd.s32 %v4091, %v4093
        %vm4097 = vc.u32 %v4091, %v4093
        %v4098 = vadd.s32 %v4094, 1
        %v4099 = vsel %vm4097, %v4098, %v4094
        %v4100 = vadd.s32 %v4095, %v4099
        %v4101 = vadd.s32 %v4100, 536870912
        %v4102 = vshrl.u32 %v4101, 30
        %v4103 = vshll.u32 %v4102, 30
        %v4104 = vsub.s32 %v4100, %v4103
        %vm4105 = vcmp.lt.s32.totalorder %v4104, 0
        %v4106 = vsub.s32 0, %v4104
        %v4107 = vsel %vm4105, %v4106, %v4104
        %v4108 = vclz %v4107
        %v4109 = vsub.s32 %v4108, 2
        %vm4110 = vcmp.gt.s32.totalorder 0, %v4109
        %v4111 = vsel %vm4110, 0, %v4109
        %v4112 = vsub.s32 32, %v4111
        %v4113 = vshll.u32 %v4104, %v4111
        %v4114 = vshrl.u32 %v4096, %v4112
        %v4115 = vor.u32 %v4113, %v4114
        %v4116 = vsub.s32 4294967266, %v4111
        %v4117 = vadd.s32 %v4116, 127
        %v4118 = vshll.u32 %v4117, 23
        %v4119 = vor.u32 4788187, %v4118
        %v4120 = vand.u32 2147483647, %v4119
        %v4122 = vcvt.s32.f32 %v4115
        %v4123 = vmul.f32 %v4122, %v4120
        %v4124 = vxor.u32 %v4123, 2147483648
        %v4125 = vsel %vm4042, %v4124, %v4123
        %v4126 = vsub.s32 4, %v4102
        %v4127 = vsel %vm4042, %v4126, %v4102
        %v4128 = vsel %vm4041, %v268, %v4125
        %v4129 = vsel %vm4041, 0, %v4127
        %v4130 = vcosq.f32.pop %v4128
        %v4131 = vsinq.f32.pop %v4128
        %vm4132 = vweird.f32 %v268
        %v4133 = vadd.s32 %v4129, 3
        %v4134 = vand.u32 %v4133, 3
        %vm4135 = vcmp.lt.s32.totalorder %v4134, 2
        %vm4136 = vcmp.eq.s32.totalorder %v4134, 0
        %v4137 = vxor.u32 %v4131, 2147483648
        %v4138 = vsel %vm4136, %v4130, %v4137
        %vm4139 = vcmp.eq.s32.totalorder %v4134, 2
        %v4140 = vxor.u32 %v4130, 2147483648
        %v4141 = vsel %vm4139, %v4140, %v4131
        %v4142 = vsel %vm4135, %v4138, %v4141
        %v4143 = vsel %vm4132, nan, %v4142
        %v4144 = vand.u32 2147483647, %v269
        %vm4145 = vcmp.le.f32.partialorder %v4144, 0.7853982
        %vm4146 = vcmp.lt.s32.totalorder %v269, 0
        %v4147 = vand.u32 %v269, 2139095040
        %v4148 = vshrl.u32 %v4147, 23
        %v4149 = vsub.s32 %v4148, 127
        %v4150 = vand.u32 2147483647, %v269
        %v4151 = vand.u32 %v4150, 8388607
        %v4152 = vor.u32 %v4151, 8388608
        %v4153 = vsub.s32 0, %v4152
        %v4154 = vadd.s32 %v4149, 1
        %vm4155 = vcmp.gt.s32.totalorder %v4154, 0
        %v4156 = vsel %vm4155, %v4154, 0
        %v4157 = vshrl.u32 %v4156, 5
        %v4158 = vand.u32 %v4156, 31
        %v4159 = vsub.s32 32, %v4158
        %v4160 = vshrl.u32 683565275, %v4159
        %v4161 = vshll.u32 683565275, %v4158
        %v4162 = vshrl.u32 2475754826, %v4159
        %v4163 = vor.u32 %v4161, %v4162
        %v4164 = vshll.u32 2475754826, %v4158
        %v4165 = vshrl.u32 2131351028, %v4159
        %v4166 = vor.u32 %v4164, %v4165
        %v4167 = vshll.u32 2131351028, %v4158
        %v4168 = vshrl.u32 2102212464, %v4159
        %v4169 = vor.u32 %v4167, %v4168
        %v4170 = vshll.u32 2102212464, %v4158
        %v4171 = vshrl.u32 920167782, %v4159
        %v4172 = vor.u32 %v4170, %v4171
        %v4173 = vshll.u32 920167782, %v4158
        %v4174 = vshrl.u32 1326507024, %v4159
        %v4175 = vor.u32 %v4173, %v4174
        %vm4176 = vcmp.lt.s32.totalorder %v4157, 1
        %vm4177 = vcmp.lt.s32.totalorder %v4157, 2
        %vm4178 = vcmp.lt.s32.totalorder %v4157, 3
        %vm4179 = vcmp.lt.s32.totalorder %v4157, 4
        %v4180 = vsel %vm4176, %v4160, %v4163
        %v4181 = vsel %vm4179, %v4169, 2102212464
        %v4182 = vsel %vm4178, %v4166, %v4181
        %v4183 = vsel %vm4177, %v4180, %v4182
        %v4184 = vsel %vm4176, %v4163, %v4166
        %v4185 = vsel %vm4179, %v4172, 920167782
        %v4186 = vsel %vm4178, %v4169, %v4185
        %v4187 = vsel %vm4177, %v4184, %v4186
        %v4188 = vsel %vm4176, %v4166, %v4169
        %v4189 = vsel %vm4179, %v4175, 1326507024
        %v4190 = vsel %vm4178, %v4172, %v4189
        %v4191 = vsel %vm4177, %v4188, %v4190
        %v4192 = vshll.u32 %v4152, 8
        %v4193 = vmul.u32.u64.compose %v4192, %v4191
        %v4194 = vextract.low.u32 %v4193
        %v4195 = vextract.high.u32 %v4193
        %v4196 = vmul.u32.u64.compose %v4192, %v4187
        %v4197 = vextract.low.u32 %v4196
        %v4198 = vextract.high.u32 %v4196
        %v4199 = vmul.u32 %v4192, %v4183
        %v4200 = vadd.s32 %v4195, %v4197
        %vm4201 = vc.u32 %v4195, %v4197
        %v4202 = vadd.s32 %v4198, 1
        %v4203 = vsel %vm4201, %v4202, %v4198
        %v4204 = vadd.s32 %v4199, %v4203
        %v4205 = vadd.s32 %v4204, 536870912
        %v4206 = vshrl.u32 %v4205, 30
        %v4207 = vshll.u32 %v4206, 30
        %v4208 = vsub.s32 %v4204, %v4207
        %vm4209 = vcmp.lt.s32.totalorder %v4208, 0
        %v4210 = vsub.s32 0, %v4208
        %v4211 = vsel %vm4209, %v4210, %v4208
        %v4212 = vclz %v4211
        %v4213 = vsub.s32 %v4212, 2
        %vm4214 = vcmp.gt.s32.totalorder 0, %v4213
        %v4215 = vsel %vm4214, 0, %v4213
        %v4216 = vsub.s32 32, %v4215
        %v4217 = vshll.u32 %v4208, %v4215
        %v4218 = vshrl.u32 %v4200, %v4216
        %v4219 = vor.u32 %v4217, %v4218
        %v4220 = vsub.s32 4294967266, %v4215
        %v4221 = vadd.s32 %v4220, 127
        %v4222 = vshll.u32 %v4221, 23
        %v4223 = vor.u32 4788187, %v4222
        %v4224 = vand.u32 2147483647, %v4223
        %v4226 = vcvt.s32.f32 %v4219
        %v4227 = vmul.f32 %v4226, %v4224
        %v4228 = vxor.u32 %v4227, 2147483648
        %v4229 = vsel %vm4146, %v4228, %v4227
        %v4230 = vsub.s32 4, %v4206
        %v4231 = vsel %vm4146, %v4230, %v4206
        %v4232 = vsel %vm4145, %v269, %v4229
        %v4233 = vsel %vm4145, 0, %v4231
        %v4234 = vcosq.f32.pop %v4232
        %v4235 = vsinq.f32.pop %v4232
        %vm4236 = vweird.f32 %v269
        %v4237 = vadd.s32 %v4233, 3
        %v4238 = vand.u32 %v4237, 3
        %vm4239 = vcmp.lt.s32.totalorder %v4238, 2
        %vm4240 = vcmp.eq.s32.totalorder %v4238, 0
        %v4241 = vxor.u32 %v4235, 2147483648
        %v4242 = vsel %vm4240, %v4234, %v4241
        %vm4243 = vcmp.eq.s32.totalorder %v4238, 2
        %v4244 = vxor.u32 %v4234, 2147483648
        %v4245 = vsel %vm4243, %v4244, %v4235
        %v4246 = vsel %vm4239, %v4242, %v4245
        %v4247 = vsel %vm4236, nan, %v4246
        %v4248 = vand.u32 2147483647, %v270
        %vm4249 = vcmp.le.f32.partialorder %v4248, 0.7853982
        %vm4250 = vcmp.lt.s32.totalorder %v270, 0
        %v4251 = vand.u32 %v270, 2139095040
        %v4252 = vshrl.u32 %v4251, 23
        %v4253 = vsub.s32 %v4252, 127
        %v4254 = vand.u32 2147483647, %v270
        %v4255 = vand.u32 %v4254, 8388607
        %v4256 = vor.u32 %v4255, 8388608
        %v4257 = vsub.s32 0, %v4256
        %v4258 = vadd.s32 %v4253, 1
        %vm4259 = vcmp.gt.s32.totalorder %v4258, 0
        %v4260 = vsel %vm4259, %v4258, 0
        %v4261 = vshrl.u32 %v4260, 5
        %v4262 = vand.u32 %v4260, 31
        %v4263 = vsub.s32 32, %v4262
        %v4264 = vshrl.u32 683565275, %v4263
        %v4265 = vshll.u32 683565275, %v4262
        %v4266 = vshrl.u32 2475754826, %v4263
        %v4267 = vor.u32 %v4265, %v4266
        %v4268 = vshll.u32 2475754826, %v4262
        %v4269 = vshrl.u32 2131351028, %v4263
        %v4270 = vor.u32 %v4268, %v4269
        %v4271 = vshll.u32 2131351028, %v4262
        %v4272 = vshrl.u32 2102212464, %v4263
        %v4273 = vor.u32 %v4271, %v4272
        %v4274 = vshll.u32 2102212464, %v4262
        %v4275 = vshrl.u32 920167782, %v4263
        %v4276 = vor.u32 %v4274, %v4275
        %v4277 = vshll.u32 920167782, %v4262
        %v4278 = vshrl.u32 1326507024, %v4263
        %v4279 = vor.u32 %v4277, %v4278
        %vm4280 = vcmp.lt.s32.totalorder %v4261, 1
        %vm4281 = vcmp.lt.s32.totalorder %v4261, 2
        %vm4282 = vcmp.lt.s32.totalorder %v4261, 3
        %vm4283 = vcmp.lt.s32.totalorder %v4261, 4
        %v4284 = vsel %vm4280, %v4264, %v4267
        %v4285 = vsel %vm4283, %v4273, 2102212464
        %v4286 = vsel %vm4282, %v4270, %v4285
        %v4287 = vsel %vm4281, %v4284, %v4286
        %v4288 = vsel %vm4280, %v4267, %v4270
        %v4289 = vsel %vm4283, %v4276, 920167782
        %v4290 = vsel %vm4282, %v4273, %v4289
        %v4291 = vsel %vm4281, %v4288, %v4290
        %v4292 = vsel %vm4280, %v4270, %v4273
        %v4293 = vsel %vm4283, %v4279, 1326507024
        %v4294 = vsel %vm4282, %v4276, %v4293
        %v4295 = vsel %vm4281, %v4292, %v4294
        %v4296 = vshll.u32 %v4256, 8
        %v4297 = vmul.u32.u64.compose %v4296, %v4295
        %v4298 = vextract.low.u32 %v4297
        %v4299 = vextract.high.u32 %v4297
        %v4300 = vmul.u32.u64.compose %v4296, %v4291
        %v4301 = vextract.low.u32 %v4300
        %v4302 = vextract.high.u32 %v4300
        %v4303 = vmul.u32 %v4296, %v4287
        %v4304 = vadd.s32 %v4299, %v4301
        %vm4305 = vc.u32 %v4299, %v4301
        %v4306 = vadd.s32 %v4302, 1
        %v4307 = vsel %vm4305, %v4306, %v4302
        %v4308 = vadd.s32 %v4303, %v4307
        %v4309 = vadd.s32 %v4308, 536870912
        %v4310 = vshrl.u32 %v4309, 30
        %v4311 = vshll.u32 %v4310, 30
        %v4312 = vsub.s32 %v4308, %v4311
        %vm4313 = vcmp.lt.s32.totalorder %v4312, 0
        %v4314 = vsub.s32 0, %v4312
        %v4315 = vsel %vm4313, %v4314, %v4312
        %v4316 = vclz %v4315
        %v4317 = vsub.s32 %v4316, 2
        %vm4318 = vcmp.gt.s32.totalorder 0, %v4317
        %v4319 = vsel %vm4318, 0, %v4317
        %v4320 = vsub.s32 32, %v4319
        %v4321 = vshll.u32 %v4312, %v4319
        %v4322 = vshrl.u32 %v4304, %v4320
        %v4323 = vor.u32 %v4321, %v4322
        %v4324 = vsub.s32 4294967266, %v4319
        %v4325 = vadd.s32 %v4324, 127
        %v4326 = vshll.u32 %v4325, 23
        %v4327 = vor.u32 4788187, %v4326
        %v4328 = vand.u32 2147483647, %v4327
        %v4330 = vcvt.s32.f32 %v4323
        %v4331 = vmul.f32 %v4330, %v4328
        %v4332 = vxor.u32 %v4331, 2147483648
        %v4333 = vsel %vm4250, %v4332, %v4331
        %v4334 = vsub.s32 4, %v4310
        %v4335 = vsel %vm4250, %v4334, %v4310
        %v4336 = vsel %vm4249, %v270, %v4333
        %v4337 = vsel %vm4249, 0, %v4335
        %v4338 = vcosq.f32.pop %v4336
        %v4339 = vsinq.f32.pop %v4336
        %vm4340 = vweird.f32 %v270
        %v4341 = vadd.s32 %v4337, 3
        %v4342 = vand.u32 %v4341, 3
        %vm4343 = vcmp.lt.s32.totalorder %v4342, 2
        %vm4344 = vcmp.eq.s32.totalorder %v4342, 0
        %v4345 = vxor.u32 %v4339, 2147483648
        %v4346 = vsel %vm4344, %v4338, %v4345
        %vm4347 = vcmp.eq.s32.totalorder %v4342, 2
        %v4348 = vxor.u32 %v4338, 2147483648
        %v4349 = vsel %vm4347, %v4348, %v4339
        %v4350 = vsel %vm4343, %v4346, %v4349
        %v4351 = vsel %vm4340, nan, %v4350
        %v4352 = vand.u32 2147483647, %v271
        %vm4353 = vcmp.le.f32.partialorder %v4352, 0.7853982
        %vm4354 = vcmp.lt.s32.totalorder %v271, 0
        %v4355 = vand.u32 %v271, 2139095040
        %v4356 = vshrl.u32 %v4355, 23
        %v4357 = vsub.s32 %v4356, 127
        %v4358 = vand.u32 2147483647, %v271
        %v4359 = vand.u32 %v4358, 8388607
        %v4360 = vor.u32 %v4359, 8388608
        %v4361 = vsub.s32 0, %v4360
        %v4362 = vadd.s32 %v4357, 1
        %vm4363 = vcmp.gt.s32.totalorder %v4362, 0
        %v4364 = vsel %vm4363, %v4362, 0
        %v4365 = vshrl.u32 %v4364, 5
        %v4366 = vand.u32 %v4364, 31
        %v4367 = vsub.s32 32, %v4366
        %v4368 = vshrl.u32 683565275, %v4367
        %v4369 = vshll.u32 683565275, %v4366
        %v4370 = vshrl.u32 2475754826, %v4367
        %v4371 = vor.u32 %v4369, %v4370
        %v4372 = vshll.u32 2475754826, %v4366
        %v4373 = vshrl.u32 2131351028, %v4367
        %v4374 = vor.u32 %v4372, %v4373
        %v4375 = vshll.u32 2131351028, %v4366
        %v4376 = vshrl.u32 2102212464, %v4367
        %v4377 = vor.u32 %v4375, %v4376
        %v4378 = vshll.u32 2102212464, %v4366
        %v4379 = vshrl.u32 920167782, %v4367
        %v4380 = vor.u32 %v4378, %v4379
        %v4381 = vshll.u32 920167782, %v4366
        %v4382 = vshrl.u32 1326507024, %v4367
        %v4383 = vor.u32 %v4381, %v4382
        %vm4384 = vcmp.lt.s32.totalorder %v4365, 1
        %vm4385 = vcmp.lt.s32.totalorder %v4365, 2
        %vm4386 = vcmp.lt.s32.totalorder %v4365, 3
        %vm4387 = vcmp.lt.s32.totalorder %v4365, 4
        %v4388 = vsel %vm4384, %v4368, %v4371
        %v4389 = vsel %vm4387, %v4377, 2102212464
        %v4390 = vsel %vm4386, %v4374, %v4389
        %v4391 = vsel %vm4385, %v4388, %v4390
        %v4392 = vsel %vm4384, %v4371, %v4374
        %v4393 = vsel %vm4387, %v4380, 920167782
        %v4394 = vsel %vm4386, %v4377, %v4393
        %v4395 = vsel %vm4385, %v4392, %v4394
        %v4396 = vsel %vm4384, %v4374, %v4377
        %v4397 = vsel %vm4387, %v4383, 1326507024
        %v4398 = vsel %vm4386, %v4380, %v4397
        %v4399 = vsel %vm4385, %v4396, %v4398
        %v4400 = vshll.u32 %v4360, 8
        %v4401 = vmul.u32.u64.compose %v4400, %v4399
        %v4402 = vextract.low.u32 %v4401
        %v4403 = vextract.high.u32 %v4401
        %v4404 = vmul.u32.u64.compose %v4400, %v4395
        %v4405 = vextract.low.u32 %v4404
        %v4406 = vextract.high.u32 %v4404
        %v4407 = vmul.u32 %v4400, %v4391
        %v4408 = vadd.s32 %v4403, %v4405
        %vm4409 = vc.u32 %v4403, %v4405
        %v4410 = vadd.s32 %v4406, 1
        %v4411 = vsel %vm4409, %v4410, %v4406
        %v4412 = vadd.s32 %v4407, %v4411
        %v4413 = vadd.s32 %v4412, 536870912
        %v4414 = vshrl.u32 %v4413, 30
        %v4415 = vshll.u32 %v4414, 30
        %v4416 = vsub.s32 %v4412, %v4415
        %vm4417 = vcmp.lt.s32.totalorder %v4416, 0
        %v4418 = vsub.s32 0, %v4416
        %v4419 = vsel %vm4417, %v4418, %v4416
        %v4420 = vclz %v4419
        %v4421 = vsub.s32 %v4420, 2
        %vm4422 = vcmp.gt.s32.totalorder 0, %v4421
        %v4423 = vsel %vm4422, 0, %v4421
        %v4424 = vsub.s32 32, %v4423
        %v4425 = vshll.u32 %v4416, %v4423
        %v4426 = vshrl.u32 %v4408, %v4424
        %v4427 = vor.u32 %v4425, %v4426
        %v4428 = vsub.s32 4294967266, %v4423
        %v4429 = vadd.s32 %v4428, 127
        %v4430 = vshll.u32 %v4429, 23
        %v4431 = vor.u32 4788187, %v4430
        %v4432 = vand.u32 2147483647, %v4431
        %v4434 = vcvt.s32.f32 %v4427
        %v4435 = vmul.f32 %v4434, %v4432
        %v4436 = vxor.u32 %v4435, 2147483648
        %v4437 = vsel %vm4354, %v4436, %v4435
        %v4438 = vsub.s32 4, %v4414
        %v4439 = vsel %vm4354, %v4438, %v4414
        %v4440 = vsel %vm4353, %v271, %v4437
        %v4441 = vsel %vm4353, 0, %v4439
        %v4442 = vcosq.f32.pop %v4440
        %v4443 = vsinq.f32.pop %v4440
        %vm4444 = vweird.f32 %v271
        %v4445 = vadd.s32 %v4441, 3
        %v4446 = vand.u32 %v4445, 3
        %vm4447 = vcmp.lt.s32.totalorder %v4446, 2
        %vm4448 = vcmp.eq.s32.totalorder %v4446, 0
        %v4449 = vxor.u32 %v4443, 2147483648
        %v4450 = vsel %vm4448, %v4442, %v4449
        %vm4451 = vcmp.eq.s32.totalorder %v4446, 2
        %v4452 = vxor.u32 %v4442, 2147483648
        %v4453 = vsel %vm4451, %v4452, %v4443
        %v4454 = vsel %vm4447, %v4450, %v4453
        %v4455 = vsel %vm4444, nan, %v4454
        %v4456 = vand.u32 2147483647, %v272
        %vm4457 = vcmp.le.f32.partialorder %v4456, 0.7853982
        %vm4458 = vcmp.lt.s32.totalorder %v272, 0
        %v4459 = vand.u32 %v272, 2139095040
        %v4460 = vshrl.u32 %v4459, 23
        %v4461 = vsub.s32 %v4460, 127
        %v4462 = vand.u32 2147483647, %v272
        %v4463 = vand.u32 %v4462, 8388607
        %v4464 = vor.u32 %v4463, 8388608
        %v4465 = vsub.s32 0, %v4464
        %v4466 = vadd.s32 %v4461, 1
        %vm4467 = vcmp.gt.s32.totalorder %v4466, 0
        %v4468 = vsel %vm4467, %v4466, 0
        %v4469 = vshrl.u32 %v4468, 5
        %v4470 = vand.u32 %v4468, 31
        %v4471 = vsub.s32 32, %v4470
        %v4472 = vshrl.u32 683565275, %v4471
        %v4473 = vshll.u32 683565275, %v4470
        %v4474 = vshrl.u32 2475754826, %v4471
        %v4475 = vor.u32 %v4473, %v4474
        %v4476 = vshll.u32 2475754826, %v4470
        %v4477 = vshrl.u32 2131351028, %v4471
        %v4478 = vor.u32 %v4476, %v4477
        %v4479 = vshll.u32 2131351028, %v4470
        %v4480 = vshrl.u32 2102212464, %v4471
        %v4481 = vor.u32 %v4479, %v4480
        %v4482 = vshll.u32 2102212464, %v4470
        %v4483 = vshrl.u32 920167782, %v4471
        %v4484 = vor.u32 %v4482, %v4483
        %v4485 = vshll.u32 920167782, %v4470
        %v4486 = vshrl.u32 1326507024, %v4471
        %v4487 = vor.u32 %v4485, %v4486
        %vm4488 = vcmp.lt.s32.totalorder %v4469, 1
        %vm4489 = vcmp.lt.s32.totalorder %v4469, 2
        %vm4490 = vcmp.lt.s32.totalorder %v4469, 3
        %vm4491 = vcmp.lt.s32.totalorder %v4469, 4
        %v4492 = vsel %vm4488, %v4472, %v4475
        %v4493 = vsel %vm4491, %v4481, 2102212464
        %v4494 = vsel %vm4490, %v4478, %v4493
        %v4495 = vsel %vm4489, %v4492, %v4494
        %v4496 = vsel %vm4488, %v4475, %v4478
        %v4497 = vsel %vm4491, %v4484, 920167782
        %v4498 = vsel %vm4490, %v4481, %v4497
        %v4499 = vsel %vm4489, %v4496, %v4498
        %v4500 = vsel %vm4488, %v4478, %v4481
        %v4501 = vsel %vm4491, %v4487, 1326507024
        %v4502 = vsel %vm4490, %v4484, %v4501
        %v4503 = vsel %vm4489, %v4500, %v4502
        %v4504 = vshll.u32 %v4464, 8
        %v4505 = vmul.u32.u64.compose %v4504, %v4503
        %v4506 = vextract.low.u32 %v4505
        %v4507 = vextract.high.u32 %v4505
        %v4508 = vmul.u32.u64.compose %v4504, %v4499
        %v4509 = vextract.low.u32 %v4508
        %v4510 = vextract.high.u32 %v4508
        %v4511 = vmul.u32 %v4504, %v4495
        %v4512 = vadd.s32 %v4507, %v4509
        %vm4513 = vc.u32 %v4507, %v4509
        %v4514 = vadd.s32 %v4510, 1
        %v4515 = vsel %vm4513, %v4514, %v4510
        %v4516 = vadd.s32 %v4511, %v4515
        %v4517 = vadd.s32 %v4516, 536870912
        %v4518 = vshrl.u32 %v4517, 30
        %v4519 = vshll.u32 %v4518, 30
        %v4520 = vsub.s32 %v4516, %v4519
        %vm4521 = vcmp.lt.s32.totalorder %v4520, 0
        %v4522 = vsub.s32 0, %v4520
        %v4523 = vsel %vm4521, %v4522, %v4520
        %v4524 = vclz %v4523
        %v4525 = vsub.s32 %v4524, 2
        %vm4526 = vcmp.gt.s32.totalorder 0, %v4525
        %v4527 = vsel %vm4526, 0, %v4525
        %v4528 = vsub.s32 32, %v4527
        %v4529 = vshll.u32 %v4520, %v4527
        %v4530 = vshrl.u32 %v4512, %v4528
        %v4531 = vor.u32 %v4529, %v4530
        %v4532 = vsub.s32 4294967266, %v4527
        %v4533 = vadd.s32 %v4532, 127
        %v4534 = vshll.u32 %v4533, 23
        %v4535 = vor.u32 4788187, %v4534
        %v4536 = vand.u32 2147483647, %v4535
        %v4538 = vcvt.s32.f32 %v4531
        %v4539 = vmul.f32 %v4538, %v4536
        %v4540 = vxor.u32 %v4539, 2147483648
        %v4541 = vsel %vm4458, %v4540, %v4539
        %v4542 = vsub.s32 4, %v4518
        %v4543 = vsel %vm4458, %v4542, %v4518
        %v4544 = vsel %vm4457, %v272, %v4541
        %v4545 = vsel %vm4457, 0, %v4543
        %v4546 = vcosq.f32.pop %v4544
        %v4547 = vsinq.f32.pop %v4544
        %vm4548 = vweird.f32 %v272
        %v4549 = vadd.s32 %v4545, 3
        %v4550 = vand.u32 %v4549, 3
        %vm4551 = vcmp.lt.s32.totalorder %v4550, 2
        %vm4552 = vcmp.eq.s32.totalorder %v4550, 0
        %v4553 = vxor.u32 %v4547, 2147483648
        %v4554 = vsel %vm4552, %v4546, %v4553
        %vm4555 = vcmp.eq.s32.totalorder %v4550, 2
        %v4556 = vxor.u32 %v4546, 2147483648
        %v4557 = vsel %vm4555, %v4556, %v4547
        %v4558 = vsel %vm4551, %v4554, %v4557
        %v4559 = vsel %vm4548, nan, %v4558
        %v4560 = vand.u32 2147483647, %v273
        %vm4561 = vcmp.le.f32.partialorder %v4560, 0.7853982
        %vm4562 = vcmp.lt.s32.totalorder %v273, 0
        %v4563 = vand.u32 %v273, 2139095040
        %v4564 = vshrl.u32 %v4563, 23
        %v4565 = vsub.s32 %v4564, 127
        %v4566 = vand.u32 2147483647, %v273
        %v4567 = vand.u32 %v4566, 8388607
        %v4568 = vor.u32 %v4567, 8388608
        %v4569 = vsub.s32 0, %v4568
        %v4570 = vadd.s32 %v4565, 1
        %vm4571 = vcmp.gt.s32.totalorder %v4570, 0
        %v4572 = vsel %vm4571, %v4570, 0
        %v4573 = vshrl.u32 %v4572, 5
        %v4574 = vand.u32 %v4572, 31
        %v4575 = vsub.s32 32, %v4574
        %v4576 = vshrl.u32 683565275, %v4575
        %v4577 = vshll.u32 683565275, %v4574
        %v4578 = vshrl.u32 2475754826, %v4575
        %v4579 = vor.u32 %v4577, %v4578
        %v4580 = vshll.u32 2475754826, %v4574
        %v4581 = vshrl.u32 2131351028, %v4575
        %v4582 = vor.u32 %v4580, %v4581
        %v4583 = vshll.u32 2131351028, %v4574
        %v4584 = vshrl.u32 2102212464, %v4575
        %v4585 = vor.u32 %v4583, %v4584
        %v4586 = vshll.u32 2102212464, %v4574
        %v4587 = vshrl.u32 920167782, %v4575
        %v4588 = vor.u32 %v4586, %v4587
        %v4589 = vshll.u32 920167782, %v4574
        %v4590 = vshrl.u32 1326507024, %v4575
        %v4591 = vor.u32 %v4589, %v4590
        %vm4592 = vcmp.lt.s32.totalorder %v4573, 1
        %vm4593 = vcmp.lt.s32.totalorder %v4573, 2
        %vm4594 = vcmp.lt.s32.totalorder %v4573, 3
        %vm4595 = vcmp.lt.s32.totalorder %v4573, 4
        %v4596 = vsel %vm4592, %v4576, %v4579
        %v4597 = vsel %vm4595, %v4585, 2102212464
        %v4598 = vsel %vm4594, %v4582, %v4597
        %v4599 = vsel %vm4593, %v4596, %v4598
        %v4600 = vsel %vm4592, %v4579, %v4582
        %v4601 = vsel %vm4595, %v4588, 920167782
        %v4602 = vsel %vm4594, %v4585, %v4601
        %v4603 = vsel %vm4593, %v4600, %v4602
        %v4604 = vsel %vm4592, %v4582, %v4585
        %v4605 = vsel %vm4595, %v4591, 1326507024
        %v4606 = vsel %vm4594, %v4588, %v4605
        %v4607 = vsel %vm4593, %v4604, %v4606
        %v4608 = vshll.u32 %v4568, 8
        %v4609 = vmul.u32.u64.compose %v4608, %v4607
        %v4610 = vextract.low.u32 %v4609
        %v4611 = vextract.high.u32 %v4609
        %v4612 = vmul.u32.u64.compose %v4608, %v4603
        %v4613 = vextract.low.u32 %v4612
        %v4614 = vextract.high.u32 %v4612
        %v4615 = vmul.u32 %v4608, %v4599
        %v4616 = vadd.s32 %v4611, %v4613
        %vm4617 = vc.u32 %v4611, %v4613
        %v4618 = vadd.s32 %v4614, 1
        %v4619 = vsel %vm4617, %v4618, %v4614
        %v4620 = vadd.s32 %v4615, %v4619
        %v4621 = vadd.s32 %v4620, 536870912
        %v4622 = vshrl.u32 %v4621, 30
        %v4623 = vshll.u32 %v4622, 30
        %v4624 = vsub.s32 %v4620, %v4623
        %vm4625 = vcmp.lt.s32.totalorder %v4624, 0
        %v4626 = vsub.s32 0, %v4624
        %v4627 = vsel %vm4625, %v4626, %v4624
        %v4628 = vclz %v4627
        %v4629 = vsub.s32 %v4628, 2
        %vm4630 = vcmp.gt.s32.totalorder 0, %v4629
        %v4631 = vsel %vm4630, 0, %v4629
        %v4632 = vsub.s32 32, %v4631
        %v4633 = vshll.u32 %v4624, %v4631
        %v4634 = vshrl.u32 %v4616, %v4632
        %v4635 = vor.u32 %v4633, %v4634
        %v4636 = vsub.s32 4294967266, %v4631
        %v4637 = vadd.s32 %v4636, 127
        %v4638 = vshll.u32 %v4637, 23
        %v4639 = vor.u32 4788187, %v4638
        %v4640 = vand.u32 2147483647, %v4639
        %v4642 = vcvt.s32.f32 %v4635
        %v4643 = vmul.f32 %v4642, %v4640
        %v4644 = vxor.u32 %v4643, 2147483648
        %v4645 = vsel %vm4562, %v4644, %v4643
        %v4646 = vsub.s32 4, %v4622
        %v4647 = vsel %vm4562, %v4646, %v4622
        %v4648 = vsel %vm4561, %v273, %v4645
        %v4649 = vsel %vm4561, 0, %v4647
        %v4650 = vcosq.f32.pop %v4648
        %v4651 = vsinq.f32.pop %v4648
        %vm4652 = vweird.f32 %v273
        %v4653 = vadd.s32 %v4649, 3
        %v4654 = vand.u32 %v4653, 3
        %vm4655 = vcmp.lt.s32.totalorder %v4654, 2
        %vm4656 = vcmp.eq.s32.totalorder %v4654, 0
        %v4657 = vxor.u32 %v4651, 2147483648
        %v4658 = vsel %vm4656, %v4650, %v4657
        %vm4659 = vcmp.eq.s32.totalorder %v4654, 2
        %v4660 = vxor.u32 %v4650, 2147483648
        %v4661 = vsel %vm4659, %v4660, %v4651
        %v4662 = vsel %vm4655, %v4658, %v4661
        %v4663 = vsel %vm4652, nan, %v4662
        %v4664 = vand.u32 2147483647, %v274
        %vm4665 = vcmp.le.f32.partialorder %v4664, 0.7853982
        %vm4666 = vcmp.lt.s32.totalorder %v274, 0
        %v4667 = vand.u32 %v274, 2139095040
        %v4668 = vshrl.u32 %v4667, 23
        %v4669 = vsub.s32 %v4668, 127
        %v4670 = vand.u32 2147483647, %v274
        %v4671 = vand.u32 %v4670, 8388607
        %v4672 = vor.u32 %v4671, 8388608
        %v4673 = vsub.s32 0, %v4672
        %v4674 = vadd.s32 %v4669, 1
        %vm4675 = vcmp.gt.s32.totalorder %v4674, 0
        %v4676 = vsel %vm4675, %v4674, 0
        %v4677 = vshrl.u32 %v4676, 5
        %v4678 = vand.u32 %v4676, 31
        %v4679 = vsub.s32 32, %v4678
        %v4680 = vshrl.u32 683565275, %v4679
        %v4681 = vshll.u32 683565275, %v4678
        %v4682 = vshrl.u32 2475754826, %v4679
        %v4683 = vor.u32 %v4681, %v4682
        %v4684 = vshll.u32 2475754826, %v4678
        %v4685 = vshrl.u32 2131351028, %v4679
        %v4686 = vor.u32 %v4684, %v4685
        %v4687 = vshll.u32 2131351028, %v4678
        %v4688 = vshrl.u32 2102212464, %v4679
        %v4689 = vor.u32 %v4687, %v4688
        %v4690 = vshll.u32 2102212464, %v4678
        %v4691 = vshrl.u32 920167782, %v4679
        %v4692 = vor.u32 %v4690, %v4691
        %v4693 = vshll.u32 920167782, %v4678
        %v4694 = vshrl.u32 1326507024, %v4679
        %v4695 = vor.u32 %v4693, %v4694
        %vm4696 = vcmp.lt.s32.totalorder %v4677, 1
        %vm4697 = vcmp.lt.s32.totalorder %v4677, 2
        %vm4698 = vcmp.lt.s32.totalorder %v4677, 3
        %vm4699 = vcmp.lt.s32.totalorder %v4677, 4
        %v4700 = vsel %vm4696, %v4680, %v4683
        %v4701 = vsel %vm4699, %v4689, 2102212464
        %v4702 = vsel %vm4698, %v4686, %v4701
        %v4703 = vsel %vm4697, %v4700, %v4702
        %v4704 = vsel %vm4696, %v4683, %v4686
        %v4705 = vsel %vm4699, %v4692, 920167782
        %v4706 = vsel %vm4698, %v4689, %v4705
        %v4707 = vsel %vm4697, %v4704, %v4706
        %v4708 = vsel %vm4696, %v4686, %v4689
        %v4709 = vsel %vm4699, %v4695, 1326507024
        %v4710 = vsel %vm4698, %v4692, %v4709
        %v4711 = vsel %vm4697, %v4708, %v4710
        %v4712 = vshll.u32 %v4672, 8
        %v4713 = vmul.u32.u64.compose %v4712, %v4711
        %v4714 = vextract.low.u32 %v4713
        %v4715 = vextract.high.u32 %v4713
        %v4716 = vmul.u32.u64.compose %v4712, %v4707
        %v4717 = vextract.low.u32 %v4716
        %v4718 = vextract.high.u32 %v4716
        %v4719 = vmul.u32 %v4712, %v4703
        %v4720 = vadd.s32 %v4715, %v4717
        %vm4721 = vc.u32 %v4715, %v4717
        %v4722 = vadd.s32 %v4718, 1
        %v4723 = vsel %vm4721, %v4722, %v4718
        %v4724 = vadd.s32 %v4719, %v4723
        %v4725 = vadd.s32 %v4724, 536870912
        %v4726 = vshrl.u32 %v4725, 30
        %v4727 = vshll.u32 %v4726, 30
        %v4728 = vsub.s32 %v4724, %v4727
        %vm4729 = vcmp.lt.s32.totalorder %v4728, 0
        %v4730 = vsub.s32 0, %v4728
        %v4731 = vsel %vm4729, %v4730, %v4728
        %v4732 = vclz %v4731
        %v4733 = vsub.s32 %v4732, 2
        %vm4734 = vcmp.gt.s32.totalorder 0, %v4733
        %v4735 = vsel %vm4734, 0, %v4733
        %v4736 = vsub.s32 32, %v4735
        %v4737 = vshll.u32 %v4728, %v4735
        %v4738 = vshrl.u32 %v4720, %v4736
        %v4739 = vor.u32 %v4737, %v4738
        %v4740 = vsub.s32 4294967266, %v4735
        %v4741 = vadd.s32 %v4740, 127
        %v4742 = vshll.u32 %v4741, 23
        %v4743 = vor.u32 4788187, %v4742
        %v4744 = vand.u32 2147483647, %v4743
        %v4746 = vcvt.s32.f32 %v4739
        %v4747 = vmul.f32 %v4746, %v4744
        %v4748 = vxor.u32 %v4747, 2147483648
        %v4749 = vsel %vm4666, %v4748, %v4747
        %v4750 = vsub.s32 4, %v4726
        %v4751 = vsel %vm4666, %v4750, %v4726
        %v4752 = vsel %vm4665, %v274, %v4749
        %v4753 = vsel %vm4665, 0, %v4751
        %v4754 = vcosq.f32.pop %v4752
        %v4755 = vsinq.f32.pop %v4752
        %vm4756 = vweird.f32 %v274
        %v4757 = vadd.s32 %v4753, 3
        %v4758 = vand.u32 %v4757, 3
        %vm4759 = vcmp.lt.s32.totalorder %v4758, 2
        %vm4760 = vcmp.eq.s32.totalorder %v4758, 0
        %v4761 = vxor.u32 %v4755, 2147483648
        %v4762 = vsel %vm4760, %v4754, %v4761
        %vm4763 = vcmp.eq.s32.totalorder %v4758, 2
        %v4764 = vxor.u32 %v4754, 2147483648
        %v4765 = vsel %vm4763, %v4764, %v4755
        %v4766 = vsel %vm4759, %v4762, %v4765
        %v4767 = vsel %vm4756, nan, %v4766
        %v4768 = vand.u32 2147483647, %v275
        %vm4769 = vcmp.le.f32.partialorder %v4768, 0.7853982
        %vm4770 = vcmp.lt.s32.totalorder %v275, 0
        %v4771 = vand.u32 %v275, 2139095040
        %v4772 = vshrl.u32 %v4771, 23
        %v4773 = vsub.s32 %v4772, 127
        %v4774 = vand.u32 2147483647, %v275
        %v4775 = vand.u32 %v4774, 8388607
        %v4776 = vor.u32 %v4775, 8388608
        %v4777 = vsub.s32 0, %v4776
        %v4778 = vadd.s32 %v4773, 1
        %vm4779 = vcmp.gt.s32.totalorder %v4778, 0
        %v4780 = vsel %vm4779, %v4778, 0
        %v4781 = vshrl.u32 %v4780, 5
        %v4782 = vand.u32 %v4780, 31
        %v4783 = vsub.s32 32, %v4782
        %v4784 = vshrl.u32 683565275, %v4783
        %v4785 = vshll.u32 683565275, %v4782
        %v4786 = vshrl.u32 2475754826, %v4783
        %v4787 = vor.u32 %v4785, %v4786
        %v4788 = vshll.u32 2475754826, %v4782
        %v4789 = vshrl.u32 2131351028, %v4783
        %v4790 = vor.u32 %v4788, %v4789
        %v4791 = vshll.u32 2131351028, %v4782
        %v4792 = vshrl.u32 2102212464, %v4783
        %v4793 = vor.u32 %v4791, %v4792
        %v4794 = vshll.u32 2102212464, %v4782
        %v4795 = vshrl.u32 920167782, %v4783
        %v4796 = vor.u32 %v4794, %v4795
        %v4797 = vshll.u32 920167782, %v4782
        %v4798 = vshrl.u32 1326507024, %v4783
        %v4799 = vor.u32 %v4797, %v4798
        %vm4800 = vcmp.lt.s32.totalorder %v4781, 1
        %vm4801 = vcmp.lt.s32.totalorder %v4781, 2
        %vm4802 = vcmp.lt.s32.totalorder %v4781, 3
        %vm4803 = vcmp.lt.s32.totalorder %v4781, 4
        %v4804 = vsel %vm4800, %v4784, %v4787
        %v4805 = vsel %vm4803, %v4793, 2102212464
        %v4806 = vsel %vm4802, %v4790, %v4805
        %v4807 = vsel %vm4801, %v4804, %v4806
        %v4808 = vsel %vm4800, %v4787, %v4790
        %v4809 = vsel %vm4803, %v4796, 920167782
        %v4810 = vsel %vm4802, %v4793, %v4809
        %v4811 = vsel %vm4801, %v4808, %v4810
        %v4812 = vsel %vm4800, %v4790, %v4793
        %v4813 = vsel %vm4803, %v4799, 1326507024
        %v4814 = vsel %vm4802, %v4796, %v4813
        %v4815 = vsel %vm4801, %v4812, %v4814
        %v4816 = vshll.u32 %v4776, 8
        %v4817 = vmul.u32.u64.compose %v4816, %v4815
        %v4818 = vextract.low.u32 %v4817
        %v4819 = vextract.high.u32 %v4817
        %v4820 = vmul.u32.u64.compose %v4816, %v4811
        %v4821 = vextract.low.u32 %v4820
        %v4822 = vextract.high.u32 %v4820
        %v4823 = vmul.u32 %v4816, %v4807
        %v4824 = vadd.s32 %v4819, %v4821
        %vm4825 = vc.u32 %v4819, %v4821
        %v4826 = vadd.s32 %v4822, 1
        %v4827 = vsel %vm4825, %v4826, %v4822
        %v4828 = vadd.s32 %v4823, %v4827
        %v4829 = vadd.s32 %v4828, 536870912
        %v4830 = vshrl.u32 %v4829, 30
        %v4831 = vshll.u32 %v4830, 30
        %v4832 = vsub.s32 %v4828, %v4831
        %vm4833 = vcmp.lt.s32.totalorder %v4832, 0
        %v4834 = vsub.s32 0, %v4832
        %v4835 = vsel %vm4833, %v4834, %v4832
        %v4836 = vclz %v4835
        %v4837 = vsub.s32 %v4836, 2
        %vm4838 = vcmp.gt.s32.totalorder 0, %v4837
        %v4839 = vsel %vm4838, 0, %v4837
        %v4840 = vsub.s32 32, %v4839
        %v4841 = vshll.u32 %v4832, %v4839
        %v4842 = vshrl.u32 %v4824, %v4840
        %v4843 = vor.u32 %v4841, %v4842
        %v4844 = vsub.s32 4294967266, %v4839
        %v4845 = vadd.s32 %v4844, 127
        %v4846 = vshll.u32 %v4845, 23
        %v4847 = vor.u32 4788187, %v4846
        %v4848 = vand.u32 2147483647, %v4847
        %v4850 = vcvt.s32.f32 %v4843
        %v4851 = vmul.f32 %v4850, %v4848
        %v4852 = vxor.u32 %v4851, 2147483648
        %v4853 = vsel %vm4770, %v4852, %v4851
        %v4854 = vsub.s32 4, %v4830
        %v4855 = vsel %vm4770, %v4854, %v4830
        %v4856 = vsel %vm4769, %v275, %v4853
        %v4857 = vsel %vm4769, 0, %v4855
        %v4858 = vcosq.f32.pop %v4856
        %v4859 = vsinq.f32.pop %v4856
        %vm4860 = vweird.f32 %v275
        %v4861 = vadd.s32 %v4857, 3
        %v4862 = vand.u32 %v4861, 3
        %vm4863 = vcmp.lt.s32.totalorder %v4862, 2
        %vm4864 = vcmp.eq.s32.totalorder %v4862, 0
        %v4865 = vxor.u32 %v4859, 2147483648
        %v4866 = vsel %vm4864, %v4858, %v4865
        %vm4867 = vcmp.eq.s32.totalorder %v4862, 2
        %v4868 = vxor.u32 %v4858, 2147483648
        %v4869 = vsel %vm4867, %v4868, %v4859
        %v4870 = vsel %vm4863, %v4866, %v4869
        %v4871 = vsel %vm4860, nan, %v4870
        %v4872 = vand.u32 2147483647, %v276
        %vm4873 = vcmp.le.f32.partialorder %v4872, 0.7853982
        %vm4874 = vcmp.lt.s32.totalorder %v276, 0
        %v4875 = vand.u32 %v276, 2139095040
        %v4876 = vshrl.u32 %v4875, 23
        %v4877 = vsub.s32 %v4876, 127
        %v4878 = vand.u32 2147483647, %v276
        %v4879 = vand.u32 %v4878, 8388607
        %v4880 = vor.u32 %v4879, 8388608
        %v4881 = vsub.s32 0, %v4880
        %v4882 = vadd.s32 %v4877, 1
        %vm4883 = vcmp.gt.s32.totalorder %v4882, 0
        %v4884 = vsel %vm4883, %v4882, 0
        %v4885 = vshrl.u32 %v4884, 5
        %v4886 = vand.u32 %v4884, 31
        %v4887 = vsub.s32 32, %v4886
        %v4888 = vshrl.u32 683565275, %v4887
        %v4889 = vshll.u32 683565275, %v4886
        %v4890 = vshrl.u32 2475754826, %v4887
        %v4891 = vor.u32 %v4889, %v4890
        %v4892 = vshll.u32 2475754826, %v4886
        %v4893 = vshrl.u32 2131351028, %v4887
        %v4894 = vor.u32 %v4892, %v4893
        %v4895 = vshll.u32 2131351028, %v4886
        %v4896 = vshrl.u32 2102212464, %v4887
        %v4897 = vor.u32 %v4895, %v4896
        %v4898 = vshll.u32 2102212464, %v4886
        %v4899 = vshrl.u32 920167782, %v4887
        %v4900 = vor.u32 %v4898, %v4899
        %v4901 = vshll.u32 920167782, %v4886
        %v4902 = vshrl.u32 1326507024, %v4887
        %v4903 = vor.u32 %v4901, %v4902
        %vm4904 = vcmp.lt.s32.totalorder %v4885, 1
        %vm4905 = vcmp.lt.s32.totalorder %v4885, 2
        %vm4906 = vcmp.lt.s32.totalorder %v4885, 3
        %vm4907 = vcmp.lt.s32.totalorder %v4885, 4
        %v4908 = vsel %vm4904, %v4888, %v4891
        %v4909 = vsel %vm4907, %v4897, 2102212464
        %v4910 = vsel %vm4906, %v4894, %v4909
        %v4911 = vsel %vm4905, %v4908, %v4910
        %v4912 = vsel %vm4904, %v4891, %v4894
        %v4913 = vsel %vm4907, %v4900, 920167782
        %v4914 = vsel %vm4906, %v4897, %v4913
        %v4915 = vsel %vm4905, %v4912, %v4914
        %v4916 = vsel %vm4904, %v4894, %v4897
        %v4917 = vsel %vm4907, %v4903, 1326507024
        %v4918 = vsel %vm4906, %v4900, %v4917
        %v4919 = vsel %vm4905, %v4916, %v4918
        %v4920 = vshll.u32 %v4880, 8
        %v4921 = vmul.u32.u64.compose %v4920, %v4919
        %v4922 = vextract.low.u32 %v4921
        %v4923 = vextract.high.u32 %v4921
        %v4924 = vmul.u32.u64.compose %v4920, %v4915
        %v4925 = vextract.low.u32 %v4924
        %v4926 = vextract.high.u32 %v4924
        %v4927 = vmul.u32 %v4920, %v4911
        %v4928 = vadd.s32 %v4923, %v4925
        %vm4929 = vc.u32 %v4923, %v4925
        %v4930 = vadd.s32 %v4926, 1
        %v4931 = vsel %vm4929, %v4930, %v4926
        %v4932 = vadd.s32 %v4927, %v4931
        %v4933 = vadd.s32 %v4932, 536870912
        %v4934 = vshrl.u32 %v4933, 30
        %v4935 = vshll.u32 %v4934, 30
        %v4936 = vsub.s32 %v4932, %v4935
        %vm4937 = vcmp.lt.s32.totalorder %v4936, 0
        %v4938 = vsub.s32 0, %v4936
        %v4939 = vsel %vm4937, %v4938, %v4936
        %v4940 = vclz %v4939
        %v4941 = vsub.s32 %v4940, 2
        %vm4942 = vcmp.gt.s32.totalorder 0, %v4941
        %v4943 = vsel %vm4942, 0, %v4941
        %v4944 = vsub.s32 32, %v4943
        %v4945 = vshll.u32 %v4936, %v4943
        %v4946 = vshrl.u32 %v4928, %v4944
        %v4947 = vor.u32 %v4945, %v4946
        %v4948 = vsub.s32 4294967266, %v4943
        %v4949 = vadd.s32 %v4948, 127
        %v4950 = vshll.u32 %v4949, 23
        %v4951 = vor.u32 4788187, %v4950
        %v4952 = vand.u32 2147483647, %v4951
        %v4954 = vcvt.s32.f32 %v4947
        %v4955 = vmul.f32 %v4954, %v4952
        %v4956 = vxor.u32 %v4955, 2147483648
        %v4957 = vsel %vm4874, %v4956, %v4955
        %v4958 = vsub.s32 4, %v4934
        %v4959 = vsel %vm4874, %v4958, %v4934
        %v4960 = vsel %vm4873, %v276, %v4957
        %v4961 = vsel %vm4873, 0, %v4959
        %v4962 = vcosq.f32.pop %v4960
        %v4963 = vsinq.f32.pop %v4960
        %vm4964 = vweird.f32 %v276
        %v4965 = vadd.s32 %v4961, 3
        %v4966 = vand.u32 %v4965, 3
        %vm4967 = vcmp.lt.s32.totalorder %v4966, 2
        %vm4968 = vcmp.eq.s32.totalorder %v4966, 0
        %v4969 = vxor.u32 %v4963, 2147483648
        %v4970 = vsel %vm4968, %v4962, %v4969
        %vm4971 = vcmp.eq.s32.totalorder %v4966, 2
        %v4972 = vxor.u32 %v4962, 2147483648
        %v4973 = vsel %vm4971, %v4972, %v4963
        %v4974 = vsel %vm4967, %v4970, %v4973
        %v4975 = vsel %vm4964, nan, %v4974
        %v4976 = vand.u32 2147483647, %v277
        %vm4977 = vcmp.le.f32.partialorder %v4976, 0.7853982
        %vm4978 = vcmp.lt.s32.totalorder %v277, 0
        %v4979 = vand.u32 %v277, 2139095040
        %v4980 = vshrl.u32 %v4979, 23
        %v4981 = vsub.s32 %v4980, 127
        %v4982 = vand.u32 2147483647, %v277
        %v4983 = vand.u32 %v4982, 8388607
        %v4984 = vor.u32 %v4983, 8388608
        %v4985 = vsub.s32 0, %v4984
        %v4986 = vadd.s32 %v4981, 1
        %vm4987 = vcmp.gt.s32.totalorder %v4986, 0
        %v4988 = vsel %vm4987, %v4986, 0
        %v4989 = vshrl.u32 %v4988, 5
        %v4990 = vand.u32 %v4988, 31
        %v4991 = vsub.s32 32, %v4990
        %v4992 = vshrl.u32 683565275, %v4991
        %v4993 = vshll.u32 683565275, %v4990
        %v4994 = vshrl.u32 2475754826, %v4991
        %v4995 = vor.u32 %v4993, %v4994
        %v4996 = vshll.u32 2475754826, %v4990
        %v4997 = vshrl.u32 2131351028, %v4991
        %v4998 = vor.u32 %v4996, %v4997
        %v4999 = vshll.u32 2131351028, %v4990
        %v5000 = vshrl.u32 2102212464, %v4991
        %v5001 = vor.u32 %v4999, %v5000
        %v5002 = vshll.u32 2102212464, %v4990
        %v5003 = vshrl.u32 920167782, %v4991
        %v5004 = vor.u32 %v5002, %v5003
        %v5005 = vshll.u32 920167782, %v4990
        %v5006 = vshrl.u32 1326507024, %v4991
        %v5007 = vor.u32 %v5005, %v5006
        %vm5008 = vcmp.lt.s32.totalorder %v4989, 1
        %vm5009 = vcmp.lt.s32.totalorder %v4989, 2
        %vm5010 = vcmp.lt.s32.totalorder %v4989, 3
        %vm5011 = vcmp.lt.s32.totalorder %v4989, 4
        %v5012 = vsel %vm5008, %v4992, %v4995
        %v5013 = vsel %vm5011, %v5001, 2102212464
        %v5014 = vsel %vm5010, %v4998, %v5013
        %v5015 = vsel %vm5009, %v5012, %v5014
        %v5016 = vsel %vm5008, %v4995, %v4998
        %v5017 = vsel %vm5011, %v5004, 920167782
        %v5018 = vsel %vm5010, %v5001, %v5017
        %v5019 = vsel %vm5009, %v5016, %v5018
        %v5020 = vsel %vm5008, %v4998, %v5001
        %v5021 = vsel %vm5011, %v5007, 1326507024
        %v5022 = vsel %vm5010, %v5004, %v5021
        %v5023 = vsel %vm5009, %v5020, %v5022
        %v5024 = vshll.u32 %v4984, 8
        %v5025 = vmul.u32.u64.compose %v5024, %v5023
        %v5026 = vextract.low.u32 %v5025
        %v5027 = vextract.high.u32 %v5025
        %v5028 = vmul.u32.u64.compose %v5024, %v5019
        %v5029 = vextract.low.u32 %v5028
        %v5030 = vextract.high.u32 %v5028
        %v5031 = vmul.u32 %v5024, %v5015
        %v5032 = vadd.s32 %v5027, %v5029
        %vm5033 = vc.u32 %v5027, %v5029
        %v5034 = vadd.s32 %v5030, 1
        %v5035 = vsel %vm5033, %v5034, %v5030
        %v5036 = vadd.s32 %v5031, %v5035
        %v5037 = vadd.s32 %v5036, 536870912
        %v5038 = vshrl.u32 %v5037, 30
        %v5039 = vshll.u32 %v5038, 30
        %v5040 = vsub.s32 %v5036, %v5039
        %vm5041 = vcmp.lt.s32.totalorder %v5040, 0
        %v5042 = vsub.s32 0, %v5040
        %v5043 = vsel %vm5041, %v5042, %v5040
        %v5044 = vclz %v5043
        %v5045 = vsub.s32 %v5044, 2
        %vm5046 = vcmp.gt.s32.totalorder 0, %v5045
        %v5047 = vsel %vm5046, 0, %v5045
        %v5048 = vsub.s32 32, %v5047
        %v5049 = vshll.u32 %v5040, %v5047
        %v5050 = vshrl.u32 %v5032, %v5048
        %v5051 = vor.u32 %v5049, %v5050
        %v5052 = vsub.s32 4294967266, %v5047
        %v5053 = vadd.s32 %v5052, 127
        %v5054 = vshll.u32 %v5053, 23
        %v5055 = vor.u32 4788187, %v5054
        %v5056 = vand.u32 2147483647, %v5055
        %v5058 = vcvt.s32.f32 %v5051
        %v5059 = vmul.f32 %v5058, %v5056
        %v5060 = vxor.u32 %v5059, 2147483648
        %v5061 = vsel %vm4978, %v5060, %v5059
        %v5062 = vsub.s32 4, %v5038
        %v5063 = vsel %vm4978, %v5062, %v5038
        %v5064 = vsel %vm4977, %v277, %v5061
        %v5065 = vsel %vm4977, 0, %v5063
        %v5066 = vcosq.f32.pop %v5064
        %v5067 = vsinq.f32.pop %v5064
        %vm5068 = vweird.f32 %v277
        %v5069 = vadd.s32 %v5065, 3
        %v5070 = vand.u32 %v5069, 3
        %vm5071 = vcmp.lt.s32.totalorder %v5070, 2
        %vm5072 = vcmp.eq.s32.totalorder %v5070, 0
        %v5073 = vxor.u32 %v5067, 2147483648
        %v5074 = vsel %vm5072, %v5066, %v5073
        %vm5075 = vcmp.eq.s32.totalorder %v5070, 2
        %v5076 = vxor.u32 %v5066, 2147483648
        %v5077 = vsel %vm5075, %v5076, %v5067
        %v5078 = vsel %vm5071, %v5074, %v5077
        %v5079 = vsel %vm5068, nan, %v5078
        %v5080 = vand.u32 2147483647, %v278
        %vm5081 = vcmp.le.f32.partialorder %v5080, 0.7853982
        %vm5082 = vcmp.lt.s32.totalorder %v278, 0
        %v5083 = vand.u32 %v278, 2139095040
        %v5084 = vshrl.u32 %v5083, 23
        %v5085 = vsub.s32 %v5084, 127
        %v5086 = vand.u32 2147483647, %v278
        %v5087 = vand.u32 %v5086, 8388607
        %v5088 = vor.u32 %v5087, 8388608
        %v5089 = vsub.s32 0, %v5088
        %v5090 = vadd.s32 %v5085, 1
        %vm5091 = vcmp.gt.s32.totalorder %v5090, 0
        %v5092 = vsel %vm5091, %v5090, 0
        %v5093 = vshrl.u32 %v5092, 5
        %v5094 = vand.u32 %v5092, 31
        %v5095 = vsub.s32 32, %v5094
        %v5096 = vshrl.u32 683565275, %v5095
        %v5097 = vshll.u32 683565275, %v5094
        %v5098 = vshrl.u32 2475754826, %v5095
        %v5099 = vor.u32 %v5097, %v5098
        %v5100 = vshll.u32 2475754826, %v5094
        %v5101 = vshrl.u32 2131351028, %v5095
        %v5102 = vor.u32 %v5100, %v5101
        %v5103 = vshll.u32 2131351028, %v5094
        %v5104 = vshrl.u32 2102212464, %v5095
        %v5105 = vor.u32 %v5103, %v5104
        %v5106 = vshll.u32 2102212464, %v5094
        %v5107 = vshrl.u32 920167782, %v5095
        %v5108 = vor.u32 %v5106, %v5107
        %v5109 = vshll.u32 920167782, %v5094
        %v5110 = vshrl.u32 1326507024, %v5095
        %v5111 = vor.u32 %v5109, %v5110
        %vm5112 = vcmp.lt.s32.totalorder %v5093, 1
        %vm5113 = vcmp.lt.s32.totalorder %v5093, 2
        %vm5114 = vcmp.lt.s32.totalorder %v5093, 3
        %vm5115 = vcmp.lt.s32.totalorder %v5093, 4
        %v5116 = vsel %vm5112, %v5096, %v5099
        %v5117 = vsel %vm5115, %v5105, 2102212464
        %v5118 = vsel %vm5114, %v5102, %v5117
        %v5119 = vsel %vm5113, %v5116, %v5118
        %v5120 = vsel %vm5112, %v5099, %v5102
        %v5121 = vsel %vm5115, %v5108, 920167782
        %v5122 = vsel %vm5114, %v5105, %v5121
        %v5123 = vsel %vm5113, %v5120, %v5122
        %v5124 = vsel %vm5112, %v5102, %v5105
        %v5125 = vsel %vm5115, %v5111, 1326507024
        %v5126 = vsel %vm5114, %v5108, %v5125
        %v5127 = vsel %vm5113, %v5124, %v5126
        %v5128 = vshll.u32 %v5088, 8
        %v5129 = vmul.u32.u64.compose %v5128, %v5127
        %v5130 = vextract.low.u32 %v5129
        %v5131 = vextract.high.u32 %v5129
        %v5132 = vmul.u32.u64.compose %v5128, %v5123
        %v5133 = vextract.low.u32 %v5132
        %v5134 = vextract.high.u32 %v5132
        %v5135 = vmul.u32 %v5128, %v5119
        %v5136 = vadd.s32 %v5131, %v5133
        %vm5137 = vc.u32 %v5131, %v5133
        %v5138 = vadd.s32 %v5134, 1
        %v5139 = vsel %vm5137, %v5138, %v5134
        %v5140 = vadd.s32 %v5135, %v5139
        %v5141 = vadd.s32 %v5140, 536870912
        %v5142 = vshrl.u32 %v5141, 30
        %v5143 = vshll.u32 %v5142, 30
        %v5144 = vsub.s32 %v5140, %v5143
        %vm5145 = vcmp.lt.s32.totalorder %v5144, 0
        %v5146 = vsub.s32 0, %v5144
        %v5147 = vsel %vm5145, %v5146, %v5144
        %v5148 = vclz %v5147
        %v5149 = vsub.s32 %v5148, 2
        %vm5150 = vcmp.gt.s32.totalorder 0, %v5149
        %v5151 = vsel %vm5150, 0, %v5149
        %v5152 = vsub.s32 32, %v5151
        %v5153 = vshll.u32 %v5144, %v5151
        %v5154 = vshrl.u32 %v5136, %v5152
        %v5155 = vor.u32 %v5153, %v5154
        %v5156 = vsub.s32 4294967266, %v5151
        %v5157 = vadd.s32 %v5156, 127
        %v5158 = vshll.u32 %v5157, 23
        %v5159 = vor.u32 4788187, %v5158
        %v5160 = vand.u32 2147483647, %v5159
        %v5162 = vcvt.s32.f32 %v5155
        %v5163 = vmul.f32 %v5162, %v5160
        %v5164 = vxor.u32 %v5163, 2147483648
        %v5165 = vsel %vm5082, %v5164, %v5163
        %v5166 = vsub.s32 4, %v5142
        %v5167 = vsel %vm5082, %v5166, %v5142
        %v5168 = vsel %vm5081, %v278, %v5165
        %v5169 = vsel %vm5081, 0, %v5167
        %v5170 = vcosq.f32.pop %v5168
        %v5171 = vsinq.f32.pop %v5168
        %vm5172 = vweird.f32 %v278
        %v5173 = vadd.s32 %v5169, 3
        %v5174 = vand.u32 %v5173, 3
        %vm5175 = vcmp.lt.s32.totalorder %v5174, 2
        %vm5176 = vcmp.eq.s32.totalorder %v5174, 0
        %v5177 = vxor.u32 %v5171, 2147483648
        %v5178 = vsel %vm5176, %v5170, %v5177
        %vm5179 = vcmp.eq.s32.totalorder %v5174, 2
        %v5180 = vxor.u32 %v5170, 2147483648
        %v5181 = vsel %vm5179, %v5180, %v5171
        %v5182 = vsel %vm5175, %v5178, %v5181
        %v5183 = vsel %vm5172, nan, %v5182
        %v5184 = vand.u32 2147483647, %v279
        %vm5185 = vcmp.le.f32.partialorder %v5184, 0.7853982
        %vm5186 = vcmp.lt.s32.totalorder %v279, 0
        %v5187 = vand.u32 %v279, 2139095040
        %v5188 = vshrl.u32 %v5187, 23
        %v5189 = vsub.s32 %v5188, 127
        %v5190 = vand.u32 2147483647, %v279
        %v5191 = vand.u32 %v5190, 8388607
        %v5192 = vor.u32 %v5191, 8388608
        %v5193 = vsub.s32 0, %v5192
        %v5194 = vadd.s32 %v5189, 1
        %vm5195 = vcmp.gt.s32.totalorder %v5194, 0
        %v5196 = vsel %vm5195, %v5194, 0
        %v5197 = vshrl.u32 %v5196, 5
        %v5198 = vand.u32 %v5196, 31
        %v5199 = vsub.s32 32, %v5198
        %v5200 = vshrl.u32 683565275, %v5199
        %v5201 = vshll.u32 683565275, %v5198
        %v5202 = vshrl.u32 2475754826, %v5199
        %v5203 = vor.u32 %v5201, %v5202
        %v5204 = vshll.u32 2475754826, %v5198
        %v5205 = vshrl.u32 2131351028, %v5199
        %v5206 = vor.u32 %v5204, %v5205
        %v5207 = vshll.u32 2131351028, %v5198
        %v5208 = vshrl.u32 2102212464, %v5199
        %v5209 = vor.u32 %v5207, %v5208
        %v5210 = vshll.u32 2102212464, %v5198
        %v5211 = vshrl.u32 920167782, %v5199
        %v5212 = vor.u32 %v5210, %v5211
        %v5213 = vshll.u32 920167782, %v5198
        %v5214 = vshrl.u32 1326507024, %v5199
        %v5215 = vor.u32 %v5213, %v5214
        %vm5216 = vcmp.lt.s32.totalorder %v5197, 1
        %vm5217 = vcmp.lt.s32.totalorder %v5197, 2
        %vm5218 = vcmp.lt.s32.totalorder %v5197, 3
        %vm5219 = vcmp.lt.s32.totalorder %v5197, 4
        %v5220 = vsel %vm5216, %v5200, %v5203
        %v5221 = vsel %vm5219, %v5209, 2102212464
        %v5222 = vsel %vm5218, %v5206, %v5221
        %v5223 = vsel %vm5217, %v5220, %v5222
        %v5224 = vsel %vm5216, %v5203, %v5206
        %v5225 = vsel %vm5219, %v5212, 920167782
        %v5226 = vsel %vm5218, %v5209, %v5225
        %v5227 = vsel %vm5217, %v5224, %v5226
        %v5228 = vsel %vm5216, %v5206, %v5209
        %v5229 = vsel %vm5219, %v5215, 1326507024
        %v5230 = vsel %vm5218, %v5212, %v5229
        %v5231 = vsel %vm5217, %v5228, %v5230
        %v5232 = vshll.u32 %v5192, 8
        %v5233 = vmul.u32.u64.compose %v5232, %v5231
        %v5234 = vextract.low.u32 %v5233
        %v5235 = vextract.high.u32 %v5233
        %v5236 = vmul.u32.u64.compose %v5232, %v5227
        %v5237 = vextract.low.u32 %v5236
        %v5238 = vextract.high.u32 %v5236
        %v5239 = vmul.u32 %v5232, %v5223
        %v5240 = vadd.s32 %v5235, %v5237
        %vm5241 = vc.u32 %v5235, %v5237
        %v5242 = vadd.s32 %v5238, 1
        %v5243 = vsel %vm5241, %v5242, %v5238
        %v5244 = vadd.s32 %v5239, %v5243
        %v5245 = vadd.s32 %v5244, 536870912
        %v5246 = vshrl.u32 %v5245, 30
        %v5247 = vshll.u32 %v5246, 30
        %v5248 = vsub.s32 %v5244, %v5247
        %vm5249 = vcmp.lt.s32.totalorder %v5248, 0
        %v5250 = vsub.s32 0, %v5248
        %v5251 = vsel %vm5249, %v5250, %v5248
        %v5252 = vclz %v5251
        %v5253 = vsub.s32 %v5252, 2
        %vm5254 = vcmp.gt.s32.totalorder 0, %v5253
        %v5255 = vsel %vm5254, 0, %v5253
        %v5256 = vsub.s32 32, %v5255
        %v5257 = vshll.u32 %v5248, %v5255
        %v5258 = vshrl.u32 %v5240, %v5256
        %v5259 = vor.u32 %v5257, %v5258
        %v5260 = vsub.s32 4294967266, %v5255
        %v5261 = vadd.s32 %v5260, 127
        %v5262 = vshll.u32 %v5261, 23
        %v5263 = vor.u32 4788187, %v5262
        %v5264 = vand.u32 2147483647, %v5263
        %v5266 = vcvt.s32.f32 %v5259
        %v5267 = vmul.f32 %v5266, %v5264
        %v5268 = vxor.u32 %v5267, 2147483648
        %v5269 = vsel %vm5186, %v5268, %v5267
        %v5270 = vsub.s32 4, %v5246
        %v5271 = vsel %vm5186, %v5270, %v5246
        %v5272 = vsel %vm5185, %v279, %v5269
        %v5273 = vsel %vm5185, 0, %v5271
        %v5274 = vcosq.f32.pop %v5272
        %v5275 = vsinq.f32.pop %v5272
        %vm5276 = vweird.f32 %v279
        %v5277 = vadd.s32 %v5273, 3
        %v5278 = vand.u32 %v5277, 3
        %vm5279 = vcmp.lt.s32.totalorder %v5278, 2
        %vm5280 = vcmp.eq.s32.totalorder %v5278, 0
        %v5281 = vxor.u32 %v5275, 2147483648
        %v5282 = vsel %vm5280, %v5274, %v5281
        %vm5283 = vcmp.eq.s32.totalorder %v5278, 2
        %v5284 = vxor.u32 %v5274, 2147483648
        %v5285 = vsel %vm5283, %v5284, %v5275
        %v5286 = vsel %vm5279, %v5282, %v5285
        %v5287 = vsel %vm5276, nan, %v5286
        %v5288 = vand.u32 2147483647, %v280
        %vm5289 = vcmp.le.f32.partialorder %v5288, 0.7853982
        %vm5290 = vcmp.lt.s32.totalorder %v280, 0
        %v5291 = vand.u32 %v280, 2139095040
        %v5292 = vshrl.u32 %v5291, 23
        %v5293 = vsub.s32 %v5292, 127
        %v5294 = vand.u32 2147483647, %v280
        %v5295 = vand.u32 %v5294, 8388607
        %v5296 = vor.u32 %v5295, 8388608
        %v5297 = vsub.s32 0, %v5296
        %v5298 = vadd.s32 %v5293, 1
        %vm5299 = vcmp.gt.s32.totalorder %v5298, 0
        %v5300 = vsel %vm5299, %v5298, 0
        %v5301 = vshrl.u32 %v5300, 5
        %v5302 = vand.u32 %v5300, 31
        %v5303 = vsub.s32 32, %v5302
        %v5304 = vshrl.u32 683565275, %v5303
        %v5305 = vshll.u32 683565275, %v5302
        %v5306 = vshrl.u32 2475754826, %v5303
        %v5307 = vor.u32 %v5305, %v5306
        %v5308 = vshll.u32 2475754826, %v5302
        %v5309 = vshrl.u32 2131351028, %v5303
        %v5310 = vor.u32 %v5308, %v5309
        %v5311 = vshll.u32 2131351028, %v5302
        %v5312 = vshrl.u32 2102212464, %v5303
        %v5313 = vor.u32 %v5311, %v5312
        %v5314 = vshll.u32 2102212464, %v5302
        %v5315 = vshrl.u32 920167782, %v5303
        %v5316 = vor.u32 %v5314, %v5315
        %v5317 = vshll.u32 920167782, %v5302
        %v5318 = vshrl.u32 1326507024, %v5303
        %v5319 = vor.u32 %v5317, %v5318
        %vm5320 = vcmp.lt.s32.totalorder %v5301, 1
        %vm5321 = vcmp.lt.s32.totalorder %v5301, 2
        %vm5322 = vcmp.lt.s32.totalorder %v5301, 3
        %vm5323 = vcmp.lt.s32.totalorder %v5301, 4
        %v5324 = vsel %vm5320, %v5304, %v5307
        %v5325 = vsel %vm5323, %v5313, 2102212464
        %v5326 = vsel %vm5322, %v5310, %v5325
        %v5327 = vsel %vm5321, %v5324, %v5326
        %v5328 = vsel %vm5320, %v5307, %v5310
        %v5329 = vsel %vm5323, %v5316, 920167782
        %v5330 = vsel %vm5322, %v5313, %v5329
        %v5331 = vsel %vm5321, %v5328, %v5330
        %v5332 = vsel %vm5320, %v5310, %v5313
        %v5333 = vsel %vm5323, %v5319, 1326507024
        %v5334 = vsel %vm5322, %v5316, %v5333
        %v5335 = vsel %vm5321, %v5332, %v5334
        %v5336 = vshll.u32 %v5296, 8
        %v5337 = vmul.u32.u64.compose %v5336, %v5335
        %v5338 = vextract.low.u32 %v5337
        %v5339 = vextract.high.u32 %v5337
        %v5340 = vmul.u32.u64.compose %v5336, %v5331
        %v5341 = vextract.low.u32 %v5340
        %v5342 = vextract.high.u32 %v5340
        %v5343 = vmul.u32 %v5336, %v5327
        %v5344 = vadd.s32 %v5339, %v5341
        %vm5345 = vc.u32 %v5339, %v5341
        %v5346 = vadd.s32 %v5342, 1
        %v5347 = vsel %vm5345, %v5346, %v5342
        %v5348 = vadd.s32 %v5343, %v5347
        %v5349 = vadd.s32 %v5348, 536870912
        %v5350 = vshrl.u32 %v5349, 30
        %v5351 = vshll.u32 %v5350, 30
        %v5352 = vsub.s32 %v5348, %v5351
        %vm5353 = vcmp.lt.s32.totalorder %v5352, 0
        %v5354 = vsub.s32 0, %v5352
        %v5355 = vsel %vm5353, %v5354, %v5352
        %v5356 = vclz %v5355
        %v5357 = vsub.s32 %v5356, 2
        %vm5358 = vcmp.gt.s32.totalorder 0, %v5357
        %v5359 = vsel %vm5358, 0, %v5357
        %v5360 = vsub.s32 32, %v5359
        %v5361 = vshll.u32 %v5352, %v5359
        %v5362 = vshrl.u32 %v5344, %v5360
        %v5363 = vor.u32 %v5361, %v5362
        %v5364 = vsub.s32 4294967266, %v5359
        %v5365 = vadd.s32 %v5364, 127
        %v5366 = vshll.u32 %v5365, 23
        %v5367 = vor.u32 4788187, %v5366
        %v5368 = vand.u32 2147483647, %v5367
        %v5370 = vcvt.s32.f32 %v5363
        %v5371 = vmul.f32 %v5370, %v5368
        %v5372 = vxor.u32 %v5371, 2147483648
        %v5373 = vsel %vm5290, %v5372, %v5371
        %v5374 = vsub.s32 4, %v5350
        %v5375 = vsel %vm5290, %v5374, %v5350
        %v5376 = vsel %vm5289, %v280, %v5373
        %v5377 = vsel %vm5289, 0, %v5375
        %v5378 = vcosq.f32.pop %v5376
        %v5379 = vsinq.f32.pop %v5376
        %vm5380 = vweird.f32 %v280
        %v5381 = vadd.s32 %v5377, 3
        %v5382 = vand.u32 %v5381, 3
        %vm5383 = vcmp.lt.s32.totalorder %v5382, 2
        %vm5384 = vcmp.eq.s32.totalorder %v5382, 0
        %v5385 = vxor.u32 %v5379, 2147483648
        %v5386 = vsel %vm5384, %v5378, %v5385
        %vm5387 = vcmp.eq.s32.totalorder %v5382, 2
        %v5388 = vxor.u32 %v5378, 2147483648
        %v5389 = vsel %vm5387, %v5388, %v5379
        %v5390 = vsel %vm5383, %v5386, %v5389
        %v5391 = vsel %vm5380, nan, %v5390
        %v5392 = vand.u32 2147483647, %v281
        %vm5393 = vcmp.le.f32.partialorder %v5392, 0.7853982
        %vm5394 = vcmp.lt.s32.totalorder %v281, 0
        %v5395 = vand.u32 %v281, 2139095040
        %v5396 = vshrl.u32 %v5395, 23
        %v5397 = vsub.s32 %v5396, 127
        %v5398 = vand.u32 2147483647, %v281
        %v5399 = vand.u32 %v5398, 8388607
        %v5400 = vor.u32 %v5399, 8388608
        %v5401 = vsub.s32 0, %v5400
        %v5402 = vadd.s32 %v5397, 1
        %vm5403 = vcmp.gt.s32.totalorder %v5402, 0
        %v5404 = vsel %vm5403, %v5402, 0
        %v5405 = vshrl.u32 %v5404, 5
        %v5406 = vand.u32 %v5404, 31
        %v5407 = vsub.s32 32, %v5406
        %v5408 = vshrl.u32 683565275, %v5407
        %v5409 = vshll.u32 683565275, %v5406
        %v5410 = vshrl.u32 2475754826, %v5407
        %v5411 = vor.u32 %v5409, %v5410
        %v5412 = vshll.u32 2475754826, %v5406
        %v5413 = vshrl.u32 2131351028, %v5407
        %v5414 = vor.u32 %v5412, %v5413
        %v5415 = vshll.u32 2131351028, %v5406
        %v5416 = vshrl.u32 2102212464, %v5407
        %v5417 = vor.u32 %v5415, %v5416
        %v5418 = vshll.u32 2102212464, %v5406
        %v5419 = vshrl.u32 920167782, %v5407
        %v5420 = vor.u32 %v5418, %v5419
        %v5421 = vshll.u32 920167782, %v5406
        %v5422 = vshrl.u32 1326507024, %v5407
        %v5423 = vor.u32 %v5421, %v5422
        %vm5424 = vcmp.lt.s32.totalorder %v5405, 1
        %vm5425 = vcmp.lt.s32.totalorder %v5405, 2
        %vm5426 = vcmp.lt.s32.totalorder %v5405, 3
        %vm5427 = vcmp.lt.s32.totalorder %v5405, 4
        %v5428 = vsel %vm5424, %v5408, %v5411
        %v5429 = vsel %vm5427, %v5417, 2102212464
        %v5430 = vsel %vm5426, %v5414, %v5429
        %v5431 = vsel %vm5425, %v5428, %v5430
        %v5432 = vsel %vm5424, %v5411, %v5414
        %v5433 = vsel %vm5427, %v5420, 920167782
        %v5434 = vsel %vm5426, %v5417, %v5433
        %v5435 = vsel %vm5425, %v5432, %v5434
        %v5436 = vsel %vm5424, %v5414, %v5417
        %v5437 = vsel %vm5427, %v5423, 1326507024
        %v5438 = vsel %vm5426, %v5420, %v5437
        %v5439 = vsel %vm5425, %v5436, %v5438
        %v5440 = vshll.u32 %v5400, 8
        %v5441 = vmul.u32.u64.compose %v5440, %v5439
        %v5442 = vextract.low.u32 %v5441
        %v5443 = vextract.high.u32 %v5441
        %v5444 = vmul.u32.u64.compose %v5440, %v5435
        %v5445 = vextract.low.u32 %v5444
        %v5446 = vextract.high.u32 %v5444
        %v5447 = vmul.u32 %v5440, %v5431
        %v5448 = vadd.s32 %v5443, %v5445
        %vm5449 = vc.u32 %v5443, %v5445
        %v5450 = vadd.s32 %v5446, 1
        %v5451 = vsel %vm5449, %v5450, %v5446
        %v5452 = vadd.s32 %v5447, %v5451
        %v5453 = vadd.s32 %v5452, 536870912
        %v5454 = vshrl.u32 %v5453, 30
        %v5455 = vshll.u32 %v5454, 30
        %v5456 = vsub.s32 %v5452, %v5455
        %vm5457 = vcmp.lt.s32.totalorder %v5456, 0
        %v5458 = vsub.s32 0, %v5456
        %v5459 = vsel %vm5457, %v5458, %v5456
        %v5460 = vclz %v5459
        %v5461 = vsub.s32 %v5460, 2
        %vm5462 = vcmp.gt.s32.totalorder 0, %v5461
        %v5463 = vsel %vm5462, 0, %v5461
        %v5464 = vsub.s32 32, %v5463
        %v5465 = vshll.u32 %v5456, %v5463
        %v5466 = vshrl.u32 %v5448, %v5464
        %v5467 = vor.u32 %v5465, %v5466
        %v5468 = vsub.s32 4294967266, %v5463
        %v5469 = vadd.s32 %v5468, 127
        %v5470 = vshll.u32 %v5469, 23
        %v5471 = vor.u32 4788187, %v5470
        %v5472 = vand.u32 2147483647, %v5471
        %v5474 = vcvt.s32.f32 %v5467
        %v5475 = vmul.f32 %v5474, %v5472
        %v5476 = vxor.u32 %v5475, 2147483648
        %v5477 = vsel %vm5394, %v5476, %v5475
        %v5478 = vsub.s32 4, %v5454
        %v5479 = vsel %vm5394, %v5478, %v5454
        %v5480 = vsel %vm5393, %v281, %v5477
        %v5481 = vsel %vm5393, 0, %v5479
        %v5482 = vcosq.f32.pop %v5480
        %v5483 = vsinq.f32.pop %v5480
        %vm5484 = vweird.f32 %v281
        %v5485 = vadd.s32 %v5481, 3
        %v5486 = vand.u32 %v5485, 3
        %vm5487 = vcmp.lt.s32.totalorder %v5486, 2
        %vm5488 = vcmp.eq.s32.totalorder %v5486, 0
        %v5489 = vxor.u32 %v5483, 2147483648
        %v5490 = vsel %vm5488, %v5482, %v5489
        %vm5491 = vcmp.eq.s32.totalorder %v5486, 2
        %v5492 = vxor.u32 %v5482, 2147483648
        %v5493 = vsel %vm5491, %v5492, %v5483
        %v5494 = vsel %vm5487, %v5490, %v5493
        %v5495 = vsel %vm5484, nan, %v5494
        %v5496 = vand.u32 2147483647, %v282
        %vm5497 = vcmp.le.f32.partialorder %v5496, 0.7853982
        %vm5498 = vcmp.lt.s32.totalorder %v282, 0
        %v5499 = vand.u32 %v282, 2139095040
        %v5500 = vshrl.u32 %v5499, 23
        %v5501 = vsub.s32 %v5500, 127
        %v5502 = vand.u32 2147483647, %v282
        %v5503 = vand.u32 %v5502, 8388607
        %v5504 = vor.u32 %v5503, 8388608
        %v5505 = vsub.s32 0, %v5504
        %v5506 = vadd.s32 %v5501, 1
        %vm5507 = vcmp.gt.s32.totalorder %v5506, 0
        %v5508 = vsel %vm5507, %v5506, 0
        %v5509 = vshrl.u32 %v5508, 5
        %v5510 = vand.u32 %v5508, 31
        %v5511 = vsub.s32 32, %v5510
        %v5512 = vshrl.u32 683565275, %v5511
        %v5513 = vshll.u32 683565275, %v5510
        %v5514 = vshrl.u32 2475754826, %v5511
        %v5515 = vor.u32 %v5513, %v5514
        %v5516 = vshll.u32 2475754826, %v5510
        %v5517 = vshrl.u32 2131351028, %v5511
        %v5518 = vor.u32 %v5516, %v5517
        %v5519 = vshll.u32 2131351028, %v5510
        %v5520 = vshrl.u32 2102212464, %v5511
        %v5521 = vor.u32 %v5519, %v5520
        %v5522 = vshll.u32 2102212464, %v5510
        %v5523 = vshrl.u32 920167782, %v5511
        %v5524 = vor.u32 %v5522, %v5523
        %v5525 = vshll.u32 920167782, %v5510
        %v5526 = vshrl.u32 1326507024, %v5511
        %v5527 = vor.u32 %v5525, %v5526
        %vm5528 = vcmp.lt.s32.totalorder %v5509, 1
        %vm5529 = vcmp.lt.s32.totalorder %v5509, 2
        %vm5530 = vcmp.lt.s32.totalorder %v5509, 3
        %vm5531 = vcmp.lt.s32.totalorder %v5509, 4
        %v5532 = vsel %vm5528, %v5512, %v5515
        %v5533 = vsel %vm5531, %v5521, 2102212464
        %v5534 = vsel %vm5530, %v5518, %v5533
        %v5535 = vsel %vm5529, %v5532, %v5534
        %v5536 = vsel %vm5528, %v5515, %v5518
        %v5537 = vsel %vm5531, %v5524, 920167782
        %v5538 = vsel %vm5530, %v5521, %v5537
        %v5539 = vsel %vm5529, %v5536, %v5538
        %v5540 = vsel %vm5528, %v5518, %v5521
        %v5541 = vsel %vm5531, %v5527, 1326507024
        %v5542 = vsel %vm5530, %v5524, %v5541
        %v5543 = vsel %vm5529, %v5540, %v5542
        %v5544 = vshll.u32 %v5504, 8
        %v5545 = vmul.u32.u64.compose %v5544, %v5543
        %v5546 = vextract.low.u32 %v5545
        %v5547 = vextract.high.u32 %v5545
        %v5548 = vmul.u32.u64.compose %v5544, %v5539
        %v5549 = vextract.low.u32 %v5548
        %v5550 = vextract.high.u32 %v5548
        %v5551 = vmul.u32 %v5544, %v5535
        %v5552 = vadd.s32 %v5547, %v5549
        %vm5553 = vc.u32 %v5547, %v5549
        %v5554 = vadd.s32 %v5550, 1
        %v5555 = vsel %vm5553, %v5554, %v5550
        %v5556 = vadd.s32 %v5551, %v5555
        %v5557 = vadd.s32 %v5556, 536870912
        %v5558 = vshrl.u32 %v5557, 30
        %v5559 = vshll.u32 %v5558, 30
        %v5560 = vsub.s32 %v5556, %v5559
        %vm5561 = vcmp.lt.s32.totalorder %v5560, 0
        %v5562 = vsub.s32 0, %v5560
        %v5563 = vsel %vm5561, %v5562, %v5560
        %v5564 = vclz %v5563
        %v5565 = vsub.s32 %v5564, 2
        %vm5566 = vcmp.gt.s32.totalorder 0, %v5565
        %v5567 = vsel %vm5566, 0, %v5565
        %v5568 = vsub.s32 32, %v5567
        %v5569 = vshll.u32 %v5560, %v5567
        %v5570 = vshrl.u32 %v5552, %v5568
        %v5571 = vor.u32 %v5569, %v5570
        %v5572 = vsub.s32 4294967266, %v5567
        %v5573 = vadd.s32 %v5572, 127
        %v5574 = vshll.u32 %v5573, 23
        %v5575 = vor.u32 4788187, %v5574
        %v5576 = vand.u32 2147483647, %v5575
        %v5578 = vcvt.s32.f32 %v5571
        %v5579 = vmul.f32 %v5578, %v5576
        %v5580 = vxor.u32 %v5579, 2147483648
        %v5581 = vsel %vm5498, %v5580, %v5579
        %v5582 = vsub.s32 4, %v5558
        %v5583 = vsel %vm5498, %v5582, %v5558
        %v5584 = vsel %vm5497, %v282, %v5581
        %v5585 = vsel %vm5497, 0, %v5583
        %v5586 = vcosq.f32.pop %v5584
        %v5587 = vsinq.f32.pop %v5584
        %vm5588 = vweird.f32 %v282
        %v5589 = vadd.s32 %v5585, 3
        %v5590 = vand.u32 %v5589, 3
        %vm5591 = vcmp.lt.s32.totalorder %v5590, 2
        %vm5592 = vcmp.eq.s32.totalorder %v5590, 0
        %v5593 = vxor.u32 %v5587, 2147483648
        %v5594 = vsel %vm5592, %v5586, %v5593
        %vm5595 = vcmp.eq.s32.totalorder %v5590, 2
        %v5596 = vxor.u32 %v5586, 2147483648
        %v5597 = vsel %vm5595, %v5596, %v5587
        %v5598 = vsel %vm5591, %v5594, %v5597
        %v5599 = vsel %vm5588, nan, %v5598
        %v5600 = vand.u32 2147483647, %v283
        %vm5601 = vcmp.le.f32.partialorder %v5600, 0.7853982
        %vm5602 = vcmp.lt.s32.totalorder %v283, 0
        %v5603 = vand.u32 %v283, 2139095040
        %v5604 = vshrl.u32 %v5603, 23
        %v5605 = vsub.s32 %v5604, 127
        %v5606 = vand.u32 2147483647, %v283
        %v5607 = vand.u32 %v5606, 8388607
        %v5608 = vor.u32 %v5607, 8388608
        %v5609 = vsub.s32 0, %v5608
        %v5610 = vadd.s32 %v5605, 1
        %vm5611 = vcmp.gt.s32.totalorder %v5610, 0
        %v5612 = vsel %vm5611, %v5610, 0
        %v5613 = vshrl.u32 %v5612, 5
        %v5614 = vand.u32 %v5612, 31
        %v5615 = vsub.s32 32, %v5614
        %v5616 = vshrl.u32 683565275, %v5615
        %v5617 = vshll.u32 683565275, %v5614
        %v5618 = vshrl.u32 2475754826, %v5615
        %v5619 = vor.u32 %v5617, %v5618
        %v5620 = vshll.u32 2475754826, %v5614
        %v5621 = vshrl.u32 2131351028, %v5615
        %v5622 = vor.u32 %v5620, %v5621
        %v5623 = vshll.u32 2131351028, %v5614
        %v5624 = vshrl.u32 2102212464, %v5615
        %v5625 = vor.u32 %v5623, %v5624
        %v5626 = vshll.u32 2102212464, %v5614
        %v5627 = vshrl.u32 920167782, %v5615
        %v5628 = vor.u32 %v5626, %v5627
        %v5629 = vshll.u32 920167782, %v5614
        %v5630 = vshrl.u32 1326507024, %v5615
        %v5631 = vor.u32 %v5629, %v5630
        %vm5632 = vcmp.lt.s32.totalorder %v5613, 1
        %vm5633 = vcmp.lt.s32.totalorder %v5613, 2
        %vm5634 = vcmp.lt.s32.totalorder %v5613, 3
        %vm5635 = vcmp.lt.s32.totalorder %v5613, 4
        %v5636 = vsel %vm5632, %v5616, %v5619
        %v5637 = vsel %vm5635, %v5625, 2102212464
        %v5638 = vsel %vm5634, %v5622, %v5637
        %v5639 = vsel %vm5633, %v5636, %v5638
        %v5640 = vsel %vm5632, %v5619, %v5622
        %v5641 = vsel %vm5635, %v5628, 920167782
        %v5642 = vsel %vm5634, %v5625, %v5641
        %v5643 = vsel %vm5633, %v5640, %v5642
        %v5644 = vsel %vm5632, %v5622, %v5625
        %v5645 = vsel %vm5635, %v5631, 1326507024
        %v5646 = vsel %vm5634, %v5628, %v5645
        %v5647 = vsel %vm5633, %v5644, %v5646
        %v5648 = vshll.u32 %v5608, 8
        %v5649 = vmul.u32.u64.compose %v5648, %v5647
        %v5650 = vextract.low.u32 %v5649
        %v5651 = vextract.high.u32 %v5649
        %v5652 = vmul.u32.u64.compose %v5648, %v5643
        %v5653 = vextract.low.u32 %v5652
        %v5654 = vextract.high.u32 %v5652
        %v5655 = vmul.u32 %v5648, %v5639
        %v5656 = vadd.s32 %v5651, %v5653
        %vm5657 = vc.u32 %v5651, %v5653
        %v5658 = vadd.s32 %v5654, 1
        %v5659 = vsel %vm5657, %v5658, %v5654
        %v5660 = vadd.s32 %v5655, %v5659
        %v5661 = vadd.s32 %v5660, 536870912
        %v5662 = vshrl.u32 %v5661, 30
        %v5663 = vshll.u32 %v5662, 30
        %v5664 = vsub.s32 %v5660, %v5663
        %vm5665 = vcmp.lt.s32.totalorder %v5664, 0
        %v5666 = vsub.s32 0, %v5664
        %v5667 = vsel %vm5665, %v5666, %v5664
        %v5668 = vclz %v5667
        %v5669 = vsub.s32 %v5668, 2
        %vm5670 = vcmp.gt.s32.totalorder 0, %v5669
        %v5671 = vsel %vm5670, 0, %v5669
        %v5672 = vsub.s32 32, %v5671
        %v5673 = vshll.u32 %v5664, %v5671
        %v5674 = vshrl.u32 %v5656, %v5672
        %v5675 = vor.u32 %v5673, %v5674
        %v5676 = vsub.s32 4294967266, %v5671
        %v5677 = vadd.s32 %v5676, 127
        %v5678 = vshll.u32 %v5677, 23
        %v5679 = vor.u32 4788187, %v5678
        %v5680 = vand.u32 2147483647, %v5679
        %v5682 = vcvt.s32.f32 %v5675
        %v5683 = vmul.f32 %v5682, %v5680
        %v5684 = vxor.u32 %v5683, 2147483648
        %v5685 = vsel %vm5602, %v5684, %v5683
        %v5686 = vsub.s32 4, %v5662
        %v5687 = vsel %vm5602, %v5686, %v5662
        %v5688 = vsel %vm5601, %v283, %v5685
        %v5689 = vsel %vm5601, 0, %v5687
        %v5690 = vcosq.f32.pop %v5688
        %v5691 = vsinq.f32.pop %v5688
        %vm5692 = vweird.f32 %v283
        %v5693 = vadd.s32 %v5689, 3
        %v5694 = vand.u32 %v5693, 3
        %vm5695 = vcmp.lt.s32.totalorder %v5694, 2
        %vm5696 = vcmp.eq.s32.totalorder %v5694, 0
        %v5697 = vxor.u32 %v5691, 2147483648
        %v5698 = vsel %vm5696, %v5690, %v5697
        %vm5699 = vcmp.eq.s32.totalorder %v5694, 2
        %v5700 = vxor.u32 %v5690, 2147483648
        %v5701 = vsel %vm5699, %v5700, %v5691
        %v5702 = vsel %vm5695, %v5698, %v5701
        %v5703 = vsel %vm5692, nan, %v5702
        %v5704 = vand.u32 2147483647, %v284
        %vm5705 = vcmp.le.f32.partialorder %v5704, 0.7853982
        %vm5706 = vcmp.lt.s32.totalorder %v284, 0
        %v5707 = vand.u32 %v284, 2139095040
        %v5708 = vshrl.u32 %v5707, 23
        %v5709 = vsub.s32 %v5708, 127
        %v5710 = vand.u32 2147483647, %v284
        %v5711 = vand.u32 %v5710, 8388607
        %v5712 = vor.u32 %v5711, 8388608
        %v5713 = vsub.s32 0, %v5712
        %v5714 = vadd.s32 %v5709, 1
        %vm5715 = vcmp.gt.s32.totalorder %v5714, 0
        %v5716 = vsel %vm5715, %v5714, 0
        %v5717 = vshrl.u32 %v5716, 5
        %v5718 = vand.u32 %v5716, 31
        %v5719 = vsub.s32 32, %v5718
        %v5720 = vshrl.u32 683565275, %v5719
        %v5721 = vshll.u32 683565275, %v5718
        %v5722 = vshrl.u32 2475754826, %v5719
        %v5723 = vor.u32 %v5721, %v5722
        %v5724 = vshll.u32 2475754826, %v5718
        %v5725 = vshrl.u32 2131351028, %v5719
        %v5726 = vor.u32 %v5724, %v5725
        %v5727 = vshll.u32 2131351028, %v5718
        %v5728 = vshrl.u32 2102212464, %v5719
        %v5729 = vor.u32 %v5727, %v5728
        %v5730 = vshll.u32 2102212464, %v5718
        %v5731 = vshrl.u32 920167782, %v5719
        %v5732 = vor.u32 %v5730, %v5731
        %v5733 = vshll.u32 920167782, %v5718
        %v5734 = vshrl.u32 1326507024, %v5719
        %v5735 = vor.u32 %v5733, %v5734
        %vm5736 = vcmp.lt.s32.totalorder %v5717, 1
        %vm5737 = vcmp.lt.s32.totalorder %v5717, 2
        %vm5738 = vcmp.lt.s32.totalorder %v5717, 3
        %vm5739 = vcmp.lt.s32.totalorder %v5717, 4
        %v5740 = vsel %vm5736, %v5720, %v5723
        %v5741 = vsel %vm5739, %v5729, 2102212464
        %v5742 = vsel %vm5738, %v5726, %v5741
        %v5743 = vsel %vm5737, %v5740, %v5742
        %v5744 = vsel %vm5736, %v5723, %v5726
        %v5745 = vsel %vm5739, %v5732, 920167782
        %v5746 = vsel %vm5738, %v5729, %v5745
        %v5747 = vsel %vm5737, %v5744, %v5746
        %v5748 = vsel %vm5736, %v5726, %v5729
        %v5749 = vsel %vm5739, %v5735, 1326507024
        %v5750 = vsel %vm5738, %v5732, %v5749
        %v5751 = vsel %vm5737, %v5748, %v5750
        %v5752 = vshll.u32 %v5712, 8
        %v5753 = vmul.u32.u64.compose %v5752, %v5751
        %v5754 = vextract.low.u32 %v5753
        %v5755 = vextract.high.u32 %v5753
        %v5756 = vmul.u32.u64.compose %v5752, %v5747
        %v5757 = vextract.low.u32 %v5756
        %v5758 = vextract.high.u32 %v5756
        %v5759 = vmul.u32 %v5752, %v5743
        %v5760 = vadd.s32 %v5755, %v5757
        %vm5761 = vc.u32 %v5755, %v5757
        %v5762 = vadd.s32 %v5758, 1
        %v5763 = vsel %vm5761, %v5762, %v5758
        %v5764 = vadd.s32 %v5759, %v5763
        %v5765 = vadd.s32 %v5764, 536870912
        %v5766 = vshrl.u32 %v5765, 30
        %v5767 = vshll.u32 %v5766, 30
        %v5768 = vsub.s32 %v5764, %v5767
        %vm5769 = vcmp.lt.s32.totalorder %v5768, 0
        %v5770 = vsub.s32 0, %v5768
        %v5771 = vsel %vm5769, %v5770, %v5768
        %v5772 = vclz %v5771
        %v5773 = vsub.s32 %v5772, 2
        %vm5774 = vcmp.gt.s32.totalorder 0, %v5773
        %v5775 = vsel %vm5774, 0, %v5773
        %v5776 = vsub.s32 32, %v5775
        %v5777 = vshll.u32 %v5768, %v5775
        %v5778 = vshrl.u32 %v5760, %v5776
        %v5779 = vor.u32 %v5777, %v5778
        %v5780 = vsub.s32 4294967266, %v5775
        %v5781 = vadd.s32 %v5780, 127
        %v5782 = vshll.u32 %v5781, 23
        %v5783 = vor.u32 4788187, %v5782
        %v5784 = vand.u32 2147483647, %v5783
        %v5786 = vcvt.s32.f32 %v5779
        %v5787 = vmul.f32 %v5786, %v5784
        %v5788 = vxor.u32 %v5787, 2147483648
        %v5789 = vsel %vm5706, %v5788, %v5787
        %v5790 = vsub.s32 4, %v5766
        %v5791 = vsel %vm5706, %v5790, %v5766
        %v5792 = vsel %vm5705, %v284, %v5789
        %v5793 = vsel %vm5705, 0, %v5791
        %v5794 = vcosq.f32.pop %v5792
        %v5795 = vsinq.f32.pop %v5792
        %vm5796 = vweird.f32 %v284
        %v5797 = vadd.s32 %v5793, 3
        %v5798 = vand.u32 %v5797, 3
        %vm5799 = vcmp.lt.s32.totalorder %v5798, 2
        %vm5800 = vcmp.eq.s32.totalorder %v5798, 0
        %v5801 = vxor.u32 %v5795, 2147483648
        %v5802 = vsel %vm5800, %v5794, %v5801
        %vm5803 = vcmp.eq.s32.totalorder %v5798, 2
        %v5804 = vxor.u32 %v5794, 2147483648
        %v5805 = vsel %vm5803, %v5804, %v5795
        %v5806 = vsel %vm5799, %v5802, %v5805
        %v5807 = vsel %vm5796, nan, %v5806
        %v5808 = vand.u32 2147483647, %v285
        %vm5809 = vcmp.le.f32.partialorder %v5808, 0.7853982
        %vm5810 = vcmp.lt.s32.totalorder %v285, 0
        %v5811 = vand.u32 %v285, 2139095040
        %v5812 = vshrl.u32 %v5811, 23
        %v5813 = vsub.s32 %v5812, 127
        %v5814 = vand.u32 2147483647, %v285
        %v5815 = vand.u32 %v5814, 8388607
        %v5816 = vor.u32 %v5815, 8388608
        %v5817 = vsub.s32 0, %v5816
        %v5818 = vadd.s32 %v5813, 1
        %vm5819 = vcmp.gt.s32.totalorder %v5818, 0
        %v5820 = vsel %vm5819, %v5818, 0
        %v5821 = vshrl.u32 %v5820, 5
        %v5822 = vand.u32 %v5820, 31
        %v5823 = vsub.s32 32, %v5822
        %v5824 = vshrl.u32 683565275, %v5823
        %v5825 = vshll.u32 683565275, %v5822
        %v5826 = vshrl.u32 2475754826, %v5823
        %v5827 = vor.u32 %v5825, %v5826
        %v5828 = vshll.u32 2475754826, %v5822
        %v5829 = vshrl.u32 2131351028, %v5823
        %v5830 = vor.u32 %v5828, %v5829
        %v5831 = vshll.u32 2131351028, %v5822
        %v5832 = vshrl.u32 2102212464, %v5823
        %v5833 = vor.u32 %v5831, %v5832
        %v5834 = vshll.u32 2102212464, %v5822
        %v5835 = vshrl.u32 920167782, %v5823
        %v5836 = vor.u32 %v5834, %v5835
        %v5837 = vshll.u32 920167782, %v5822
        %v5838 = vshrl.u32 1326507024, %v5823
        %v5839 = vor.u32 %v5837, %v5838
        %vm5840 = vcmp.lt.s32.totalorder %v5821, 1
        %vm5841 = vcmp.lt.s32.totalorder %v5821, 2
        %vm5842 = vcmp.lt.s32.totalorder %v5821, 3
        %vm5843 = vcmp.lt.s32.totalorder %v5821, 4
        %v5844 = vsel %vm5840, %v5824, %v5827
        %v5845 = vsel %vm5843, %v5833, 2102212464
        %v5846 = vsel %vm5842, %v5830, %v5845
        %v5847 = vsel %vm5841, %v5844, %v5846
        %v5848 = vsel %vm5840, %v5827, %v5830
        %v5849 = vsel %vm5843, %v5836, 920167782
        %v5850 = vsel %vm5842, %v5833, %v5849
        %v5851 = vsel %vm5841, %v5848, %v5850
        %v5852 = vsel %vm5840, %v5830, %v5833
        %v5853 = vsel %vm5843, %v5839, 1326507024
        %v5854 = vsel %vm5842, %v5836, %v5853
        %v5855 = vsel %vm5841, %v5852, %v5854
        %v5856 = vshll.u32 %v5816, 8
        %v5857 = vmul.u32.u64.compose %v5856, %v5855
        %v5858 = vextract.low.u32 %v5857
        %v5859 = vextract.high.u32 %v5857
        %v5860 = vmul.u32.u64.compose %v5856, %v5851
        %v5861 = vextract.low.u32 %v5860
        %v5862 = vextract.high.u32 %v5860
        %v5863 = vmul.u32 %v5856, %v5847
        %v5864 = vadd.s32 %v5859, %v5861
        %vm5865 = vc.u32 %v5859, %v5861
        %v5866 = vadd.s32 %v5862, 1
        %v5867 = vsel %vm5865, %v5866, %v5862
        %v5868 = vadd.s32 %v5863, %v5867
        %v5869 = vadd.s32 %v5868, 536870912
        %v5870 = vshrl.u32 %v5869, 30
        %v5871 = vshll.u32 %v5870, 30
        %v5872 = vsub.s32 %v5868, %v5871
        %vm5873 = vcmp.lt.s32.totalorder %v5872, 0
        %v5874 = vsub.s32 0, %v5872
        %v5875 = vsel %vm5873, %v5874, %v5872
        %v5876 = vclz %v5875
        %v5877 = vsub.s32 %v5876, 2
        %vm5878 = vcmp.gt.s32.totalorder 0, %v5877
        %v5879 = vsel %vm5878, 0, %v5877
        %v5880 = vsub.s32 32, %v5879
        %v5881 = vshll.u32 %v5872, %v5879
        %v5882 = vshrl.u32 %v5864, %v5880
        %v5883 = vor.u32 %v5881, %v5882
        %v5884 = vsub.s32 4294967266, %v5879
        %v5885 = vadd.s32 %v5884, 127
        %v5886 = vshll.u32 %v5885, 23
        %v5887 = vor.u32 4788187, %v5886
        %v5888 = vand.u32 2147483647, %v5887
        %v5890 = vcvt.s32.f32 %v5883
        %v5891 = vmul.f32 %v5890, %v5888
        %v5892 = vxor.u32 %v5891, 2147483648
        %v5893 = vsel %vm5810, %v5892, %v5891
        %v5894 = vsub.s32 4, %v5870
        %v5895 = vsel %vm5810, %v5894, %v5870
        %v5896 = vsel %vm5809, %v285, %v5893
        %v5897 = vsel %vm5809, 0, %v5895
        %v5898 = vcosq.f32.pop %v5896
        %v5899 = vsinq.f32.pop %v5896
        %vm5900 = vweird.f32 %v285
        %v5901 = vadd.s32 %v5897, 3
        %v5902 = vand.u32 %v5901, 3
        %vm5903 = vcmp.lt.s32.totalorder %v5902, 2
        %vm5904 = vcmp.eq.s32.totalorder %v5902, 0
        %v5905 = vxor.u32 %v5899, 2147483648
        %v5906 = vsel %vm5904, %v5898, %v5905
        %vm5907 = vcmp.eq.s32.totalorder %v5902, 2
        %v5908 = vxor.u32 %v5898, 2147483648
        %v5909 = vsel %vm5907, %v5908, %v5899
        %v5910 = vsel %vm5903, %v5906, %v5909
        %v5911 = vsel %vm5900, nan, %v5910
        %v5912 = vand.u32 2147483647, %v286
        %vm5913 = vcmp.le.f32.partialorder %v5912, 0.7853982
        %vm5914 = vcmp.lt.s32.totalorder %v286, 0
        %v5915 = vand.u32 %v286, 2139095040
        %v5916 = vshrl.u32 %v5915, 23
        %v5917 = vsub.s32 %v5916, 127
        %v5918 = vand.u32 2147483647, %v286
        %v5919 = vand.u32 %v5918, 8388607
        %v5920 = vor.u32 %v5919, 8388608
        %v5921 = vsub.s32 0, %v5920
        %v5922 = vadd.s32 %v5917, 1
        %vm5923 = vcmp.gt.s32.totalorder %v5922, 0
        %v5924 = vsel %vm5923, %v5922, 0
        %v5925 = vshrl.u32 %v5924, 5
        %v5926 = vand.u32 %v5924, 31
        %v5927 = vsub.s32 32, %v5926
        %v5928 = vshrl.u32 683565275, %v5927
        %v5929 = vshll.u32 683565275, %v5926
        %v5930 = vshrl.u32 2475754826, %v5927
        %v5931 = vor.u32 %v5929, %v5930
        %v5932 = vshll.u32 2475754826, %v5926
        %v5933 = vshrl.u32 2131351028, %v5927
        %v5934 = vor.u32 %v5932, %v5933
        %v5935 = vshll.u32 2131351028, %v5926
        %v5936 = vshrl.u32 2102212464, %v5927
        %v5937 = vor.u32 %v5935, %v5936
        %v5938 = vshll.u32 2102212464, %v5926
        %v5939 = vshrl.u32 920167782, %v5927
        %v5940 = vor.u32 %v5938, %v5939
        %v5941 = vshll.u32 920167782, %v5926
        %v5942 = vshrl.u32 1326507024, %v5927
        %v5943 = vor.u32 %v5941, %v5942
        %vm5944 = vcmp.lt.s32.totalorder %v5925, 1
        %vm5945 = vcmp.lt.s32.totalorder %v5925, 2
        %vm5946 = vcmp.lt.s32.totalorder %v5925, 3
        %vm5947 = vcmp.lt.s32.totalorder %v5925, 4
        %v5948 = vsel %vm5944, %v5928, %v5931
        %v5949 = vsel %vm5947, %v5937, 2102212464
        %v5950 = vsel %vm5946, %v5934, %v5949
        %v5951 = vsel %vm5945, %v5948, %v5950
        %v5952 = vsel %vm5944, %v5931, %v5934
        %v5953 = vsel %vm5947, %v5940, 920167782
        %v5954 = vsel %vm5946, %v5937, %v5953
        %v5955 = vsel %vm5945, %v5952, %v5954
        %v5956 = vsel %vm5944, %v5934, %v5937
        %v5957 = vsel %vm5947, %v5943, 1326507024
        %v5958 = vsel %vm5946, %v5940, %v5957
        %v5959 = vsel %vm5945, %v5956, %v5958
        %v5960 = vshll.u32 %v5920, 8
        %v5961 = vmul.u32.u64.compose %v5960, %v5959
        %v5962 = vextract.low.u32 %v5961
        %v5963 = vextract.high.u32 %v5961
        %v5964 = vmul.u32.u64.compose %v5960, %v5955
        %v5965 = vextract.low.u32 %v5964
        %v5966 = vextract.high.u32 %v5964
        %v5967 = vmul.u32 %v5960, %v5951
        %v5968 = vadd.s32 %v5963, %v5965
        %vm5969 = vc.u32 %v5963, %v5965
        %v5970 = vadd.s32 %v5966, 1
        %v5971 = vsel %vm5969, %v5970, %v5966
        %v5972 = vadd.s32 %v5967, %v5971
        %v5973 = vadd.s32 %v5972, 536870912
        %v5974 = vshrl.u32 %v5973, 30
        %v5975 = vshll.u32 %v5974, 30
        %v5976 = vsub.s32 %v5972, %v5975
        %vm5977 = vcmp.lt.s32.totalorder %v5976, 0
        %v5978 = vsub.s32 0, %v5976
        %v5979 = vsel %vm5977, %v5978, %v5976
        %v5980 = vclz %v5979
        %v5981 = vsub.s32 %v5980, 2
        %vm5982 = vcmp.gt.s32.totalorder 0, %v5981
        %v5983 = vsel %vm5982, 0, %v5981
        %v5984 = vsub.s32 32, %v5983
        %v5985 = vshll.u32 %v5976, %v5983
        %v5986 = vshrl.u32 %v5968, %v5984
        %v5987 = vor.u32 %v5985, %v5986
        %v5988 = vsub.s32 4294967266, %v5983
        %v5989 = vadd.s32 %v5988, 127
        %v5990 = vshll.u32 %v5989, 23
        %v5991 = vor.u32 4788187, %v5990
        %v5992 = vand.u32 2147483647, %v5991
        %v5994 = vcvt.s32.f32 %v5987
        %v5995 = vmul.f32 %v5994, %v5992
        %v5996 = vxor.u32 %v5995, 2147483648
        %v5997 = vsel %vm5914, %v5996, %v5995
        %v5998 = vsub.s32 4, %v5974
        %v5999 = vsel %vm5914, %v5998, %v5974
        %v6000 = vsel %vm5913, %v286, %v5997
        %v6001 = vsel %vm5913, 0, %v5999
        %v6002 = vcosq.f32.pop %v6000
        %v6003 = vsinq.f32.pop %v6000
        %vm6004 = vweird.f32 %v286
        %v6005 = vadd.s32 %v6001, 3
        %v6006 = vand.u32 %v6005, 3
        %vm6007 = vcmp.lt.s32.totalorder %v6006, 2
        %vm6008 = vcmp.eq.s32.totalorder %v6006, 0
        %v6009 = vxor.u32 %v6003, 2147483648
        %v6010 = vsel %vm6008, %v6002, %v6009
        %vm6011 = vcmp.eq.s32.totalorder %v6006, 2
        %v6012 = vxor.u32 %v6002, 2147483648
        %v6013 = vsel %vm6011, %v6012, %v6003
        %v6014 = vsel %vm6007, %v6010, %v6013
        %v6015 = vsel %vm6004, nan, %v6014
        %v6016 = vand.u32 2147483647, %v287
        %vm6017 = vcmp.le.f32.partialorder %v6016, 0.7853982
        %vm6018 = vcmp.lt.s32.totalorder %v287, 0
        %v6019 = vand.u32 %v287, 2139095040
        %v6020 = vshrl.u32 %v6019, 23
        %v6021 = vsub.s32 %v6020, 127
        %v6022 = vand.u32 2147483647, %v287
        %v6023 = vand.u32 %v6022, 8388607
        %v6024 = vor.u32 %v6023, 8388608
        %v6025 = vsub.s32 0, %v6024
        %v6026 = vadd.s32 %v6021, 1
        %vm6027 = vcmp.gt.s32.totalorder %v6026, 0
        %v6028 = vsel %vm6027, %v6026, 0
        %v6029 = vshrl.u32 %v6028, 5
        %v6030 = vand.u32 %v6028, 31
        %v6031 = vsub.s32 32, %v6030
        %v6032 = vshrl.u32 683565275, %v6031
        %v6033 = vshll.u32 683565275, %v6030
        %v6034 = vshrl.u32 2475754826, %v6031
        %v6035 = vor.u32 %v6033, %v6034
        %v6036 = vshll.u32 2475754826, %v6030
        %v6037 = vshrl.u32 2131351028, %v6031
        %v6038 = vor.u32 %v6036, %v6037
        %v6039 = vshll.u32 2131351028, %v6030
        %v6040 = vshrl.u32 2102212464, %v6031
        %v6041 = vor.u32 %v6039, %v6040
        %v6042 = vshll.u32 2102212464, %v6030
        %v6043 = vshrl.u32 920167782, %v6031
        %v6044 = vor.u32 %v6042, %v6043
        %v6045 = vshll.u32 920167782, %v6030
        %v6046 = vshrl.u32 1326507024, %v6031
        %v6047 = vor.u32 %v6045, %v6046
        %vm6048 = vcmp.lt.s32.totalorder %v6029, 1
        %vm6049 = vcmp.lt.s32.totalorder %v6029, 2
        %vm6050 = vcmp.lt.s32.totalorder %v6029, 3
        %vm6051 = vcmp.lt.s32.totalorder %v6029, 4
        %v6052 = vsel %vm6048, %v6032, %v6035
        %v6053 = vsel %vm6051, %v6041, 2102212464
        %v6054 = vsel %vm6050, %v6038, %v6053
        %v6055 = vsel %vm6049, %v6052, %v6054
        %v6056 = vsel %vm6048, %v6035, %v6038
        %v6057 = vsel %vm6051, %v6044, 920167782
        %v6058 = vsel %vm6050, %v6041, %v6057
        %v6059 = vsel %vm6049, %v6056, %v6058
        %v6060 = vsel %vm6048, %v6038, %v6041
        %v6061 = vsel %vm6051, %v6047, 1326507024
        %v6062 = vsel %vm6050, %v6044, %v6061
        %v6063 = vsel %vm6049, %v6060, %v6062
        %v6064 = vshll.u32 %v6024, 8
        %v6065 = vmul.u32.u64.compose %v6064, %v6063
        %v6066 = vextract.low.u32 %v6065
        %v6067 = vextract.high.u32 %v6065
        %v6068 = vmul.u32.u64.compose %v6064, %v6059
        %v6069 = vextract.low.u32 %v6068
        %v6070 = vextract.high.u32 %v6068
        %v6071 = vmul.u32 %v6064, %v6055
        %v6072 = vadd.s32 %v6067, %v6069
        %vm6073 = vc.u32 %v6067, %v6069
        %v6074 = vadd.s32 %v6070, 1
        %v6075 = vsel %vm6073, %v6074, %v6070
        %v6076 = vadd.s32 %v6071, %v6075
        %v6077 = vadd.s32 %v6076, 536870912
        %v6078 = vshrl.u32 %v6077, 30
        %v6079 = vshll.u32 %v6078, 30
        %v6080 = vsub.s32 %v6076, %v6079
        %vm6081 = vcmp.lt.s32.totalorder %v6080, 0
        %v6082 = vsub.s32 0, %v6080
        %v6083 = vsel %vm6081, %v6082, %v6080
        %v6084 = vclz %v6083
        %v6085 = vsub.s32 %v6084, 2
        %vm6086 = vcmp.gt.s32.totalorder 0, %v6085
        %v6087 = vsel %vm6086, 0, %v6085
        %v6088 = vsub.s32 32, %v6087
        %v6089 = vshll.u32 %v6080, %v6087
        %v6090 = vshrl.u32 %v6072, %v6088
        %v6091 = vor.u32 %v6089, %v6090
        %v6092 = vsub.s32 4294967266, %v6087
        %v6093 = vadd.s32 %v6092, 127
        %v6094 = vshll.u32 %v6093, 23
        %v6095 = vor.u32 4788187, %v6094
        %v6096 = vand.u32 2147483647, %v6095
        %v6098 = vcvt.s32.f32 %v6091
        %v6099 = vmul.f32 %v6098, %v6096
        %v6100 = vxor.u32 %v6099, 2147483648
        %v6101 = vsel %vm6018, %v6100, %v6099
        %v6102 = vsub.s32 4, %v6078
        %v6103 = vsel %vm6018, %v6102, %v6078
        %v6104 = vsel %vm6017, %v287, %v6101
        %v6105 = vsel %vm6017, 0, %v6103
        %v6106 = vcosq.f32.pop %v6104
        %v6107 = vsinq.f32.pop %v6104
        %vm6108 = vweird.f32 %v287
        %v6109 = vadd.s32 %v6105, 3
        %v6110 = vand.u32 %v6109, 3
        %vm6111 = vcmp.lt.s32.totalorder %v6110, 2
        %vm6112 = vcmp.eq.s32.totalorder %v6110, 0
        %v6113 = vxor.u32 %v6107, 2147483648
        %v6114 = vsel %vm6112, %v6106, %v6113
        %vm6115 = vcmp.eq.s32.totalorder %v6110, 2
        %v6116 = vxor.u32 %v6106, 2147483648
        %v6117 = vsel %vm6115, %v6116, %v6107
        %v6118 = vsel %vm6111, %v6114, %v6117
        %v6119 = vsel %vm6108, nan, %v6118
        %v6120 = vand.u32 2147483647, %v288
        %vm6121 = vcmp.le.f32.partialorder %v6120, 0.7853982
        %vm6122 = vcmp.lt.s32.totalorder %v288, 0
        %v6123 = vand.u32 %v288, 2139095040
        %v6124 = vshrl.u32 %v6123, 23
        %v6125 = vsub.s32 %v6124, 127
        %v6126 = vand.u32 2147483647, %v288
        %v6127 = vand.u32 %v6126, 8388607
        %v6128 = vor.u32 %v6127, 8388608
        %v6129 = vsub.s32 0, %v6128
        %v6130 = vadd.s32 %v6125, 1
        %vm6131 = vcmp.gt.s32.totalorder %v6130, 0
        %v6132 = vsel %vm6131, %v6130, 0
        %v6133 = vshrl.u32 %v6132, 5
        %v6134 = vand.u32 %v6132, 31
        %v6135 = vsub.s32 32, %v6134
        %v6136 = vshrl.u32 683565275, %v6135
        %v6137 = vshll.u32 683565275, %v6134
        %v6138 = vshrl.u32 2475754826, %v6135
        %v6139 = vor.u32 %v6137, %v6138
        %v6140 = vshll.u32 2475754826, %v6134
        %v6141 = vshrl.u32 2131351028, %v6135
        %v6142 = vor.u32 %v6140, %v6141
        %v6143 = vshll.u32 2131351028, %v6134
        %v6144 = vshrl.u32 2102212464, %v6135
        %v6145 = vor.u32 %v6143, %v6144
        %v6146 = vshll.u32 2102212464, %v6134
        %v6147 = vshrl.u32 920167782, %v6135
        %v6148 = vor.u32 %v6146, %v6147
        %v6149 = vshll.u32 920167782, %v6134
        %v6150 = vshrl.u32 1326507024, %v6135
        %v6151 = vor.u32 %v6149, %v6150
        %vm6152 = vcmp.lt.s32.totalorder %v6133, 1
        %vm6153 = vcmp.lt.s32.totalorder %v6133, 2
        %vm6154 = vcmp.lt.s32.totalorder %v6133, 3
        %vm6155 = vcmp.lt.s32.totalorder %v6133, 4
        %v6156 = vsel %vm6152, %v6136, %v6139
        %v6157 = vsel %vm6155, %v6145, 2102212464
        %v6158 = vsel %vm6154, %v6142, %v6157
        %v6159 = vsel %vm6153, %v6156, %v6158
        %v6160 = vsel %vm6152, %v6139, %v6142
        %v6161 = vsel %vm6155, %v6148, 920167782
        %v6162 = vsel %vm6154, %v6145, %v6161
        %v6163 = vsel %vm6153, %v6160, %v6162
        %v6164 = vsel %vm6152, %v6142, %v6145
        %v6165 = vsel %vm6155, %v6151, 1326507024
        %v6166 = vsel %vm6154, %v6148, %v6165
        %v6167 = vsel %vm6153, %v6164, %v6166
        %v6168 = vshll.u32 %v6128, 8
        %v6169 = vmul.u32.u64.compose %v6168, %v6167
        %v6170 = vextract.low.u32 %v6169
        %v6171 = vextract.high.u32 %v6169
        %v6172 = vmul.u32.u64.compose %v6168, %v6163
        %v6173 = vextract.low.u32 %v6172
        %v6174 = vextract.high.u32 %v6172
        %v6175 = vmul.u32 %v6168, %v6159
        %v6176 = vadd.s32 %v6171, %v6173
        %vm6177 = vc.u32 %v6171, %v6173
        %v6178 = vadd.s32 %v6174, 1
        %v6179 = vsel %vm6177, %v6178, %v6174
        %v6180 = vadd.s32 %v6175, %v6179
        %v6181 = vadd.s32 %v6180, 536870912
        %v6182 = vshrl.u32 %v6181, 30
        %v6183 = vshll.u32 %v6182, 30
        %v6184 = vsub.s32 %v6180, %v6183
        %vm6185 = vcmp.lt.s32.totalorder %v6184, 0
        %v6186 = vsub.s32 0, %v6184
        %v6187 = vsel %vm6185, %v6186, %v6184
        %v6188 = vclz %v6187
        %v6189 = vsub.s32 %v6188, 2
        %vm6190 = vcmp.gt.s32.totalorder 0, %v6189
        %v6191 = vsel %vm6190, 0, %v6189
        %v6192 = vsub.s32 32, %v6191
        %v6193 = vshll.u32 %v6184, %v6191
        %v6194 = vshrl.u32 %v6176, %v6192
        %v6195 = vor.u32 %v6193, %v6194
        %v6196 = vsub.s32 4294967266, %v6191
        %v6197 = vadd.s32 %v6196, 127
        %v6198 = vshll.u32 %v6197, 23
        %v6199 = vor.u32 4788187, %v6198
        %v6200 = vand.u32 2147483647, %v6199
        %v6202 = vcvt.s32.f32 %v6195
        %v6203 = vmul.f32 %v6202, %v6200
        %v6204 = vxor.u32 %v6203, 2147483648
        %v6205 = vsel %vm6122, %v6204, %v6203
        %v6206 = vsub.s32 4, %v6182
        %v6207 = vsel %vm6122, %v6206, %v6182
        %v6208 = vsel %vm6121, %v288, %v6205
        %v6209 = vsel %vm6121, 0, %v6207
        %v6210 = vcosq.f32.pop %v6208
        %v6211 = vsinq.f32.pop %v6208
        %vm6212 = vweird.f32 %v288
        %v6213 = vadd.s32 %v6209, 3
        %v6214 = vand.u32 %v6213, 3
        %vm6215 = vcmp.lt.s32.totalorder %v6214, 2
        %vm6216 = vcmp.eq.s32.totalorder %v6214, 0
        %v6217 = vxor.u32 %v6211, 2147483648
        %v6218 = vsel %vm6216, %v6210, %v6217
        %vm6219 = vcmp.eq.s32.totalorder %v6214, 2
        %v6220 = vxor.u32 %v6210, 2147483648
        %v6221 = vsel %vm6219, %v6220, %v6211
        %v6222 = vsel %vm6215, %v6218, %v6221
        %v6223 = vsel %vm6212, nan, %v6222
        %v6224 = vand.u32 2147483647, %v289
        %vm6225 = vcmp.le.f32.partialorder %v6224, 0.7853982
        %vm6226 = vcmp.lt.s32.totalorder %v289, 0
        %v6227 = vand.u32 %v289, 2139095040
        %v6228 = vshrl.u32 %v6227, 23
        %v6229 = vsub.s32 %v6228, 127
        %v6230 = vand.u32 2147483647, %v289
        %v6231 = vand.u32 %v6230, 8388607
        %v6232 = vor.u32 %v6231, 8388608
        %v6233 = vsub.s32 0, %v6232
        %v6234 = vadd.s32 %v6229, 1
        %vm6235 = vcmp.gt.s32.totalorder %v6234, 0
        %v6236 = vsel %vm6235, %v6234, 0
        %v6237 = vshrl.u32 %v6236, 5
        %v6238 = vand.u32 %v6236, 31
        %v6239 = vsub.s32 32, %v6238
        %v6240 = vshrl.u32 683565275, %v6239
        %v6241 = vshll.u32 683565275, %v6238
        %v6242 = vshrl.u32 2475754826, %v6239
        %v6243 = vor.u32 %v6241, %v6242
        %v6244 = vshll.u32 2475754826, %v6238
        %v6245 = vshrl.u32 2131351028, %v6239
        %v6246 = vor.u32 %v6244, %v6245
        %v6247 = vshll.u32 2131351028, %v6238
        %v6248 = vshrl.u32 2102212464, %v6239
        %v6249 = vor.u32 %v6247, %v6248
        %v6250 = vshll.u32 2102212464, %v6238
        %v6251 = vshrl.u32 920167782, %v6239
        %v6252 = vor.u32 %v6250, %v6251
        %v6253 = vshll.u32 920167782, %v6238
        %v6254 = vshrl.u32 1326507024, %v6239
        %v6255 = vor.u32 %v6253, %v6254
        %vm6256 = vcmp.lt.s32.totalorder %v6237, 1
        %vm6257 = vcmp.lt.s32.totalorder %v6237, 2
        %vm6258 = vcmp.lt.s32.totalorder %v6237, 3
        %vm6259 = vcmp.lt.s32.totalorder %v6237, 4
        %v6260 = vsel %vm6256, %v6240, %v6243
        %v6261 = vsel %vm6259, %v6249, 2102212464
        %v6262 = vsel %vm6258, %v6246, %v6261
        %v6263 = vsel %vm6257, %v6260, %v6262
        %v6264 = vsel %vm6256, %v6243, %v6246
        %v6265 = vsel %vm6259, %v6252, 920167782
        %v6266 = vsel %vm6258, %v6249, %v6265
        %v6267 = vsel %vm6257, %v6264, %v6266
        %v6268 = vsel %vm6256, %v6246, %v6249
        %v6269 = vsel %vm6259, %v6255, 1326507024
        %v6270 = vsel %vm6258, %v6252, %v6269
        %v6271 = vsel %vm6257, %v6268, %v6270
        %v6272 = vshll.u32 %v6232, 8
        %v6273 = vmul.u32.u64.compose %v6272, %v6271
        %v6274 = vextract.low.u32 %v6273
        %v6275 = vextract.high.u32 %v6273
        %v6276 = vmul.u32.u64.compose %v6272, %v6267
        %v6277 = vextract.low.u32 %v6276
        %v6278 = vextract.high.u32 %v6276
        %v6279 = vmul.u32 %v6272, %v6263
        %v6280 = vadd.s32 %v6275, %v6277
        %vm6281 = vc.u32 %v6275, %v6277
        %v6282 = vadd.s32 %v6278, 1
        %v6283 = vsel %vm6281, %v6282, %v6278
        %v6284 = vadd.s32 %v6279, %v6283
        %v6285 = vadd.s32 %v6284, 536870912
        %v6286 = vshrl.u32 %v6285, 30
        %v6287 = vshll.u32 %v6286, 30
        %v6288 = vsub.s32 %v6284, %v6287
        %vm6289 = vcmp.lt.s32.totalorder %v6288, 0
        %v6290 = vsub.s32 0, %v6288
        %v6291 = vsel %vm6289, %v6290, %v6288
        %v6292 = vclz %v6291
        %v6293 = vsub.s32 %v6292, 2
        %vm6294 = vcmp.gt.s32.totalorder 0, %v6293
        %v6295 = vsel %vm6294, 0, %v6293
        %v6296 = vsub.s32 32, %v6295
        %v6297 = vshll.u32 %v6288, %v6295
        %v6298 = vshrl.u32 %v6280, %v6296
        %v6299 = vor.u32 %v6297, %v6298
        %v6300 = vsub.s32 4294967266, %v6295
        %v6301 = vadd.s32 %v6300, 127
        %v6302 = vshll.u32 %v6301, 23
        %v6303 = vor.u32 4788187, %v6302
        %v6304 = vand.u32 2147483647, %v6303
        %v6306 = vcvt.s32.f32 %v6299
        %v6307 = vmul.f32 %v6306, %v6304
        %v6308 = vxor.u32 %v6307, 2147483648
        %v6309 = vsel %vm6226, %v6308, %v6307
        %v6310 = vsub.s32 4, %v6286
        %v6311 = vsel %vm6226, %v6310, %v6286
        %v6312 = vsel %vm6225, %v289, %v6309
        %v6313 = vsel %vm6225, 0, %v6311
        %v6314 = vcosq.f32.pop %v6312
        %v6315 = vsinq.f32.pop %v6312
        %vm6316 = vweird.f32 %v289
        %v6317 = vadd.s32 %v6313, 3
        %v6318 = vand.u32 %v6317, 3
        %vm6319 = vcmp.lt.s32.totalorder %v6318, 2
        %vm6320 = vcmp.eq.s32.totalorder %v6318, 0
        %v6321 = vxor.u32 %v6315, 2147483648
        %v6322 = vsel %vm6320, %v6314, %v6321
        %vm6323 = vcmp.eq.s32.totalorder %v6318, 2
        %v6324 = vxor.u32 %v6314, 2147483648
        %v6325 = vsel %vm6323, %v6324, %v6315
        %v6326 = vsel %vm6319, %v6322, %v6325
        %v6327 = vsel %vm6316, nan, %v6326
        %v6328 = vand.u32 2147483647, %v290
        %vm6329 = vcmp.le.f32.partialorder %v6328, 0.7853982
        %vm6330 = vcmp.lt.s32.totalorder %v290, 0
        %v6331 = vand.u32 %v290, 2139095040
        %v6332 = vshrl.u32 %v6331, 23
        %v6333 = vsub.s32 %v6332, 127
        %v6334 = vand.u32 2147483647, %v290
        %v6335 = vand.u32 %v6334, 8388607
        %v6336 = vor.u32 %v6335, 8388608
        %v6337 = vsub.s32 0, %v6336
        %v6338 = vadd.s32 %v6333, 1
        %vm6339 = vcmp.gt.s32.totalorder %v6338, 0
        %v6340 = vsel %vm6339, %v6338, 0
        %v6341 = vshrl.u32 %v6340, 5
        %v6342 = vand.u32 %v6340, 31
        %v6343 = vsub.s32 32, %v6342
        %v6344 = vshrl.u32 683565275, %v6343
        %v6345 = vshll.u32 683565275, %v6342
        %v6346 = vshrl.u32 2475754826, %v6343
        %v6347 = vor.u32 %v6345, %v6346
        %v6348 = vshll.u32 2475754826, %v6342
        %v6349 = vshrl.u32 2131351028, %v6343
        %v6350 = vor.u32 %v6348, %v6349
        %v6351 = vshll.u32 2131351028, %v6342
        %v6352 = vshrl.u32 2102212464, %v6343
        %v6353 = vor.u32 %v6351, %v6352
        %v6354 = vshll.u32 2102212464, %v6342
        %v6355 = vshrl.u32 920167782, %v6343
        %v6356 = vor.u32 %v6354, %v6355
        %v6357 = vshll.u32 920167782, %v6342
        %v6358 = vshrl.u32 1326507024, %v6343
        %v6359 = vor.u32 %v6357, %v6358
        %vm6360 = vcmp.lt.s32.totalorder %v6341, 1
        %vm6361 = vcmp.lt.s32.totalorder %v6341, 2
        %vm6362 = vcmp.lt.s32.totalorder %v6341, 3
        %vm6363 = vcmp.lt.s32.totalorder %v6341, 4
        %v6364 = vsel %vm6360, %v6344, %v6347
        %v6365 = vsel %vm6363, %v6353, 2102212464
        %v6366 = vsel %vm6362, %v6350, %v6365
        %v6367 = vsel %vm6361, %v6364, %v6366
        %v6368 = vsel %vm6360, %v6347, %v6350
        %v6369 = vsel %vm6363, %v6356, 920167782
        %v6370 = vsel %vm6362, %v6353, %v6369
        %v6371 = vsel %vm6361, %v6368, %v6370
        %v6372 = vsel %vm6360, %v6350, %v6353
        %v6373 = vsel %vm6363, %v6359, 1326507024
        %v6374 = vsel %vm6362, %v6356, %v6373
        %v6375 = vsel %vm6361, %v6372, %v6374
        %v6376 = vshll.u32 %v6336, 8
        %v6377 = vmul.u32.u64.compose %v6376, %v6375
        %v6378 = vextract.low.u32 %v6377
        %v6379 = vextract.high.u32 %v6377
        %v6380 = vmul.u32.u64.compose %v6376, %v6371
        %v6381 = vextract.low.u32 %v6380
        %v6382 = vextract.high.u32 %v6380
        %v6383 = vmul.u32 %v6376, %v6367
        %v6384 = vadd.s32 %v6379, %v6381
        %vm6385 = vc.u32 %v6379, %v6381
        %v6386 = vadd.s32 %v6382, 1
        %v6387 = vsel %vm6385, %v6386, %v6382
        %v6388 = vadd.s32 %v6383, %v6387
        %v6389 = vadd.s32 %v6388, 536870912
        %v6390 = vshrl.u32 %v6389, 30
        %v6391 = vshll.u32 %v6390, 30
        %v6392 = vsub.s32 %v6388, %v6391
        %vm6393 = vcmp.lt.s32.totalorder %v6392, 0
        %v6394 = vsub.s32 0, %v6392
        %v6395 = vsel %vm6393, %v6394, %v6392
        %v6396 = vclz %v6395
        %v6397 = vsub.s32 %v6396, 2
        %vm6398 = vcmp.gt.s32.totalorder 0, %v6397
        %v6399 = vsel %vm6398, 0, %v6397
        %v6400 = vsub.s32 32, %v6399
        %v6401 = vshll.u32 %v6392, %v6399
        %v6402 = vshrl.u32 %v6384, %v6400
        %v6403 = vor.u32 %v6401, %v6402
        %v6404 = vsub.s32 4294967266, %v6399
        %v6405 = vadd.s32 %v6404, 127
        %v6406 = vshll.u32 %v6405, 23
        %v6407 = vor.u32 4788187, %v6406
        %v6408 = vand.u32 2147483647, %v6407
        %v6410 = vcvt.s32.f32 %v6403
        %v6411 = vmul.f32 %v6410, %v6408
        %v6412 = vxor.u32 %v6411, 2147483648
        %v6413 = vsel %vm6330, %v6412, %v6411
        %v6414 = vsub.s32 4, %v6390
        %v6415 = vsel %vm6330, %v6414, %v6390
        %v6416 = vsel %vm6329, %v290, %v6413
        %v6417 = vsel %vm6329, 0, %v6415
        %v6418 = vcosq.f32.pop %v6416
        %v6419 = vsinq.f32.pop %v6416
        %vm6420 = vweird.f32 %v290
        %v6421 = vadd.s32 %v6417, 3
        %v6422 = vand.u32 %v6421, 3
        %vm6423 = vcmp.lt.s32.totalorder %v6422, 2
        %vm6424 = vcmp.eq.s32.totalorder %v6422, 0
        %v6425 = vxor.u32 %v6419, 2147483648
        %v6426 = vsel %vm6424, %v6418, %v6425
        %vm6427 = vcmp.eq.s32.totalorder %v6422, 2
        %v6428 = vxor.u32 %v6418, 2147483648
        %v6429 = vsel %vm6427, %v6428, %v6419
        %v6430 = vsel %vm6423, %v6426, %v6429
        %v6431 = vsel %vm6420, nan, %v6430
        %v6432 = vand.u32 2147483647, %v291
        %vm6433 = vcmp.le.f32.partialorder %v6432, 0.7853982
        %vm6434 = vcmp.lt.s32.totalorder %v291, 0
        %v6435 = vand.u32 %v291, 2139095040
        %v6436 = vshrl.u32 %v6435, 23
        %v6437 = vsub.s32 %v6436, 127
        %v6438 = vand.u32 2147483647, %v291
        %v6439 = vand.u32 %v6438, 8388607
        %v6440 = vor.u32 %v6439, 8388608
        %v6441 = vsub.s32 0, %v6440
        %v6442 = vadd.s32 %v6437, 1
        %vm6443 = vcmp.gt.s32.totalorder %v6442, 0
        %v6444 = vsel %vm6443, %v6442, 0
        %v6445 = vshrl.u32 %v6444, 5
        %v6446 = vand.u32 %v6444, 31
        %v6447 = vsub.s32 32, %v6446
        %v6448 = vshrl.u32 683565275, %v6447
        %v6449 = vshll.u32 683565275, %v6446
        %v6450 = vshrl.u32 2475754826, %v6447
        %v6451 = vor.u32 %v6449, %v6450
        %v6452 = vshll.u32 2475754826, %v6446
        %v6453 = vshrl.u32 2131351028, %v6447
        %v6454 = vor.u32 %v6452, %v6453
        %v6455 = vshll.u32 2131351028, %v6446
        %v6456 = vshrl.u32 2102212464, %v6447
        %v6457 = vor.u32 %v6455, %v6456
        %v6458 = vshll.u32 2102212464, %v6446
        %v6459 = vshrl.u32 920167782, %v6447
        %v6460 = vor.u32 %v6458, %v6459
        %v6461 = vshll.u32 920167782, %v6446
        %v6462 = vshrl.u32 1326507024, %v6447
        %v6463 = vor.u32 %v6461, %v6462
        %vm6464 = vcmp.lt.s32.totalorder %v6445, 1
        %vm6465 = vcmp.lt.s32.totalorder %v6445, 2
        %vm6466 = vcmp.lt.s32.totalorder %v6445, 3
        %vm6467 = vcmp.lt.s32.totalorder %v6445, 4
        %v6468 = vsel %vm6464, %v6448, %v6451
        %v6469 = vsel %vm6467, %v6457, 2102212464
        %v6470 = vsel %vm6466, %v6454, %v6469
        %v6471 = vsel %vm6465, %v6468, %v6470
        %v6472 = vsel %vm6464, %v6451, %v6454
        %v6473 = vsel %vm6467, %v6460, 920167782
        %v6474 = vsel %vm6466, %v6457, %v6473
        %v6475 = vsel %vm6465, %v6472, %v6474
        %v6476 = vsel %vm6464, %v6454, %v6457
        %v6477 = vsel %vm6467, %v6463, 1326507024
        %v6478 = vsel %vm6466, %v6460, %v6477
        %v6479 = vsel %vm6465, %v6476, %v6478
        %v6480 = vshll.u32 %v6440, 8
        %v6481 = vmul.u32.u64.compose %v6480, %v6479
        %v6482 = vextract.low.u32 %v6481
        %v6483 = vextract.high.u32 %v6481
        %v6484 = vmul.u32.u64.compose %v6480, %v6475
        %v6485 = vextract.low.u32 %v6484
        %v6486 = vextract.high.u32 %v6484
        %v6487 = vmul.u32 %v6480, %v6471
        %v6488 = vadd.s32 %v6483, %v6485
        %vm6489 = vc.u32 %v6483, %v6485
        %v6490 = vadd.s32 %v6486, 1
        %v6491 = vsel %vm6489, %v6490, %v6486
        %v6492 = vadd.s32 %v6487, %v6491
        %v6493 = vadd.s32 %v6492, 536870912
        %v6494 = vshrl.u32 %v6493, 30
        %v6495 = vshll.u32 %v6494, 30
        %v6496 = vsub.s32 %v6492, %v6495
        %vm6497 = vcmp.lt.s32.totalorder %v6496, 0
        %v6498 = vsub.s32 0, %v6496
        %v6499 = vsel %vm6497, %v6498, %v6496
        %v6500 = vclz %v6499
        %v6501 = vsub.s32 %v6500, 2
        %vm6502 = vcmp.gt.s32.totalorder 0, %v6501
        %v6503 = vsel %vm6502, 0, %v6501
        %v6504 = vsub.s32 32, %v6503
        %v6505 = vshll.u32 %v6496, %v6503
        %v6506 = vshrl.u32 %v6488, %v6504
        %v6507 = vor.u32 %v6505, %v6506
        %v6508 = vsub.s32 4294967266, %v6503
        %v6509 = vadd.s32 %v6508, 127
        %v6510 = vshll.u32 %v6509, 23
        %v6511 = vor.u32 4788187, %v6510
        %v6512 = vand.u32 2147483647, %v6511
        %v6514 = vcvt.s32.f32 %v6507
        %v6515 = vmul.f32 %v6514, %v6512
        %v6516 = vxor.u32 %v6515, 2147483648
        %v6517 = vsel %vm6434, %v6516, %v6515
        %v6518 = vsub.s32 4, %v6494
        %v6519 = vsel %vm6434, %v6518, %v6494
        %v6520 = vsel %vm6433, %v291, %v6517
        %v6521 = vsel %vm6433, 0, %v6519
        %v6522 = vcosq.f32.pop %v6520
        %v6523 = vsinq.f32.pop %v6520
        %vm6524 = vweird.f32 %v291
        %v6525 = vadd.s32 %v6521, 3
        %v6526 = vand.u32 %v6525, 3
        %vm6527 = vcmp.lt.s32.totalorder %v6526, 2
        %vm6528 = vcmp.eq.s32.totalorder %v6526, 0
        %v6529 = vxor.u32 %v6523, 2147483648
        %v6530 = vsel %vm6528, %v6522, %v6529
        %vm6531 = vcmp.eq.s32.totalorder %v6526, 2
        %v6532 = vxor.u32 %v6522, 2147483648
        %v6533 = vsel %vm6531, %v6532, %v6523
        %v6534 = vsel %vm6527, %v6530, %v6533
        %v6535 = vsel %vm6524, nan, %v6534
        %v6536 = vand.u32 2147483647, %v292
        %vm6537 = vcmp.le.f32.partialorder %v6536, 0.7853982
        %vm6538 = vcmp.lt.s32.totalorder %v292, 0
        %v6539 = vand.u32 %v292, 2139095040
        %v6540 = vshrl.u32 %v6539, 23
        %v6541 = vsub.s32 %v6540, 127
        %v6542 = vand.u32 2147483647, %v292
        %v6543 = vand.u32 %v6542, 8388607
        %v6544 = vor.u32 %v6543, 8388608
        %v6545 = vsub.s32 0, %v6544
        %v6546 = vadd.s32 %v6541, 1
        %vm6547 = vcmp.gt.s32.totalorder %v6546, 0
        %v6548 = vsel %vm6547, %v6546, 0
        %v6549 = vshrl.u32 %v6548, 5
        %v6550 = vand.u32 %v6548, 31
        %v6551 = vsub.s32 32, %v6550
        %v6552 = vshrl.u32 683565275, %v6551
        %v6553 = vshll.u32 683565275, %v6550
        %v6554 = vshrl.u32 2475754826, %v6551
        %v6555 = vor.u32 %v6553, %v6554
        %v6556 = vshll.u32 2475754826, %v6550
        %v6557 = vshrl.u32 2131351028, %v6551
        %v6558 = vor.u32 %v6556, %v6557
        %v6559 = vshll.u32 2131351028, %v6550
        %v6560 = vshrl.u32 2102212464, %v6551
        %v6561 = vor.u32 %v6559, %v6560
        %v6562 = vshll.u32 2102212464, %v6550
        %v6563 = vshrl.u32 920167782, %v6551
        %v6564 = vor.u32 %v6562, %v6563
        %v6565 = vshll.u32 920167782, %v6550
        %v6566 = vshrl.u32 1326507024, %v6551
        %v6567 = vor.u32 %v6565, %v6566
        %vm6568 = vcmp.lt.s32.totalorder %v6549, 1
        %vm6569 = vcmp.lt.s32.totalorder %v6549, 2
        %vm6570 = vcmp.lt.s32.totalorder %v6549, 3
        %vm6571 = vcmp.lt.s32.totalorder %v6549, 4
        %v6572 = vsel %vm6568, %v6552, %v6555
        %v6573 = vsel %vm6571, %v6561, 2102212464
        %v6574 = vsel %vm6570, %v6558, %v6573
        %v6575 = vsel %vm6569, %v6572, %v6574
        %v6576 = vsel %vm6568, %v6555, %v6558
        %v6577 = vsel %vm6571, %v6564, 920167782
        %v6578 = vsel %vm6570, %v6561, %v6577
        %v6579 = vsel %vm6569, %v6576, %v6578
        %v6580 = vsel %vm6568, %v6558, %v6561
        %v6581 = vsel %vm6571, %v6567, 1326507024
        %v6582 = vsel %vm6570, %v6564, %v6581
        %v6583 = vsel %vm6569, %v6580, %v6582
        %v6584 = vshll.u32 %v6544, 8
        %v6585 = vmul.u32.u64.compose %v6584, %v6583
        %v6586 = vextract.low.u32 %v6585
        %v6587 = vextract.high.u32 %v6585
        %v6588 = vmul.u32.u64.compose %v6584, %v6579
        %v6589 = vextract.low.u32 %v6588
        %v6590 = vextract.high.u32 %v6588
        %v6591 = vmul.u32 %v6584, %v6575
        %v6592 = vadd.s32 %v6587, %v6589
        %vm6593 = vc.u32 %v6587, %v6589
        %v6594 = vadd.s32 %v6590, 1
        %v6595 = vsel %vm6593, %v6594, %v6590
        %v6596 = vadd.s32 %v6591, %v6595
        %v6597 = vadd.s32 %v6596, 536870912
        %v6598 = vshrl.u32 %v6597, 30
        %v6599 = vshll.u32 %v6598, 30
        %v6600 = vsub.s32 %v6596, %v6599
        %vm6601 = vcmp.lt.s32.totalorder %v6600, 0
        %v6602 = vsub.s32 0, %v6600
        %v6603 = vsel %vm6601, %v6602, %v6600
        %v6604 = vclz %v6603
        %v6605 = vsub.s32 %v6604, 2
        %vm6606 = vcmp.gt.s32.totalorder 0, %v6605
        %v6607 = vsel %vm6606, 0, %v6605
        %v6608 = vsub.s32 32, %v6607
        %v6609 = vshll.u32 %v6600, %v6607
        %v6610 = vshrl.u32 %v6592, %v6608
        %v6611 = vor.u32 %v6609, %v6610
        %v6612 = vsub.s32 4294967266, %v6607
        %v6613 = vadd.s32 %v6612, 127
        %v6614 = vshll.u32 %v6613, 23
        %v6615 = vor.u32 4788187, %v6614
        %v6616 = vand.u32 2147483647, %v6615
        %v6618 = vcvt.s32.f32 %v6611
        %v6619 = vmul.f32 %v6618, %v6616
        %v6620 = vxor.u32 %v6619, 2147483648
        %v6621 = vsel %vm6538, %v6620, %v6619
        %v6622 = vsub.s32 4, %v6598
        %v6623 = vsel %vm6538, %v6622, %v6598
        %v6624 = vsel %vm6537, %v292, %v6621
        %v6625 = vsel %vm6537, 0, %v6623
        %v6626 = vcosq.f32.pop %v6624
        %v6627 = vsinq.f32.pop %v6624
        %vm6628 = vweird.f32 %v292
        %v6629 = vadd.s32 %v6625, 3
        %v6630 = vand.u32 %v6629, 3
        %vm6631 = vcmp.lt.s32.totalorder %v6630, 2
        %vm6632 = vcmp.eq.s32.totalorder %v6630, 0
        %v6633 = vxor.u32 %v6627, 2147483648
        %v6634 = vsel %vm6632, %v6626, %v6633
        %vm6635 = vcmp.eq.s32.totalorder %v6630, 2
        %v6636 = vxor.u32 %v6626, 2147483648
        %v6637 = vsel %vm6635, %v6636, %v6627
        %v6638 = vsel %vm6631, %v6634, %v6637
        %v6639 = vsel %vm6628, nan, %v6638
        %v6640 = vand.u32 2147483647, %v293
        %vm6641 = vcmp.le.f32.partialorder %v6640, 0.7853982
        %vm6642 = vcmp.lt.s32.totalorder %v293, 0
        %v6643 = vand.u32 %v293, 2139095040
        %v6644 = vshrl.u32 %v6643, 23
        %v6645 = vsub.s32 %v6644, 127
        %v6646 = vand.u32 2147483647, %v293
        %v6647 = vand.u32 %v6646, 8388607
        %v6648 = vor.u32 %v6647, 8388608
        %v6649 = vsub.s32 0, %v6648
        %v6650 = vadd.s32 %v6645, 1
        %vm6651 = vcmp.gt.s32.totalorder %v6650, 0
        %v6652 = vsel %vm6651, %v6650, 0
        %v6653 = vshrl.u32 %v6652, 5
        %v6654 = vand.u32 %v6652, 31
        %v6655 = vsub.s32 32, %v6654
        %v6656 = vshrl.u32 683565275, %v6655
        %v6657 = vshll.u32 683565275, %v6654
        %v6658 = vshrl.u32 2475754826, %v6655
        %v6659 = vor.u32 %v6657, %v6658
        %v6660 = vshll.u32 2475754826, %v6654
        %v6661 = vshrl.u32 2131351028, %v6655
        %v6662 = vor.u32 %v6660, %v6661
        %v6663 = vshll.u32 2131351028, %v6654
        %v6664 = vshrl.u32 2102212464, %v6655
        %v6665 = vor.u32 %v6663, %v6664
        %v6666 = vshll.u32 2102212464, %v6654
        %v6667 = vshrl.u32 920167782, %v6655
        %v6668 = vor.u32 %v6666, %v6667
        %v6669 = vshll.u32 920167782, %v6654
        %v6670 = vshrl.u32 1326507024, %v6655
        %v6671 = vor.u32 %v6669, %v6670
        %vm6672 = vcmp.lt.s32.totalorder %v6653, 1
        %vm6673 = vcmp.lt.s32.totalorder %v6653, 2
        %vm6674 = vcmp.lt.s32.totalorder %v6653, 3
        %vm6675 = vcmp.lt.s32.totalorder %v6653, 4
        %v6676 = vsel %vm6672, %v6656, %v6659
        %v6677 = vsel %vm6675, %v6665, 2102212464
        %v6678 = vsel %vm6674, %v6662, %v6677
        %v6679 = vsel %vm6673, %v6676, %v6678
        %v6680 = vsel %vm6672, %v6659, %v6662
        %v6681 = vsel %vm6675, %v6668, 920167782
        %v6682 = vsel %vm6674, %v6665, %v6681
        %v6683 = vsel %vm6673, %v6680, %v6682
        %v6684 = vsel %vm6672, %v6662, %v6665
        %v6685 = vsel %vm6675, %v6671, 1326507024
        %v6686 = vsel %vm6674, %v6668, %v6685
        %v6687 = vsel %vm6673, %v6684, %v6686
        %v6688 = vshll.u32 %v6648, 8
        %v6689 = vmul.u32.u64.compose %v6688, %v6687
        %v6690 = vextract.low.u32 %v6689
        %v6691 = vextract.high.u32 %v6689
        %v6692 = vmul.u32.u64.compose %v6688, %v6683
        %v6693 = vextract.low.u32 %v6692
        %v6694 = vextract.high.u32 %v6692
        %v6695 = vmul.u32 %v6688, %v6679
        %v6696 = vadd.s32 %v6691, %v6693
        %vm6697 = vc.u32 %v6691, %v6693
        %v6698 = vadd.s32 %v6694, 1
        %v6699 = vsel %vm6697, %v6698, %v6694
        %v6700 = vadd.s32 %v6695, %v6699
        %v6701 = vadd.s32 %v6700, 536870912
        %v6702 = vshrl.u32 %v6701, 30
        %v6703 = vshll.u32 %v6702, 30
        %v6704 = vsub.s32 %v6700, %v6703
        %vm6705 = vcmp.lt.s32.totalorder %v6704, 0
        %v6706 = vsub.s32 0, %v6704
        %v6707 = vsel %vm6705, %v6706, %v6704
        %v6708 = vclz %v6707
        %v6709 = vsub.s32 %v6708, 2
        %vm6710 = vcmp.gt.s32.totalorder 0, %v6709
        %v6711 = vsel %vm6710, 0, %v6709
        %v6712 = vsub.s32 32, %v6711
        %v6713 = vshll.u32 %v6704, %v6711
        %v6714 = vshrl.u32 %v6696, %v6712
        %v6715 = vor.u32 %v6713, %v6714
        %v6716 = vsub.s32 4294967266, %v6711
        %v6717 = vadd.s32 %v6716, 127
        %v6718 = vshll.u32 %v6717, 23
        %v6719 = vor.u32 4788187, %v6718
        %v6720 = vand.u32 2147483647, %v6719
        %v6722 = vcvt.s32.f32 %v6715
        %v6723 = vmul.f32 %v6722, %v6720
        %v6724 = vxor.u32 %v6723, 2147483648
        %v6725 = vsel %vm6642, %v6724, %v6723
        %v6726 = vsub.s32 4, %v6702
        %v6727 = vsel %vm6642, %v6726, %v6702
        %v6728 = vsel %vm6641, %v293, %v6725
        %v6729 = vsel %vm6641, 0, %v6727
        %v6730 = vcosq.f32.pop %v6728
        %v6731 = vsinq.f32.pop %v6728
        %vm6732 = vweird.f32 %v293
        %v6733 = vadd.s32 %v6729, 3
        %v6734 = vand.u32 %v6733, 3
        %vm6735 = vcmp.lt.s32.totalorder %v6734, 2
        %vm6736 = vcmp.eq.s32.totalorder %v6734, 0
        %v6737 = vxor.u32 %v6731, 2147483648
        %v6738 = vsel %vm6736, %v6730, %v6737
        %vm6739 = vcmp.eq.s32.totalorder %v6734, 2
        %v6740 = vxor.u32 %v6730, 2147483648
        %v6741 = vsel %vm6739, %v6740, %v6731
        %v6742 = vsel %vm6735, %v6738, %v6741
        %v6743 = vsel %vm6732, nan, %v6742
        %v6744 = vand.u32 2147483647, %v294
        %vm6745 = vcmp.le.f32.partialorder %v6744, 0.7853982
        %vm6746 = vcmp.lt.s32.totalorder %v294, 0
        %v6747 = vand.u32 %v294, 2139095040
        %v6748 = vshrl.u32 %v6747, 23
        %v6749 = vsub.s32 %v6748, 127
        %v6750 = vand.u32 2147483647, %v294
        %v6751 = vand.u32 %v6750, 8388607
        %v6752 = vor.u32 %v6751, 8388608
        %v6753 = vsub.s32 0, %v6752
        %v6754 = vadd.s32 %v6749, 1
        %vm6755 = vcmp.gt.s32.totalorder %v6754, 0
        %v6756 = vsel %vm6755, %v6754, 0
        %v6757 = vshrl.u32 %v6756, 5
        %v6758 = vand.u32 %v6756, 31
        %v6759 = vsub.s32 32, %v6758
        %v6760 = vshrl.u32 683565275, %v6759
        %v6761 = vshll.u32 683565275, %v6758
        %v6762 = vshrl.u32 2475754826, %v6759
        %v6763 = vor.u32 %v6761, %v6762
        %v6764 = vshll.u32 2475754826, %v6758
        %v6765 = vshrl.u32 2131351028, %v6759
        %v6766 = vor.u32 %v6764, %v6765
        %v6767 = vshll.u32 2131351028, %v6758
        %v6768 = vshrl.u32 2102212464, %v6759
        %v6769 = vor.u32 %v6767, %v6768
        %v6770 = vshll.u32 2102212464, %v6758
        %v6771 = vshrl.u32 920167782, %v6759
        %v6772 = vor.u32 %v6770, %v6771
        %v6773 = vshll.u32 920167782, %v6758
        %v6774 = vshrl.u32 1326507024, %v6759
        %v6775 = vor.u32 %v6773, %v6774
        %vm6776 = vcmp.lt.s32.totalorder %v6757, 1
        %vm6777 = vcmp.lt.s32.totalorder %v6757, 2
        %vm6778 = vcmp.lt.s32.totalorder %v6757, 3
        %vm6779 = vcmp.lt.s32.totalorder %v6757, 4
        %v6780 = vsel %vm6776, %v6760, %v6763
        %v6781 = vsel %vm6779, %v6769, 2102212464
        %v6782 = vsel %vm6778, %v6766, %v6781
        %v6783 = vsel %vm6777, %v6780, %v6782
        %v6784 = vsel %vm6776, %v6763, %v6766
        %v6785 = vsel %vm6779, %v6772, 920167782
        %v6786 = vsel %vm6778, %v6769, %v6785
        %v6787 = vsel %vm6777, %v6784, %v6786
        %v6788 = vsel %vm6776, %v6766, %v6769
        %v6789 = vsel %vm6779, %v6775, 1326507024
        %v6790 = vsel %vm6778, %v6772, %v6789
        %v6791 = vsel %vm6777, %v6788, %v6790
        %v6792 = vshll.u32 %v6752, 8
        %v6793 = vmul.u32.u64.compose %v6792, %v6791
        %v6794 = vextract.low.u32 %v6793
        %v6795 = vextract.high.u32 %v6793
        %v6796 = vmul.u32.u64.compose %v6792, %v6787
        %v6797 = vextract.low.u32 %v6796
        %v6798 = vextract.high.u32 %v6796
        %v6799 = vmul.u32 %v6792, %v6783
        %v6800 = vadd.s32 %v6795, %v6797
        %vm6801 = vc.u32 %v6795, %v6797
        %v6802 = vadd.s32 %v6798, 1
        %v6803 = vsel %vm6801, %v6802, %v6798
        %v6804 = vadd.s32 %v6799, %v6803
        %v6805 = vadd.s32 %v6804, 536870912
        %v6806 = vshrl.u32 %v6805, 30
        %v6807 = vshll.u32 %v6806, 30
        %v6808 = vsub.s32 %v6804, %v6807
        %vm6809 = vcmp.lt.s32.totalorder %v6808, 0
        %v6810 = vsub.s32 0, %v6808
        %v6811 = vsel %vm6809, %v6810, %v6808
        %v6812 = vclz %v6811
        %v6813 = vsub.s32 %v6812, 2
        %vm6814 = vcmp.gt.s32.totalorder 0, %v6813
        %v6815 = vsel %vm6814, 0, %v6813
        %v6816 = vsub.s32 32, %v6815
        %v6817 = vshll.u32 %v6808, %v6815
        %v6818 = vshrl.u32 %v6800, %v6816
        %v6819 = vor.u32 %v6817, %v6818
        %v6820 = vsub.s32 4294967266, %v6815
        %v6821 = vadd.s32 %v6820, 127
        %v6822 = vshll.u32 %v6821, 23
        %v6823 = vor.u32 4788187, %v6822
        %v6824 = vand.u32 2147483647, %v6823
        %v6826 = vcvt.s32.f32 %v6819
        %v6827 = vmul.f32 %v6826, %v6824
        %v6828 = vxor.u32 %v6827, 2147483648
        %v6829 = vsel %vm6746, %v6828, %v6827
        %v6830 = vsub.s32 4, %v6806
        %v6831 = vsel %vm6746, %v6830, %v6806
        %v6832 = vsel %vm6745, %v294, %v6829
        %v6833 = vsel %vm6745, 0, %v6831
        %v6834 = vcosq.f32.pop %v6832
        %v6835 = vsinq.f32.pop %v6832
        %vm6836 = vweird.f32 %v294
        %v6837 = vadd.s32 %v6833, 3
        %v6838 = vand.u32 %v6837, 3
        %vm6839 = vcmp.lt.s32.totalorder %v6838, 2
        %vm6840 = vcmp.eq.s32.totalorder %v6838, 0
        %v6841 = vxor.u32 %v6835, 2147483648
        %v6842 = vsel %vm6840, %v6834, %v6841
        %vm6843 = vcmp.eq.s32.totalorder %v6838, 2
        %v6844 = vxor.u32 %v6834, 2147483648
        %v6845 = vsel %vm6843, %v6844, %v6835
        %v6846 = vsel %vm6839, %v6842, %v6845
        %v6847 = vsel %vm6836, nan, %v6846
        %v6848 = vand.u32 2147483647, %v295
        %vm6849 = vcmp.le.f32.partialorder %v6848, 0.7853982
        %vm6850 = vcmp.lt.s32.totalorder %v295, 0
        %v6851 = vand.u32 %v295, 2139095040
        %v6852 = vshrl.u32 %v6851, 23
        %v6853 = vsub.s32 %v6852, 127
        %v6854 = vand.u32 2147483647, %v295
        %v6855 = vand.u32 %v6854, 8388607
        %v6856 = vor.u32 %v6855, 8388608
        %v6857 = vsub.s32 0, %v6856
        %v6858 = vadd.s32 %v6853, 1
        %vm6859 = vcmp.gt.s32.totalorder %v6858, 0
        %v6860 = vsel %vm6859, %v6858, 0
        %v6861 = vshrl.u32 %v6860, 5
        %v6862 = vand.u32 %v6860, 31
        %v6863 = vsub.s32 32, %v6862
        %v6864 = vshrl.u32 683565275, %v6863
        %v6865 = vshll.u32 683565275, %v6862
        %v6866 = vshrl.u32 2475754826, %v6863
        %v6867 = vor.u32 %v6865, %v6866
        %v6868 = vshll.u32 2475754826, %v6862
        %v6869 = vshrl.u32 2131351028, %v6863
        %v6870 = vor.u32 %v6868, %v6869
        %v6871 = vshll.u32 2131351028, %v6862
        %v6872 = vshrl.u32 2102212464, %v6863
        %v6873 = vor.u32 %v6871, %v6872
        %v6874 = vshll.u32 2102212464, %v6862
        %v6875 = vshrl.u32 920167782, %v6863
        %v6876 = vor.u32 %v6874, %v6875
        %v6877 = vshll.u32 920167782, %v6862
        %v6878 = vshrl.u32 1326507024, %v6863
        %v6879 = vor.u32 %v6877, %v6878
        %vm6880 = vcmp.lt.s32.totalorder %v6861, 1
        %vm6881 = vcmp.lt.s32.totalorder %v6861, 2
        %vm6882 = vcmp.lt.s32.totalorder %v6861, 3
        %vm6883 = vcmp.lt.s32.totalorder %v6861, 4
        %v6884 = vsel %vm6880, %v6864, %v6867
        %v6885 = vsel %vm6883, %v6873, 2102212464
        %v6886 = vsel %vm6882, %v6870, %v6885
        %v6887 = vsel %vm6881, %v6884, %v6886
        %v6888 = vsel %vm6880, %v6867, %v6870
        %v6889 = vsel %vm6883, %v6876, 920167782
        %v6890 = vsel %vm6882, %v6873, %v6889
        %v6891 = vsel %vm6881, %v6888, %v6890
        %v6892 = vsel %vm6880, %v6870, %v6873
        %v6893 = vsel %vm6883, %v6879, 1326507024
        %v6894 = vsel %vm6882, %v6876, %v6893
        %v6895 = vsel %vm6881, %v6892, %v6894
        %v6896 = vshll.u32 %v6856, 8
        %v6897 = vmul.u32.u64.compose %v6896, %v6895
        %v6898 = vextract.low.u32 %v6897
        %v6899 = vextract.high.u32 %v6897
        %v6900 = vmul.u32.u64.compose %v6896, %v6891
        %v6901 = vextract.low.u32 %v6900
        %v6902 = vextract.high.u32 %v6900
        %v6903 = vmul.u32 %v6896, %v6887
        %v6904 = vadd.s32 %v6899, %v6901
        %vm6905 = vc.u32 %v6899, %v6901
        %v6906 = vadd.s32 %v6902, 1
        %v6907 = vsel %vm6905, %v6906, %v6902
        %v6908 = vadd.s32 %v6903, %v6907
        %v6909 = vadd.s32 %v6908, 536870912
        %v6910 = vshrl.u32 %v6909, 30
        %v6911 = vshll.u32 %v6910, 30
        %v6912 = vsub.s32 %v6908, %v6911
        %vm6913 = vcmp.lt.s32.totalorder %v6912, 0
        %v6914 = vsub.s32 0, %v6912
        %v6915 = vsel %vm6913, %v6914, %v6912
        %v6916 = vclz %v6915
        %v6917 = vsub.s32 %v6916, 2
        %vm6918 = vcmp.gt.s32.totalorder 0, %v6917
        %v6919 = vsel %vm6918, 0, %v6917
        %v6920 = vsub.s32 32, %v6919
        %v6921 = vshll.u32 %v6912, %v6919
        %v6922 = vshrl.u32 %v6904, %v6920
        %v6923 = vor.u32 %v6921, %v6922
        %v6924 = vsub.s32 4294967266, %v6919
        %v6925 = vadd.s32 %v6924, 127
        %v6926 = vshll.u32 %v6925, 23
        %v6927 = vor.u32 4788187, %v6926
        %v6928 = vand.u32 2147483647, %v6927
        %v6930 = vcvt.s32.f32 %v6923
        %v6931 = vmul.f32 %v6930, %v6928
        %v6932 = vxor.u32 %v6931, 2147483648
        %v6933 = vsel %vm6850, %v6932, %v6931
        %v6934 = vsub.s32 4, %v6910
        %v6935 = vsel %vm6850, %v6934, %v6910
        %v6936 = vsel %vm6849, %v295, %v6933
        %v6937 = vsel %vm6849, 0, %v6935
        %v6938 = vcosq.f32.pop %v6936
        %v6939 = vsinq.f32.pop %v6936
        %vm6940 = vweird.f32 %v295
        %v6941 = vadd.s32 %v6937, 3
        %v6942 = vand.u32 %v6941, 3
        %vm6943 = vcmp.lt.s32.totalorder %v6942, 2
        %vm6944 = vcmp.eq.s32.totalorder %v6942, 0
        %v6945 = vxor.u32 %v6939, 2147483648
        %v6946 = vsel %vm6944, %v6938, %v6945
        %vm6947 = vcmp.eq.s32.totalorder %v6942, 2
        %v6948 = vxor.u32 %v6938, 2147483648
        %v6949 = vsel %vm6947, %v6948, %v6939
        %v6950 = vsel %vm6943, %v6946, %v6949
        %v6951 = vsel %vm6940, nan, %v6950
        %6952 = vst [vmem:[%s163] sm:$0xff] %v399
        %6953 = vst [vmem:[%s163 + $0x8] sm:$0xff] %v503
        %6954 = vst [vmem:[%s163 + $0x10] sm:$0xff] %v607
        %6955 = vst [vmem:[%s163 + $0x18] sm:$0xff] %v711
        %6956 = vst [vmem:[%s163 + $0x20] sm:$0xff] %v815
        %6957 = vst [vmem:[%s163 + $0x28] sm:$0xff] %v919
        %6958 = vst [vmem:[%s163 + $0x30] sm:$0xff] %v1023
        %6959 = vst [vmem:[%s163 + $0x38] sm:$0xff] %v1127
        %6960 = vst [vmem:[%s163 + $0x40] sm:$0xff] %v1231
        %6961 = vst [vmem:[%s163 + $0x48] sm:$0xff] %v1335
        %6962 = vst [vmem:[%s163 + $0x50] sm:$0xff] %v1439
        %6963 = vst [vmem:[%s163 + $0x58] sm:$0xff] %v1543
        %6964 = vst [vmem:[%s163 + $0x60] sm:$0xff] %v1647
        %6965 = vst [vmem:[%s163 + $0x68] sm:$0xff] %v1751
        %6966 = vst [vmem:[%s163 + $0x70] sm:$0xff] %v1855
        %6967 = vst [vmem:[%s163 + $0x78] sm:$0xff] %v1959
        %6968 = vst [vmem:[%s163 + $0x80] sm:$0xff] %v2063
        %6969 = vst [vmem:[%s163 + $0x88] sm:$0xff] %v2167
        %6970 = vst [vmem:[%s163 + $0x90] sm:$0xff] %v2271
        %6971 = vst [vmem:[%s163 + $0x98] sm:$0xff] %v2375
        %6972 = vst [vmem:[%s163 + $0xa0] sm:$0xff] %v2479
        %6973 = vst [vmem:[%s163 + $0xa8] sm:$0xff] %v2583
        %6974 = vst [vmem:[%s163 + $0xb0] sm:$0xff] %v2687
        %6975 = vst [vmem:[%s163 + $0xb8] sm:$0xff] %v2791
        %6976 = vst [vmem:[%s163 + $0xc0] sm:$0xff] %v2895
        %6977 = vst [vmem:[%s163 + $0xc8] sm:$0xff] %v2999
        %6978 = vst [vmem:[%s163 + $0xd0] sm:$0xff] %v3103
        %6979 = vst [vmem:[%s163 + $0xd8] sm:$0xff] %v3207
        %6980 = vst [vmem:[%s163 + $0xe0] sm:$0xff] %v3311
        %6981 = vst [vmem:[%s163 + $0xe8] sm:$0xff] %v3415
        %6982 = vst [vmem:[%s163 + $0xf0] sm:$0xff] %v3519
        %6983 = vst [vmem:[%s163 + $0xf8] sm:$0xff] %v3623
        %6984 = vst [vmem:[%s163 + $0x100] sm:$0xff] %v3727
        %6985 = vst [vmem:[%s163 + $0x108] sm:$0xff] %v3831
        %6986 = vst [vmem:[%s163 + $0x110] sm:$0xff] %v3935
        %6987 = vst [vmem:[%s163 + $0x118] sm:$0xff] %v4039
        %6988 = vst [vmem:[%s163 + $0x120] sm:$0xff] %v4143
        %6989 = vst [vmem:[%s163 + $0x128] sm:$0xff] %v4247
        %6990 = vst [vmem:[%s163 + $0x130] sm:$0xff] %v4351
        %6991 = vst [vmem:[%s163 + $0x138] sm:$0xff] %v4455
        %6992 = vst [vmem:[%s163 + $0x140] sm:$0xff] %v4559
        %6993 = vst [vmem:[%s163 + $0x148] sm:$0xff] %v4663
        %6994 = vst [vmem:[%s163 + $0x150] sm:$0xff] %v4767
        %6995 = vst [vmem:[%s163 + $0x158] sm:$0xff] %v4871
        %6996 = vst [vmem:[%s163 + $0x160] sm:$0xff] %v4975
        %6997 = vst [vmem:[%s163 + $0x168] sm:$0xff] %v5079
        %6998 = vst [vmem:[%s163 + $0x170] sm:$0xff] %v5183
        %6999 = vst [vmem:[%s163 + $0x178] sm:$0xff] %v5287
        %7000 = vst [vmem:[%s163 + $0x180] sm:$0xff] %v5391
        %7001 = vst [vmem:[%s163 + $0x188] sm:$0xff] %v5495
        %7002 = vst [vmem:[%s163 + $0x190] sm:$0xff] %v5599
        %7003 = vst [vmem:[%s163 + $0x198] sm:$0xff] %v5703
        %7004 = vst [vmem:[%s163 + $0x1a0] sm:$0xff] %v5807
        %7005 = vst [vmem:[%s163 + $0x1a8] sm:$0xff] %v5911
        %7006 = vst [vmem:[%s163 + $0x1b0] sm:$0xff] %v6015
        %7007 = vst [vmem:[%s163 + $0x1b8] sm:$0xff] %v6119
        %7008 = vst [vmem:[%s163 + $0x1c0] sm:$0xff] %v6223
        %7009 = vst [vmem:[%s163 + $0x1c8] sm:$0xff] %v6327
        %7010 = vst [vmem:[%s163 + $0x1d0] sm:$0xff] %v6431
        %7011 = vst [vmem:[%s163 + $0x1d8] sm:$0xff] %v6535
        %7012 = vst [vmem:[%s163 + $0x1e0] sm:$0xff] %v6639
        %7013 = vst [vmem:[%s163 + $0x1e8] sm:$0xff] %v6743
        %7014 = vst [vmem:[%s163 + $0x1f0] sm:$0xff] %v6847
        %7015 = vst [vmem:[%s163 + $0x1f8] sm:$0xff] %v6951
        %s7016 = sand.u32 %s75, 1
        %s7017 = scalar_lea.sflag [#allocation5], %s7016
        %s7018 = sand.u32 %s75, 1
        %s7019 = smul.addr %s7018, 512
        %s7020 = scalar_lea.vmem [#allocation6], %s7019
        // Predicated region
        $region33: #{tpu_custom_call.1} parent=27 // pred_check
          %p7021 = pneg %p85
        $region34: #{tpu_custom_call.1} parent=27 // pred_check_branch
          %7023 = sbr.rel (%p7021) target = $region36
        $region35: #{tpu_custom_call.1} parent=27 // pred_region
          %s7024 = smul.u32 8, %s20
          %s7026 = ssub.s32 8192, 8192
          %7027 = vsyncadd %s7017, %s7026
          %s7028 = smul.addr %s7024, 8
          %s7029 = smul.addr %s7028, 128
          %s7030 = scalar_lea.hbm %s2, %s7029
          %s7031 = sshll.u32 %s7020, 4
          %s7032 = int_to_ptr.vmem [resolvable:$true] %s7031
          %7037 = dma.vmem_to_hbm [thread:$0]  %s7032, 8192, %s7030, %s7017, 1024, 1024, 64
        $region36: #{tpu_custom_call.1} parent=27 // pred_fallthru
          _
      $region28: #{tpu_custom_call.1} parent=5 // pred_fallthru
        _
      %p7038 = scmp.le.s32.totalorder 2, %s15
      // Predicated region
      $region37: #{tpu_custom_call.1} parent=5 // pred_check
        %p7039 = pneg %p7038
      $region38: #{tpu_custom_call.1} parent=5 // pred_check_branch
        %7041 = sbr.rel (%p7039) target = $region40
      $region39: #{tpu_custom_call.1} parent=5 // pred_region
        %s7042 = ssub.s32 %s15, 2
        // Predicated region
        $region41: #{tpu_custom_call.1} parent=39 // pred_check
          %p7043 = pneg %p91
        $region42: #{tpu_custom_call.1} parent=39 // pred_check_branch
          %7045 = sbr.rel (%p7043) target = $region44
        $region43: #{tpu_custom_call.1} parent=39 // pred_region
          %s7046 = sand.u32 %s76, 1
          %s7047 = scalar_lea.sflag [#allocation5], %s7046
          %s7048 = sand.u32 %s76, 1
          %s7049 = smul.addr %s7048, 512
          %s7050 = scalar_lea.vmem [#allocation6], %s7049
          %7051 = dma.done %s7047, 8192
        $region44: #{tpu_custom_call.1} parent=39 // pred_fallthru
          _
      $region40: #{tpu_custom_call.1} parent=5 // pred_fallthru
        _
    $region6: #{tpu_custom_call.1} parent=1 // loop_footer
      %s19 = sadd.s32 1, %s15
    $region7: #{tpu_custom_call.1} parent=1 // loop_footer_branch
      %14 = sbr.rel target = $region3
    $region8: #{tpu_custom_call.1} parent=1 // loop_exit
      _
    %7052 = vsyncpa [#allocation4], 1
    %s7053 = scalar_lea.sflag [#allocation4], 1
    %7054 = vsyncpa %s7053, 1
    %7055 = vsyncpa [#allocation5], 1
    %s7056 = scalar_lea.sflag [#allocation5], 1
    %7057 = vsyncpa %s7056, 1

</llo_original>
